<compile_context>
chip_gen: v6e
topology: v6e:2x2x1
jax: 0.10.0
libtpu: 0.0.40
codegen_flags: <defaults>
</compile_context>

<pallas_src>
import functools

import jax
import jax.numpy as jnp
from jax.experimental import pallas as pl
from jax.experimental.pallas import tpu as pltpu

_LANE = 128


def _round_up(x, m):
    return -(-x // m) * m


# ---------------------------------------------------------------------------
# Pallas kernels
# ---------------------------------------------------------------------------
def _initial_kernel(a_ref, b_ref, c_ref, s_ref, q_ref):
    """(Mpad, Kpad) @ (Kpad, Npad) with per-column sum / sum-of-squares."""
    acc = jnp.dot(a_ref[...], b_ref[...], preferred_element_type=jnp.float32)
    c_ref[...] = acc.astype(jnp.bfloat16)
    s_ref[...] = jnp.sum(acc, axis=0, keepdims=True)
    q_ref[...] = jnp.sum(acc * acc, axis=0, keepdims=True)


def _make_convt_kernel(hc, ww, cpad, final, out_dtype):
    """Fused ConvTranspose2d(k=4, s=2, p=1) kernel.

    One grid step = one (batch element, row-chunk).  The padded NHWC input
    block (1, H+2, W+2, Cin) is VMEM-resident; for every coarse row the 3x3
    neighbourhood taps are gathered in VMEM and the 4 output phases are
    computed with 16 small MXU matmuls accumulated in f32.  Pyramid layers
    also accumulate BatchNorm sum / sum^2 from the f32 accumulator.
    """

    def kernel(xp_ref, b_ref, out_ref, *stat_refs):
        if not final:
            s_ref, q_ref = stat_refs
            s_ref[...] = jnp.zeros_like(s_ref)
            q_ref[...] = jnp.zeros_like(q_ref)
        h0 = pl.program_id(1) * hc

        @pl.loop(0, hc)
        def _row(h):
            hg = h0 + h
            # 3x3 neighbourhood taps of this coarse row, each (W, Cin).
            taps = [
                [xp_ref[0, pl.ds(hg + dy, 1), pl.ds(dx, ww)][0] for dx in range(3)]
                for dy in range(3)
            ]
            for py in (0, 1):
                for px in (0, 1):
                    p = py * 2 + px
                    acc = jnp.zeros((ww, cpad), jnp.float32)
                    for ty in (0, 1):
                        for tx in (0, 1):
                            acc = acc + jnp.dot(
                                taps[py + ty][px + tx],
                                b_ref[p * 4 + ty * 2 + tx],
                                preferred_element_type=jnp.float32,
                            )
                    if final:
                        res = jnp.tanh(acc)
                    else:
                        res = acc
                        s_ref[0, 0] += jnp.sum(acc, axis=0, keepdims=True)
                        q_ref[0, 0] += jnp.sum(acc * acc, axis=0, keepdims=True)
                    out_ref[0, pl.ds(h, 1), :, pl.ds(p * cpad, cpad)] = (
                        res.astype(out_dtype)[None]
                    )

    return kernel


# ---------------------------------------------------------------------------
# pallas_call wrappers
# ---------------------------------------------------------------------------
def _convt_call(xp, wstack, *, final):
    """xp: (N, H+2, W+2, Cin) bf16, wstack: (16, Cin, Cpad) bf16."""
    n, hp, wp, _ = xp.shape
    hh, ww = hp - 2, wp - 2
    cpad = wstack.shape[-1]
    r = 2 if (hh >= 8 and hh % 2 == 0) else 1   # extra parallel steps (megacore)
    hc = hh // r
    out_dtype = jnp.float32 if final else jnp.bfloat16
    kernel = _make_convt_kernel(hc, ww, cpad, final, out_dtype)

    in_specs = [
        pl.BlockSpec((1, hp, wp, xp.shape[-1]), lambda i, j: (i, 0, 0, 0)),
        pl.BlockSpec(wstack.shape, lambda i, j: (0, 0, 0)),
    ]
    cp = pltpu.CompilerParams(dimension_semantics=("parallel", "parallel"))

    if final:
        return pl.pallas_call(
            kernel,
            grid=(n, r),
            in_specs=in_specs,
            out_specs=pl.BlockSpec((1, hc, ww, 4 * cpad), lambda i, j: (i, j, 0, 0)),
            out_shape=jax.ShapeDtypeStruct((n, hh, ww, 4 * cpad), out_dtype),
            compiler_params=cp,
        )(xp, wstack)

    return pl.pallas_call(
        kernel,
        grid=(n, r),
        in_specs=in_specs,
        out_specs=(
            pl.BlockSpec((1, hc, ww, 4 * cpad), lambda i, j: (i, j, 0, 0)),
            pl.BlockSpec((1, 1, 1, cpad), lambda i, j: (i, j, 0, 0)),
            pl.BlockSpec((1, 1, 1, cpad), lambda i, j: (i, j, 0, 0)),
        ),
        out_shape=(
            jax.ShapeDtypeStruct((n, hh, ww, 4 * cpad), out_dtype),
            jax.ShapeDtypeStruct((n, r, 1, cpad), jnp.float32),
            jax.ShapeDtypeStruct((n, r, 1, cpad), jnp.float32),
        ),
        compiler_params=cp,
    )(xp, wstack)


# ---------------------------------------------------------------------------
# Layers (XLA glue around the kernels is elementwise / copy-fusion only)
# ---------------------------------------------------------------------------
def _bn_scale_shift(ch_sum, ch_ssq, count, gamma, beta):
    mean = ch_sum / count
    var = jnp.maximum(ch_ssq / count - mean * mean, 0.0)   # clamp: cancellation
    scale = gamma * jax.lax.rsqrt(var + 1e-5)
    shift = beta - mean * scale
    return scale, shift


def _initial_layer(z, p, cout):
    # ConvTranspose2d(nz, cngf, 4, 1, 0) on 1x1 input == (N,nz)@(nz,16*cngf).
    n = z.shape[0]
    b = p["b"]                                   # (Kpad, Npad) bf16, cols (kh,kw,co)
    kpad, npad = b.shape
    a = z.reshape(n, -1).astype(jnp.bfloat16)
    mpad = _round_up(n, 8)
    a = jnp.pad(a, ((0, mpad - n), (0, kpad - a.shape[1])))
    c, s, q = pl.pallas_call(
        _initial_kernel,
        out_shape=(
            jax.ShapeDtypeStruct((mpad, npad), jnp.bfloat16),
            jax.ShapeDtypeStruct((1, npad), jnp.float32),
            jax.ShapeDtypeStruct((1, npad), jnp.float32),
        ),
    )(a, b)
    ncols = 16 * cout
    ch_sum = s[0, :ncols].reshape(16, cout).sum(axis=0)
    ch_ssq = q[0, :ncols].reshape(16, cout).sum(axis=0)
    scale, shift = _bn_scale_shift(ch_sum, ch_ssq, float(n * 16),
                                   p["gamma"], p["beta"])
    y = c[:n, :ncols].astype(jnp.float32).reshape(n, 4, 4, cout)
    y = jnp.maximum(y * scale + shift, 0.0).astype(jnp.bfloat16)
    # zero-pad border for the next layer's in-kernel tap gather
    return jnp.pad(y, ((0, 0), (1, 1), (1, 1), (0, 0)))


def _pyramid_layer(xp, p, cout):
    # ConvTranspose2d(cin, cout, 4, 2, 1) + BN(batch stats) + ReLU
    n, hp, wp, _ = xp.shape
    hh, ww = hp - 2, wp - 2
    cpad = p["w"].shape[-1]
    out4, s, q = _convt_call(xp, p["w"], final=False)
    ch_sum = jnp.sum(s, axis=(0, 1))[0, :cout]
    ch_ssq = jnp.sum(q, axis=(0, 1))[0, :cout]
    count = float(n * 4 * hh * ww)
    scale, shift = _bn_scale_shift(ch_sum, ch_ssq, count, p["gamma"], p["beta"])
    # (N,H,W,4*Cpad) -> (N,H,W,py,px,C); BN+ReLU fuses with the interleave+pad
    y = out4.reshape(n, hh, ww, 2, 2, cpad)[..., :cout].astype(jnp.float32)
    y = jnp.maximum(y * scale + shift, 0.0).astype(jnp.bfloat16)
    y = y.transpose(0, 1, 3, 2, 4, 5).reshape(n, 2 * hh, 2 * ww, cout)
    return jnp.pad(y, ((0, 0), (1, 1), (1, 1), (0, 0)))


def _final_layer(xp, p, cout):
    # ConvTranspose2d(cin, nc, 4, 2, 1) + Tanh (tanh fused in-kernel)
    n, hp, wp, _ = xp.shape
    hh, ww = hp - 2, wp - 2
    cpad = p["w"].shape[-1]
    out4 = _convt_call(xp, p["w"], final=True)               # f32, tanh applied
    y = out4.reshape(n, hh, ww, 2, 2, cpad)[..., :cout]
    y = y.transpose(0, 1, 3, 2, 4, 5).reshape(n, 2 * hh, 2 * ww, cout)
    return y.transpose(0, 3, 1, 2)                           # NHWC -> NCHW


def wgan_generator_forward(z, params, meta):
    """z: (N, nz, 1, 1) NCHW; returns (N, nc, imageSize, imageSize) NCHW f32."""
    x = None
    for p, (kind, cout) in zip(params, meta):
        if kind == "initial":
            x = _initial_layer(z, p, cout)
        elif kind == "pyramid":
            x = _pyramid_layer(x, p, cout)
        else:
            x = _final_layer(x, p, cout)
    return x


# ---------------------------------------------------------------------------
# Parameter construction / one-time weight preprocessing
# ---------------------------------------------------------------------------
def init_params(key, image_size, nc, ngf, input_features, n_extra_layers=0):
    assert image_size % 16 == 0, "imageSize has to be a multiple of 16"
    # TODO(synk): n_extra_layers > 0 (plain 3x3 Conv2d blocks) not implemented.
    assert n_extra_layers == 0
    cngf, tisize = ngf // 2, 4
    while tisize != image_size:
        cngf, tisize = cngf * 2, tisize * 2
    layers = []
    key, k = jax.random.split(key)
    layers.append(("initial",
                   0.02 * jax.random.normal(k, (input_features, cngf, 4, 4), jnp.float32),
                   jnp.ones((cngf,), jnp.float32), jnp.zeros((cngf,), jnp.float32)))
    csize = 4
    while csize < image_size // 2:
        key, k = jax.random.split(key)
        layers.append(("pyramid",
                       0.02 * jax.random.normal(k, (cngf, cngf // 2, 4, 4), jnp.float32),
                       jnp.ones((cngf // 2,), jnp.float32),
                       jnp.zeros((cngf // 2,), jnp.float32)))
        cngf, csize = cngf // 2, csize * 2
    key, k = jax.random.split(key)
    layers.append(("final",
                   0.02 * jax.random.normal(k, (cngf, nc, 4, 4), jnp.float32),
                   None, None))
    return layers


def prepare_params(layers):
    """Hoisted weight preprocessing: bf16, phase/tap-reordered, lane-padded."""
    params, meta = [], []
    for kind, w, gamma, beta in layers:
        cin, cout = w.shape[0], w.shape[1]
        if kind == "initial":
            b = w.transpose(0, 2, 3, 1).reshape(cin, 16 * cout)   # cols (kh,kw,co)
            kpad = _round_up(cin, _LANE)
            npad = _round_up(16 * cout, _LANE)
            b = jnp.pad(b, ((0, kpad - cin), (0, npad - 16 * cout))).astype(jnp.bfloat16)
            params.append(dict(b=b, gamma=gamma, beta=beta))
        else:
            cpad = _round_up(cout, _LANE)
            mats = []
            # index order must match the kernel: ((py*2+px)*2+ty)*2+tx
            for py in (0, 1):
                for px in (0, 1):
                    for ty in (0, 1):
                        for tx in (0, 1):
                            m = w[:, :, 3 - py - 2 * ty, 3 - px - 2 * tx]
                            mats.append(jnp.pad(m, ((0, 0), (0, cpad - cout))))
            wstack = jnp.stack(mats, axis=0).astype(jnp.bfloat16)  # (16,Cin,Cpad)
            if kind == "pyramid":
                params.append(dict(w=wstack, gamma=gamma, beta=beta))
            else:
                params.append(dict(w=wstack))
        meta.append((kind, cout))
    return params, tuple(meta)


# ---------------------------------------------------------------------------
# Pure-JAX f32 reference (correctness self-check)
# ---------------------------------------------------------------------------
def _ref_convt(x, w, stride, padding):
    n, cin, h, wd_ = x.shape
    _, cout, k, _ = w.shape
    hd, wd = (h - 1) * stride + 1, (wd_ - 1) * stride + 1
    xd = jnp.zeros((n, cin, hd, wd), jnp.float32).at[:, :, ::stride, ::stride].set(x)
    pad = k - 1 - padding
    xp = jnp.pad(xd, ((0, 0), (0, 0), (pad, pad), (pad, pad)))
    oh, ow = hd + 2 * pad - k + 1, wd + 2 * pad - k + 1
    wf = w[:, :, ::-1, ::-1].astype(jnp.float32)
    out = jnp.zeros((n, cout, oh, ow), jnp.float32)
    for kh in range(k):
        for kw in range(k):
            out = out + jnp.einsum('ncij,cd->ndij',
                                   xp[:, :, kh:kh + oh, kw:kw + ow], wf[:, :, kh, kw])
    return out


def _reference_forward(z, layers):
    x = z.astype(jnp.float32)
    for kind, w, gamma, beta in layers:
        stride, padding = (1, 0) if kind == "initial" else (2, 1)
        x = _ref_convt(x, w, stride, padding)
        if kind == "final":
            x = jnp.tanh(x)
        else:
            mean = x.mean(axis=(0, 2, 3), keepdims=True)
            var = ((x - mean) ** 2).mean(axis=(0, 2, 3), keepdims=True)
            x = (x - mean) * jax.lax.rsqrt(var + 1e-5)
            x = x * gamma.reshape(1, -1, 1, 1) + beta.reshape(1, -1, 1, 1)
            x = jnp.maximum(x, 0.0)
    return x


# ---------------------------------------------------------------------------
if __name__ == "__main__":
    image_size, nc, ngf, nz, batch = 32, 3, 32, 100, 2
    key = jax.random.PRNGKey(0)
    key, kz = jax.random.split(key)
    z = jax.random.normal(kz, (batch, nz, 1, 1), jnp.float32)

    layers = init_params(key, image_size, nc, ngf, nz)
    params, meta = prepare_params(layers)

    fwd = jax.jit(functools.partial(wgan_generator_forward, meta=meta))
    out = jax.block_until_ready(fwd(z, params))

    assert out.shape == (batch, nc, image_size, image_size), out.shape
    assert bool(jnp.all(jnp.isfinite(out)))

    ref = jax.block_until_ready(_reference_forward(z, layers))
    max_err = float(jnp.max(jnp.abs(out - ref)))
    assert max_err < 7.5e-2, f"max abs err vs f32 reference: {max_err}"

    print("KERNEL_OK")
</pallas_src>

<mosaic_0001>
module attributes {stable_mosaic.version = 11 : i64} {
  func.func @_initial_kernel(%arg0: memref<8x128xbf16, #tpu.memory_space<vmem>>, %arg1: memref<128x2048xbf16, #tpu.memory_space<vmem>>, %arg2: memref<8x2048xbf16, #tpu.memory_space<vmem>>, %arg3: memref<1x2048xf32, #tpu.memory_space<vmem>>, %arg4: memref<1x2048xf32, #tpu.memory_space<vmem>>) attributes {dimension_semantics = [], scalar_prefetch = 0 : i64, scratch_operands = 0 : i64, tpu.core_type = #tpu.core_type<tc>} {
    %c0 = arith.constant 0 : index
    %c0_0 = arith.constant 0 : index
    %0 = vector.load %arg0[%c0, %c0_0] : memref<8x128xbf16, #tpu.memory_space<vmem>>, vector<8x128xbf16>
    %c0_1 = arith.constant 0 : index
    %c0_2 = arith.constant 0 : index
    %1 = vector.load %arg1[%c0_1, %c0_2] : memref<128x2048xbf16, #tpu.memory_space<vmem>>, vector<128x2048xbf16>
    %cst = arith.constant dense<0.000000e+00> : vector<8x2048xf32>
    %2 = tpu.matmul %0, %1, %cst {dimension_numbers = #tpu.dot_dimension_numbers<[1], [0], [0], [1], [0, 0, 1, 1], [], []>} : vector<8x128xbf16>, vector<128x2048xbf16>, vector<8x2048xf32> -> vector<8x2048xf32>
    %3 = arith.truncf %2 : vector<8x2048xf32> to vector<8x2048xbf16>
    %c0_3 = arith.constant 0 : index
    %c0_4 = arith.constant 0 : index
    %4 = vector.load %arg2[%c0_3, %c0_4] : memref<8x2048xbf16, #tpu.memory_space<vmem>>, vector<8x2048xbf16>
    tpu.vector_store %arg2[%c0_3, %c0_4], %3 {strides = array<i32>} : memref<8x2048xbf16, #tpu.memory_space<vmem>>, vector<8x2048xbf16>,
    %cst_5 = arith.constant dense<0.000000e+00> : vector<2048xf32>
    %5 = vector.multi_reduction <add>, %2, %cst_5 [0] : vector<8x2048xf32> to vector<2048xf32>
    %6 = vector.shape_cast %5 : vector<2048xf32> to vector<1x2048xf32>
    %c0_6 = arith.constant 0 : index
    %c0_7 = arith.constant 0 : index
    %7 = vector.load %arg3[%c0_6, %c0_7] : memref<1x2048xf32, #tpu.memory_space<vmem>>, vector<1x2048xf32>
    tpu.vector_store %arg3[%c0_6, %c0_7], %6 {strides = array<i32>} : memref<1x2048xf32, #tpu.memory_space<vmem>>, vector<1x2048xf32>,
    %8 = arith.mulf %2, %2 : vector<8x2048xf32>
    %cst_8 = arith.constant dense<0.000000e+00> : vector<2048xf32>
    %9 = vector.multi_reduction <add>, %8, %cst_8 [0] : vector<8x2048xf32> to vector<2048xf32>
    %10 = vector.shape_cast %9 : vector<2048xf32> to vector<1x2048xf32>
    %c0_9 = arith.constant 0 : index
    %c0_10 = arith.constant 0 : index
    %11 = vector.load %arg4[%c0_9, %c0_10] : memref<1x2048xf32, #tpu.memory_space<vmem>>, vector<1x2048xf32>
    tpu.vector_store %arg4[%c0_9, %c0_10], %10 {strides = array<i32>} : memref<1x2048xf32, #tpu.memory_space<vmem>>, vector<1x2048xf32>,
    return
  }
}

module attributes {stable_mosaic.version = 11 : i64} {
  func.func @kernel(%arg0: i32, %arg1: i32, %arg2: memref<1x6x6x128xbf16, #tpu.memory_space<vmem>>, %arg3: memref<16x128x128xbf16, #tpu.memory_space<vmem>>, %arg4: memref<1x4x4x512xbf16, #tpu.memory_space<vmem>>, %arg5: memref<1x1x1x128xf32, #tpu.memory_space<vmem>>, %arg6: memref<1x1x1x128xf32, #tpu.memory_space<vmem>>) attributes {dimension_semantics = [#tpu.dimension_semantics<parallel>, #tpu.dimension_semantics<parallel>], iteration_bounds = array<i64: 2, 1>, scalar_prefetch = 0 : i64, scratch_operands = 0 : i64, tpu.core_type = #tpu.core_type<tc>, window_params = [{transform_indices = @transform_0, window_bounds = array<i64: 1, 6, 6, 128>}, {pipeline_mode = #tpu.pipeline_mode<synchronous>, transform_indices = @transform_1, window_bounds = array<i64: 16, 128, 128>}, {transform_indices = @transform_2, window_bounds = array<i64: 1, 4, 4, 512>}, {transform_indices = @transform_3, window_bounds = array<i64: 1, 1, 1, 128>}, {transform_indices = @transform_4, window_bounds = array<i64: 1, 1, 1, 128>}]} {
    %cst = arith.constant 0.000000e+00 : f32
    %0 = vector.broadcast %cst : f32 to vector<1x1x1x128xf32>
    %c0 = arith.constant 0 : index
    %c0_0 = arith.constant 0 : index
    %c0_1 = arith.constant 0 : index
    %c0_2 = arith.constant 0 : index
    %1 = vector.load %arg5[%c0, %c0_0, %c0_1, %c0_2] : memref<1x1x1x128xf32, #tpu.memory_space<vmem>>, vector<1x1x1x128xf32>
    tpu.vector_store %arg5[%c0, %c0_0, %c0_1, %c0_2], %0 {strides = array<i32>} : memref<1x1x1x128xf32, #tpu.memory_space<vmem>>, vector<1x1x1x128xf32>,
    %cst_3 = arith.constant 0.000000e+00 : f32
    %2 = vector.broadcast %cst_3 : f32 to vector<1x1x1x128xf32>
    %c0_4 = arith.constant 0 : index
    %c0_5 = arith.constant 0 : index
    %c0_6 = arith.constant 0 : index
    %c0_7 = arith.constant 0 : index
    %3 = vector.load %arg6[%c0_4, %c0_5, %c0_6, %c0_7] : memref<1x1x1x128xf32, #tpu.memory_space<vmem>>, vector<1x1x1x128xf32>
    tpu.vector_store %arg6[%c0_4, %c0_5, %c0_6, %c0_7], %2 {strides = array<i32>} : memref<1x1x1x128xf32, #tpu.memory_space<vmem>>, vector<1x1x1x128xf32>,
    %c4_i32 = arith.constant 4 : i32
    %4 = arith.muli %arg1, %c4_i32 : i32
    %c0_i32 = arith.constant 0 : i32
    %c4_i32_8 = arith.constant 4 : i32
    %5 = arith.addi %c0_i32, %c4_i32_8 : i32
    %c1_i32 = arith.constant 1 : i32
    scf.for %arg7 = %c0_i32 to %5 step %c1_i32  : i32 {
      %c1_i32_10 = arith.constant 1 : i32
      %6 = arith.muli %arg7, %c1_i32_10 : i32
      %c0_i32_11 = arith.constant 0 : i32
      %7 = arith.addi %c0_i32_11, %6 : i32
      %8 = arith.addi %4, %7 : i32
      %c0_i32_12 = arith.constant 0 : i32
      %9 = arith.addi %8, %c0_i32_12 : i32
      %c0_13 = arith.constant 0 : index
      %10 = arith.index_cast %9 : i32 to index
      %c0_14 = arith.constant 0 : index
      %c0_15 = arith.constant 0 : index
      %11 = vector.load %arg2[%c0_13, %10, %c0_14, %c0_15] : memref<1x6x6x128xbf16, #tpu.memory_space<vmem>>, vector<1x1x4x128xbf16>
      %12 = vector.shape_cast %11 : vector<1x1x4x128xbf16> to vector<1x4x128xbf16>
      %13 = vector.shape_cast %12 : vector<1x4x128xbf16> to vector<4x128xbf16>
      %c0_i32_16 = arith.constant 0 : i32
      %14 = arith.addi %8, %c0_i32_16 : i32
      %c0_17 = arith.constant 0 : index
      %15 = arith.index_cast %14 : i32 to index
      %c1 = arith.constant 1 : index
      %c0_18 = arith.constant 0 : index
      %16 = vector.load %arg2[%c0_17, %15, %c1, %c0_18] : memref<1x6x6x128xbf16, #tpu.memory_space<vmem>>, vector<1x1x4x128xbf16>
      %17 = vector.shape_cast %16 : vector<1x1x4x128xbf16> to vector<1x4x128xbf16>
      %18 = vector.shape_cast %17 : vector<1x4x128xbf16> to vector<4x128xbf16>
      %c0_i32_19 = arith.constant 0 : i32
      %19 = arith.addi %8, %c0_i32_19 : i32
      %c0_20 = arith.constant 0 : index
      %20 = arith.index_cast %19 : i32 to index
      %c2 = arith.constant 2 : index
      %c0_21 = arith.constant 0 : index
      %21 = vector.load %arg2[%c0_20, %20, %c2, %c0_21] : memref<1x6x6x128xbf16, #tpu.memory_space<vmem>>, vector<1x1x4x128xbf16>
      %22 = vector.shape_cast %21 : vector<1x1x4x128xbf16> to vector<1x4x128xbf16>
      %23 = vector.shape_cast %22 : vector<1x4x128xbf16> to vector<4x128xbf16>
      %c1_i32_22 = arith.constant 1 : i32
      %24 = arith.addi %8, %c1_i32_22 : i32
      %c0_23 = arith.constant 0 : index
      %25 = arith.index_cast %24 : i32 to index
      %c0_24 = arith.constant 0 : index
      %c0_25 = arith.constant 0 : index
      %26 = vector.load %arg2[%c0_23, %25, %c0_24, %c0_25] : memref<1x6x6x128xbf16, #tpu.memory_space<vmem>>, vector<1x1x4x128xbf16>
      %27 = vector.shape_cast %26 : vector<1x1x4x128xbf16> to vector<1x4x128xbf16>
      %28 = vector.shape_cast %27 : vector<1x4x128xbf16> to vector<4x128xbf16>
      %c1_i32_26 = arith.constant 1 : i32
      %29 = arith.addi %8, %c1_i32_26 : i32
      %c0_27 = arith.constant 0 : index
      %30 = arith.index_cast %29 : i32 to index
      %c1_28 = arith.constant 1 : index
      %c0_29 = arith.constant 0 : index
      %31 = vector.load %arg2[%c0_27, %30, %c1_28, %c0_29] : memref<1x6x6x128xbf16, #tpu.memory_space<vmem>>, vector<1x1x4x128xbf16>
      %32 = vector.shape_cast %31 : vector<1x1x4x128xbf16> to vector<1x4x128xbf16>
      %33 = vector.shape_cast %32 : vector<1x4x128xbf16> to vector<4x128xbf16>
      %c1_i32_30 = arith.constant 1 : i32
      %34 = arith.addi %8, %c1_i32_30 : i32
      %c0_31 = arith.constant 0 : index
      %35 = arith.index_cast %34 : i32 to index
      %c2_32 = arith.constant 2 : index
      %c0_33 = arith.constant 0 : index
      %36 = vector.load %arg2[%c0_31, %35, %c2_32, %c0_33] : memref<1x6x6x128xbf16, #tpu.memory_space<vmem>>, vector<1x1x4x128xbf16>
      %37 = vector.shape_cast %36 : vector<1x1x4x128xbf16> to vector<1x4x128xbf16>
      %38 = vector.shape_cast %37 : vector<1x4x128xbf16> to vector<4x128xbf16>
      %c2_i32 = arith.constant 2 : i32
      %39 = arith.addi %8, %c2_i32 : i32
      %c0_34 = arith.constant 0 : index
      %40 = arith.index_cast %39 : i32 to index
      %c0_35 = arith.constant 0 : index
      %c0_36 = arith.constant 0 : index
      %41 = vector.load %arg2[%c0_34, %40, %c0_35, %c0_36] : memref<1x6x6x128xbf16, #tpu.memory_space<vmem>>, vector<1x1x4x128xbf16>
      %42 = vector.shape_cast %41 : vector<1x1x4x128xbf16> to vector<1x4x128xbf16>
      %43 = vector.shape_cast %42 : vector<1x4x128xbf16> to vector<4x128xbf16>
      %c2_i32_37 = arith.constant 2 : i32
      %44 = arith.addi %8, %c2_i32_37 : i32
      %c0_38 = arith.constant 0 : index
      %45 = arith.index_cast %44 : i32 to index
      %c1_39 = arith.constant 1 : index
      %c0_40 = arith.constant 0 : index
      %46 = vector.load %arg2[%c0_38, %45, %c1_39, %c0_40] : memref<1x6x6x128xbf16, #tpu.memory_space<vmem>>, vector<1x1x4x128xbf16>
      %47 = vector.shape_cast %46 : vector<1x1x4x128xbf16> to vector<1x4x128xbf16>
      %48 = vector.shape_cast %47 : vector<1x4x128xbf16> to vector<4x128xbf16>
      %c2_i32_41 = arith.constant 2 : i32
      %49 = arith.addi %8, %c2_i32_41 : i32
      %c0_42 = arith.constant 0 : index
      %50 = arith.index_cast %49 : i32 to index
      %c2_43 = arith.constant 2 : index
      %c0_44 = arith.constant 0 : index
      %51 = vector.load %arg2[%c0_42, %50, %c2_43, %c0_44] : memref<1x6x6x128xbf16, #tpu.memory_space<vmem>>, vector<1x1x4x128xbf16>
      %52 = vector.shape_cast %51 : vector<1x1x4x128xbf16> to vector<1x4x128xbf16>
      %53 = vector.shape_cast %52 : vector<1x4x128xbf16> to vector<4x128xbf16>
      %cst_45 = arith.constant 0.000000e+00 : f32
      %54 = vector.broadcast %cst_45 : f32 to vector<4x128xf32>
      %c0_46 = arith.constant 0 : index
      %c0_47 = arith.constant 0 : index
      %c0_48 = arith.constant 0 : index
      %55 = vector.load %arg3[%c0_46, %c0_47, %c0_48] : memref<16x128x128xbf16, #tpu.memory_space<vmem>>, vector<1x128x128xbf16>
      %56 = vector.shape_cast %55 : vector<1x128x128xbf16> to vector<128x128xbf16>
      %cst_49 = arith.constant dense<0.000000e+00> : vector<4x128xf32>
      %57 = tpu.matmul %13, %56, %cst_49 {dimension_numbers = #tpu.dot_dimension_numbers<[1], [0], [0], [1], [0, 0, 1, 1], [], []>} : vector<4x128xbf16>, vector<128x128xbf16>, vector<4x128xf32> -> vector<4x128xf32>
      %58 = arith.addf %54, %57 : vector<4x128xf32>
      %c1_50 = arith.constant 1 : index
      %c0_51 = arith.constant 0 : index
      %c0_52 = arith.constant 0 : index
      %59 = vector.load %arg3[%c1_50, %c0_51, %c0_52] : memref<16x128x128xbf16, #tpu.memory_space<vmem>>, vector<1x128x128xbf16>
      %60 = vector.shape_cast %59 : vector<1x128x128xbf16> to vector<128x128xbf16>
      %cst_53 = arith.constant dense<0.000000e+00> : vector<4x128xf32>
      %61 = tpu.matmul %18, %60, %cst_53 {dimension_numbers = #tpu.dot_dimension_numbers<[1], [0], [0], [1], [0, 0, 1, 1], [], []>} : vector<4x128xbf16>, vector<128x128xbf16>, vector<4x128xf32> -> vector<4x128xf32>
      %62 = arith.addf %58, %61 : vector<4x128xf32>
      %c2_54 = arith.constant 2 : index
      %c0_55 = arith.constant 0 : index
      %c0_56 = arith.constant 0 : index
      %63 = vector.load %arg3[%c2_54, %c0_55, %c0_56] : memref<16x128x128xbf16, #tpu.memory_space<vmem>>, vector<1x128x128xbf16>
      %64 = vector.shape_cast %63 : vector<1x128x128xbf16> to vector<128x128xbf16>
      %cst_57 = arith.constant dense<0.000000e+00> : vector<4x128xf32>
      %65 = tpu.matmul %28, %64, %cst_57 {dimension_numbers = #tpu.dot_dimension_numbers<[1], [0], [0], [1], [0, 0, 1, 1], [], []>} : vector<4x128xbf16>, vector<128x128xbf16>, vector<4x128xf32> -> vector<4x128xf32>
      %66 = arith.addf %62, %65 : vector<4x128xf32>
      %c3 = arith.constant 3 : index
      %c0_58 = arith.constant 0 : index
      %c0_59 = arith.constant 0 : index
      %67 = vector.load %arg3[%c3, %c0_58, %c0_59] : memref<16x128x128xbf16, #tpu.memory_space<vmem>>, vector<1x128x128xbf16>
      %68 = vector.shape_cast %67 : vector<1x128x128xbf16> to vector<128x128xbf16>
      %cst_60 = arith.constant dense<0.000000e+00> : vector<4x128xf32>
      %69 = tpu.matmul %33, %68, %cst_60 {dimension_numbers = #tpu.dot_dimension_numbers<[1], [0], [0], [1], [0, 0, 1, 1], [], []>} : vector<4x128xbf16>, vector<128x128xbf16>, vector<4x128xf32> -> vector<4x128xf32>
      %70 = arith.addf %66, %69 : vector<4x128xf32>
      %c0_61 = arith.constant 0 : index
      %c0_62 = arith.constant 0 : index
      %c0_63 = arith.constant 0 : index
      %c0_64 = arith.constant 0 : index
      %71 = vector.load %arg5[%c0_61, %c0_62, %c0_63, %c0_64] : memref<1x1x1x128xf32, #tpu.memory_space<vmem>>, vector<1x1x1x128xf32>
      %72 = vector.shape_cast %71 : vector<1x1x1x128xf32> to vector<1x128xf32>
      %cst_65 = arith.constant dense<0.000000e+00> : vector<128xf32>
      %73 = vector.multi_reduction <add>, %70, %cst_65 [0] : vector<4x128xf32> to vector<128xf32>
      %74 = vector.shape_cast %73 : vector<128xf32> to vector<1x128xf32>
      %75 = arith.addf %72, %74 : vector<1x128xf32>
      %c0_66 = arith.constant 0 : index
      %c0_67 = arith.constant 0 : index
      %c0_68 = arith.constant 0 : index
      %c0_69 = arith.constant 0 : index
      %76 = vector.load %arg5[%c0_66, %c0_67, %c0_68, %c0_69] : memref<1x1x1x128xf32, #tpu.memory_space<vmem>>, vector<1x1x1x128xf32>
      %77 = vector.shape_cast %76 : vector<1x1x1x128xf32> to vector<1x128xf32>
      %78 = vector.shape_cast %75 : vector<1x128xf32> to vector<1x1x1x128xf32>
      tpu.vector_store %arg5[%c0_66, %c0_67, %c0_68, %c0_69], %78 {strides = array<i32>} : memref<1x1x1x128xf32, #tpu.memory_space<vmem>>, vector<1x1x1x128xf32>,
      %c0_70 = arith.constant 0 : index
      %c0_71 = arith.constant 0 : index
      %c0_72 = arith.constant 0 : index
      %c0_73 = arith.constant 0 : index
      %79 = vector.load %arg6[%c0_70, %c0_71, %c0_72, %c0_73] : memref<1x1x1x128xf32, #tpu.memory_space<vmem>>, vector<1x1x1x128xf32>
      %80 = vector.shape_cast %79 : vector<1x1x1x128xf32> to vector<1x128xf32>
      %81 = arith.mulf %70, %70 : vector<4x128xf32>
      %cst_74 = arith.constant dense<0.000000e+00> : vector<128xf32>
      %82 = vector.multi_reduction <add>, %81, %cst_74 [0] : vector<4x128xf32> to vector<128xf32>
      %83 = vector.shape_cast %82 : vector<128xf32> to vector<1x128xf32>
      %84 = arith.addf %80, %83 : vector<1x128xf32>
      %c0_75 = arith.constant 0 : index
      %c0_76 = arith.constant 0 : index
      %c0_77 = arith.constant 0 : index
      %c0_78 = arith.constant 0 : index
      %85 = vector.load %arg6[%c0_75, %c0_76, %c0_77, %c0_78] : memref<1x1x1x128xf32, #tpu.memory_space<vmem>>, vector<1x1x1x128xf32>
      %86 = vector.shape_cast %85 : vector<1x1x1x128xf32> to vector<1x128xf32>
      %87 = vector.shape_cast %84 : vector<1x128xf32> to vector<1x1x1x128xf32>
      tpu.vector_store %arg6[%c0_75, %c0_76, %c0_77, %c0_78], %87 {strides = array<i32>} : memref<1x1x1x128xf32, #tpu.memory_space<vmem>>, vector<1x1x1x128xf32>,
      %88 = arith.truncf %70 : vector<4x128xf32> to vector<4x128xbf16>
      %89 = vector.shape_cast %88 : vector<4x128xbf16> to vector<1x4x128xbf16>
      %c0_79 = arith.constant 0 : index
      %90 = arith.index_cast %7 : i32 to index
      %c0_80 = arith.constant 0 : index
      %c0_81 = arith.constant 0 : index
      %91 = vector.load %arg4[%c0_79, %90, %c0_80, %c0_81] : memref<1x4x4x512xbf16, #tpu.memory_space<vmem>>, vector<1x1x4x128xbf16>
      %92 = vector.shape_cast %91 : vector<1x1x4x128xbf16> to vector<1x4x128xbf16>
      %93 = vector.shape_cast %89 : vector<1x4x128xbf16> to vector<1x1x4x128xbf16>
      tpu.vector_store %arg4[%c0_79, %90, %c0_80, %c0_81], %93 {strides = array<i32>} : memref<1x4x4x512xbf16, #tpu.memory_space<vmem>>, vector<1x1x4x128xbf16>,
      %cst_82 = arith.constant 0.000000e+00 : f32
      %94 = vector.broadcast %cst_82 : f32 to vector<4x128xf32>
      %c4 = arith.constant 4 : index
      %c0_83 = arith.constant 0 : index
      %c0_84 = arith.constant 0 : index
      %95 = vector.load %arg3[%c4, %c0_83, %c0_84] : memref<16x128x128xbf16, #tpu.memory_space<vmem>>, vector<1x128x128xbf16>
      %96 = vector.shape_cast %95 : vector<1x128x128xbf16> to vector<128x128xbf16>
      %cst_85 = arith.constant dense<0.000000e+00> : vector<4x128xf32>
      %97 = tpu.matmul %18, %96, %cst_85 {dimension_numbers = #tpu.dot_dimension_numbers<[1], [0], [0], [1], [0, 0, 1, 1], [], []>} : vector<4x128xbf16>, vector<128x128xbf16>, vector<4x128xf32> -> vector<4x128xf32>
      %98 = arith.addf %94, %97 : vector<4x128xf32>
      %c5 = arith.constant 5 : index
      %c0_86 = arith.constant 0 : index
      %c0_87 = arith.constant 0 : index
      %99 = vector.load %arg3[%c5, %c0_86, %c0_87] : memref<16x128x128xbf16, #tpu.memory_space<vmem>>, vector<1x128x128xbf16>
      %100 = vector.shape_cast %99 : vector<1x128x128xbf16> to vector<128x128xbf16>
      %cst_88 = arith.constant dense<0.000000e+00> : vector<4x128xf32>
      %101 = tpu.matmul %23, %100, %cst_88 {dimension_numbers = #tpu.dot_dimension_numbers<[1], [0], [0], [1], [0, 0, 1, 1], [], []>} : vector<4x128xbf16>, vector<128x128xbf16>, vector<4x128xf32> -> vector<4x128xf32>
      %102 = arith.addf %98, %101 : vector<4x128xf32>
      %c6 = arith.constant 6 : index
      %c0_89 = arith.constant 0 : index
      %c0_90 = arith.constant 0 : index
      %103 = vector.load %arg3[%c6, %c0_89, %c0_90] : memref<16x128x128xbf16, #tpu.memory_space<vmem>>, vector<1x128x128xbf16>
      %104 = vector.shape_cast %103 : vector<1x128x128xbf16> to vector<128x128xbf16>
      %cst_91 = arith.constant dense<0.000000e+00> : vector<4x128xf32>
      %105 = tpu.matmul %33, %104, %cst_91 {dimension_numbers = #tpu.dot_dimension_numbers<[1], [0], [0], [1], [0, 0, 1, 1], [], []>} : vector<4x128xbf16>, vector<128x128xbf16>, vector<4x128xf32> -> vector<4x128xf32>
      %106 = arith.addf %102, %105 : vector<4x128xf32>
      %c7 = arith.constant 7 : index
      %c0_92 = arith.constant 0 : index
      %c0_93 = arith.constant 0 : index
      %107 = vector.load %arg3[%c7, %c0_92, %c0_93] : memref<16x128x128xbf16, #tpu.memory_space<vmem>>, vector<1x128x128xbf16>
      %108 = vector.shape_cast %107 : vector<1x128x128xbf16> to vector<128x128xbf16>
      %cst_94 = arith.constant dense<0.000000e+00> : vector<4x128xf32>
      %109 = tpu.matmul %38, %108, %cst_94 {dimension_numbers = #tpu.dot_dimension_numbers<[1], [0], [0], [1], [0, 0, 1, 1], [], []>} : vector<4x128xbf16>, vector<128x128xbf16>, vector<4x128xf32> -> vector<4x128xf32>
      %110 = arith.addf %106, %109 : vector<4x128xf32>
      %c0_95 = arith.constant 0 : index
      %c0_96 = arith.constant 0 : index
      %c0_97 = arith.constant 0 : index
      %c0_98 = arith.constant 0 : index
      %111 = vector.load %arg5[%c0_95, %c0_96, %c0_97, %c0_98] : memref<1x1x1x128xf32, #tpu.memory_space<vmem>>, vector<1x1x1x128xf32>
      %112 = vector.shape_cast %111 : vector<1x1x1x128xf32> to vector<1x128xf32>
      %cst_99 = arith.constant dense<0.000000e+00> : vector<128xf32>
      %113 = vector.multi_reduction <add>, %110, %cst_99 [0] : vector<4x128xf32> to vector<128xf32>
      %114 = vector.shape_cast %113 : vector<128xf32> to vector<1x128xf32>
      %115 = arith.addf %112, %114 : vector<1x128xf32>
      %c0_100 = arith.constant 0 : index
      %c0_101 = arith.constant 0 : index
      %c0_102 = arith.constant 0 : index
      %c0_103 = arith.constant 0 : index
      %116 = vector.load %arg5[%c0_100, %c0_101, %c0_102, %c0_103] : memref<1x1x1x128xf32, #tpu.memory_space<vmem>>, vector<1x1x1x128xf32>
      %117 = vector.shape_cast %116 : vector<1x1x1x128xf32> to vector<1x128xf32>
      %118 = vector.shape_cast %115 : vector<1x128xf32> to vector<1x1x1x128xf32>
      tpu.vector_store %arg5[%c0_100, %c0_101, %c0_102, %c0_103], %118 {strides = array<i32>} : memref<1x1x1x128xf32, #tpu.memory_space<vmem>>, vector<1x1x1x128xf32>,
      %c0_104 = arith.constant 0 : index
      %c0_105 = arith.constant 0 : index
      %c0_106 = arith.constant 0 : index
      %c0_107 = arith.constant 0 : index
      %119 = vector.load %arg6[%c0_104, %c0_105, %c0_106, %c0_107] : memref<1x1x1x128xf32, #tpu.memory_space<vmem>>, vector<1x1x1x128xf32>
      %120 = vector.shape_cast %119 : vector<1x1x1x128xf32> to vector<1x128xf32>
      %121 = arith.mulf %110, %110 : vector<4x128xf32>
      %cst_108 = arith.constant dense<0.000000e+00> : vector<128xf32>
      %122 = vector.multi_reduction <add>, %121, %cst_108 [0] : vector<4x128xf32> to vector<128xf32>
      %123 = vector.shape_cast %122 : vector<128xf32> to vector<1x128xf32>
      %124 = arith.addf %120, %123 : vector<1x128xf32>
      %c0_109 = arith.constant 0 : index
      %c0_110 = arith.constant 0 : index
      %c0_111 = arith.constant 0 : index
      %c0_112 = arith.constant 0 : index
      %125 = vector.load %arg6[%c0_109, %c0_110, %c0_111, %c0_112] : memref<1x1x1x128xf32, #tpu.memory_space<vmem>>, vector<1x1x1x128xf32>
      %126 = vector.shape_cast %125 : vector<1x1x1x128xf32> to vector<1x128xf32>
      %127 = vector.shape_cast %124 : vector<1x128xf32> to vector<1x1x1x128xf32>
      tpu.vector_store %arg6[%c0_109, %c0_110, %c0_111, %c0_112], %127 {strides = array<i32>} : memref<1x1x1x128xf32, #tpu.memory_space<vmem>>, vector<1x1x1x128xf32>,
      %128 = arith.truncf %110 : vector<4x128xf32> to vector<4x128xbf16>
      %129 = vector.shape_cast %128 : vector<4x128xbf16> to vector<1x4x128xbf16>
      %c0_113 = arith.constant 0 : index
      %130 = arith.index_cast %7 : i32 to index
      %c0_114 = arith.constant 0 : index
      %c128 = arith.constant 128 : index
      %131 = vector.load %arg4[%c0_113, %130, %c0_114, %c128] : memref<1x4x4x512xbf16, #tpu.memory_space<vmem>>, vector<1x1x4x128xbf16>
      %132 = vector.shape_cast %131 : vector<1x1x4x128xbf16> to vector<1x4x128xbf16>
      %133 = vector.shape_cast %129 : vector<1x4x128xbf16> to vector<1x1x4x128xbf16>
      tpu.vector_store %arg4[%c0_113, %130, %c0_114, %c128], %133 {strides = array<i32>} : memref<1x4x4x512xbf16, #tpu.memory_space<vmem>>, vector<1x1x4x128xbf16>,
      %cst_115 = arith.constant 0.000000e+00 : f32
      %134 = vector.broadcast %cst_115 : f32 to vector<4x128xf32>
      %c8 = arith.constant 8 : index
      %c0_116 = arith.constant 0 : index
      %c0_117 = arith.constant 0 : index
      %135 = vector.load %arg3[%c8, %c0_116, %c0_117] : memref<16x128x128xbf16, #tpu.memory_space<vmem>>, vector<1x128x128xbf16>
      %136 = vector.shape_cast %135 : vector<1x128x128xbf16> to vector<128x128xbf16>
      %cst_118 = arith.constant dense<0.000000e+00> : vector<4x128xf32>
      %137 = tpu.matmul %28, %136, %cst_118 {dimension_numbers = #tpu.dot_dimension_numbers<[1], [0], [0], [1], [0, 0, 1, 1], [], []>} : vector<4x128xbf16>, vector<128x128xbf16>, vector<4x128xf32> -> vector<4x128xf32>
      %138 = arith.addf %134, %137 : vector<4x128xf32>
      %c9 = arith.constant 9 : index
      %c0_119 = arith.constant 0 : index
      %c0_120 = arith.constant 0 : index
      %139 = vector.load %arg3[%c9, %c0_119, %c0_120] : memref<16x128x128xbf16, #tpu.memory_space<vmem>>, vector<1x128x128xbf16>
      %140 = vector.shape_cast %139 : vector<1x128x128xbf16> to vector<128x128xbf16>
      %cst_121 = arith.constant dense<0.000000e+00> : vector<4x128xf32>
      %141 = tpu.matmul %33, %140, %cst_121 {dimension_numbers = #tpu.dot_dimension_numbers<[1], [0], [0], [1], [0, 0, 1, 1], [], []>} : vector<4x128xbf16>, vector<128x128xbf16>, vector<4x128xf32> -> vector<4x128xf32>
      %142 = arith.addf %138, %141 : vector<4x128xf32>
      %c10 = arith.constant 10 : index
      %c0_122 = arith.constant 0 : index
      %c0_123 = arith.constant 0 : index
      %143 = vector.load %arg3[%c10, %c0_122, %c0_123] : memref<16x128x128xbf16, #tpu.memory_space<vmem>>, vector<1x128x128xbf16>
      %144 = vector.shape_cast %143 : vector<1x128x128xbf16> to vector<128x128xbf16>
      %cst_124 = arith.constant dense<0.000000e+00> : vector<4x128xf32>
      %145 = tpu.matmul %43, %144, %cst_124 {dimension_numbers = #tpu.dot_dimension_numbers<[1], [0], [0], [1], [0, 0, 1, 1], [], []>} : vector<4x128xbf16>, vector<128x128xbf16>, vector<4x128xf32> -> vector<4x128xf32>
      %146 = arith.addf %142, %145 : vector<4x128xf32>
      %c11 = arith.constant 11 : index
      %c0_125 = arith.constant 0 : index
      %c0_126 = arith.constant 0 : index
      %147 = vector.load %arg3[%c11, %c0_125, %c0_126] : memref<16x128x128xbf16, #tpu.memory_space<vmem>>, vector<1x128x128xbf16>
      %148 = vector.shape_cast %147 : vector<1x128x128xbf16> to vector<128x128xbf16>
      %cst_127 = arith.constant dense<0.000000e+00> : vector<4x128xf32>
      %149 = tpu.matmul %48, %148, %cst_127 {dimension_numbers = #tpu.dot_dimension_numbers<[1], [0], [0], [1], [0, 0, 1, 1], [], []>} : vector<4x128xbf16>, vector<128x128xbf16>, vector<4x128xf32> -> vector<4x128xf32>
      %150 = arith.addf %146, %149 : vector<4x128xf32>
      %c0_128 = arith.constant 0 : index
      %c0_129 = arith.constant 0 : index
      %c0_130 = arith.constant 0 : index
      %c0_131 = arith.constant 0 : index
      %151 = vector.load %arg5[%c0_128, %c0_129, %c0_130, %c0_131] : memref<1x1x1x128xf32, #tpu.memory_space<vmem>>, vector<1x1x1x128xf32>
      %152 = vector.shape_cast %151 : vector<1x1x1x128xf32> to vector<1x128xf32>
      %cst_132 = arith.constant dense<0.000000e+00> : vector<128xf32>
      %153 = vector.multi_reduction <add>, %150, %cst_132 [0] : vector<4x128xf32> to vector<128xf32>
      %154 = vector.shape_cast %153 : vector<128xf32> to vector<1x128xf32>
      %155 = arith.addf %152, %154 : vector<1x128xf32>
      %c0_133 = arith.constant 0 : index
      %c0_134 = arith.constant 0 : index
      %c0_135 = arith.constant 0 : index
      %c0_136 = arith.constant 0 : index
      %156 = vector.load %arg5[%c0_133, %c0_134, %c0_135, %c0_136] : memref<1x1x1x128xf32, #tpu.memory_space<vmem>>, vector<1x1x1x128xf32>
      %157 = vector.shape_cast %156 : vector<1x1x1x128xf32> to vector<1x128xf32>
      %158 = vector.shape_cast %155 : vector<1x128xf32> to vector<1x1x1x128xf32>
      tpu.vector_store %arg5[%c0_133, %c0_134, %c0_135, %c0_136], %158 {strides = array<i32>} : memref<1x1x1x128xf32, #tpu.memory_space<vmem>>, vector<1x1x1x128xf32>,
      %c0_137 = arith.constant 0 : index
      %c0_138 = arith.constant 0 : index
      %c0_139 = arith.constant 0 : index
      %c0_140 = arith.constant 0 : index
      %159 = vector.load %arg6[%c0_137, %c0_138, %c0_139, %c0_140] : memref<1x1x1x128xf32, #tpu.memory_space<vmem>>, vector<1x1x1x128xf32>
      %160 = vector.shape_cast %159 : vector<1x1x1x128xf32> to vector<1x128xf32>
      %161 = arith.mulf %150, %150 : vector<4x128xf32>
      %cst_141 = arith.constant dense<0.000000e+00> : vector<128xf32>
      %162 = vector.multi_reduction <add>, %161, %cst_141 [0] : vector<4x128xf32> to vector<128xf32>
      %163 = vector.shape_cast %162 : vector<128xf32> to vector<1x128xf32>
      %164 = arith.addf %160, %163 : vector<1x128xf32>
      %c0_142 = arith.constant 0 : index
      %c0_143 = arith.constant 0 : index
      %c0_144 = arith.constant 0 : index
      %c0_145 = arith.constant 0 : index
      %165 = vector.load %arg6[%c0_142, %c0_143, %c0_144, %c0_145] : memref<1x1x1x128xf32, #tpu.memory_space<vmem>>, vector<1x1x1x128xf32>
      %166 = vector.shape_cast %165 : vector<1x1x1x128xf32> to vector<1x128xf32>
      %167 = vector.shape_cast %164 : vector<1x128xf32> to vector<1x1x1x128xf32>
      tpu.vector_store %arg6[%c0_142, %c0_143, %c0_144, %c0_145], %167 {strides = array<i32>} : memref<1x1x1x128xf32, #tpu.memory_space<vmem>>, vector<1x1x1x128xf32>,
      %168 = arith.truncf %150 : vector<4x128xf32> to vector<4x128xbf16>
      %169 = vector.shape_cast %168 : vector<4x128xbf16> to vector<1x4x128xbf16>
      %c0_146 = arith.constant 0 : index
      %170 = arith.index_cast %7 : i32 to index
      %c0_147 = arith.constant 0 : index
      %c256 = arith.constant 256 : index
      %171 = vector.load %arg4[%c0_146, %170, %c0_147, %c256] : memref<1x4x4x512xbf16, #tpu.memory_space<vmem>>, vector<1x1x4x128xbf16>
      %172 = vector.shape_cast %171 : vector<1x1x4x128xbf16> to vector<1x4x128xbf16>
      %173 = vector.shape_cast %169 : vector<1x4x128xbf16> to vector<1x1x4x128xbf16>
      tpu.vector_store %arg4[%c0_146, %170, %c0_147, %c256], %173 {strides = array<i32>} : memref<1x4x4x512xbf16, #tpu.memory_space<vmem>>, vector<1x1x4x128xbf16>,
      %cst_148 = arith.constant 0.000000e+00 : f32
      %174 = vector.broadcast %cst_148 : f32 to vector<4x128xf32>
      %c12 = arith.constant 12 : index
      %c0_149 = arith.constant 0 : index
      %c0_150 = arith.constant 0 : index
      %175 = vector.load %arg3[%c12, %c0_149, %c0_150] : memref<16x128x128xbf16, #tpu.memory_space<vmem>>, vector<1x128x128xbf16>
      %176 = vector.shape_cast %175 : vector<1x128x128xbf16> to vector<128x128xbf16>
      %cst_151 = arith.constant dense<0.000000e+00> : vector<4x128xf32>
      %177 = tpu.matmul %33, %176, %cst_151 {dimension_numbers = #tpu.dot_dimension_numbers<[1], [0], [0], [1], [0, 0, 1, 1], [], []>} : vector<4x128xbf16>, vector<128x128xbf16>, vector<4x128xf32> -> vector<4x128xf32>
      %178 = arith.addf %174, %177 : vector<4x128xf32>
      %c13 = arith.constant 13 : index
      %c0_152 = arith.constant 0 : index
      %c0_153 = arith.constant 0 : index
      %179 = vector.load %arg3[%c13, %c0_152, %c0_153] : memref<16x128x128xbf16, #tpu.memory_space<vmem>>, vector<1x128x128xbf16>
      %180 = vector.shape_cast %179 : vector<1x128x128xbf16> to vector<128x128xbf16>
      %cst_154 = arith.constant dense<0.000000e+00> : vector<4x128xf32>
      %181 = tpu.matmul %38, %180, %cst_154 {dimension_numbers = #tpu.dot_dimension_numbers<[1], [0], [0], [1], [0, 0, 1, 1], [], []>} : vector<4x128xbf16>, vector<128x128xbf16>, vector<4x128xf32> -> vector<4x128xf32>
      %182 = arith.addf %178, %181 : vector<4x128xf32>
      %c14 = arith.constant 14 : index
      %c0_155 = arith.constant 0 : index
      %c0_156 = arith.constant 0 : index
      %183 = vector.load %arg3[%c14, %c0_155, %c0_156] : memref<16x128x128xbf16, #tpu.memory_space<vmem>>, vector<1x128x128xbf16>
      %184 = vector.shape_cast %183 : vector<1x128x128xbf16> to vector<128x128xbf16>
      %cst_157 = arith.constant dense<0.000000e+00> : vector<4x128xf32>
      %185 = tpu.matmul %48, %184, %cst_157 {dimension_numbers = #tpu.dot_dimension_numbers<[1], [0], [0], [1], [0, 0, 1, 1], [], []>} : vector<4x128xbf16>, vector<128x128xbf16>, vector<4x128xf32> -> vector<4x128xf32>
      %186 = arith.addf %182, %185 : vector<4x128xf32>
      %c15 = arith.constant 15 : index
      %c0_158 = arith.constant 0 : index
      %c0_159 = arith.constant 0 : index
      %187 = vector.load %arg3[%c15, %c0_158, %c0_159] : memref<16x128x128xbf16, #tpu.memory_space<vmem>>, vector<1x128x128xbf16>
      %188 = vector.shape_cast %187 : vector<1x128x128xbf16> to vector<128x128xbf16>
      %cst_160 = arith.constant dense<0.000000e+00> : vector<4x128xf32>
      %189 = tpu.matmul %53, %188, %cst_160 {dimension_numbers = #tpu.dot_dimension_numbers<[1], [0], [0], [1], [0, 0, 1, 1], [], []>} : vector<4x128xbf16>, vector<128x128xbf16>, vector<4x128xf32> -> vector<4x128xf32>
      %190 = arith.addf %186, %189 : vector<4x128xf32>
      %c0_161 = arith.constant 0 : index
      %c0_162 = arith.constant 0 : index
      %c0_163 = arith.constant 0 : index
      %c0_164 = arith.constant 0 : index
      %191 = vector.load %arg5[%c0_161, %c0_162, %c0_163, %c0_164] : memref<1x1x1x128xf32, #tpu.memory_space<vmem>>, vector<1x1x1x128xf32>
      %192 = vector.shape_cast %191 : vector<1x1x1x128xf32> to vector<1x128xf32>
      %cst_165 = arith.constant dense<0.000000e+00> : vector<128xf32>
      %193 = vector.multi_reduction <add>, %190, %cst_165 [0] : vector<4x128xf32> to vector<128xf32>
      %194 = vector.shape_cast %193 : vector<128xf32> to vector<1x128xf32>
      %195 = arith.addf %192, %194 : vector<1x128xf32>
      %c0_166 = arith.constant 0 : index
      %c0_167 = arith.constant 0 : index
      %c0_168 = arith.constant 0 : index
      %c0_169 = arith.constant 0 : index
      %196 = vector.load %arg5[%c0_166, %c0_167, %c0_168, %c0_169] : memref<1x1x1x128xf32, #tpu.memory_space<vmem>>, vector<1x1x1x128xf32>
      %197 = vector.shape_cast %196 : vector<1x1x1x128xf32> to vector<1x128xf32>
      %198 = vector.shape_cast %195 : vector<1x128xf32> to vector<1x1x1x128xf32>
      tpu.vector_store %arg5[%c0_166, %c0_167, %c0_168, %c0_169], %198 {strides = array<i32>} : memref<1x1x1x128xf32, #tpu.memory_space<vmem>>, vector<1x1x1x128xf32>,
      %c0_170 = arith.constant 0 : index
      %c0_171 = arith.constant 0 : index
      %c0_172 = arith.constant 0 : index
      %c0_173 = arith.constant 0 : index
      %199 = vector.load %arg6[%c0_170, %c0_171, %c0_172, %c0_173] : memref<1x1x1x128xf32, #tpu.memory_space<vmem>>, vector<1x1x1x128xf32>
      %200 = vector.shape_cast %199 : vector<1x1x1x128xf32> to vector<1x128xf32>
      %201 = arith.mulf %190, %190 : vector<4x128xf32>
      %cst_174 = arith.constant dense<0.000000e+00> : vector<128xf32>
      %202 = vector.multi_reduction <add>, %201, %cst_174 [0] : vector<4x128xf32> to vector<128xf32>
      %203 = vector.shape_cast %202 : vector<128xf32> to vector<1x128xf32>
      %204 = arith.addf %200, %203 : vector<1x128xf32>
      %c0_175 = arith.constant 0 : index
      %c0_176 = arith.constant 0 : index
      %c0_177 = arith.constant 0 : index
      %c0_178 = arith.constant 0 : index
      %205 = vector.load %arg6[%c0_175, %c0_176, %c0_177, %c0_178] : memref<1x1x1x128xf32, #tpu.memory_space<vmem>>, vector<1x1x1x128xf32>
      %206 = vector.shape_cast %205 : vector<1x1x1x128xf32> to vector<1x128xf32>
      %207 = vector.shape_cast %204 : vector<1x128xf32> to vector<1x1x1x128xf32>
      tpu.vector_store %arg6[%c0_175, %c0_176, %c0_177, %c0_178], %207 {strides = array<i32>} : memref<1x1x1x128xf32, #tpu.memory_space<vmem>>, vector<1x1x1x128xf32>,
      %208 = arith.truncf %190 : vector<4x128xf32> to vector<4x128xbf16>
      %209 = vector.shape_cast %208 : vector<4x128xbf16> to vector<1x4x128xbf16>
      %c0_179 = arith.constant 0 : index
      %210 = arith.index_cast %7 : i32 to index
      %c0_180 = arith.constant 0 : index
      %c384 = arith.constant 384 : index
      %211 = vector.load %arg4[%c0_179, %210, %c0_180, %c384] : memref<1x4x4x512xbf16, #tpu.memory_space<vmem>>, vector<1x1x4x128xbf16>
      %212 = vector.shape_cast %211 : vector<1x1x4x128xbf16> to vector<1x4x128xbf16>
      %213 = vector.shape_cast %209 : vector<1x4x128xbf16> to vector<1x1x4x128xbf16>
      tpu.vector_store %arg4[%c0_179, %210, %c0_180, %c384], %213 {strides = array<i32>} : memref<1x4x4x512xbf16, #tpu.memory_space<vmem>>, vector<1x1x4x128xbf16>,
    }
    %c4_i32_9 = arith.constant 4 : i32
    return
  }
  func.func @transform_0(%arg0: i32, %arg1: i32) -> (i32, i32, i32, i32) {
    %c0_i32 = arith.constant 0 : i32
    %c0_i32_0 = arith.constant 0 : i32
    %c0_i32_1 = arith.constant 0 : i32
    %c0_i32_2 = arith.constant 0 : i32
    return %arg0, %c0_i32, %c0_i32_0, %c0_i32_1 : i32, i32, i32, i32
  }
  func.func @transform_1(%arg0: i32, %arg1: i32) -> (i32, i32, i32) {
    %c0_i32 = arith.constant 0 : i32
    %c0_i32_0 = arith.constant 0 : i32
    %c0_i32_1 = arith.constant 0 : i32
    %c0_i32_2 = arith.constant 0 : i32
    return %c0_i32, %c0_i32_0, %c0_i32_1 : i32, i32, i32
  }
  func.func @transform_2(%arg0: i32, %arg1: i32) -> (i32, i32, i32, i32) {
    %c0_i32 = arith.constant 0 : i32
    %c0_i32_0 = arith.constant 0 : i32
    %c0_i32_1 = arith.constant 0 : i32
    return %arg0, %arg1, %c0_i32, %c0_i32_0 : i32, i32, i32, i32
  }
  func.func @transform_3(%arg0: i32, %arg1: i32) -> (i32, i32, i32, i32) {
    %c0_i32 = arith.constant 0 : i32
    %c0_i32_0 = arith.constant 0 : i32
    %c0_i32_1 = arith.constant 0 : i32
    return %arg0, %arg1, %c0_i32, %c0_i32_0 : i32, i32, i32, i32
  }
  func.func @transform_4(%arg0: i32, %arg1: i32) -> (i32, i32, i32, i32) {
    %c0_i32 = arith.constant 0 : i32
    %c0_i32_0 = arith.constant 0 : i32
    %c0_i32_1 = arith.constant 0 : i32
    return %arg0, %arg1, %c0_i32, %c0_i32_0 : i32, i32, i32, i32
  }
}

module attributes {stable_mosaic.version = 11 : i64} {
  func.func @kernel(%arg0: i32, %arg1: i32, %arg2: memref<1x10x10x64xbf16, #tpu.memory_space<vmem>>, %arg3: memref<16x64x128xbf16, #tpu.memory_space<vmem>>, %arg4: memref<1x4x8x512xbf16, #tpu.memory_space<vmem>>, %arg5: memref<1x1x1x128xf32, #tpu.memory_space<vmem>>, %arg6: memref<1x1x1x128xf32, #tpu.memory_space<vmem>>) attributes {dimension_semantics = [#tpu.dimension_semantics<parallel>, #tpu.dimension_semantics<parallel>], iteration_bounds = array<i64: 2, 2>, scalar_prefetch = 0 : i64, scratch_operands = 0 : i64, tpu.core_type = #tpu.core_type<tc>, window_params = [{transform_indices = @transform_0, window_bounds = array<i64: 1, 10, 10, 64>}, {pipeline_mode = #tpu.pipeline_mode<synchronous>, transform_indices = @transform_1, window_bounds = array<i64: 16, 64, 128>}, {transform_indices = @transform_2, window_bounds = array<i64: 1, 4, 8, 512>}, {transform_indices = @transform_3, window_bounds = array<i64: 1, 1, 1, 128>}, {transform_indices = @transform_4, window_bounds = array<i64: 1, 1, 1, 128>}]} {
    %cst = arith.constant 0.000000e+00 : f32
    %0 = vector.broadcast %cst : f32 to vector<1x1x1x128xf32>
    %c0 = arith.constant 0 : index
    %c0_0 = arith.constant 0 : index
    %c0_1 = arith.constant 0 : index
    %c0_2 = arith.constant 0 : index
    %1 = vector.load %arg5[%c0, %c0_0, %c0_1, %c0_2] : memref<1x1x1x128xf32, #tpu.memory_space<vmem>>, vector<1x1x1x128xf32>
    tpu.vector_store %arg5[%c0, %c0_0, %c0_1, %c0_2], %0 {strides = array<i32>} : memref<1x1x1x128xf32, #tpu.memory_space<vmem>>, vector<1x1x1x128xf32>,
    %cst_3 = arith.constant 0.000000e+00 : f32
    %2 = vector.broadcast %cst_3 : f32 to vector<1x1x1x128xf32>
    %c0_4 = arith.constant 0 : index
    %c0_5 = arith.constant 0 : index
    %c0_6 = arith.constant 0 : index
    %c0_7 = arith.constant 0 : index
    %3 = vector.load %arg6[%c0_4, %c0_5, %c0_6, %c0_7] : memref<1x1x1x128xf32, #tpu.memory_space<vmem>>, vector<1x1x1x128xf32>
    tpu.vector_store %arg6[%c0_4, %c0_5, %c0_6, %c0_7], %2 {strides = array<i32>} : memref<1x1x1x128xf32, #tpu.memory_space<vmem>>, vector<1x1x1x128xf32>,
    %c4_i32 = arith.constant 4 : i32
    %4 = arith.muli %arg1, %c4_i32 : i32
    %c0_i32 = arith.constant 0 : i32
    %c4_i32_8 = arith.constant 4 : i32
    %5 = arith.addi %c0_i32, %c4_i32_8 : i32
    %c1_i32 = arith.constant 1 : i32
    scf.for %arg7 = %c0_i32 to %5 step %c1_i32  : i32 {
      %c1_i32_10 = arith.constant 1 : i32
      %6 = arith.muli %arg7, %c1_i32_10 : i32
      %c0_i32_11 = arith.constant 0 : i32
      %7 = arith.addi %c0_i32_11, %6 : i32
      %8 = arith.addi %4, %7 : i32
      %c0_i32_12 = arith.constant 0 : i32
      %9 = arith.addi %8, %c0_i32_12 : i32
      %c0_13 = arith.constant 0 : index
      %10 = arith.index_cast %9 : i32 to index
      %c0_14 = arith.constant 0 : index
      %c0_15 = arith.constant 0 : index
      %11 = vector.load %arg2[%c0_13, %10, %c0_14, %c0_15] : memref<1x10x10x64xbf16, #tpu.memory_space<vmem>>, vector<1x1x8x64xbf16>
      %12 = vector.shape_cast %11 : vector<1x1x8x64xbf16> to vector<1x8x64xbf16>
      %13 = vector.shape_cast %12 : vector<1x8x64xbf16> to vector<8x64xbf16>
      %c0_i32_16 = arith.constant 0 : i32
      %14 = arith.addi %8, %c0_i32_16 : i32
      %c0_17 = arith.constant 0 : index
      %15 = arith.index_cast %14 : i32 to index
      %c1 = arith.constant 1 : index
      %c0_18 = arith.constant 0 : index
      %16 = vector.load %arg2[%c0_17, %15, %c1, %c0_18] : memref<1x10x10x64xbf16, #tpu.memory_space<vmem>>, vector<1x1x8x64xbf16>
      %17 = vector.shape_cast %16 : vector<1x1x8x64xbf16> to vector<1x8x64xbf16>
      %18 = vector.shape_cast %17 : vector<1x8x64xbf16> to vector<8x64xbf16>
      %c0_i32_19 = arith.constant 0 : i32
      %19 = arith.addi %8, %c0_i32_19 : i32
      %c0_20 = arith.constant 0 : index
      %20 = arith.index_cast %19 : i32 to index
      %c2 = arith.constant 2 : index
      %c0_21 = arith.constant 0 : index
      %21 = vector.load %arg2[%c0_20, %20, %c2, %c0_21] : memref<1x10x10x64xbf16, #tpu.memory_space<vmem>>, vector<1x1x8x64xbf16>
      %22 = vector.shape_cast %21 : vector<1x1x8x64xbf16> to vector<1x8x64xbf16>
      %23 = vector.shape_cast %22 : vector<1x8x64xbf16> to vector<8x64xbf16>
      %c1_i32_22 = arith.constant 1 : i32
      %24 = arith.addi %8, %c1_i32_22 : i32
      %c0_23 = arith.constant 0 : index
      %25 = arith.index_cast %24 : i32 to index
      %c0_24 = arith.constant 0 : index
      %c0_25 = arith.constant 0 : index
      %26 = vector.load %arg2[%c0_23, %25, %c0_24, %c0_25] : memref<1x10x10x64xbf16, #tpu.memory_space<vmem>>, vector<1x1x8x64xbf16>
      %27 = vector.shape_cast %26 : vector<1x1x8x64xbf16> to vector<1x8x64xbf16>
      %28 = vector.shape_cast %27 : vector<1x8x64xbf16> to vector<8x64xbf16>
      %c1_i32_26 = arith.constant 1 : i32
      %29 = arith.addi %8, %c1_i32_26 : i32
      %c0_27 = arith.constant 0 : index
      %30 = arith.index_cast %29 : i32 to index
      %c1_28 = arith.constant 1 : index
      %c0_29 = arith.constant 0 : index
      %31 = vector.load %arg2[%c0_27, %30, %c1_28, %c0_29] : memref<1x10x10x64xbf16, #tpu.memory_space<vmem>>, vector<1x1x8x64xbf16>
      %32 = vector.shape_cast %31 : vector<1x1x8x64xbf16> to vector<1x8x64xbf16>
      %33 = vector.shape_cast %32 : vector<1x8x64xbf16> to vector<8x64xbf16>
      %c1_i32_30 = arith.constant 1 : i32
      %34 = arith.addi %8, %c1_i32_30 : i32
      %c0_31 = arith.constant 0 : index
      %35 = arith.index_cast %34 : i32 to index
      %c2_32 = arith.constant 2 : index
      %c0_33 = arith.constant 0 : index
      %36 = vector.load %arg2[%c0_31, %35, %c2_32, %c0_33] : memref<1x10x10x64xbf16, #tpu.memory_space<vmem>>, vector<1x1x8x64xbf16>
      %37 = vector.shape_cast %36 : vector<1x1x8x64xbf16> to vector<1x8x64xbf16>
      %38 = vector.shape_cast %37 : vector<1x8x64xbf16> to vector<8x64xbf16>
      %c2_i32 = arith.constant 2 : i32
      %39 = arith.addi %8, %c2_i32 : i32
      %c0_34 = arith.constant 0 : index
      %40 = arith.index_cast %39 : i32 to index
      %c0_35 = arith.constant 0 : index
      %c0_36 = arith.constant 0 : index
      %41 = vector.load %arg2[%c0_34, %40, %c0_35, %c0_36] : memref<1x10x10x64xbf16, #tpu.memory_space<vmem>>, vector<1x1x8x64xbf16>
      %42 = vector.shape_cast %41 : vector<1x1x8x64xbf16> to vector<1x8x64xbf16>
      %43 = vector.shape_cast %42 : vector<1x8x64xbf16> to vector<8x64xbf16>
      %c2_i32_37 = arith.constant 2 : i32
      %44 = arith.addi %8, %c2_i32_37 : i32
      %c0_38 = arith.constant 0 : index
      %45 = arith.index_cast %44 : i32 to index
      %c1_39 = arith.constant 1 : index
      %c0_40 = arith.constant 0 : index
      %46 = vector.load %arg2[%c0_38, %45, %c1_39, %c0_40] : memref<1x10x10x64xbf16, #tpu.memory_space<vmem>>, vector<1x1x8x64xbf16>
      %47 = vector.shape_cast %46 : vector<1x1x8x64xbf16> to vector<1x8x64xbf16>
      %48 = vector.shape_cast %47 : vector<1x8x64xbf16> to vector<8x64xbf16>
      %c2_i32_41 = arith.constant 2 : i32
      %49 = arith.addi %8, %c2_i32_41 : i32
      %c0_42 = arith.constant 0 : index
      %50 = arith.index_cast %49 : i32 to index
      %c2_43 = arith.constant 2 : index
      %c0_44 = arith.constant 0 : index
      %51 = vector.load %arg2[%c0_42, %50, %c2_43, %c0_44] : memref<1x10x10x64xbf16, #tpu.memory_space<vmem>>, vector<1x1x8x64xbf16>
      %52 = vector.shape_cast %51 : vector<1x1x8x64xbf16> to vector<1x8x64xbf16>
      %53 = vector.shape_cast %52 : vector<1x8x64xbf16> to vector<8x64xbf16>
      %cst_45 = arith.constant 0.000000e+00 : f32
      %54 = vector.broadcast %cst_45 : f32 to vector<8x128xf32>
      %c0_46 = arith.constant 0 : index
      %c0_47 = arith.constant 0 : index
      %c0_48 = arith.constant 0 : index
      %55 = vector.load %arg3[%c0_46, %c0_47, %c0_48] : memref<16x64x128xbf16, #tpu.memory_space<vmem>>, vector<1x64x128xbf16>
      %56 = vector.shape_cast %55 : vector<1x64x128xbf16> to vector<64x128xbf16>
      %cst_49 = arith.constant dense<0.000000e+00> : vector<8x128xf32>
      %57 = tpu.matmul %13, %56, %cst_49 {dimension_numbers = #tpu.dot_dimension_numbers<[1], [0], [0], [1], [0, 0, 1, 1], [], []>} : vector<8x64xbf16>, vector<64x128xbf16>, vector<8x128xf32> -> vector<8x128xf32>
      %58 = arith.addf %54, %57 : vector<8x128xf32>
      %c1_50 = arith.constant 1 : index
      %c0_51 = arith.constant 0 : index
      %c0_52 = arith.constant 0 : index
      %59 = vector.load %arg3[%c1_50, %c0_51, %c0_52] : memref<16x64x128xbf16, #tpu.memory_space<vmem>>, vector<1x64x128xbf16>
      %60 = vector.shape_cast %59 : vector<1x64x128xbf16> to vector<64x128xbf16>
      %cst_53 = arith.constant dense<0.000000e+00> : vector<8x128xf32>
      %61 = tpu.matmul %18, %60, %cst_53 {dimension_numbers = #tpu.dot_dimension_numbers<[1], [0], [0], [1], [0, 0, 1, 1], [], []>} : vector<8x64xbf16>, vector<64x128xbf16>, vector<8x128xf32> -> vector<8x128xf32>
      %62 = arith.addf %58, %61 : vector<8x128xf32>
      %c2_54 = arith.constant 2 : index
      %c0_55 = arith.constant 0 : index
      %c0_56 = arith.constant 0 : index
      %63 = vector.load %arg3[%c2_54, %c0_55, %c0_56] : memref<16x64x128xbf16, #tpu.memory_space<vmem>>, vector<1x64x128xbf16>
      %64 = vector.shape_cast %63 : vector<1x64x128xbf16> to vector<64x128xbf16>
      %cst_57 = arith.constant dense<0.000000e+00> : vector<8x128xf32>
      %65 = tpu.matmul %28, %64, %cst_57 {dimension_numbers = #tpu.dot_dimension_numbers<[1], [0], [0], [1], [0, 0, 1, 1], [], []>} : vector<8x64xbf16>, vector<64x128xbf16>, vector<8x128xf32> -> vector<8x128xf32>
      %66 = arith.addf %62, %65 : vector<8x128xf32>
      %c3 = arith.constant 3 : index
      %c0_58 = arith.constant 0 : index
      %c0_59 = arith.constant 0 : index
      %67 = vector.load %arg3[%c3, %c0_58, %c0_59] : memref<16x64x128xbf16, #tpu.memory_space<vmem>>, vector<1x64x128xbf16>
      %68 = vector.shape_cast %67 : vector<1x64x128xbf16> to vector<64x128xbf16>
      %cst_60 = arith.constant dense<0.000000e+00> : vector<8x128xf32>
      %69 = tpu.matmul %33, %68, %cst_60 {dimension_numbers = #tpu.dot_dimension_numbers<[1], [0], [0], [1], [0, 0, 1, 1], [], []>} : vector<8x64xbf16>, vector<64x128xbf16>, vector<8x128xf32> -> vector<8x128xf32>
      %70 = arith.addf %66, %69 : vector<8x128xf32>
      %c0_61 = arith.constant 0 : index
      %c0_62 = arith.constant 0 : index
      %c0_63 = arith.constant 0 : index
      %c0_64 = arith.constant 0 : index
      %71 = vector.load %arg5[%c0_61, %c0_62, %c0_63, %c0_64] : memref<1x1x1x128xf32, #tpu.memory_space<vmem>>, vector<1x1x1x128xf32>
      %72 = vector.shape_cast %71 : vector<1x1x1x128xf32> to vector<1x128xf32>
      %cst_65 = arith.constant dense<0.000000e+00> : vector<128xf32>
      %73 = vector.multi_reduction <add>, %70, %cst_65 [0] : vector<8x128xf32> to vector<128xf32>
      %74 = vector.shape_cast %73 : vector<128xf32> to vector<1x128xf32>
      %75 = arith.addf %72, %74 : vector<1x128xf32>
      %c0_66 = arith.constant 0 : index
      %c0_67 = arith.constant 0 : index
      %c0_68 = arith.constant 0 : index
      %c0_69 = arith.constant 0 : index
      %76 = vector.load %arg5[%c0_66, %c0_67, %c0_68, %c0_69] : memref<1x1x1x128xf32, #tpu.memory_space<vmem>>, vector<1x1x1x128xf32>
      %77 = vector.shape_cast %76 : vector<1x1x1x128xf32> to vector<1x128xf32>
      %78 = vector.shape_cast %75 : vector<1x128xf32> to vector<1x1x1x128xf32>
      tpu.vector_store %arg5[%c0_66, %c0_67, %c0_68, %c0_69], %78 {strides = array<i32>} : memref<1x1x1x128xf32, #tpu.memory_space<vmem>>, vector<1x1x1x128xf32>,
      %c0_70 = arith.constant 0 : index
      %c0_71 = arith.constant 0 : index
      %c0_72 = arith.constant 0 : index
      %c0_73 = arith.constant 0 : index
      %79 = vector.load %arg6[%c0_70, %c0_71, %c0_72, %c0_73] : memref<1x1x1x128xf32, #tpu.memory_space<vmem>>, vector<1x1x1x128xf32>
      %80 = vector.shape_cast %79 : vector<1x1x1x128xf32> to vector<1x128xf32>
      %81 = arith.mulf %70, %70 : vector<8x128xf32>
      %cst_74 = arith.constant dense<0.000000e+00> : vector<128xf32>
      %82 = vector.multi_reduction <add>, %81, %cst_74 [0] : vector<8x128xf32> to vector<128xf32>
      %83 = vector.shape_cast %82 : vector<128xf32> to vector<1x128xf32>
      %84 = arith.addf %80, %83 : vector<1x128xf32>
      %c0_75 = arith.constant 0 : index
      %c0_76 = arith.constant 0 : index
      %c0_77 = arith.constant 0 : index
      %c0_78 = arith.constant 0 : index
      %85 = vector.load %arg6[%c0_75, %c0_76, %c0_77, %c0_78] : memref<1x1x1x128xf32, #tpu.memory_space<vmem>>, vector<1x1x1x128xf32>
      %86 = vector.shape_cast %85 : vector<1x1x1x128xf32> to vector<1x128xf32>
      %87 = vector.shape_cast %84 : vector<1x128xf32> to vector<1x1x1x128xf32>
      tpu.vector_store %arg6[%c0_75, %c0_76, %c0_77, %c0_78], %87 {strides = array<i32>} : memref<1x1x1x128xf32, #tpu.memory_space<vmem>>, vector<1x1x1x128xf32>,
      %88 = arith.truncf %70 : vector<8x128xf32> to vector<8x128xbf16>
      %89 = vector.shape_cast %88 : vector<8x128xbf16> to vector<1x8x128xbf16>
      %c0_79 = arith.constant 0 : index
      %90 = arith.index_cast %7 : i32 to index
      %c0_80 = arith.constant 0 : index
      %c0_81 = arith.constant 0 : index
      %91 = vector.load %arg4[%c0_79, %90, %c0_80, %c0_81] : memref<1x4x8x512xbf16, #tpu.memory_space<vmem>>, vector<1x1x8x128xbf16>
      %92 = vector.shape_cast %91 : vector<1x1x8x128xbf16> to vector<1x8x128xbf16>
      %93 = vector.shape_cast %89 : vector<1x8x128xbf16> to vector<1x1x8x128xbf16>
      tpu.vector_store %arg4[%c0_79, %90, %c0_80, %c0_81], %93 {strides = array<i32>} : memref<1x4x8x512xbf16, #tpu.memory_space<vmem>>, vector<1x1x8x128xbf16>,
      %cst_82 = arith.constant 0.000000e+00 : f32
      %94 = vector.broadcast %cst_82 : f32 to vector<8x128xf32>
      %c4 = arith.constant 4 : index
      %c0_83 = arith.constant 0 : index
      %c0_84 = arith.constant 0 : index
      %95 = vector.load %arg3[%c4, %c0_83, %c0_84] : memref<16x64x128xbf16, #tpu.memory_space<vmem>>, vector<1x64x128xbf16>
      %96 = vector.shape_cast %95 : vector<1x64x128xbf16> to vector<64x128xbf16>
      %cst_85 = arith.constant dense<0.000000e+00> : vector<8x128xf32>
      %97 = tpu.matmul %18, %96, %cst_85 {dimension_numbers = #tpu.dot_dimension_numbers<[1], [0], [0], [1], [0, 0, 1, 1], [], []>} : vector<8x64xbf16>, vector<64x128xbf16>, vector<8x128xf32> -> vector<8x128xf32>
      %98 = arith.addf %94, %97 : vector<8x128xf32>
      %c5 = arith.constant 5 : index
      %c0_86 = arith.constant 0 : index
      %c0_87 = arith.constant 0 : index
      %99 = vector.load %arg3[%c5, %c0_86, %c0_87] : memref<16x64x128xbf16, #tpu.memory_space<vmem>>, vector<1x64x128xbf16>
      %100 = vector.shape_cast %99 : vector<1x64x128xbf16> to vector<64x128xbf16>
      %cst_88 = arith.constant dense<0.000000e+00> : vector<8x128xf32>
      %101 = tpu.matmul %23, %100, %cst_88 {dimension_numbers = #tpu.dot_dimension_numbers<[1], [0], [0], [1], [0, 0, 1, 1], [], []>} : vector<8x64xbf16>, vector<64x128xbf16>, vector<8x128xf32> -> vector<8x128xf32>
      %102 = arith.addf %98, %101 : vector<8x128xf32>
      %c6 = arith.constant 6 : index
      %c0_89 = arith.constant 0 : index
      %c0_90 = arith.constant 0 : index
      %103 = vector.load %arg3[%c6, %c0_89, %c0_90] : memref<16x64x128xbf16, #tpu.memory_space<vmem>>, vector<1x64x128xbf16>
      %104 = vector.shape_cast %103 : vector<1x64x128xbf16> to vector<64x128xbf16>
      %cst_91 = arith.constant dense<0.000000e+00> : vector<8x128xf32>
      %105 = tpu.matmul %33, %104, %cst_91 {dimension_numbers = #tpu.dot_dimension_numbers<[1], [0], [0], [1], [0, 0, 1, 1], [], []>} : vector<8x64xbf16>, vector<64x128xbf16>, vector<8x128xf32> -> vector<8x128xf32>
      %106 = arith.addf %102, %105 : vector<8x128xf32>
      %c7 = arith.constant 7 : index
      %c0_92 = arith.constant 0 : index
      %c0_93 = arith.constant 0 : index
      %107 = vector.load %arg3[%c7, %c0_92, %c0_93] : memref<16x64x128xbf16, #tpu.memory_space<vmem>>, vector<1x64x128xbf16>
      %108 = vector.shape_cast %107 : vector<1x64x128xbf16> to vector<64x128xbf16>
      %cst_94 = arith.constant dense<0.000000e+00> : vector<8x128xf32>
      %109 = tpu.matmul %38, %108, %cst_94 {dimension_numbers = #tpu.dot_dimension_numbers<[1], [0], [0], [1], [0, 0, 1, 1], [], []>} : vector<8x64xbf16>, vector<64x128xbf16>, vector<8x128xf32> -> vector<8x128xf32>
      %110 = arith.addf %106, %109 : vector<8x128xf32>
      %c0_95 = arith.constant 0 : index
      %c0_96 = arith.constant 0 : index
      %c0_97 = arith.constant 0 : index
      %c0_98 = arith.constant 0 : index
      %111 = vector.load %arg5[%c0_95, %c0_96, %c0_97, %c0_98] : memref<1x1x1x128xf32, #tpu.memory_space<vmem>>, vector<1x1x1x128xf32>
      %112 = vector.shape_cast %111 : vector<1x1x1x128xf32> to vector<1x128xf32>
      %cst_99 = arith.constant dense<0.000000e+00> : vector<128xf32>
      %113 = vector.multi_reduction <add>, %110, %cst_99 [0] : vector<8x128xf32> to vector<128xf32>
      %114 = vector.shape_cast %113 : vector<128xf32> to vector<1x128xf32>
      %115 = arith.addf %112, %114 : vector<1x128xf32>
      %c0_100 = arith.constant 0 : index
      %c0_101 = arith.constant 0 : index
      %c0_102 = arith.constant 0 : index
      %c0_103 = arith.constant 0 : index
      %116 = vector.load %arg5[%c0_100, %c0_101, %c0_102, %c0_103] : memref<1x1x1x128xf32, #tpu.memory_space<vmem>>, vector<1x1x1x128xf32>
      %117 = vector.shape_cast %116 : vector<1x1x1x128xf32> to vector<1x128xf32>
      %118 = vector.shape_cast %115 : vector<1x128xf32> to vector<1x1x1x128xf32>
      tpu.vector_store %arg5[%c0_100, %c0_101, %c0_102, %c0_103], %118 {strides = array<i32>} : memref<1x1x1x128xf32, #tpu.memory_space<vmem>>, vector<1x1x1x128xf32>,
      %c0_104 = arith.constant 0 : index
      %c0_105 = arith.constant 0 : index
      %c0_106 = arith.constant 0 : index
      %c0_107 = arith.constant 0 : index
      %119 = vector.load %arg6[%c0_104, %c0_105, %c0_106, %c0_107] : memref<1x1x1x128xf32, #tpu.memory_space<vmem>>, vector<1x1x1x128xf32>
      %120 = vector.shape_cast %119 : vector<1x1x1x128xf32> to vector<1x128xf32>
      %121 = arith.mulf %110, %110 : vector<8x128xf32>
      %cst_108 = arith.constant dense<0.000000e+00> : vector<128xf32>
      %122 = vector.multi_reduction <add>, %121, %cst_108 [0] : vector<8x128xf32> to vector<128xf32>
      %123 = vector.shape_cast %122 : vector<128xf32> to vector<1x128xf32>
      %124 = arith.addf %120, %123 : vector<1x128xf32>
      %c0_109 = arith.constant 0 : index
      %c0_110 = arith.constant 0 : index
      %c0_111 = arith.constant 0 : index
      %c0_112 = arith.constant 0 : index
      %125 = vector.load %arg6[%c0_109, %c0_110, %c0_111, %c0_112] : memref<1x1x1x128xf32, #tpu.memory_space<vmem>>, vector<1x1x1x128xf32>
      %126 = vector.shape_cast %125 : vector<1x1x1x128xf32> to vector<1x128xf32>
      %127 = vector.shape_cast %124 : vector<1x128xf32> to vector<1x1x1x128xf32>
      tpu.vector_store %arg6[%c0_109, %c0_110, %c0_111, %c0_112], %127 {strides = array<i32>} : memref<1x1x1x128xf32, #tpu.memory_space<vmem>>, vector<1x1x1x128xf32>,
      %128 = arith.truncf %110 : vector<8x128xf32> to vector<8x128xbf16>
      %129 = vector.shape_cast %128 : vector<8x128xbf16> to vector<1x8x128xbf16>
      %c0_113 = arith.constant 0 : index
      %130 = arith.index_cast %7 : i32 to index
      %c0_114 = arith.constant 0 : index
      %c128 = arith.constant 128 : index
      %131 = vector.load %arg4[%c0_113, %130, %c0_114, %c128] : memref<1x4x8x512xbf16, #tpu.memory_space<vmem>>, vector<1x1x8x128xbf16>
      %132 = vector.shape_cast %131 : vector<1x1x8x128xbf16> to vector<1x8x128xbf16>
      %133 = vector.shape_cast %129 : vector<1x8x128xbf16> to vector<1x1x8x128xbf16>
      tpu.vector_store %arg4[%c0_113, %130, %c0_114, %c128], %133 {strides = array<i32>} : memref<1x4x8x512xbf16, #tpu.memory_space<vmem>>, vector<1x1x8x128xbf16>,
      %cst_115 = arith.constant 0.000000e+00 : f32
      %134 = vector.broadcast %cst_115 : f32 to vector<8x128xf32>
      %c8 = arith.constant 8 : index
      %c0_116 = arith.constant 0 : index
      %c0_117 = arith.constant 0 : index
      %135 = vector.load %arg3[%c8, %c0_116, %c0_117] : memref<16x64x128xbf16, #tpu.memory_space<vmem>>, vector<1x64x128xbf16>
      %136 = vector.shape_cast %135 : vector<1x64x128xbf16> to vector<64x128xbf16>
      %cst_118 = arith.constant dense<0.000000e+00> : vector<8x128xf32>
      %137 = tpu.matmul %28, %136, %cst_118 {dimension_numbers = #tpu.dot_dimension_numbers<[1], [0], [0], [1], [0, 0, 1, 1], [], []>} : vector<8x64xbf16>, vector<64x128xbf16>, vector<8x128xf32> -> vector<8x128xf32>
      %138 = arith.addf %134, %137 : vector<8x128xf32>
      %c9 = arith.constant 9 : index
      %c0_119 = arith.constant 0 : index
      %c0_120 = arith.constant 0 : index
      %139 = vector.load %arg3[%c9, %c0_119, %c0_120] : memref<16x64x128xbf16, #tpu.memory_space<vmem>>, vector<1x64x128xbf16>
      %140 = vector.shape_cast %139 : vector<1x64x128xbf16> to vector<64x128xbf16>
      %cst_121 = arith.constant dense<0.000000e+00> : vector<8x128xf32>
      %141 = tpu.matmul %33, %140, %cst_121 {dimension_numbers = #tpu.dot_dimension_numbers<[1], [0], [0], [1], [0, 0, 1, 1], [], []>} : vector<8x64xbf16>, vector<64x128xbf16>, vector<8x128xf32> -> vector<8x128xf32>
      %142 = arith.addf %138, %141 : vector<8x128xf32>
      %c10 = arith.constant 10 : index
      %c0_122 = arith.constant 0 : index
      %c0_123 = arith.constant 0 : index
      %143 = vector.load %arg3[%c10, %c0_122, %c0_123] : memref<16x64x128xbf16, #tpu.memory_space<vmem>>, vector<1x64x128xbf16>
      %144 = vector.shape_cast %143 : vector<1x64x128xbf16> to vector<64x128xbf16>
      %cst_124 = arith.constant dense<0.000000e+00> : vector<8x128xf32>
      %145 = tpu.matmul %43, %144, %cst_124 {dimension_numbers = #tpu.dot_dimension_numbers<[1], [0], [0], [1], [0, 0, 1, 1], [], []>} : vector<8x64xbf16>, vector<64x128xbf16>, vector<8x128xf32> -> vector<8x128xf32>
      %146 = arith.addf %142, %145 : vector<8x128xf32>
      %c11 = arith.constant 11 : index
      %c0_125 = arith.constant 0 : index
      %c0_126 = arith.constant 0 : index
      %147 = vector.load %arg3[%c11, %c0_125, %c0_126] : memref<16x64x128xbf16, #tpu.memory_space<vmem>>, vector<1x64x128xbf16>
      %148 = vector.shape_cast %147 : vector<1x64x128xbf16> to vector<64x128xbf16>
      %cst_127 = arith.constant dense<0.000000e+00> : vector<8x128xf32>
      %149 = tpu.matmul %48, %148, %cst_127 {dimension_numbers = #tpu.dot_dimension_numbers<[1], [0], [0], [1], [0, 0, 1, 1], [], []>} : vector<8x64xbf16>, vector<64x128xbf16>, vector<8x128xf32> -> vector<8x128xf32>
      %150 = arith.addf %146, %149 : vector<8x128xf32>
      %c0_128 = arith.constant 0 : index
      %c0_129 = arith.constant 0 : index
      %c0_130 = arith.constant 0 : index
      %c0_131 = arith.constant 0 : index
      %151 = vector.load %arg5[%c0_128, %c0_129, %c0_130, %c0_131] : memref<1x1x1x128xf32, #tpu.memory_space<vmem>>, vector<1x1x1x128xf32>
      %152 = vector.shape_cast %151 : vector<1x1x1x128xf32> to vector<1x128xf32>
      %cst_132 = arith.constant dense<0.000000e+00> : vector<128xf32>
      %153 = vector.multi_reduction <add>, %150, %cst_132 [0] : vector<8x128xf32> to vector<128xf32>
      %154 = vector.shape_cast %153 : vector<128xf32> to vector<1x128xf32>
      %155 = arith.addf %152, %154 : vector<1x128xf32>
      %c0_133 = arith.constant 0 : index
      %c0_134 = arith.constant 0 : index
      %c0_135 = arith.constant 0 : index
      %c0_136 = arith.constant 0 : index
      %156 = vector.load %arg5[%c0_133, %c0_134, %c0_135, %c0_136] : memref<1x1x1x128xf32, #tpu.memory_space<vmem>>, vector<1x1x1x128xf32>
      %157 = vector.shape_cast %156 : vector<1x1x1x128xf32> to vector<1x128xf32>
      %158 = vector.shape_cast %155 : vector<1x128xf32> to vector<1x1x1x128xf32>
      tpu.vector_store %arg5[%c0_133, %c0_134, %c0_135, %c0_136], %158 {strides = array<i32>} : memref<1x1x1x128xf32, #tpu.memory_space<vmem>>, vector<1x1x1x128xf32>,
      %c0_137 = arith.constant 0 : index
      %c0_138 = arith.constant 0 : index
      %c0_139 = arith.constant 0 : index
      %c0_140 = arith.constant 0 : index
      %159 = vector.load %arg6[%c0_137, %c0_138, %c0_139, %c0_140] : memref<1x1x1x128xf32, #tpu.memory_space<vmem>>, vector<1x1x1x128xf32>
      %160 = vector.shape_cast %159 : vector<1x1x1x128xf32> to vector<1x128xf32>
      %161 = arith.mulf %150, %150 : vector<8x128xf32>
      %cst_141 = arith.constant dense<0.000000e+00> : vector<128xf32>
      %162 = vector.multi_reduction <add>, %161, %cst_141 [0] : vector<8x128xf32> to vector<128xf32>
      %163 = vector.shape_cast %162 : vector<128xf32> to vector<1x128xf32>
      %164 = arith.addf %160, %163 : vector<1x128xf32>
      %c0_142 = arith.constant 0 : index
      %c0_143 = arith.constant 0 : index
      %c0_144 = arith.constant 0 : index
      %c0_145 = arith.constant 0 : index
      %165 = vector.load %arg6[%c0_142, %c0_143, %c0_144, %c0_145] : memref<1x1x1x128xf32, #tpu.memory_space<vmem>>, vector<1x1x1x128xf32>
      %166 = vector.shape_cast %165 : vector<1x1x1x128xf32> to vector<1x128xf32>
      %167 = vector.shape_cast %164 : vector<1x128xf32> to vector<1x1x1x128xf32>
      tpu.vector_store %arg6[%c0_142, %c0_143, %c0_144, %c0_145], %167 {strides = array<i32>} : memref<1x1x1x128xf32, #tpu.memory_space<vmem>>, vector<1x1x1x128xf32>,
      %168 = arith.truncf %150 : vector<8x128xf32> to vector<8x128xbf16>
      %169 = vector.shape_cast %168 : vector<8x128xbf16> to vector<1x8x128xbf16>
      %c0_146 = arith.constant 0 : index
      %170 = arith.index_cast %7 : i32 to index
      %c0_147 = arith.constant 0 : index
      %c256 = arith.constant 256 : index
      %171 = vector.load %arg4[%c0_146, %170, %c0_147, %c256] : memref<1x4x8x512xbf16, #tpu.memory_space<vmem>>, vector<1x1x8x128xbf16>
      %172 = vector.shape_cast %171 : vector<1x1x8x128xbf16> to vector<1x8x128xbf16>
      %173 = vector.shape_cast %169 : vector<1x8x128xbf16> to vector<1x1x8x128xbf16>
      tpu.vector_store %arg4[%c0_146, %170, %c0_147, %c256], %173 {strides = array<i32>} : memref<1x4x8x512xbf16, #tpu.memory_space<vmem>>, vector<1x1x8x128xbf16>,
      %cst_148 = arith.constant 0.000000e+00 : f32
      %174 = vector.broadcast %cst_148 : f32 to vector<8x128xf32>
      %c12 = arith.constant 12 : index
      %c0_149 = arith.constant 0 : index
      %c0_150 = arith.constant 0 : index
      %175 = vector.load %arg3[%c12, %c0_149, %c0_150] : memref<16x64x128xbf16, #tpu.memory_space<vmem>>, vector<1x64x128xbf16>
      %176 = vector.shape_cast %175 : vector<1x64x128xbf16> to vector<64x128xbf16>
      %cst_151 = arith.constant dense<0.000000e+00> : vector<8x128xf32>
      %177 = tpu.matmul %33, %176, %cst_151 {dimension_numbers = #tpu.dot_dimension_numbers<[1], [0], [0], [1], [0, 0, 1, 1], [], []>} : vector<8x64xbf16>, vector<64x128xbf16>, vector<8x128xf32> -> vector<8x128xf32>
      %178 = arith.addf %174, %177 : vector<8x128xf32>
      %c13 = arith.constant 13 : index
      %c0_152 = arith.constant 0 : index
      %c0_153 = arith.constant 0 : index
      %179 = vector.load %arg3[%c13, %c0_152, %c0_153] : memref<16x64x128xbf16, #tpu.memory_space<vmem>>, vector<1x64x128xbf16>
      %180 = vector.shape_cast %179 : vector<1x64x128xbf16> to vector<64x128xbf16>
      %cst_154 = arith.constant dense<0.000000e+00> : vector<8x128xf32>
      %181 = tpu.matmul %38, %180, %cst_154 {dimension_numbers = #tpu.dot_dimension_numbers<[1], [0], [0], [1], [0, 0, 1, 1], [], []>} : vector<8x64xbf16>, vector<64x128xbf16>, vector<8x128xf32> -> vector<8x128xf32>
      %182 = arith.addf %178, %181 : vector<8x128xf32>
      %c14 = arith.constant 14 : index
      %c0_155 = arith.constant 0 : index
      %c0_156 = arith.constant 0 : index
      %183 = vector.load %arg3[%c14, %c0_155, %c0_156] : memref<16x64x128xbf16, #tpu.memory_space<vmem>>, vector<1x64x128xbf16>
      %184 = vector.shape_cast %183 : vector<1x64x128xbf16> to vector<64x128xbf16>
      %cst_157 = arith.constant dense<0.000000e+00> : vector<8x128xf32>
      %185 = tpu.matmul %48, %184, %cst_157 {dimension_numbers = #tpu.dot_dimension_numbers<[1], [0], [0], [1], [0, 0, 1, 1], [], []>} : vector<8x64xbf16>, vector<64x128xbf16>, vector<8x128xf32> -> vector<8x128xf32>
      %186 = arith.addf %182, %185 : vector<8x128xf32>
      %c15 = arith.constant 15 : index
      %c0_158 = arith.constant 0 : index
      %c0_159 = arith.constant 0 : index
      %187 = vector.load %arg3[%c15, %c0_158, %c0_159] : memref<16x64x128xbf16, #tpu.memory_space<vmem>>, vector<1x64x128xbf16>
      %188 = vector.shape_cast %187 : vector<1x64x128xbf16> to vector<64x128xbf16>
      %cst_160 = arith.constant dense<0.000000e+00> : vector<8x128xf32>
      %189 = tpu.matmul %53, %188, %cst_160 {dimension_numbers = #tpu.dot_dimension_numbers<[1], [0], [0], [1], [0, 0, 1, 1], [], []>} : vector<8x64xbf16>, vector<64x128xbf16>, vector<8x128xf32> -> vector<8x128xf32>
      %190 = arith.addf %186, %189 : vector<8x128xf32>
      %c0_161 = arith.constant 0 : index
      %c0_162 = arith.constant 0 : index
      %c0_163 = arith.constant 0 : index
      %c0_164 = arith.constant 0 : index
      %191 = vector.load %arg5[%c0_161, %c0_162, %c0_163, %c0_164] : memref<1x1x1x128xf32, #tpu.memory_space<vmem>>, vector<1x1x1x128xf32>
      %192 = vector.shape_cast %191 : vector<1x1x1x128xf32> to vector<1x128xf32>
      %cst_165 = arith.constant dense<0.000000e+00> : vector<128xf32>
      %193 = vector.multi_reduction <add>, %190, %cst_165 [0] : vector<8x128xf32> to vector<128xf32>
      %194 = vector.shape_cast %193 : vector<128xf32> to vector<1x128xf32>
      %195 = arith.addf %192, %194 : vector<1x128xf32>
      %c0_166 = arith.constant 0 : index
      %c0_167 = arith.constant 0 : index
      %c0_168 = arith.constant 0 : index
      %c0_169 = arith.constant 0 : index
      %196 = vector.load %arg5[%c0_166, %c0_167, %c0_168, %c0_169] : memref<1x1x1x128xf32, #tpu.memory_space<vmem>>, vector<1x1x1x128xf32>
      %197 = vector.shape_cast %196 : vector<1x1x1x128xf32> to vector<1x128xf32>
      %198 = vector.shape_cast %195 : vector<1x128xf32> to vector<1x1x1x128xf32>
      tpu.vector_store %arg5[%c0_166, %c0_167, %c0_168, %c0_169], %198 {strides = array<i32>} : memref<1x1x1x128xf32, #tpu.memory_space<vmem>>, vector<1x1x1x128xf32>,
      %c0_170 = arith.constant 0 : index
      %c0_171 = arith.constant 0 : index
      %c0_172 = arith.constant 0 : index
      %c0_173 = arith.constant 0 : index
      %199 = vector.load %arg6[%c0_170, %c0_171, %c0_172, %c0_173] : memref<1x1x1x128xf32, #tpu.memory_space<vmem>>, vector<1x1x1x128xf32>
      %200 = vector.shape_cast %199 : vector<1x1x1x128xf32> to vector<1x128xf32>
      %201 = arith.mulf %190, %190 : vector<8x128xf32>
      %cst_174 = arith.constant dense<0.000000e+00> : vector<128xf32>
      %202 = vector.multi_reduction <add>, %201, %cst_174 [0] : vector<8x128xf32> to vector<128xf32>
      %203 = vector.shape_cast %202 : vector<128xf32> to vector<1x128xf32>
      %204 = arith.addf %200, %203 : vector<1x128xf32>
      %c0_175 = arith.constant 0 : index
      %c0_176 = arith.constant 0 : index
      %c0_177 = arith.constant 0 : index
      %c0_178 = arith.constant 0 : index
      %205 = vector.load %arg6[%c0_175, %c0_176, %c0_177, %c0_178] : memref<1x1x1x128xf32, #tpu.memory_space<vmem>>, vector<1x1x1x128xf32>
      %206 = vector.shape_cast %205 : vector<1x1x1x128xf32> to vector<1x128xf32>
      %207 = vector.shape_cast %204 : vector<1x128xf32> to vector<1x1x1x128xf32>
      tpu.vector_store %arg6[%c0_175, %c0_176, %c0_177, %c0_178], %207 {strides = array<i32>} : memref<1x1x1x128xf32, #tpu.memory_space<vmem>>, vector<1x1x1x128xf32>,
      %208 = arith.truncf %190 : vector<8x128xf32> to vector<8x128xbf16>
      %209 = vector.shape_cast %208 : vector<8x128xbf16> to vector<1x8x128xbf16>
      %c0_179 = arith.constant 0 : index
      %210 = arith.index_cast %7 : i32 to index
      %c0_180 = arith.constant 0 : index
      %c384 = arith.constant 384 : index
      %211 = vector.load %arg4[%c0_179, %210, %c0_180, %c384] : memref<1x4x8x512xbf16, #tpu.memory_space<vmem>>, vector<1x1x8x128xbf16>
      %212 = vector.shape_cast %211 : vector<1x1x8x128xbf16> to vector<1x8x128xbf16>
      %213 = vector.shape_cast %209 : vector<1x8x128xbf16> to vector<1x1x8x128xbf16>
      tpu.vector_store %arg4[%c0_179, %210, %c0_180, %c384], %213 {strides = array<i32>} : memref<1x4x8x512xbf16, #tpu.memory_space<vmem>>, vector<1x1x8x128xbf16>,
    }
    %c4_i32_9 = arith.constant 4 : i32
    return
  }
  func.func @transform_0(%arg0: i32, %arg1: i32) -> (i32, i32, i32, i32) {
    %c0_i32 = arith.constant 0 : i32
    %c0_i32_0 = arith.constant 0 : i32
    %c0_i32_1 = arith.constant 0 : i32
    %c0_i32_2 = arith.constant 0 : i32
    return %arg0, %c0_i32, %c0_i32_0, %c0_i32_1 : i32, i32, i32, i32
  }
  func.func @transform_1(%arg0: i32, %arg1: i32) -> (i32, i32, i32) {
    %c0_i32 = arith.constant 0 : i32
    %c0_i32_0 = arith.constant 0 : i32
    %c0_i32_1 = arith.constant 0 : i32
    %c0_i32_2 = arith.constant 0 : i32
    return %c0_i32, %c0_i32_0, %c0_i32_1 : i32, i32, i32
  }
  func.func @transform_2(%arg0: i32, %arg1: i32) -> (i32, i32, i32, i32) {
    %c0_i32 = arith.constant 0 : i32
    %c0_i32_0 = arith.constant 0 : i32
    %c0_i32_1 = arith.constant 0 : i32
    return %arg0, %arg1, %c0_i32, %c0_i32_0 : i32, i32, i32, i32
  }
  func.func @transform_3(%arg0: i32, %arg1: i32) -> (i32, i32, i32, i32) {
    %c0_i32 = arith.constant 0 : i32
    %c0_i32_0 = arith.constant 0 : i32
    %c0_i32_1 = arith.constant 0 : i32
    return %arg0, %arg1, %c0_i32, %c0_i32_0 : i32, i32, i32, i32
  }
  func.func @transform_4(%arg0: i32, %arg1: i32) -> (i32, i32, i32, i32) {
    %c0_i32 = arith.constant 0 : i32
    %c0_i32_0 = arith.constant 0 : i32
    %c0_i32_1 = arith.constant 0 : i32
    return %arg0, %arg1, %c0_i32, %c0_i32_0 : i32, i32, i32, i32
  }
}

module attributes {stable_mosaic.version = 11 : i64} {
  func.func @kernel(%arg0: i32, %arg1: i32, %arg2: memref<1x18x18x32xbf16, #tpu.memory_space<vmem>>, %arg3: memref<16x32x128xbf16, #tpu.memory_space<vmem>>, %arg4: memref<1x8x16x512xf32, #tpu.memory_space<vmem>>) attributes {dimension_semantics = [#tpu.dimension_semantics<parallel>, #tpu.dimension_semantics<parallel>], iteration_bounds = array<i64: 2, 2>, scalar_prefetch = 0 : i64, scratch_operands = 0 : i64, tpu.core_type = #tpu.core_type<tc>, window_params = [{transform_indices = @transform_0, window_bounds = array<i64: 1, 18, 18, 32>}, {pipeline_mode = #tpu.pipeline_mode<synchronous>, transform_indices = @transform_1, window_bounds = array<i64: 16, 32, 128>}, {transform_indices = @transform_2, window_bounds = array<i64: 1, 8, 16, 512>}]} {
    %c8_i32 = arith.constant 8 : i32
    %0 = arith.muli %arg1, %c8_i32 : i32
    %c0_i32 = arith.constant 0 : i32
    %c8_i32_0 = arith.constant 8 : i32
    %1 = arith.addi %c0_i32, %c8_i32_0 : i32
    %c1_i32 = arith.constant 1 : i32
    scf.for %arg5 = %c0_i32 to %1 step %c1_i32  : i32 {
      %c1_i32_2 = arith.constant 1 : i32
      %2 = arith.muli %arg5, %c1_i32_2 : i32
      %c0_i32_3 = arith.constant 0 : i32
      %3 = arith.addi %c0_i32_3, %2 : i32
      %4 = arith.addi %0, %3 : i32
      %c0_i32_4 = arith.constant 0 : i32
      %5 = arith.addi %4, %c0_i32_4 : i32
      %c0 = arith.constant 0 : index
      %6 = arith.index_cast %5 : i32 to index
      %c0_5 = arith.constant 0 : index
      %c0_6 = arith.constant 0 : index
      %7 = vector.load %arg2[%c0, %6, %c0_5, %c0_6] : memref<1x18x18x32xbf16, #tpu.memory_space<vmem>>, vector<1x1x16x32xbf16>
      %8 = vector.shape_cast %7 : vector<1x1x16x32xbf16> to vector<1x16x32xbf16>
      %9 = vector.shape_cast %8 : vector<1x16x32xbf16> to vector<16x32xbf16>
      %c0_i32_7 = arith.constant 0 : i32
      %10 = arith.addi %4, %c0_i32_7 : i32
      %c0_8 = arith.constant 0 : index
      %11 = arith.index_cast %10 : i32 to index
      %c1 = arith.constant 1 : index
      %c0_9 = arith.constant 0 : index
      %12 = vector.load %arg2[%c0_8, %11, %c1, %c0_9] : memref<1x18x18x32xbf16, #tpu.memory_space<vmem>>, vector<1x1x16x32xbf16>
      %13 = vector.shape_cast %12 : vector<1x1x16x32xbf16> to vector<1x16x32xbf16>
      %14 = vector.shape_cast %13 : vector<1x16x32xbf16> to vector<16x32xbf16>
      %c0_i32_10 = arith.constant 0 : i32
      %15 = arith.addi %4, %c0_i32_10 : i32
      %c0_11 = arith.constant 0 : index
      %16 = arith.index_cast %15 : i32 to index
      %c2 = arith.constant 2 : index
      %c0_12 = arith.constant 0 : index
      %17 = vector.load %arg2[%c0_11, %16, %c2, %c0_12] : memref<1x18x18x32xbf16, #tpu.memory_space<vmem>>, vector<1x1x16x32xbf16>
      %18 = vector.shape_cast %17 : vector<1x1x16x32xbf16> to vector<1x16x32xbf16>
      %19 = vector.shape_cast %18 : vector<1x16x32xbf16> to vector<16x32xbf16>
      %c1_i32_13 = arith.constant 1 : i32
      %20 = arith.addi %4, %c1_i32_13 : i32
      %c0_14 = arith.constant 0 : index
      %21 = arith.index_cast %20 : i32 to index
      %c0_15 = arith.constant 0 : index
      %c0_16 = arith.constant 0 : index
      %22 = vector.load %arg2[%c0_14, %21, %c0_15, %c0_16] : memref<1x18x18x32xbf16, #tpu.memory_space<vmem>>, vector<1x1x16x32xbf16>
      %23 = vector.shape_cast %22 : vector<1x1x16x32xbf16> to vector<1x16x32xbf16>
      %24 = vector.shape_cast %23 : vector<1x16x32xbf16> to vector<16x32xbf16>
      %c1_i32_17 = arith.constant 1 : i32
      %25 = arith.addi %4, %c1_i32_17 : i32
      %c0_18 = arith.constant 0 : index
      %26 = arith.index_cast %25 : i32 to index
      %c1_19 = arith.constant 1 : index
      %c0_20 = arith.constant 0 : index
      %27 = vector.load %arg2[%c0_18, %26, %c1_19, %c0_20] : memref<1x18x18x32xbf16, #tpu.memory_space<vmem>>, vector<1x1x16x32xbf16>
      %28 = vector.shape_cast %27 : vector<1x1x16x32xbf16> to vector<1x16x32xbf16>
      %29 = vector.shape_cast %28 : vector<1x16x32xbf16> to vector<16x32xbf16>
      %c1_i32_21 = arith.constant 1 : i32
      %30 = arith.addi %4, %c1_i32_21 : i32
      %c0_22 = arith.constant 0 : index
      %31 = arith.index_cast %30 : i32 to index
      %c2_23 = arith.constant 2 : index
      %c0_24 = arith.constant 0 : index
      %32 = vector.load %arg2[%c0_22, %31, %c2_23, %c0_24] : memref<1x18x18x32xbf16, #tpu.memory_space<vmem>>, vector<1x1x16x32xbf16>
      %33 = vector.shape_cast %32 : vector<1x1x16x32xbf16> to vector<1x16x32xbf16>
      %34 = vector.shape_cast %33 : vector<1x16x32xbf16> to vector<16x32xbf16>
      %c2_i32 = arith.constant 2 : i32
      %35 = arith.addi %4, %c2_i32 : i32
      %c0_25 = arith.constant 0 : index
      %36 = arith.index_cast %35 : i32 to index
      %c0_26 = arith.constant 0 : index
      %c0_27 = arith.constant 0 : index
      %37 = vector.load %arg2[%c0_25, %36, %c0_26, %c0_27] : memref<1x18x18x32xbf16, #tpu.memory_space<vmem>>, vector<1x1x16x32xbf16>
      %38 = vector.shape_cast %37 : vector<1x1x16x32xbf16> to vector<1x16x32xbf16>
      %39 = vector.shape_cast %38 : vector<1x16x32xbf16> to vector<16x32xbf16>
      %c2_i32_28 = arith.constant 2 : i32
      %40 = arith.addi %4, %c2_i32_28 : i32
      %c0_29 = arith.constant 0 : index
      %41 = arith.index_cast %40 : i32 to index
      %c1_30 = arith.constant 1 : index
      %c0_31 = arith.constant 0 : index
      %42 = vector.load %arg2[%c0_29, %41, %c1_30, %c0_31] : memref<1x18x18x32xbf16, #tpu.memory_space<vmem>>, vector<1x1x16x32xbf16>
      %43 = vector.shape_cast %42 : vector<1x1x16x32xbf16> to vector<1x16x32xbf16>
      %44 = vector.shape_cast %43 : vector<1x16x32xbf16> to vector<16x32xbf16>
      %c2_i32_32 = arith.constant 2 : i32
      %45 = arith.addi %4, %c2_i32_32 : i32
      %c0_33 = arith.constant 0 : index
      %46 = arith.index_cast %45 : i32 to index
      %c2_34 = arith.constant 2 : index
      %c0_35 = arith.constant 0 : index
      %47 = vector.load %arg2[%c0_33, %46, %c2_34, %c0_35] : memref<1x18x18x32xbf16, #tpu.memory_space<vmem>>, vector<1x1x16x32xbf16>
      %48 = vector.shape_cast %47 : vector<1x1x16x32xbf16> to vector<1x16x32xbf16>
      %49 = vector.shape_cast %48 : vector<1x16x32xbf16> to vector<16x32xbf16>
      %cst = arith.constant 0.000000e+00 : f32
      %50 = vector.broadcast %cst : f32 to vector<16x128xf32>
      %c0_36 = arith.constant 0 : index
      %c0_37 = arith.constant 0 : index
      %c0_38 = arith.constant 0 : index
      %51 = vector.load %arg3[%c0_36, %c0_37, %c0_38] : memref<16x32x128xbf16, #tpu.memory_space<vmem>>, vector<1x32x128xbf16>
      %52 = vector.shape_cast %51 : vector<1x32x128xbf16> to vector<32x128xbf16>
      %cst_39 = arith.constant dense<0.000000e+00> : vector<16x128xf32>
      %53 = tpu.matmul %9, %52, %cst_39 {dimension_numbers = #tpu.dot_dimension_numbers<[1], [0], [0], [1], [0, 0, 1, 1], [], []>} : vector<16x32xbf16>, vector<32x128xbf16>, vector<16x128xf32> -> vector<16x128xf32>
      %54 = arith.addf %50, %53 : vector<16x128xf32>
      %c1_40 = arith.constant 1 : index
      %c0_41 = arith.constant 0 : index
      %c0_42 = arith.constant 0 : index
      %55 = vector.load %arg3[%c1_40, %c0_41, %c0_42] : memref<16x32x128xbf16, #tpu.memory_space<vmem>>, vector<1x32x128xbf16>
      %56 = vector.shape_cast %55 : vector<1x32x128xbf16> to vector<32x128xbf16>
      %cst_43 = arith.constant dense<0.000000e+00> : vector<16x128xf32>
      %57 = tpu.matmul %14, %56, %cst_43 {dimension_numbers = #tpu.dot_dimension_numbers<[1], [0], [0], [1], [0, 0, 1, 1], [], []>} : vector<16x32xbf16>, vector<32x128xbf16>, vector<16x128xf32> -> vector<16x128xf32>
      %58 = arith.addf %54, %57 : vector<16x128xf32>
      %c2_44 = arith.constant 2 : index
      %c0_45 = arith.constant 0 : index
      %c0_46 = arith.constant 0 : index
      %59 = vector.load %arg3[%c2_44, %c0_45, %c0_46] : memref<16x32x128xbf16, #tpu.memory_space<vmem>>, vector<1x32x128xbf16>
      %60 = vector.shape_cast %59 : vector<1x32x128xbf16> to vector<32x128xbf16>
      %cst_47 = arith.constant dense<0.000000e+00> : vector<16x128xf32>
      %61 = tpu.matmul %24, %60, %cst_47 {dimension_numbers = #tpu.dot_dimension_numbers<[1], [0], [0], [1], [0, 0, 1, 1], [], []>} : vector<16x32xbf16>, vector<32x128xbf16>, vector<16x128xf32> -> vector<16x128xf32>
      %62 = arith.addf %58, %61 : vector<16x128xf32>
      %c3 = arith.constant 3 : index
      %c0_48 = arith.constant 0 : index
      %c0_49 = arith.constant 0 : index
      %63 = vector.load %arg3[%c3, %c0_48, %c0_49] : memref<16x32x128xbf16, #tpu.memory_space<vmem>>, vector<1x32x128xbf16>
      %64 = vector.shape_cast %63 : vector<1x32x128xbf16> to vector<32x128xbf16>
      %cst_50 = arith.constant dense<0.000000e+00> : vector<16x128xf32>
      %65 = tpu.matmul %29, %64, %cst_50 {dimension_numbers = #tpu.dot_dimension_numbers<[1], [0], [0], [1], [0, 0, 1, 1], [], []>} : vector<16x32xbf16>, vector<32x128xbf16>, vector<16x128xf32> -> vector<16x128xf32>
      %66 = arith.addf %62, %65 : vector<16x128xf32>
      %67 = math.tanh %66 : vector<16x128xf32>
      %68 = vector.shape_cast %67 : vector<16x128xf32> to vector<1x16x128xf32>
      %c0_51 = arith.constant 0 : index
      %69 = arith.index_cast %3 : i32 to index
      %c0_52 = arith.constant 0 : index
      %c0_53 = arith.constant 0 : index
      %70 = vector.load %arg4[%c0_51, %69, %c0_52, %c0_53] : memref<1x8x16x512xf32, #tpu.memory_space<vmem>>, vector<1x1x16x128xf32>
      %71 = vector.shape_cast %70 : vector<1x1x16x128xf32> to vector<1x16x128xf32>
      %72 = vector.shape_cast %68 : vector<1x16x128xf32> to vector<1x1x16x128xf32>
      tpu.vector_store %arg4[%c0_51, %69, %c0_52, %c0_53], %72 {strides = array<i32>} : memref<1x8x16x512xf32, #tpu.memory_space<vmem>>, vector<1x1x16x128xf32>,
      %cst_54 = arith.constant 0.000000e+00 : f32
      %73 = vector.broadcast %cst_54 : f32 to vector<16x128xf32>
      %c4 = arith.constant 4 : index
      %c0_55 = arith.constant 0 : index
      %c0_56 = arith.constant 0 : index
      %74 = vector.load %arg3[%c4, %c0_55, %c0_56] : memref<16x32x128xbf16, #tpu.memory_space<vmem>>, vector<1x32x128xbf16>
      %75 = vector.shape_cast %74 : vector<1x32x128xbf16> to vector<32x128xbf16>
      %cst_57 = arith.constant dense<0.000000e+00> : vector<16x128xf32>
      %76 = tpu.matmul %14, %75, %cst_57 {dimension_numbers = #tpu.dot_dimension_numbers<[1], [0], [0], [1], [0, 0, 1, 1], [], []>} : vector<16x32xbf16>, vector<32x128xbf16>, vector<16x128xf32> -> vector<16x128xf32>
      %77 = arith.addf %73, %76 : vector<16x128xf32>
      %c5 = arith.constant 5 : index
      %c0_58 = arith.constant 0 : index
      %c0_59 = arith.constant 0 : index
      %78 = vector.load %arg3[%c5, %c0_58, %c0_59] : memref<16x32x128xbf16, #tpu.memory_space<vmem>>, vector<1x32x128xbf16>
      %79 = vector.shape_cast %78 : vector<1x32x128xbf16> to vector<32x128xbf16>
      %cst_60 = arith.constant dense<0.000000e+00> : vector<16x128xf32>
      %80 = tpu.matmul %19, %79, %cst_60 {dimension_numbers = #tpu.dot_dimension_numbers<[1], [0], [0], [1], [0, 0, 1, 1], [], []>} : vector<16x32xbf16>, vector<32x128xbf16>, vector<16x128xf32> -> vector<16x128xf32>
      %81 = arith.addf %77, %80 : vector<16x128xf32>
      %c6 = arith.constant 6 : index
      %c0_61 = arith.constant 0 : index
      %c0_62 = arith.constant 0 : index
      %82 = vector.load %arg3[%c6, %c0_61, %c0_62] : memref<16x32x128xbf16, #tpu.memory_space<vmem>>, vector<1x32x128xbf16>
      %83 = vector.shape_cast %82 : vector<1x32x128xbf16> to vector<32x128xbf16>
      %cst_63 = arith.constant dense<0.000000e+00> : vector<16x128xf32>
      %84 = tpu.matmul %29, %83, %cst_63 {dimension_numbers = #tpu.dot_dimension_numbers<[1], [0], [0], [1], [0, 0, 1, 1], [], []>} : vector<16x32xbf16>, vector<32x128xbf16>, vector<16x128xf32> -> vector<16x128xf32>
      %85 = arith.addf %81, %84 : vector<16x128xf32>
      %c7 = arith.constant 7 : index
      %c0_64 = arith.constant 0 : index
      %c0_65 = arith.constant 0 : index
      %86 = vector.load %arg3[%c7, %c0_64, %c0_65] : memref<16x32x128xbf16, #tpu.memory_space<vmem>>, vector<1x32x128xbf16>
      %87 = vector.shape_cast %86 : vector<1x32x128xbf16> to vector<32x128xbf16>
      %cst_66 = arith.constant dense<0.000000e+00> : vector<16x128xf32>
      %88 = tpu.matmul %34, %87, %cst_66 {dimension_numbers = #tpu.dot_dimension_numbers<[1], [0], [0], [1], [0, 0, 1, 1], [], []>} : vector<16x32xbf16>, vector<32x128xbf16>, vector<16x128xf32> -> vector<16x128xf32>
      %89 = arith.addf %85, %88 : vector<16x128xf32>
      %90 = math.tanh %89 : vector<16x128xf32>
      %91 = vector.shape_cast %90 : vector<16x128xf32> to vector<1x16x128xf32>
      %c0_67 = arith.constant 0 : index
      %92 = arith.index_cast %3 : i32 to index
      %c0_68 = arith.constant 0 : index
      %c128 = arith.constant 128 : index
      %93 = vector.load %arg4[%c0_67, %92, %c0_68, %c128] : memref<1x8x16x512xf32, #tpu.memory_space<vmem>>, vector<1x1x16x128xf32>
      %94 = vector.shape_cast %93 : vector<1x1x16x128xf32> to vector<1x16x128xf32>
      %95 = vector.shape_cast %91 : vector<1x16x128xf32> to vector<1x1x16x128xf32>
      tpu.vector_store %arg4[%c0_67, %92, %c0_68, %c128], %95 {strides = array<i32>} : memref<1x8x16x512xf32, #tpu.memory_space<vmem>>, vector<1x1x16x128xf32>,
      %cst_69 = arith.constant 0.000000e+00 : f32
      %96 = vector.broadcast %cst_69 : f32 to vector<16x128xf32>
      %c8 = arith.constant 8 : index
      %c0_70 = arith.constant 0 : index
      %c0_71 = arith.constant 0 : index
      %97 = vector.load %arg3[%c8, %c0_70, %c0_71] : memref<16x32x128xbf16, #tpu.memory_space<vmem>>, vector<1x32x128xbf16>
      %98 = vector.shape_cast %97 : vector<1x32x128xbf16> to vector<32x128xbf16>
      %cst_72 = arith.constant dense<0.000000e+00> : vector<16x128xf32>
      %99 = tpu.matmul %24, %98, %cst_72 {dimension_numbers = #tpu.dot_dimension_numbers<[1], [0], [0], [1], [0, 0, 1, 1], [], []>} : vector<16x32xbf16>, vector<32x128xbf16>, vector<16x128xf32> -> vector<16x128xf32>
      %100 = arith.addf %96, %99 : vector<16x128xf32>
      %c9 = arith.constant 9 : index
      %c0_73 = arith.constant 0 : index
      %c0_74 = arith.constant 0 : index
      %101 = vector.load %arg3[%c9, %c0_73, %c0_74] : memref<16x32x128xbf16, #tpu.memory_space<vmem>>, vector<1x32x128xbf16>
      %102 = vector.shape_cast %101 : vector<1x32x128xbf16> to vector<32x128xbf16>
      %cst_75 = arith.constant dense<0.000000e+00> : vector<16x128xf32>
      %103 = tpu.matmul %29, %102, %cst_75 {dimension_numbers = #tpu.dot_dimension_numbers<[1], [0], [0], [1], [0, 0, 1, 1], [], []>} : vector<16x32xbf16>, vector<32x128xbf16>, vector<16x128xf32> -> vector<16x128xf32>
      %104 = arith.addf %100, %103 : vector<16x128xf32>
      %c10 = arith.constant 10 : index
      %c0_76 = arith.constant 0 : index
      %c0_77 = arith.constant 0 : index
      %105 = vector.load %arg3[%c10, %c0_76, %c0_77] : memref<16x32x128xbf16, #tpu.memory_space<vmem>>, vector<1x32x128xbf16>
      %106 = vector.shape_cast %105 : vector<1x32x128xbf16> to vector<32x128xbf16>
      %cst_78 = arith.constant dense<0.000000e+00> : vector<16x128xf32>
      %107 = tpu.matmul %39, %106, %cst_78 {dimension_numbers = #tpu.dot_dimension_numbers<[1], [0], [0], [1], [0, 0, 1, 1], [], []>} : vector<16x32xbf16>, vector<32x128xbf16>, vector<16x128xf32> -> vector<16x128xf32>
      %108 = arith.addf %104, %107 : vector<16x128xf32>
      %c11 = arith.constant 11 : index
      %c0_79 = arith.constant 0 : index
      %c0_80 = arith.constant 0 : index
      %109 = vector.load %arg3[%c11, %c0_79, %c0_80] : memref<16x32x128xbf16, #tpu.memory_space<vmem>>, vector<1x32x128xbf16>
      %110 = vector.shape_cast %109 : vector<1x32x128xbf16> to vector<32x128xbf16>
      %cst_81 = arith.constant dense<0.000000e+00> : vector<16x128xf32>
      %111 = tpu.matmul %44, %110, %cst_81 {dimension_numbers = #tpu.dot_dimension_numbers<[1], [0], [0], [1], [0, 0, 1, 1], [], []>} : vector<16x32xbf16>, vector<32x128xbf16>, vector<16x128xf32> -> vector<16x128xf32>
      %112 = arith.addf %108, %111 : vector<16x128xf32>
      %113 = math.tanh %112 : vector<16x128xf32>
      %114 = vector.shape_cast %113 : vector<16x128xf32> to vector<1x16x128xf32>
      %c0_82 = arith.constant 0 : index
      %115 = arith.index_cast %3 : i32 to index
      %c0_83 = arith.constant 0 : index
      %c256 = arith.constant 256 : index
      %116 = vector.load %arg4[%c0_82, %115, %c0_83, %c256] : memref<1x8x16x512xf32, #tpu.memory_space<vmem>>, vector<1x1x16x128xf32>
      %117 = vector.shape_cast %116 : vector<1x1x16x128xf32> to vector<1x16x128xf32>
      %118 = vector.shape_cast %114 : vector<1x16x128xf32> to vector<1x1x16x128xf32>
      tpu.vector_store %arg4[%c0_82, %115, %c0_83, %c256], %118 {strides = array<i32>} : memref<1x8x16x512xf32, #tpu.memory_space<vmem>>, vector<1x1x16x128xf32>,
      %cst_84 = arith.constant 0.000000e+00 : f32
      %119 = vector.broadcast %cst_84 : f32 to vector<16x128xf32>
      %c12 = arith.constant 12 : index
      %c0_85 = arith.constant 0 : index
      %c0_86 = arith.constant 0 : index
      %120 = vector.load %arg3[%c12, %c0_85, %c0_86] : memref<16x32x128xbf16, #tpu.memory_space<vmem>>, vector<1x32x128xbf16>
      %121 = vector.shape_cast %120 : vector<1x32x128xbf16> to vector<32x128xbf16>
      %cst_87 = arith.constant dense<0.000000e+00> : vector<16x128xf32>
      %122 = tpu.matmul %29, %121, %cst_87 {dimension_numbers = #tpu.dot_dimension_numbers<[1], [0], [0], [1], [0, 0, 1, 1], [], []>} : vector<16x32xbf16>, vector<32x128xbf16>, vector<16x128xf32> -> vector<16x128xf32>
      %123 = arith.addf %119, %122 : vector<16x128xf32>
      %c13 = arith.constant 13 : index
      %c0_88 = arith.constant 0 : index
      %c0_89 = arith.constant 0 : index
      %124 = vector.load %arg3[%c13, %c0_88, %c0_89] : memref<16x32x128xbf16, #tpu.memory_space<vmem>>, vector<1x32x128xbf16>
      %125 = vector.shape_cast %124 : vector<1x32x128xbf16> to vector<32x128xbf16>
      %cst_90 = arith.constant dense<0.000000e+00> : vector<16x128xf32>
      %126 = tpu.matmul %34, %125, %cst_90 {dimension_numbers = #tpu.dot_dimension_numbers<[1], [0], [0], [1], [0, 0, 1, 1], [], []>} : vector<16x32xbf16>, vector<32x128xbf16>, vector<16x128xf32> -> vector<16x128xf32>
      %127 = arith.addf %123, %126 : vector<16x128xf32>
      %c14 = arith.constant 14 : index
      %c0_91 = arith.constant 0 : index
      %c0_92 = arith.constant 0 : index
      %128 = vector.load %arg3[%c14, %c0_91, %c0_92] : memref<16x32x128xbf16, #tpu.memory_space<vmem>>, vector<1x32x128xbf16>
      %129 = vector.shape_cast %128 : vector<1x32x128xbf16> to vector<32x128xbf16>
      %cst_93 = arith.constant dense<0.000000e+00> : vector<16x128xf32>
      %130 = tpu.matmul %44, %129, %cst_93 {dimension_numbers = #tpu.dot_dimension_numbers<[1], [0], [0], [1], [0, 0, 1, 1], [], []>} : vector<16x32xbf16>, vector<32x128xbf16>, vector<16x128xf32> -> vector<16x128xf32>
      %131 = arith.addf %127, %130 : vector<16x128xf32>
      %c15 = arith.constant 15 : index
      %c0_94 = arith.constant 0 : index
      %c0_95 = arith.constant 0 : index
      %132 = vector.load %arg3[%c15, %c0_94, %c0_95] : memref<16x32x128xbf16, #tpu.memory_space<vmem>>, vector<1x32x128xbf16>
      %133 = vector.shape_cast %132 : vector<1x32x128xbf16> to vector<32x128xbf16>
      %cst_96 = arith.constant dense<0.000000e+00> : vector<16x128xf32>
      %134 = tpu.matmul %49, %133, %cst_96 {dimension_numbers = #tpu.dot_dimension_numbers<[1], [0], [0], [1], [0, 0, 1, 1], [], []>} : vector<16x32xbf16>, vector<32x128xbf16>, vector<16x128xf32> -> vector<16x128xf32>
      %135 = arith.addf %131, %134 : vector<16x128xf32>
      %136 = math.tanh %135 : vector<16x128xf32>
      %137 = vector.shape_cast %136 : vector<16x128xf32> to vector<1x16x128xf32>
      %c0_97 = arith.constant 0 : index
      %138 = arith.index_cast %3 : i32 to index
      %c0_98 = arith.constant 0 : index
      %c384 = arith.constant 384 : index
      %139 = vector.load %arg4[%c0_97, %138, %c0_98, %c384] : memref<1x8x16x512xf32, #tpu.memory_space<vmem>>, vector<1x1x16x128xf32>
      %140 = vector.shape_cast %139 : vector<1x1x16x128xf32> to vector<1x16x128xf32>
      %141 = vector.shape_cast %137 : vector<1x16x128xf32> to vector<1x1x16x128xf32>
      tpu.vector_store %arg4[%c0_97, %138, %c0_98, %c384], %141 {strides = array<i32>} : memref<1x8x16x512xf32, #tpu.memory_space<vmem>>, vector<1x1x16x128xf32>,
    }
    %c8_i32_1 = arith.constant 8 : i32
    return
  }
  func.func @transform_0(%arg0: i32, %arg1: i32) -> (i32, i32, i32, i32) {
    %c0_i32 = arith.constant 0 : i32
    %c0_i32_0 = arith.constant 0 : i32
    %c0_i32_1 = arith.constant 0 : i32
    %c0_i32_2 = arith.constant 0 : i32
    return %arg0, %c0_i32, %c0_i32_0, %c0_i32_1 : i32, i32, i32, i32
  }
  func.func @transform_1(%arg0: i32, %arg1: i32) -> (i32, i32, i32) {
    %c0_i32 = arith.constant 0 : i32
    %c0_i32_0 = arith.constant 0 : i32
    %c0_i32_1 = arith.constant 0 : i32
    %c0_i32_2 = arith.constant 0 : i32
    return %c0_i32, %c0_i32_0, %c0_i32_1 : i32, i32, i32
  }
  func.func @transform_2(%arg0: i32, %arg1: i32) -> (i32, i32, i32, i32) {
    %c0_i32 = arith.constant 0 : i32
    %c0_i32_0 = arith.constant 0 : i32
    %c0_i32_1 = arith.constant 0 : i32
    return %arg0, %arg1, %c0_i32, %c0_i32_0 : i32, i32, i32, i32
  }
}

</mosaic_0001>

<llo_original>
// kernel: wgan_generator_forward.4
$region0: #{wgan_generator_forward.4}
  #allocation0 [shape = 'u32[]', space=smem, size = 0x4, offset = 0x4, fixed_abs, tag = 'smem constant byte address 0x4 - core index']
  #allocation1 [shape = 'u32[144,128]{1,0:T(1,128)}', space=vmem, size = 0x12000, scoped, tag = 'internal scratch']
  %s0 = inlined_call_operand.vmem [shape: bf16[8,128], index: 0, kind: input, shape index: {}]
  %s1 = inlined_call_operand.hbm [shape: bf16[128,2048], index: 1, kind: input, shape index: {}]
  %s2 = inlined_call_operand.vmem [shape: bf16[8,2048], index: 2, kind: output, shape index: {0}]
  %s3 = inlined_call_operand.vmem [shape: f32[1,2048], index: 3, kind: output, shape index: {1}]
  %s4 = inlined_call_operand.vmem [shape: f32[1,2048], index: 4, kind: output, shape index: {2}]
  %5 = xla_tuple %s2, %s3, %s4
  %s6 = sld [smem:[#allocation0]]
  $region38: #{wgan_generator_forward.4} parent=0
    _
  %s8 = ssub.s32 1, %s6
  %s9 = scalar_select 0, %s8, %s6
  $region1: #{wgan_generator_forward.4} parent=0
    #allocation2 [shape = 'u8[524288]{0}', space=vmem, size = 0x80000, scoped, tag = 'input window, operand 1, single buffered']
    #allocation3 [shape = 's32[1]{0}', space=sflag, size = 0x4, scoped, tag = 'scoped memory for wgan_generator_forward.4']
    %10 = vsyncpa [#allocation3], 0
    // Predicated region
    $region2: #{wgan_generator_forward.4} parent=1 // pred_check
      _
    $region3: #{wgan_generator_forward.4} parent=1 // pred_check_branch
      %12 = sbr.rel (0) target = $region5
    $region4: #{wgan_generator_forward.4} parent=1 // pred_region
      _
    $region5: #{wgan_generator_forward.4} parent=1 // pred_fallthru
      _
    // Predicated region
    $region6: #{wgan_generator_forward.4} parent=1 // pred_check
      _
    $region7: #{wgan_generator_forward.4} parent=1 // pred_check_branch
      %14 = sbr.rel (0) target = $region9
    $region8: #{wgan_generator_forward.4} parent=1 // pred_region
      %s16 = ssub.s32 16384, 16384
      %17 = vsyncadd [#allocation3], %s16
      %s18 = sshll.u32 [#allocation2], 4
      %s19 = int_to_ptr.vmem [resolvable:$true] %s18
      %24 = dma.hbm_to_vmem [thread:$0]  %s1, 16384, %s19, [#allocation3], 1024, 1024, 64
    $region9: #{wgan_generator_forward.4} parent=1 // pred_fallthru
      _
    // Predicated region
    $region10: #{wgan_generator_forward.4} parent=1 // pred_check
      _
    $region11: #{wgan_generator_forward.4} parent=1 // pred_check_branch
      %26 = sbr.rel (0) target = $region13
    $region12: #{wgan_generator_forward.4} parent=1 // pred_region
      %27 = dma.done [#allocation3], 16384
    $region13: #{wgan_generator_forward.4} parent=1 // pred_fallthru
      _
    %v29 = vld [vmem:[%s0] sm:$0xf]
    %v30 = vld [vmem:[#allocation2] sm:$0xff]
    %v31 = vld [vmem:[#allocation2 + $0x8] sm:$0xff]
    %v32 = vld [vmem:[#allocation2 + $0x10] sm:$0xff]
    %v33 = vld [vmem:[#allocation2 + $0x18] sm:$0xff]
    %v34 = vld [vmem:[#allocation2 + $0x20] sm:$0xff]
    %v35 = vld [vmem:[#allocation2 + $0x28] sm:$0xff]
    %v36 = vld [vmem:[#allocation2 + $0x30] sm:$0xff]
    %v37 = vld [vmem:[#allocation2 + $0x38] sm:$0xff]
    %v38 = vld [vmem:[#allocation2 + $0x40] sm:$0xff]
    %v39 = vld [vmem:[#allocation2 + $0x48] sm:$0xff]
    %v40 = vld [vmem:[#allocation2 + $0x50] sm:$0xff]
    %v41 = vld [vmem:[#allocation2 + $0x58] sm:$0xff]
    %v42 = vld [vmem:[#allocation2 + $0x60] sm:$0xff]
    %v43 = vld [vmem:[#allocation2 + $0x68] sm:$0xff]
    %v44 = vld [vmem:[#allocation2 + $0x70] sm:$0xff]
    %v45 = vld [vmem:[#allocation2 + $0x78] sm:$0xff]
    %v46 = vld [vmem:[#allocation2 + $0x80] sm:$0xff]
    %v47 = vld [vmem:[#allocation2 + $0x88] sm:$0xff]
    %v48 = vld [vmem:[#allocation2 + $0x90] sm:$0xff]
    %v49 = vld [vmem:[#allocation2 + $0x98] sm:$0xff]
    %v50 = vld [vmem:[#allocation2 + $0xa0] sm:$0xff]
    %v51 = vld [vmem:[#allocation2 + $0xa8] sm:$0xff]
    %v52 = vld [vmem:[#allocation2 + $0xb0] sm:$0xff]
    %v53 = vld [vmem:[#allocation2 + $0xb8] sm:$0xff]
    %v54 = vld [vmem:[#allocation2 + $0xc0] sm:$0xff]
    %v55 = vld [vmem:[#allocation2 + $0xc8] sm:$0xff]
    %v56 = vld [vmem:[#allocation2 + $0xd0] sm:$0xff]
    %v57 = vld [vmem:[#allocation2 + $0xd8] sm:$0xff]
    %v58 = vld [vmem:[#allocation2 + $0xe0] sm:$0xff]
    %v59 = vld [vmem:[#allocation2 + $0xe8] sm:$0xff]
    %v60 = vld [vmem:[#allocation2 + $0xf0] sm:$0xff]
    %v61 = vld [vmem:[#allocation2 + $0xf8] sm:$0xff]
    %v62 = vld [vmem:[#allocation2 + $0x100] sm:$0xff]
    %v63 = vld [vmem:[#allocation2 + $0x108] sm:$0xff]
    %v64 = vld [vmem:[#allocation2 + $0x110] sm:$0xff]
    %v65 = vld [vmem:[#allocation2 + $0x118] sm:$0xff]
    %v66 = vld [vmem:[#allocation2 + $0x120] sm:$0xff]
    %v67 = vld [vmem:[#allocation2 + $0x128] sm:$0xff]
    %v68 = vld [vmem:[#allocation2 + $0x130] sm:$0xff]
    %v69 = vld [vmem:[#allocation2 + $0x138] sm:$0xff]
    %v70 = vld [vmem:[#allocation2 + $0x140] sm:$0xff]
    %v71 = vld [vmem:[#allocation2 + $0x148] sm:$0xff]
    %v72 = vld [vmem:[#allocation2 + $0x150] sm:$0xff]
    %v73 = vld [vmem:[#allocation2 + $0x158] sm:$0xff]
    %v74 = vld [vmem:[#allocation2 + $0x160] sm:$0xff]
    %v75 = vld [vmem:[#allocation2 + $0x168] sm:$0xff]
    %v76 = vld [vmem:[#allocation2 + $0x170] sm:$0xff]
    %v77 = vld [vmem:[#allocation2 + $0x178] sm:$0xff]
    %v78 = vld [vmem:[#allocation2 + $0x180] sm:$0xff]
    %v79 = vld [vmem:[#allocation2 + $0x188] sm:$0xff]
    %v80 = vld [vmem:[#allocation2 + $0x190] sm:$0xff]
    %v81 = vld [vmem:[#allocation2 + $0x198] sm:$0xff]
    %v82 = vld [vmem:[#allocation2 + $0x1a0] sm:$0xff]
    %v83 = vld [vmem:[#allocation2 + $0x1a8] sm:$0xff]
    %v84 = vld [vmem:[#allocation2 + $0x1b0] sm:$0xff]
    %v85 = vld [vmem:[#allocation2 + $0x1b8] sm:$0xff]
    %v86 = vld [vmem:[#allocation2 + $0x1c0] sm:$0xff]
    %v87 = vld [vmem:[#allocation2 + $0x1c8] sm:$0xff]
    %v88 = vld [vmem:[#allocation2 + $0x1d0] sm:$0xff]
    %v89 = vld [vmem:[#allocation2 + $0x1d8] sm:$0xff]
    %v90 = vld [vmem:[#allocation2 + $0x1e0] sm:$0xff]
    %v91 = vld [vmem:[#allocation2 + $0x1e8] sm:$0xff]
    %v92 = vld [vmem:[#allocation2 + $0x1f0] sm:$0xff]
    %v93 = vld [vmem:[#allocation2 + $0x1f8] sm:$0xff]
    %v94 = vld [vmem:[#allocation2 + $0x200] sm:$0xff]
    %v95 = vld [vmem:[#allocation2 + $0x208] sm:$0xff]
    %v96 = vld [vmem:[#allocation2 + $0x210] sm:$0xff]
    %v97 = vld [vmem:[#allocation2 + $0x218] sm:$0xff]
    %v98 = vld [vmem:[#allocation2 + $0x220] sm:$0xff]
    %v99 = vld [vmem:[#allocation2 + $0x228] sm:$0xff]
    %v100 = vld [vmem:[#allocation2 + $0x230] sm:$0xff]
    %v101 = vld [vmem:[#allocation2 + $0x238] sm:$0xff]
    %v102 = vld [vmem:[#allocation2 + $0x240] sm:$0xff]
    %v103 = vld [vmem:[#allocation2 + $0x248] sm:$0xff]
    %v104 = vld [vmem:[#allocation2 + $0x250] sm:$0xff]
    %v105 = vld [vmem:[#allocation2 + $0x258] sm:$0xff]
    %v106 = vld [vmem:[#allocation2 + $0x260] sm:$0xff]
    %v107 = vld [vmem:[#allocation2 + $0x268] sm:$0xff]
    %v108 = vld [vmem:[#allocation2 + $0x270] sm:$0xff]
    %v109 = vld [vmem:[#allocation2 + $0x278] sm:$0xff]
    %v110 = vld [vmem:[#allocation2 + $0x280] sm:$0xff]
    %v111 = vld [vmem:[#allocation2 + $0x288] sm:$0xff]
    %v112 = vld [vmem:[#allocation2 + $0x290] sm:$0xff]
    %v113 = vld [vmem:[#allocation2 + $0x298] sm:$0xff]
    %v114 = vld [vmem:[#allocation2 + $0x2a0] sm:$0xff]
    %v115 = vld [vmem:[#allocation2 + $0x2a8] sm:$0xff]
    %v116 = vld [vmem:[#allocation2 + $0x2b0] sm:$0xff]
    %v117 = vld [vmem:[#allocation2 + $0x2b8] sm:$0xff]
    %v118 = vld [vmem:[#allocation2 + $0x2c0] sm:$0xff]
    %v119 = vld [vmem:[#allocation2 + $0x2c8] sm:$0xff]
    %v120 = vld [vmem:[#allocation2 + $0x2d0] sm:$0xff]
    %v121 = vld [vmem:[#allocation2 + $0x2d8] sm:$0xff]
    %v122 = vld [vmem:[#allocation2 + $0x2e0] sm:$0xff]
    %v123 = vld [vmem:[#allocation2 + $0x2e8] sm:$0xff]
    %v124 = vld [vmem:[#allocation2 + $0x2f0] sm:$0xff]
    %v125 = vld [vmem:[#allocation2 + $0x2f8] sm:$0xff]
    %v126 = vld [vmem:[#allocation2 + $0x300] sm:$0xff]
    %v127 = vld [vmem:[#allocation2 + $0x308] sm:$0xff]
    %v128 = vld [vmem:[#allocation2 + $0x310] sm:$0xff]
    %v129 = vld [vmem:[#allocation2 + $0x318] sm:$0xff]
    %v130 = vld [vmem:[#allocation2 + $0x320] sm:$0xff]
    %v131 = vld [vmem:[#allocation2 + $0x328] sm:$0xff]
    %v132 = vld [vmem:[#allocation2 + $0x330] sm:$0xff]
    %v133 = vld [vmem:[#allocation2 + $0x338] sm:$0xff]
    %v134 = vld [vmem:[#allocation2 + $0x340] sm:$0xff]
    %v135 = vld [vmem:[#allocation2 + $0x348] sm:$0xff]
    %v136 = vld [vmem:[#allocation2 + $0x350] sm:$0xff]
    %v137 = vld [vmem:[#allocation2 + $0x358] sm:$0xff]
    %v138 = vld [vmem:[#allocation2 + $0x360] sm:$0xff]
    %v139 = vld [vmem:[#allocation2 + $0x368] sm:$0xff]
    %v140 = vld [vmem:[#allocation2 + $0x370] sm:$0xff]
    %v141 = vld [vmem:[#allocation2 + $0x378] sm:$0xff]
    %v142 = vld [vmem:[#allocation2 + $0x380] sm:$0xff]
    %v143 = vld [vmem:[#allocation2 + $0x388] sm:$0xff]
    %v144 = vld [vmem:[#allocation2 + $0x390] sm:$0xff]
    %v145 = vld [vmem:[#allocation2 + $0x398] sm:$0xff]
    %v146 = vld [vmem:[#allocation2 + $0x3a0] sm:$0xff]
    %v147 = vld [vmem:[#allocation2 + $0x3a8] sm:$0xff]
    %v148 = vld [vmem:[#allocation2 + $0x3b0] sm:$0xff]
    %v149 = vld [vmem:[#allocation2 + $0x3b8] sm:$0xff]
    %v150 = vld [vmem:[#allocation2 + $0x3c0] sm:$0xff]
    %v151 = vld [vmem:[#allocation2 + $0x3c8] sm:$0xff]
    %v152 = vld [vmem:[#allocation2 + $0x3d0] sm:$0xff]
    %v153 = vld [vmem:[#allocation2 + $0x3d8] sm:$0xff]
    %v154 = vld [vmem:[#allocation2 + $0x3e0] sm:$0xff]
    %v155 = vld [vmem:[#allocation2 + $0x3e8] sm:$0xff]
    %v156 = vld [vmem:[#allocation2 + $0x3f0] sm:$0xff]
    %v157 = vld [vmem:[#allocation2 + $0x3f8] sm:$0xff]
    %v286 = vunpack.c.l.b16 %v30
    %v287 = vunpack.c.h.b16 %v30
    %v288 = vunpack.c.l.b16 %v31
    %v289 = vunpack.c.h.b16 %v31
    %v290 = vunpack.c.l.b16 %v32
    %v291 = vunpack.c.h.b16 %v32
    %v292 = vunpack.c.l.b16 %v33
    %v293 = vunpack.c.h.b16 %v33
    %v294 = vunpack.c.l.b16 %v34
    %v295 = vunpack.c.h.b16 %v34
    %v296 = vunpack.c.l.b16 %v35
    %v297 = vunpack.c.h.b16 %v35
    %v298 = vunpack.c.l.b16 %v36
    %v299 = vunpack.c.h.b16 %v36
    %v300 = vunpack.c.l.b16 %v37
    %v301 = vunpack.c.h.b16 %v37
    %v302 = vunpack.c.l.b16 %v38
    %v303 = vunpack.c.h.b16 %v38
    %v304 = vunpack.c.l.b16 %v39
    %v305 = vunpack.c.h.b16 %v39
    %v306 = vunpack.c.l.b16 %v40
    %v307 = vunpack.c.h.b16 %v40
    %v308 = vunpack.c.l.b16 %v41
    %v309 = vunpack.c.h.b16 %v41
    %v310 = vunpack.c.l.b16 %v42
    %v311 = vunpack.c.h.b16 %v42
    %v312 = vunpack.c.l.b16 %v43
    %v313 = vunpack.c.h.b16 %v43
    %v314 = vunpack.c.l.b16 %v44
    %v315 = vunpack.c.h.b16 %v44
    %v316 = vunpack.c.l.b16 %v45
    %v317 = vunpack.c.h.b16 %v45
    %v318 = vunpack.c.l.b16 %v46
    %v319 = vunpack.c.h.b16 %v46
    %v320 = vunpack.c.l.b16 %v47
    %v321 = vunpack.c.h.b16 %v47
    %v322 = vunpack.c.l.b16 %v48
    %v323 = vunpack.c.h.b16 %v48
    %v324 = vunpack.c.l.b16 %v49
    %v325 = vunpack.c.h.b16 %v49
    %v326 = vunpack.c.l.b16 %v50
    %v327 = vunpack.c.h.b16 %v50
    %v328 = vunpack.c.l.b16 %v51
    %v329 = vunpack.c.h.b16 %v51
    %v330 = vunpack.c.l.b16 %v52
    %v331 = vunpack.c.h.b16 %v52
    %v332 = vunpack.c.l.b16 %v53
    %v333 = vunpack.c.h.b16 %v53
    %v334 = vunpack.c.l.b16 %v54
    %v335 = vunpack.c.h.b16 %v54
    %v336 = vunpack.c.l.b16 %v55
    %v337 = vunpack.c.h.b16 %v55
    %v338 = vunpack.c.l.b16 %v56
    %v339 = vunpack.c.h.b16 %v56
    %v340 = vunpack.c.l.b16 %v57
    %v341 = vunpack.c.h.b16 %v57
    %v342 = vunpack.c.l.b16 %v58
    %v343 = vunpack.c.h.b16 %v58
    %v344 = vunpack.c.l.b16 %v59
    %v345 = vunpack.c.h.b16 %v59
    %v346 = vunpack.c.l.b16 %v60
    %v347 = vunpack.c.h.b16 %v60
    %v348 = vunpack.c.l.b16 %v61
    %v349 = vunpack.c.h.b16 %v61
    %v350 = vunpack.c.l.b16 %v62
    %v351 = vunpack.c.h.b16 %v62
    %v352 = vunpack.c.l.b16 %v63
    %v353 = vunpack.c.h.b16 %v63
    %v354 = vunpack.c.l.b16 %v64
    %v355 = vunpack.c.h.b16 %v64
    %v356 = vunpack.c.l.b16 %v65
    %v357 = vunpack.c.h.b16 %v65
    %v358 = vunpack.c.l.b16 %v66
    %v359 = vunpack.c.h.b16 %v66
    %v360 = vunpack.c.l.b16 %v67
    %v361 = vunpack.c.h.b16 %v67
    %v362 = vunpack.c.l.b16 %v68
    %v363 = vunpack.c.h.b16 %v68
    %v364 = vunpack.c.l.b16 %v69
    %v365 = vunpack.c.h.b16 %v69
    %v366 = vunpack.c.l.b16 %v70
    %v367 = vunpack.c.h.b16 %v70
    %v368 = vunpack.c.l.b16 %v71
    %v369 = vunpack.c.h.b16 %v71
    %v370 = vunpack.c.l.b16 %v72
    %v371 = vunpack.c.h.b16 %v72
    %v372 = vunpack.c.l.b16 %v73
    %v373 = vunpack.c.h.b16 %v73
    %v374 = vunpack.c.l.b16 %v74
    %v375 = vunpack.c.h.b16 %v74
    %v376 = vunpack.c.l.b16 %v75
    %v377 = vunpack.c.h.b16 %v75
    %v378 = vunpack.c.l.b16 %v76
    %v379 = vunpack.c.h.b16 %v76
    %v380 = vunpack.c.l.b16 %v77
    %v381 = vunpack.c.h.b16 %v77
    %v382 = vunpack.c.l.b16 %v78
    %v383 = vunpack.c.h.b16 %v78
    %v384 = vunpack.c.l.b16 %v79
    %v385 = vunpack.c.h.b16 %v79
    %v386 = vunpack.c.l.b16 %v80
    %v387 = vunpack.c.h.b16 %v80
    %v388 = vunpack.c.l.b16 %v81
    %v389 = vunpack.c.h.b16 %v81
    %v390 = vunpack.c.l.b16 %v82
    %v391 = vunpack.c.h.b16 %v82
    %v392 = vunpack.c.l.b16 %v83
    %v393 = vunpack.c.h.b16 %v83
    %v394 = vunpack.c.l.b16 %v84
    %v395 = vunpack.c.h.b16 %v84
    %v396 = vunpack.c.l.b16 %v85
    %v397 = vunpack.c.h.b16 %v85
    %v398 = vunpack.c.l.b16 %v86
    %v399 = vunpack.c.h.b16 %v86
    %v400 = vunpack.c.l.b16 %v87
    %v401 = vunpack.c.h.b16 %v87
    %v402 = vunpack.c.l.b16 %v88
    %v403 = vunpack.c.h.b16 %v88
    %v404 = vunpack.c.l.b16 %v89
    %v405 = vunpack.c.h.b16 %v89
    %v406 = vunpack.c.l.b16 %v90
    %v407 = vunpack.c.h.b16 %v90
    %v408 = vunpack.c.l.b16 %v91
    %v409 = vunpack.c.h.b16 %v91
    %v410 = vunpack.c.l.b16 %v92
    %v411 = vunpack.c.h.b16 %v92
    %v412 = vunpack.c.l.b16 %v93
    %v413 = vunpack.c.h.b16 %v93
    %v414 = vunpack.c.l.b16 %v94
    %v415 = vunpack.c.h.b16 %v94
    %v416 = vunpack.c.l.b16 %v95
    %v417 = vunpack.c.h.b16 %v95
    %v418 = vunpack.c.l.b16 %v96
    %v419 = vunpack.c.h.b16 %v96
    %v420 = vunpack.c.l.b16 %v97
    %v421 = vunpack.c.h.b16 %v97
    %v422 = vunpack.c.l.b16 %v98
    %v423 = vunpack.c.h.b16 %v98
    %v424 = vunpack.c.l.b16 %v99
    %v425 = vunpack.c.h.b16 %v99
    %v426 = vunpack.c.l.b16 %v100
    %v427 = vunpack.c.h.b16 %v100
    %v428 = vunpack.c.l.b16 %v101
    %v429 = vunpack.c.h.b16 %v101
    %v430 = vunpack.c.l.b16 %v102
    %v431 = vunpack.c.h.b16 %v102
    %v432 = vunpack.c.l.b16 %v103
    %v433 = vunpack.c.h.b16 %v103
    %v434 = vunpack.c.l.b16 %v104
    %v435 = vunpack.c.h.b16 %v104
    %v436 = vunpack.c.l.b16 %v105
    %v437 = vunpack.c.h.b16 %v105
    %v438 = vunpack.c.l.b16 %v106
    %v439 = vunpack.c.h.b16 %v106
    %v440 = vunpack.c.l.b16 %v107
    %v441 = vunpack.c.h.b16 %v107
    %v442 = vunpack.c.l.b16 %v108
    %v443 = vunpack.c.h.b16 %v108
    %v444 = vunpack.c.l.b16 %v109
    %v445 = vunpack.c.h.b16 %v109
    %v446 = vunpack.c.l.b16 %v110
    %v447 = vunpack.c.h.b16 %v110
    %v448 = vunpack.c.l.b16 %v111
    %v449 = vunpack.c.h.b16 %v111
    %v450 = vunpack.c.l.b16 %v112
    %v451 = vunpack.c.h.b16 %v112
    %v452 = vunpack.c.l.b16 %v113
    %v453 = vunpack.c.h.b16 %v113
    %v454 = vunpack.c.l.b16 %v114
    %v455 = vunpack.c.h.b16 %v114
    %v456 = vunpack.c.l.b16 %v115
    %v457 = vunpack.c.h.b16 %v115
    %v458 = vunpack.c.l.b16 %v116
    %v459 = vunpack.c.h.b16 %v116
    %v460 = vunpack.c.l.b16 %v117
    %v461 = vunpack.c.h.b16 %v117
    %v462 = vunpack.c.l.b16 %v118
    %v463 = vunpack.c.h.b16 %v118
    %v464 = vunpack.c.l.b16 %v119
    %v465 = vunpack.c.h.b16 %v119
    %v466 = vunpack.c.l.b16 %v120
    %v467 = vunpack.c.h.b16 %v120
    %v468 = vunpack.c.l.b16 %v121
    %v469 = vunpack.c.h.b16 %v121
    %v470 = vunpack.c.l.b16 %v122
    %v471 = vunpack.c.h.b16 %v122
    %v472 = vunpack.c.l.b16 %v123
    %v473 = vunpack.c.h.b16 %v123
    %v474 = vunpack.c.l.b16 %v124
    %v475 = vunpack.c.h.b16 %v124
    %v476 = vunpack.c.l.b16 %v125
    %v477 = vunpack.c.h.b16 %v125
    %v478 = vunpack.c.l.b16 %v126
    %v479 = vunpack.c.h.b16 %v126
    %v480 = vunpack.c.l.b16 %v127
    %v481 = vunpack.c.h.b16 %v127
    %v482 = vunpack.c.l.b16 %v128
    %v483 = vunpack.c.h.b16 %v128
    %v484 = vunpack.c.l.b16 %v129
    %v485 = vunpack.c.h.b16 %v129
    %v486 = vunpack.c.l.b16 %v130
    %v487 = vunpack.c.h.b16 %v130
    %v488 = vunpack.c.l.b16 %v131
    %v489 = vunpack.c.h.b16 %v131
    %v490 = vunpack.c.l.b16 %v132
    %v491 = vunpack.c.h.b16 %v132
    %v492 = vunpack.c.l.b16 %v133
    %v493 = vunpack.c.h.b16 %v133
    %v494 = vunpack.c.l.b16 %v134
    %v495 = vunpack.c.h.b16 %v134
    %v496 = vunpack.c.l.b16 %v135
    %v497 = vunpack.c.h.b16 %v135
    %v498 = vunpack.c.l.b16 %v136
    %v499 = vunpack.c.h.b16 %v136
    %v500 = vunpack.c.l.b16 %v137
    %v501 = vunpack.c.h.b16 %v137
    %v502 = vunpack.c.l.b16 %v138
    %v503 = vunpack.c.h.b16 %v138
    %v504 = vunpack.c.l.b16 %v139
    %v505 = vunpack.c.h.b16 %v139
    %v506 = vunpack.c.l.b16 %v140
    %v507 = vunpack.c.h.b16 %v140
    %v508 = vunpack.c.l.b16 %v141
    %v509 = vunpack.c.h.b16 %v141
    %v510 = vunpack.c.l.b16 %v142
    %v511 = vunpack.c.h.b16 %v142
    %v512 = vunpack.c.l.b16 %v143
    %v513 = vunpack.c.h.b16 %v143
    %v514 = vunpack.c.l.b16 %v144
    %v515 = vunpack.c.h.b16 %v144
    %v516 = vunpack.c.l.b16 %v145
    %v517 = vunpack.c.h.b16 %v145
    %v518 = vunpack.c.l.b16 %v146
    %v519 = vunpack.c.h.b16 %v146
    %v520 = vunpack.c.l.b16 %v147
    %v521 = vunpack.c.h.b16 %v147
    %v522 = vunpack.c.l.b16 %v148
    %v523 = vunpack.c.h.b16 %v148
    %v524 = vunpack.c.l.b16 %v149
    %v525 = vunpack.c.h.b16 %v149
    %v526 = vunpack.c.l.b16 %v150
    %v527 = vunpack.c.h.b16 %v150
    %v528 = vunpack.c.l.b16 %v151
    %v529 = vunpack.c.h.b16 %v151
    %v530 = vunpack.c.l.b16 %v152
    %v531 = vunpack.c.h.b16 %v152
    %v532 = vunpack.c.l.b16 %v153
    %v533 = vunpack.c.h.b16 %v153
    %v534 = vunpack.c.l.b16 %v154
    %v535 = vunpack.c.h.b16 %v154
    %v536 = vunpack.c.l.b16 %v155
    %v537 = vunpack.c.h.b16 %v155
    %v538 = vunpack.c.l.b16 %v156
    %v539 = vunpack.c.h.b16 %v156
    %v540 = vunpack.c.l.b16 %v157
    %v541 = vunpack.c.h.b16 %v157
    %v542 = vpack.c.b16 %v302, %v286
    %v543 = vpack.c.b16 %v303, %v287
    %v544 = vpack.c.b16 %v304, %v288
    %v545 = vpack.c.b16 %v305, %v289
    %v546 = vpack.c.b16 %v306, %v290
    %v547 = vpack.c.b16 %v307, %v291
    %v548 = vpack.c.b16 %v308, %v292
    %v549 = vpack.c.b16 %v309, %v293
    %v550 = vpack.c.b16 %v310, %v294
    %v551 = vpack.c.b16 %v311, %v295
    %v552 = vpack.c.b16 %v312, %v296
    %v553 = vpack.c.b16 %v313, %v297
    %v554 = vpack.c.b16 %v314, %v298
    %v555 = vpack.c.b16 %v315, %v299
    %v556 = vpack.c.b16 %v316, %v300
    %v557 = vpack.c.b16 %v317, %v301
    %v558 = vpack.c.b16 %v334, %v318
    %v559 = vpack.c.b16 %v335, %v319
    %v560 = vpack.c.b16 %v336, %v320
    %v561 = vpack.c.b16 %v337, %v321
    %v562 = vpack.c.b16 %v338, %v322
    %v563 = vpack.c.b16 %v339, %v323
    %v564 = vpack.c.b16 %v340, %v324
    %v565 = vpack.c.b16 %v341, %v325
    %v566 = vpack.c.b16 %v342, %v326
    %v567 = vpack.c.b16 %v343, %v327
    %v568 = vpack.c.b16 %v344, %v328
    %v569 = vpack.c.b16 %v345, %v329
    %v570 = vpack.c.b16 %v346, %v330
    %v571 = vpack.c.b16 %v347, %v331
    %v572 = vpack.c.b16 %v348, %v332
    %v573 = vpack.c.b16 %v349, %v333
    %v574 = vpack.c.b16 %v366, %v350
    %v575 = vpack.c.b16 %v367, %v351
    %v576 = vpack.c.b16 %v368, %v352
    %v577 = vpack.c.b16 %v369, %v353
    %v578 = vpack.c.b16 %v370, %v354
    %v579 = vpack.c.b16 %v371, %v355
    %v580 = vpack.c.b16 %v372, %v356
    %v581 = vpack.c.b16 %v373, %v357
    %v582 = vpack.c.b16 %v374, %v358
    %v583 = vpack.c.b16 %v375, %v359
    %v584 = vpack.c.b16 %v376, %v360
    %v585 = vpack.c.b16 %v377, %v361
    %v586 = vpack.c.b16 %v378, %v362
    %v587 = vpack.c.b16 %v379, %v363
    %v588 = vpack.c.b16 %v380, %v364
    %v589 = vpack.c.b16 %v381, %v365
    %v590 = vpack.c.b16 %v398, %v382
    %v591 = vpack.c.b16 %v399, %v383
    %v592 = vpack.c.b16 %v400, %v384
    %v593 = vpack.c.b16 %v401, %v385
    %v594 = vpack.c.b16 %v402, %v386
    %v595 = vpack.c.b16 %v403, %v387
    %v596 = vpack.c.b16 %v404, %v388
    %v597 = vpack.c.b16 %v405, %v389
    %v598 = vpack.c.b16 %v406, %v390
    %v599 = vpack.c.b16 %v407, %v391
    %v600 = vpack.c.b16 %v408, %v392
    %v601 = vpack.c.b16 %v409, %v393
    %v602 = vpack.c.b16 %v410, %v394
    %v603 = vpack.c.b16 %v411, %v395
    %v604 = vpack.c.b16 %v412, %v396
    %v605 = vpack.c.b16 %v413, %v397
    %v606 = vpack.c.b16 %v430, %v414
    %v607 = vpack.c.b16 %v431, %v415
    %v608 = vpack.c.b16 %v432, %v416
    %v609 = vpack.c.b16 %v433, %v417
    %v610 = vpack.c.b16 %v434, %v418
    %v611 = vpack.c.b16 %v435, %v419
    %v612 = vpack.c.b16 %v436, %v420
    %v613 = vpack.c.b16 %v437, %v421
    %v614 = vpack.c.b16 %v438, %v422
    %v615 = vpack.c.b16 %v439, %v423
    %v616 = vpack.c.b16 %v440, %v424
    %v617 = vpack.c.b16 %v441, %v425
    %v618 = vpack.c.b16 %v442, %v426
    %v619 = vpack.c.b16 %v443, %v427
    %v620 = vpack.c.b16 %v444, %v428
    %v621 = vpack.c.b16 %v445, %v429
    %v622 = vpack.c.b16 %v462, %v446
    %v623 = vpack.c.b16 %v463, %v447
    %v624 = vpack.c.b16 %v464, %v448
    %v625 = vpack.c.b16 %v465, %v449
    %v626 = vpack.c.b16 %v466, %v450
    %v627 = vpack.c.b16 %v467, %v451
    %v628 = vpack.c.b16 %v468, %v452
    %v629 = vpack.c.b16 %v469, %v453
    %v630 = vpack.c.b16 %v470, %v454
    %v631 = vpack.c.b16 %v471, %v455
    %v632 = vpack.c.b16 %v472, %v456
    %v633 = vpack.c.b16 %v473, %v457
    %v634 = vpack.c.b16 %v474, %v458
    %v635 = vpack.c.b16 %v475, %v459
    %v636 = vpack.c.b16 %v476, %v460
    %v637 = vpack.c.b16 %v477, %v461
    %v638 = vpack.c.b16 %v494, %v478
    %v639 = vpack.c.b16 %v495, %v479
    %v640 = vpack.c.b16 %v496, %v480
    %v641 = vpack.c.b16 %v497, %v481
    %v642 = vpack.c.b16 %v498, %v482
    %v643 = vpack.c.b16 %v499, %v483
    %v644 = vpack.c.b16 %v500, %v484
    %v645 = vpack.c.b16 %v501, %v485
    %v646 = vpack.c.b16 %v502, %v486
    %v647 = vpack.c.b16 %v503, %v487
    %v648 = vpack.c.b16 %v504, %v488
    %v649 = vpack.c.b16 %v505, %v489
    %v650 = vpack.c.b16 %v506, %v490
    %v651 = vpack.c.b16 %v507, %v491
    %v652 = vpack.c.b16 %v508, %v492
    %v653 = vpack.c.b16 %v509, %v493
    %v654 = vpack.c.b16 %v526, %v510
    %v655 = vpack.c.b16 %v527, %v511
    %v656 = vpack.c.b16 %v528, %v512
    %v657 = vpack.c.b16 %v529, %v513
    %v658 = vpack.c.b16 %v530, %v514
    %v659 = vpack.c.b16 %v531, %v515
    %v660 = vpack.c.b16 %v532, %v516
    %v661 = vpack.c.b16 %v533, %v517
    %v662 = vpack.c.b16 %v534, %v518
    %v663 = vpack.c.b16 %v535, %v519
    %v664 = vpack.c.b16 %v536, %v520
    %v665 = vpack.c.b16 %v537, %v521
    %v666 = vpack.c.b16 %v538, %v522
    %v667 = vpack.c.b16 %v539, %v523
    %v668 = vpack.c.b16 %v540, %v524
    %v669 = vpack.c.b16 %v541, %v525
    %798 = vmatprep.subr.bf16.mxu0 %v655
    %799 = vmatpush1.bf16.msra.mxu0 %v654
    %800 = vmatprep.subr.bf16.mxu0 %v639
    %801 = vmatpush1.bf16.msra.mxu0 %v638
    %802 = vmatprep.subr.bf16.mxu0 %v623
    %803 = vmatpush1.bf16.msra.mxu0 %v622
    %804 = vmatprep.subr.bf16.mxu0 %v607
    %805 = vmatpush1.bf16.msra.mxu0 %v606
    %806 = vmatprep.subr.bf16.mxu0 %v591
    %807 = vmatpush1.bf16.msra.mxu0 %v590
    %808 = vmatprep.subr.bf16.mxu0 %v575
    %809 = vmatpush1.bf16.msra.mxu0 %v574
    %810 = vmatprep.subr.bf16.mxu0 %v559
    %811 = vmatpush1.bf16.msra.mxu0 %v558
    %812 = vmatprep.subr.bf16.mxu0 %v543
    %813 = vmatpush1.bf16.msra.mxu0 %v542
    %814 = vmatprep.subr.bf16.mxu0 0
    %815 = vmatpush2.bf16.msra.mxu0 0
    %816 = vmatprep.subr.bf16.mxu0 0
    %817 = vmatpush2.bf16.msra.mxu0 0
    %818 = vmatprep.subr.bf16.mxu0 0
    %819 = vmatpush2.bf16.msra.mxu0 0
    %820 = vmatprep.subr.bf16.mxu0 0
    %821 = vmatpush2.bf16.msra.mxu0 0
    %822 = vmatprep.subr.bf16.mxu0 0
    %823 = vmatpush2.bf16.msra.mxu0 0
    %824 = vmatprep.subr.bf16.mxu0 0
    %825 = vmatpush2.bf16.msra.mxu0 0
    %826 = vmatprep.subr.bf16.mxu0 0
    %827 = vmatpush2.bf16.msra.mxu0 0
    %828 = vmatprep.subr.bf16.mxu0 0
    %829 = vmatpush2.bf16.msra.mxu0 0
    %830 = vmatprep.mubr.bf16.mxu0 0
    %831 = vmatmul.mubr.bf16.gmra.mxu0 %v29
    %v832 = vpop.f32.mrf.mxu0
    %v833 = vadd.f32 0.0, %v832
    %v834 = vpop.f32.mrf.mxu0
    %v835 = vadd.f32 0.0, %v834
    %v836 = vpop.f32.mrf.mxu0
    %v837 = vpop.f32.mrf.mxu0
    %838 = vdwg.mxu0
    %839 = vmatprep.subr.bf16.mxu0 %v657
    %840 = vmatpush1.bf16.msra.mxu0 %v656
    %841 = vmatprep.subr.bf16.mxu0 %v641
    %842 = vmatpush1.bf16.msra.mxu0 %v640
    %843 = vmatprep.subr.bf16.mxu0 %v625
    %844 = vmatpush1.bf16.msra.mxu0 %v624
    %845 = vmatprep.subr.bf16.mxu0 %v609
    %846 = vmatpush1.bf16.msra.mxu0 %v608
    %847 = vmatprep.subr.bf16.mxu0 %v593
    %848 = vmatpush1.bf16.msra.mxu0 %v592
    %849 = vmatprep.subr.bf16.mxu0 %v577
    %850 = vmatpush1.bf16.msra.mxu0 %v576
    %851 = vmatprep.subr.bf16.mxu0 %v561
    %852 = vmatpush1.bf16.msra.mxu0 %v560
    %853 = vmatprep.subr.bf16.mxu0 %v545
    %854 = vmatpush1.bf16.msra.mxu0 %v544
    %855 = vmatprep.subr.bf16.mxu0 0
    %856 = vmatpush2.bf16.msra.mxu0 0
    %857 = vmatprep.subr.bf16.mxu0 0
    %858 = vmatpush2.bf16.msra.mxu0 0
    %859 = vmatprep.subr.bf16.mxu0 0
    %860 = vmatpush2.bf16.msra.mxu0 0
    %861 = vmatprep.subr.bf16.mxu0 0
    %862 = vmatpush2.bf16.msra.mxu0 0
    %863 = vmatprep.subr.bf16.mxu0 0
    %864 = vmatpush2.bf16.msra.mxu0 0
    %865 = vmatprep.subr.bf16.mxu0 0
    %866 = vmatpush2.bf16.msra.mxu0 0
    %867 = vmatprep.subr.bf16.mxu0 0
    %868 = vmatpush2.bf16.msra.mxu0 0
    %869 = vmatprep.subr.bf16.mxu0 0
    %870 = vmatpush2.bf16.msra.mxu0 0
    %871 = vmatprep.mubr.bf16.mxu0 0
    %872 = vmatmul.mubr.bf16.gmra.mxu0 %v29
    %v873 = vpop.f32.mrf.mxu0
    %v874 = vadd.f32 0.0, %v873
    %v875 = vpop.f32.mrf.mxu0
    %v876 = vadd.f32 0.0, %v875
    %v877 = vpop.f32.mrf.mxu0
    %v878 = vpop.f32.mrf.mxu0
    %879 = vdwg.mxu0
    %880 = vmatprep.subr.bf16.mxu0 %v659
    %881 = vmatpush1.bf16.msra.mxu0 %v658
    %882 = vmatprep.subr.bf16.mxu0 %v643
    %883 = vmatpush1.bf16.msra.mxu0 %v642
    %884 = vmatprep.subr.bf16.mxu0 %v627
    %885 = vmatpush1.bf16.msra.mxu0 %v626
    %886 = vmatprep.subr.bf16.mxu0 %v611
    %887 = vmatpush1.bf16.msra.mxu0 %v610
    %888 = vmatprep.subr.bf16.mxu0 %v595
    %889 = vmatpush1.bf16.msra.mxu0 %v594
    %890 = vmatprep.subr.bf16.mxu0 %v579
    %891 = vmatpush1.bf16.msra.mxu0 %v578
    %892 = vmatprep.subr.bf16.mxu0 %v563
    %893 = vmatpush1.bf16.msra.mxu0 %v562
    %894 = vmatprep.subr.bf16.mxu0 %v547
    %895 = vmatpush1.bf16.msra.mxu0 %v546
    %896 = vmatprep.subr.bf16.mxu0 0
    %897 = vmatpush2.bf16.msra.mxu0 0
    %898 = vmatprep.subr.bf16.mxu0 0
    %899 = vmatpush2.bf16.msra.mxu0 0
    %900 = vmatprep.subr.bf16.mxu0 0
    %901 = vmatpush2.bf16.msra.mxu0 0
    %902 = vmatprep.subr.bf16.mxu0 0
    %903 = vmatpush2.bf16.msra.mxu0 0
    %904 = vmatprep.subr.bf16.mxu0 0
    %905 = vmatpush2.bf16.msra.mxu0 0
    %906 = vmatprep.subr.bf16.mxu0 0
    %907 = vmatpush2.bf16.msra.mxu0 0
    %908 = vmatprep.subr.bf16.mxu0 0
    %909 = vmatpush2.bf16.msra.mxu0 0
    %910 = vmatprep.subr.bf16.mxu0 0
    %911 = vmatpush2.bf16.msra.mxu0 0
    %912 = vmatprep.mubr.bf16.mxu0 0
    %913 = vmatmul.mubr.bf16.gmra.mxu0 %v29
    %v914 = vpop.f32.mrf.mxu0
    %v915 = vadd.f32 0.0, %v914
    %v916 = vpop.f32.mrf.mxu0
    %v917 = vadd.f32 0.0, %v916
    %v918 = vpop.f32.mrf.mxu0
    %v919 = vpop.f32.mrf.mxu0
    %920 = vdwg.mxu0
    %921 = vmatprep.subr.bf16.mxu0 %v661
    %922 = vmatpush1.bf16.msra.mxu0 %v660
    %923 = vmatprep.subr.bf16.mxu0 %v645
    %924 = vmatpush1.bf16.msra.mxu0 %v644
    %925 = vmatprep.subr.bf16.mxu0 %v629
    %926 = vmatpush1.bf16.msra.mxu0 %v628
    %927 = vmatprep.subr.bf16.mxu0 %v613
    %928 = vmatpush1.bf16.msra.mxu0 %v612
    %929 = vmatprep.subr.bf16.mxu0 %v597
    %930 = vmatpush1.bf16.msra.mxu0 %v596
    %931 = vmatprep.subr.bf16.mxu0 %v581
    %932 = vmatpush1.bf16.msra.mxu0 %v580
    %933 = vmatprep.subr.bf16.mxu0 %v565
    %934 = vmatpush1.bf16.msra.mxu0 %v564
    %935 = vmatprep.subr.bf16.mxu0 %v549
    %936 = vmatpush1.bf16.msra.mxu0 %v548
    %937 = vmatprep.subr.bf16.mxu0 0
    %938 = vmatpush2.bf16.msra.mxu0 0
    %939 = vmatprep.subr.bf16.mxu0 0
    %940 = vmatpush2.bf16.msra.mxu0 0
    %941 = vmatprep.subr.bf16.mxu0 0
    %942 = vmatpush2.bf16.msra.mxu0 0
    %943 = vmatprep.subr.bf16.mxu0 0
    %944 = vmatpush2.bf16.msra.mxu0 0
    %945 = vmatprep.subr.bf16.mxu0 0
    %946 = vmatpush2.bf16.msra.mxu0 0
    %947 = vmatprep.subr.bf16.mxu0 0
    %948 = vmatpush2.bf16.msra.mxu0 0
    %949 = vmatprep.subr.bf16.mxu0 0
    %950 = vmatpush2.bf16.msra.mxu0 0
    %951 = vmatprep.subr.bf16.mxu0 0
    %952 = vmatpush2.bf16.msra.mxu0 0
    %953 = vmatprep.mubr.bf16.mxu0 0
    %954 = vmatmul.mubr.bf16.gmra.mxu0 %v29
    %v955 = vpop.f32.mrf.mxu0
    %v956 = vadd.f32 0.0, %v955
    %v957 = vpop.f32.mrf.mxu0
    %v958 = vadd.f32 0.0, %v957
    %v959 = vpop.f32.mrf.mxu0
    %v960 = vpop.f32.mrf.mxu0
    %961 = vdwg.mxu0
    %962 = vmatprep.subr.bf16.mxu0 %v663
    %963 = vmatpush1.bf16.msra.mxu0 %v662
    %964 = vmatprep.subr.bf16.mxu0 %v647
    %965 = vmatpush1.bf16.msra.mxu0 %v646
    %966 = vmatprep.subr.bf16.mxu0 %v631
    %967 = vmatpush1.bf16.msra.mxu0 %v630
    %968 = vmatprep.subr.bf16.mxu0 %v615
    %969 = vmatpush1.bf16.msra.mxu0 %v614
    %970 = vmatprep.subr.bf16.mxu0 %v599
    %971 = vmatpush1.bf16.msra.mxu0 %v598
    %972 = vmatprep.subr.bf16.mxu0 %v583
    %973 = vmatpush1.bf16.msra.mxu0 %v582
    %974 = vmatprep.subr.bf16.mxu0 %v567
    %975 = vmatpush1.bf16.msra.mxu0 %v566
    %976 = vmatprep.subr.bf16.mxu0 %v551
    %977 = vmatpush1.bf16.msra.mxu0 %v550
    %978 = vmatprep.subr.bf16.mxu0 0
    %979 = vmatpush2.bf16.msra.mxu0 0
    %980 = vmatprep.subr.bf16.mxu0 0
    %981 = vmatpush2.bf16.msra.mxu0 0
    %982 = vmatprep.subr.bf16.mxu0 0
    %983 = vmatpush2.bf16.msra.mxu0 0
    %984 = vmatprep.subr.bf16.mxu0 0
    %985 = vmatpush2.bf16.msra.mxu0 0
    %986 = vmatprep.subr.bf16.mxu0 0
    %987 = vmatpush2.bf16.msra.mxu0 0
    %988 = vmatprep.subr.bf16.mxu0 0
    %989 = vmatpush2.bf16.msra.mxu0 0
    %990 = vmatprep.subr.bf16.mxu0 0
    %991 = vmatpush2.bf16.msra.mxu0 0
    %992 = vmatprep.subr.bf16.mxu0 0
    %993 = vmatpush2.bf16.msra.mxu0 0
    %994 = vmatprep.mubr.bf16.mxu0 0
    %995 = vmatmul.mubr.bf16.gmra.mxu0 %v29
    %v996 = vpop.f32.mrf.mxu0
    %v997 = vadd.f32 0.0, %v996
    %v998 = vpop.f32.mrf.mxu0
    %v999 = vadd.f32 0.0, %v998
    %v1000 = vpop.f32.mrf.mxu0
    %v1001 = vpop.f32.mrf.mxu0
    %1002 = vdwg.mxu0
    %1003 = vmatprep.subr.bf16.mxu0 %v665
    %1004 = vmatpush1.bf16.msra.mxu0 %v664
    %1005 = vmatprep.subr.bf16.mxu0 %v649
    %1006 = vmatpush1.bf16.msra.mxu0 %v648
    %1007 = vmatprep.subr.bf16.mxu0 %v633
    %1008 = vmatpush1.bf16.msra.mxu0 %v632
    %1009 = vmatprep.subr.bf16.mxu0 %v617
    %1010 = vmatpush1.bf16.msra.mxu0 %v616
    %1011 = vmatprep.subr.bf16.mxu0 %v601
    %1012 = vmatpush1.bf16.msra.mxu0 %v600
    %1013 = vmatprep.subr.bf16.mxu0 %v585
    %1014 = vmatpush1.bf16.msra.mxu0 %v584
    %1015 = vmatprep.subr.bf16.mxu0 %v569
    %1016 = vmatpush1.bf16.msra.mxu0 %v568
    %1017 = vmatprep.subr.bf16.mxu0 %v553
    %1018 = vmatpush1.bf16.msra.mxu0 %v552
    %1019 = vmatprep.subr.bf16.mxu0 0
    %1020 = vmatpush2.bf16.msra.mxu0 0
    %1021 = vmatprep.subr.bf16.mxu0 0
    %1022 = vmatpush2.bf16.msra.mxu0 0
    %1023 = vmatprep.subr.bf16.mxu0 0
    %1024 = vmatpush2.bf16.msra.mxu0 0
    %1025 = vmatprep.subr.bf16.mxu0 0
    %1026 = vmatpush2.bf16.msra.mxu0 0
    %1027 = vmatprep.subr.bf16.mxu0 0
    %1028 = vmatpush2.bf16.msra.mxu0 0
    %1029 = vmatprep.subr.bf16.mxu0 0
    %1030 = vmatpush2.bf16.msra.mxu0 0
    %1031 = vmatprep.subr.bf16.mxu0 0
    %1032 = vmatpush2.bf16.msra.mxu0 0
    %1033 = vmatprep.subr.bf16.mxu0 0
    %1034 = vmatpush2.bf16.msra.mxu0 0
    %1035 = vmatprep.mubr.bf16.mxu0 0
    %1036 = vmatmul.mubr.bf16.gmra.mxu0 %v29
    %v1037 = vpop.f32.mrf.mxu0
    %v1038 = vadd.f32 0.0, %v1037
    %v1039 = vpop.f32.mrf.mxu0
    %v1040 = vadd.f32 0.0, %v1039
    %v1041 = vpop.f32.mrf.mxu0
    %v1042 = vpop.f32.mrf.mxu0
    %1043 = vdwg.mxu0
    %1044 = vmatprep.subr.bf16.mxu0 %v667
    %1045 = vmatpush1.bf16.msra.mxu0 %v666
    %1046 = vmatprep.subr.bf16.mxu0 %v651
    %1047 = vmatpush1.bf16.msra.mxu0 %v650
    %1048 = vmatprep.subr.bf16.mxu0 %v635
    %1049 = vmatpush1.bf16.msra.mxu0 %v634
    %1050 = vmatprep.subr.bf16.mxu0 %v619
    %1051 = vmatpush1.bf16.msra.mxu0 %v618
    %1052 = vmatprep.subr.bf16.mxu0 %v603
    %1053 = vmatpush1.bf16.msra.mxu0 %v602
    %1054 = vmatprep.subr.bf16.mxu0 %v587
    %1055 = vmatpush1.bf16.msra.mxu0 %v586
    %1056 = vmatprep.subr.bf16.mxu0 %v571
    %1057 = vmatpush1.bf16.msra.mxu0 %v570
    %1058 = vmatprep.subr.bf16.mxu0 %v555
    %1059 = vmatpush1.bf16.msra.mxu0 %v554
    %1060 = vmatprep.subr.bf16.mxu0 0
    %1061 = vmatpush2.bf16.msra.mxu0 0
    %1062 = vmatprep.subr.bf16.mxu0 0
    %1063 = vmatpush2.bf16.msra.mxu0 0
    %1064 = vmatprep.subr.bf16.mxu0 0
    %1065 = vmatpush2.bf16.msra.mxu0 0
    %1066 = vmatprep.subr.bf16.mxu0 0
    %1067 = vmatpush2.bf16.msra.mxu0 0
    %1068 = vmatprep.subr.bf16.mxu0 0
    %1069 = vmatpush2.bf16.msra.mxu0 0
    %1070 = vmatprep.subr.bf16.mxu0 0
    %1071 = vmatpush2.bf16.msra.mxu0 0
    %1072 = vmatprep.subr.bf16.mxu0 0
    %1073 = vmatpush2.bf16.msra.mxu0 0
    %1074 = vmatprep.subr.bf16.mxu0 0
    %1075 = vmatpush2.bf16.msra.mxu0 0
    %1076 = vmatprep.mubr.bf16.mxu0 0
    %1077 = vmatmul.mubr.bf16.gmra.mxu0 %v29
    %v1078 = vpop.f32.mrf.mxu0
    %v1079 = vadd.f32 0.0, %v1078
    %v1080 = vpop.f32.mrf.mxu0
    %v1081 = vadd.f32 0.0, %v1080
    %v1082 = vpop.f32.mrf.mxu0
    %v1083 = vpop.f32.mrf.mxu0
    %1084 = vdwg.mxu0
    %1085 = vmatprep.subr.bf16.mxu0 %v669
    %1086 = vmatpush1.bf16.msra.mxu0 %v668
    %1087 = vmatprep.subr.bf16.mxu0 %v653
    %1088 = vmatpush1.bf16.msra.mxu0 %v652
    %1089 = vmatprep.subr.bf16.mxu0 %v637
    %1090 = vmatpush1.bf16.msra.mxu0 %v636
    %1091 = vmatprep.subr.bf16.mxu0 %v621
    %1092 = vmatpush1.bf16.msra.mxu0 %v620
    %1093 = vmatprep.subr.bf16.mxu0 %v605
    %1094 = vmatpush1.bf16.msra.mxu0 %v604
    %1095 = vmatprep.subr.bf16.mxu0 %v589
    %1096 = vmatpush1.bf16.msra.mxu0 %v588
    %1097 = vmatprep.subr.bf16.mxu0 %v573
    %1098 = vmatpush1.bf16.msra.mxu0 %v572
    %1099 = vmatprep.subr.bf16.mxu0 %v557
    %1100 = vmatpush1.bf16.msra.mxu0 %v556
    %1101 = vmatprep.subr.bf16.mxu0 0
    %1102 = vmatpush2.bf16.msra.mxu0 0
    %1103 = vmatprep.subr.bf16.mxu0 0
    %1104 = vmatpush2.bf16.msra.mxu0 0
    %1105 = vmatprep.subr.bf16.mxu0 0
    %1106 = vmatpush2.bf16.msra.mxu0 0
    %1107 = vmatprep.subr.bf16.mxu0 0
    %1108 = vmatpush2.bf16.msra.mxu0 0
    %1109 = vmatprep.subr.bf16.mxu0 0
    %1110 = vmatpush2.bf16.msra.mxu0 0
    %1111 = vmatprep.subr.bf16.mxu0 0
    %1112 = vmatpush2.bf16.msra.mxu0 0
    %1113 = vmatprep.subr.bf16.mxu0 0
    %1114 = vmatpush2.bf16.msra.mxu0 0
    %1115 = vmatprep.subr.bf16.mxu0 0
    %1116 = vmatpush2.bf16.msra.mxu0 0
    %1117 = vmatprep.mubr.bf16.mxu0 0
    %1118 = vmatmul.mubr.bf16.gmra.mxu0 %v29
    %v1119 = vpop.f32.mrf.mxu0
    %v1120 = vadd.f32 0.0, %v1119
    %v1121 = vpop.f32.mrf.mxu0
    %v1122 = vadd.f32 0.0, %v1121
    %v1123 = vpop.f32.mrf.mxu0
    %v1124 = vpop.f32.mrf.mxu0
    %1125 = vdwg.mxu0
    %v1126 = vpack.c.bf16 %v833, %v833
    %v1127 = vpack.c.bf16 %v835, %v835
    %v1128 = vpack.c.bf16 %v874, %v874
    %v1129 = vpack.c.bf16 %v876, %v876
    %v1130 = vpack.c.bf16 %v915, %v915
    %v1131 = vpack.c.bf16 %v917, %v917
    %v1132 = vpack.c.bf16 %v956, %v956
    %v1133 = vpack.c.bf16 %v958, %v958
    %v1134 = vpack.c.bf16 %v997, %v997
    %v1135 = vpack.c.bf16 %v999, %v999
    %v1136 = vpack.c.bf16 %v1038, %v1038
    %v1137 = vpack.c.bf16 %v1040, %v1040
    %v1138 = vpack.c.bf16 %v1079, %v1079
    %v1139 = vpack.c.bf16 %v1081, %v1081
    %v1140 = vpack.c.bf16 %v1120, %v1120
    %v1141 = vpack.c.bf16 %v1122, %v1122
    %v1158 = vunpack.c.l.b16 %v1126
    %v1159 = vunpack.c.l.b16 %v1127
    %v1160 = vunpack.c.l.b16 %v1128
    %v1161 = vunpack.c.l.b16 %v1129
    %v1162 = vunpack.c.l.b16 %v1130
    %v1163 = vunpack.c.l.b16 %v1131
    %v1164 = vunpack.c.l.b16 %v1132
    %v1165 = vunpack.c.l.b16 %v1133
    %v1166 = vunpack.c.l.b16 %v1134
    %v1167 = vunpack.c.l.b16 %v1135
    %v1168 = vunpack.c.l.b16 %v1136
    %v1169 = vunpack.c.l.b16 %v1137
    %v1170 = vunpack.c.l.b16 %v1138
    %v1171 = vunpack.c.l.b16 %v1139
    %v1172 = vunpack.c.l.b16 %v1140
    %v1173 = vunpack.c.l.b16 %v1141
    %v1174 = vpack.c.b16 %v1159, %v1158
    %v1175 = vpack.c.b16 %v1161, %v1160
    %v1176 = vpack.c.b16 %v1163, %v1162
    %v1177 = vpack.c.b16 %v1165, %v1164
    %v1178 = vpack.c.b16 %v1167, %v1166
    %v1179 = vpack.c.b16 %v1169, %v1168
    %v1180 = vpack.c.b16 %v1171, %v1170
    %v1181 = vpack.c.b16 %v1173, %v1172
    %1190 = vst [vmem:[%s2] sm:$0xff] %v1174
    %1191 = vst [vmem:[%s2 + $0x8] sm:$0xff] %v1175
    %1192 = vst [vmem:[%s2 + $0x10] sm:$0xff] %v1176
    %1193 = vst [vmem:[%s2 + $0x18] sm:$0xff] %v1177
    %1194 = vst [vmem:[%s2 + $0x20] sm:$0xff] %v1178
    %1195 = vst [vmem:[%s2 + $0x28] sm:$0xff] %v1179
    %1196 = vst [vmem:[%s2 + $0x30] sm:$0xff] %v1180
    %1197 = vst [vmem:[%s2 + $0x38] sm:$0xff] %v1181
    %v1198 = vrot.slane %v833, 4
    %v1199 = vadd.f32 %v833, %v1198
    %v1200 = vrot.slane %v1199, 2
    %v1201 = vadd.f32 %v1199, %v1200
    %v1202 = vrot.slane %v1201, 1
    %v1203 = vadd.f32 %v1201, %v1202
    %v1204 = vrot.slane %v835, 4
    %v1205 = vadd.f32 %v835, %v1204
    %v1206 = vrot.slane %v1205, 2
    %v1207 = vadd.f32 %v1205, %v1206
    %v1208 = vrot.slane %v1207, 1
    %v1209 = vadd.f32 %v1207, %v1208
    %v1210 = vrot.slane %v874, 4
    %v1211 = vadd.f32 %v874, %v1210
    %v1212 = vrot.slane %v1211, 2
    %v1213 = vadd.f32 %v1211, %v1212
    %v1214 = vrot.slane %v1213, 1
    %v1215 = vadd.f32 %v1213, %v1214
    %v1216 = vrot.slane %v876, 4
    %v1217 = vadd.f32 %v876, %v1216
    %v1218 = vrot.slane %v1217, 2
    %v1219 = vadd.f32 %v1217, %v1218
    %v1220 = vrot.slane %v1219, 1
    %v1221 = vadd.f32 %v1219, %v1220
    %v1222 = vrot.slane %v915, 4
    %v1223 = vadd.f32 %v915, %v1222
    %v1224 = vrot.slane %v1223, 2
    %v1225 = vadd.f32 %v1223, %v1224
    %v1226 = vrot.slane %v1225, 1
    %v1227 = vadd.f32 %v1225, %v1226
    %v1228 = vrot.slane %v917, 4
    %v1229 = vadd.f32 %v917, %v1228
    %v1230 = vrot.slane %v1229, 2
    %v1231 = vadd.f32 %v1229, %v1230
    %v1232 = vrot.slane %v1231, 1
    %v1233 = vadd.f32 %v1231, %v1232
    %v1234 = vrot.slane %v956, 4
    %v1235 = vadd.f32 %v956, %v1234
    %v1236 = vrot.slane %v1235, 2
    %v1237 = vadd.f32 %v1235, %v1236
    %v1238 = vrot.slane %v1237, 1
    %v1239 = vadd.f32 %v1237, %v1238
    %v1240 = vrot.slane %v958, 4
    %v1241 = vadd.f32 %v958, %v1240
    %v1242 = vrot.slane %v1241, 2
    %v1243 = vadd.f32 %v1241, %v1242
    %v1244 = vrot.slane %v1243, 1
    %v1245 = vadd.f32 %v1243, %v1244
    %v1246 = vrot.slane %v997, 4
    %v1247 = vadd.f32 %v997, %v1246
    %v1248 = vrot.slane %v1247, 2
    %v1249 = vadd.f32 %v1247, %v1248
    %v1250 = vrot.slane %v1249, 1
    %v1251 = vadd.f32 %v1249, %v1250
    %v1252 = vrot.slane %v999, 4
    %v1253 = vadd.f32 %v999, %v1252
    %v1254 = vrot.slane %v1253, 2
    %v1255 = vadd.f32 %v1253, %v1254
    %v1256 = vrot.slane %v1255, 1
    %v1257 = vadd.f32 %v1255, %v1256
    %v1258 = vrot.slane %v1038, 4
    %v1259 = vadd.f32 %v1038, %v1258
    %v1260 = vrot.slane %v1259, 2
    %v1261 = vadd.f32 %v1259, %v1260
    %v1262 = vrot.slane %v1261, 1
    %v1263 = vadd.f32 %v1261, %v1262
    %v1264 = vrot.slane %v1040, 4
    %v1265 = vadd.f32 %v1040, %v1264
    %v1266 = vrot.slane %v1265, 2
    %v1267 = vadd.f32 %v1265, %v1266
    %v1268 = vrot.slane %v1267, 1
    %v1269 = vadd.f32 %v1267, %v1268
    %v1270 = vrot.slane %v1079, 4
    %v1271 = vadd.f32 %v1079, %v1270
    %v1272 = vrot.slane %v1271, 2
    %v1273 = vadd.f32 %v1271, %v1272
    %v1274 = vrot.slane %v1273, 1
    %v1275 = vadd.f32 %v1273, %v1274
    %v1276 = vrot.slane %v1081, 4
    %v1277 = vadd.f32 %v1081, %v1276
    %v1278 = vrot.slane %v1277, 2
    %v1279 = vadd.f32 %v1277, %v1278
    %v1280 = vrot.slane %v1279, 1
    %v1281 = vadd.f32 %v1279, %v1280
    %v1282 = vrot.slane %v1120, 4
    %v1283 = vadd.f32 %v1120, %v1282
    %v1284 = vrot.slane %v1283, 2
    %v1285 = vadd.f32 %v1283, %v1284
    %v1286 = vrot.slane %v1285, 1
    %v1287 = vadd.f32 %v1285, %v1286
    %v1288 = vrot.slane %v1122, 4
    %v1289 = vadd.f32 %v1122, %v1288
    %v1290 = vrot.slane %v1289, 2
    %v1291 = vadd.f32 %v1289, %v1290
    %v1292 = vrot.slane %v1291, 1
    %v1293 = vadd.f32 %v1291, %v1292
    %v1310 = vcombine.low %v1203, %v1209
    %v1311 = vcombine.low %v1215, %v1221
    %v1312 = vcombine.low %v1227, %v1233
    %v1313 = vcombine.low %v1239, %v1245
    %v1315 = vunpack.c.l.s4 1966171168
    %v1316 = vunpack.c.0.s8 %v1315
    %v1317 = vlaneseq
    %v1318 = vshrl.u32 %v1317, 7
    %v1319 = vsub.s32 %v1316, %v1318
    %v1320 = vrot.slane %v1310, %v1319
    %v1322 = vunpack.c.l.s4 1966171168
    %v1323 = vunpack.c.0.s8 %v1322
    %v1324 = vlaneseq
    %v1325 = vshrl.u32 %v1324, 7
    %v1326 = vsub.s32 %v1323, %v1325
    %v1327 = vrot.slane %v1311, %v1326
    %v1329 = vunpack.c.l.s4 1966171168
    %v1330 = vunpack.c.0.s8 %v1329
    %v1331 = vlaneseq
    %v1332 = vshrl.u32 %v1331, 7
    %v1333 = vsub.s32 %v1330, %v1332
    %v1334 = vrot.slane %v1312, %v1333
    %v1336 = vunpack.c.l.s4 1966171168
    %v1337 = vunpack.c.0.s8 %v1336
    %v1338 = vlaneseq
    %v1339 = vshrl.u32 %v1338, 7
    %v1340 = vsub.s32 %v1337, %v1339
    %v1341 = vrot.slane %v1313, %v1340
    %v1342 = vcombine.low %v1320, %v1327
    %v1343 = vcombine.low %v1334, %v1341
    %v1345 = vunpack.c.l.s4 1966171168
    %v1346 = vunpack.c.0.s8 %v1345
    %v1347 = vlaneseq
    %v1348 = vshrl.u32 %v1347, 7
    %v1349 = vsub.s32 %v1346, %v1348
    %v1350 = vrot.slane %v1342, %v1349
    %v1352 = vunpack.c.l.s4 1966171168
    %v1353 = vunpack.c.0.s8 %v1352
    %v1354 = vlaneseq
    %v1355 = vshrl.u32 %v1354, 7
    %v1356 = vsub.s32 %v1353, %v1355
    %v1357 = vrot.slane %v1343, %v1356
    %v1358 = vcombine.low %v1350, %v1357
    %v1359 = vcombine.low %v1251, %v1257
    %v1360 = vcombine.low %v1263, %v1269
    %v1361 = vcombine.low %v1275, %v1281
    %v1362 = vcombine.low %v1287, %v1293
    %v1364 = vunpack.c.l.s4 1966171168
    %v1365 = vunpack.c.0.s8 %v1364
    %v1366 = vlaneseq
    %v1367 = vshrl.u32 %v1366, 7
    %v1368 = vsub.s32 %v1365, %v1367
    %v1369 = vrot.slane %v1359, %v1368
    %v1371 = vunpack.c.l.s4 1966171168
    %v1372 = vunpack.c.0.s8 %v1371
    %v1373 = vlaneseq
    %v1374 = vshrl.u32 %v1373, 7
    %v1375 = vsub.s32 %v1372, %v1374
    %v1376 = vrot.slane %v1360, %v1375
    %v1378 = vunpack.c.l.s4 1966171168
    %v1379 = vunpack.c.0.s8 %v1378
    %v1380 = vlaneseq
    %v1381 = vshrl.u32 %v1380, 7
    %v1382 = vsub.s32 %v1379, %v1381
    %v1383 = vrot.slane %v1361, %v1382
    %v1385 = vunpack.c.l.s4 1966171168
    %v1386 = vunpack.c.0.s8 %v1385
    %v1387 = vlaneseq
    %v1388 = vshrl.u32 %v1387, 7
    %v1389 = vsub.s32 %v1386, %v1388
    %v1390 = vrot.slane %v1362, %v1389
    %v1391 = vcombine.low %v1369, %v1376
    %v1392 = vcombine.low %v1383, %v1390
    %v1394 = vunpack.c.l.s4 1966171168
    %v1395 = vunpack.c.0.s8 %v1394
    %v1396 = vlaneseq
    %v1397 = vshrl.u32 %v1396, 7
    %v1398 = vsub.s32 %v1395, %v1397
    %v1399 = vrot.slane %v1391, %v1398
    %v1401 = vunpack.c.l.s4 1966171168
    %v1402 = vunpack.c.0.s8 %v1401
    %v1403 = vlaneseq
    %v1404 = vshrl.u32 %v1403, 7
    %v1405 = vsub.s32 %v1402, %v1404
    %v1406 = vrot.slane %v1392, %v1405
    %v1407 = vcombine.low %v1399, %v1406
    %1410 = vst [vmem:[%s3] sm:$0xff] %v1358
    %1411 = vst [vmem:[%s3 + $0x8] sm:$0xff] %v1407
    %v1412 = vmul.f32 %v833, %v833
    %v1413 = vmul.f32 %v835, %v835
    %v1414 = vmul.f32 %v874, %v874
    %v1415 = vmul.f32 %v876, %v876
    %v1416 = vmul.f32 %v915, %v915
    %v1417 = vmul.f32 %v917, %v917
    %v1418 = vmul.f32 %v956, %v956
    %v1419 = vmul.f32 %v958, %v958
    %v1420 = vmul.f32 %v997, %v997
    %v1421 = vmul.f32 %v999, %v999
    %v1422 = vmul.f32 %v1038, %v1038
    %v1423 = vmul.f32 %v1040, %v1040
    %v1424 = vmul.f32 %v1079, %v1079
    %v1425 = vmul.f32 %v1081, %v1081
    %v1426 = vmul.f32 %v1120, %v1120
    %v1427 = vmul.f32 %v1122, %v1122
    %v1428 = vrot.slane %v1412, 4
    %v1429 = vadd.f32 %v1412, %v1428
    %v1430 = vrot.slane %v1429, 2
    %v1431 = vadd.f32 %v1429, %v1430
    %v1432 = vrot.slane %v1431, 1
    %v1433 = vadd.f32 %v1431, %v1432
    %v1434 = vrot.slane %v1413, 4
    %v1435 = vadd.f32 %v1413, %v1434
    %v1436 = vrot.slane %v1435, 2
    %v1437 = vadd.f32 %v1435, %v1436
    %v1438 = vrot.slane %v1437, 1
    %v1439 = vadd.f32 %v1437, %v1438
    %v1440 = vrot.slane %v1414, 4
    %v1441 = vadd.f32 %v1414, %v1440
    %v1442 = vrot.slane %v1441, 2
    %v1443 = vadd.f32 %v1441, %v1442
    %v1444 = vrot.slane %v1443, 1
    %v1445 = vadd.f32 %v1443, %v1444
    %v1446 = vrot.slane %v1415, 4
    %v1447 = vadd.f32 %v1415, %v1446
    %v1448 = vrot.slane %v1447, 2
    %v1449 = vadd.f32 %v1447, %v1448
    %v1450 = vrot.slane %v1449, 1
    %v1451 = vadd.f32 %v1449, %v1450
    %v1452 = vrot.slane %v1416, 4
    %v1453 = vadd.f32 %v1416, %v1452
    %v1454 = vrot.slane %v1453, 2
    %v1455 = vadd.f32 %v1453, %v1454
    %v1456 = vrot.slane %v1455, 1
    %v1457 = vadd.f32 %v1455, %v1456
    %v1458 = vrot.slane %v1417, 4
    %v1459 = vadd.f32 %v1417, %v1458
    %v1460 = vrot.slane %v1459, 2
    %v1461 = vadd.f32 %v1459, %v1460
    %v1462 = vrot.slane %v1461, 1
    %v1463 = vadd.f32 %v1461, %v1462
    %v1464 = vrot.slane %v1418, 4
    %v1465 = vadd.f32 %v1418, %v1464
    %v1466 = vrot.slane %v1465, 2
    %v1467 = vadd.f32 %v1465, %v1466
    %v1468 = vrot.slane %v1467, 1
    %v1469 = vadd.f32 %v1467, %v1468
    %v1470 = vrot.slane %v1419, 4
    %v1471 = vadd.f32 %v1419, %v1470
    %v1472 = vrot.slane %v1471, 2
    %v1473 = vadd.f32 %v1471, %v1472
    %v1474 = vrot.slane %v1473, 1
    %v1475 = vadd.f32 %v1473, %v1474
    %v1476 = vrot.slane %v1420, 4
    %v1477 = vadd.f32 %v1420, %v1476
    %v1478 = vrot.slane %v1477, 2
    %v1479 = vadd.f32 %v1477, %v1478
    %v1480 = vrot.slane %v1479, 1
    %v1481 = vadd.f32 %v1479, %v1480
    %v1482 = vrot.slane %v1421, 4
    %v1483 = vadd.f32 %v1421, %v1482
    %v1484 = vrot.slane %v1483, 2
    %v1485 = vadd.f32 %v1483, %v1484
    %v1486 = vrot.slane %v1485, 1
    %v1487 = vadd.f32 %v1485, %v1486
    %v1488 = vrot.slane %v1422, 4
    %v1489 = vadd.f32 %v1422, %v1488
    %v1490 = vrot.slane %v1489, 2
    %v1491 = vadd.f32 %v1489, %v1490
    %v1492 = vrot.slane %v1491, 1
    %v1493 = vadd.f32 %v1491, %v1492
    %v1494 = vrot.slane %v1423, 4
    %v1495 = vadd.f32 %v1423, %v1494
    %v1496 = vrot.slane %v1495, 2
    %v1497 = vadd.f32 %v1495, %v1496
    %v1498 = vrot.slane %v1497, 1
    %v1499 = vadd.f32 %v1497, %v1498
    %v1500 = vrot.slane %v1424, 4
    %v1501 = vadd.f32 %v1424, %v1500
    %v1502 = vrot.slane %v1501, 2
    %v1503 = vadd.f32 %v1501, %v1502
    %v1504 = vrot.slane %v1503, 1
    %v1505 = vadd.f32 %v1503, %v1504
    %v1506 = vrot.slane %v1425, 4
    %v1507 = vadd.f32 %v1425, %v1506
    %v1508 = vrot.slane %v1507, 2
    %v1509 = vadd.f32 %v1507, %v1508
    %v1510 = vrot.slane %v1509, 1
    %v1511 = vadd.f32 %v1509, %v1510
    %v1512 = vrot.slane %v1426, 4
    %v1513 = vadd.f32 %v1426, %v1512
    %v1514 = vrot.slane %v1513, 2
    %v1515 = vadd.f32 %v1513, %v1514
    %v1516 = vrot.slane %v1515, 1
    %v1517 = vadd.f32 %v1515, %v1516
    %v1518 = vrot.slane %v1427, 4
    %v1519 = vadd.f32 %v1427, %v1518
    %v1520 = vrot.slane %v1519, 2
    %v1521 = vadd.f32 %v1519, %v1520
    %v1522 = vrot.slane %v1521, 1
    %v1523 = vadd.f32 %v1521, %v1522
    %v1540 = vcombine.low %v1433, %v1439
    %v1541 = vcombine.low %v1445, %v1451
    %v1542 = vcombine.low %v1457, %v1463
    %v1543 = vcombine.low %v1469, %v1475
    %v1545 = vunpack.c.l.s4 1966171168
    %v1546 = vunpack.c.0.s8 %v1545
    %v1547 = vlaneseq
    %v1548 = vshrl.u32 %v1547, 7
    %v1549 = vsub.s32 %v1546, %v1548
    %v1550 = vrot.slane %v1540, %v1549
    %v1552 = vunpack.c.l.s4 1966171168
    %v1553 = vunpack.c.0.s8 %v1552
    %v1554 = vlaneseq
    %v1555 = vshrl.u32 %v1554, 7
    %v1556 = vsub.s32 %v1553, %v1555
    %v1557 = vrot.slane %v1541, %v1556
    %v1559 = vunpack.c.l.s4 1966171168
    %v1560 = vunpack.c.0.s8 %v1559
    %v1561 = vlaneseq
    %v1562 = vshrl.u32 %v1561, 7
    %v1563 = vsub.s32 %v1560, %v1562
    %v1564 = vrot.slane %v1542, %v1563
    %v1566 = vunpack.c.l.s4 1966171168
    %v1567 = vunpack.c.0.s8 %v1566
    %v1568 = vlaneseq
    %v1569 = vshrl.u32 %v1568, 7
    %v1570 = vsub.s32 %v1567, %v1569
    %v1571 = vrot.slane %v1543, %v1570
    %v1572 = vcombine.low %v1550, %v1557
    %v1573 = vcombine.low %v1564, %v1571
    %v1575 = vunpack.c.l.s4 1966171168
    %v1576 = vunpack.c.0.s8 %v1575
    %v1577 = vlaneseq
    %v1578 = vshrl.u32 %v1577, 7
    %v1579 = vsub.s32 %v1576, %v1578
    %v1580 = vrot.slane %v1572, %v1579
    %v1582 = vunpack.c.l.s4 1966171168
    %v1583 = vunpack.c.0.s8 %v1582
    %v1584 = vlaneseq
    %v1585 = vshrl.u32 %v1584, 7
    %v1586 = vsub.s32 %v1583, %v1585
    %v1587 = vrot.slane %v1573, %v1586
    %v1588 = vcombine.low %v1580, %v1587
    %v1589 = vcombine.low %v1481, %v1487
    %v1590 = vcombine.low %v1493, %v1499
    %v1591 = vcombine.low %v1505, %v1511
    %v1592 = vcombine.low %v1517, %v1523
    %v1594 = vunpack.c.l.s4 1966171168
    %v1595 = vunpack.c.0.s8 %v1594
    %v1596 = vlaneseq
    %v1597 = vshrl.u32 %v1596, 7
    %v1598 = vsub.s32 %v1595, %v1597
    %v1599 = vrot.slane %v1589, %v1598
    %v1601 = vunpack.c.l.s4 1966171168
    %v1602 = vunpack.c.0.s8 %v1601
    %v1603 = vlaneseq
    %v1604 = vshrl.u32 %v1603, 7
    %v1605 = vsub.s32 %v1602, %v1604
    %v1606 = vrot.slane %v1590, %v1605
    %v1608 = vunpack.c.l.s4 1966171168
    %v1609 = vunpack.c.0.s8 %v1608
    %v1610 = vlaneseq
    %v1611 = vshrl.u32 %v1610, 7
    %v1612 = vsub.s32 %v1609, %v1611
    %v1613 = vrot.slane %v1591, %v1612
    %v1615 = vunpack.c.l.s4 1966171168
    %v1616 = vunpack.c.0.s8 %v1615
    %v1617 = vlaneseq
    %v1618 = vshrl.u32 %v1617, 7
    %v1619 = vsub.s32 %v1616, %v1618
    %v1620 = vrot.slane %v1592, %v1619
    %v1621 = vcombine.low %v1599, %v1606
    %v1622 = vcombine.low %v1613, %v1620
    %v1624 = vunpack.c.l.s4 1966171168
    %v1625 = vunpack.c.0.s8 %v1624
    %v1626 = vlaneseq
    %v1627 = vshrl.u32 %v1626, 7
    %v1628 = vsub.s32 %v1625, %v1627
    %v1629 = vrot.slane %v1621, %v1628
    %v1631 = vunpack.c.l.s4 1966171168
    %v1632 = vunpack.c.0.s8 %v1631
    %v1633 = vlaneseq
    %v1634 = vshrl.u32 %v1633, 7
    %v1635 = vsub.s32 %v1632, %v1634
    %v1636 = vrot.slane %v1622, %v1635
    %v1637 = vcombine.low %v1629, %v1636
    %1640 = vst [vmem:[%s4] sm:$0xff] %v1588
    %1641 = vst [vmem:[%s4 + $0x8] sm:$0xff] %v1637
    // Predicated region
    $region14: #{wgan_generator_forward.4} parent=1 // pred_check
      _
    $region15: #{wgan_generator_forward.4} parent=1 // pred_check_branch
      %1643 = sbr.rel (0) target = $region17
    $region16: #{wgan_generator_forward.4} parent=1 // pred_region
      _
    $region17: #{wgan_generator_forward.4} parent=1 // pred_fallthru
      _
    // Predicated region
    $region18: #{wgan_generator_forward.4} parent=1 // pred_check
      _
    $region19: #{wgan_generator_forward.4} parent=1 // pred_check_branch
      %1645 = sbr.rel (0) target = $region21
    $region20: #{wgan_generator_forward.4} parent=1 // pred_region
      _
    $region21: #{wgan_generator_forward.4} parent=1 // pred_fallthru
      _
    // Predicated region
    $region22: #{wgan_generator_forward.4} parent=1 // pred_check
      _
    $region23: #{wgan_generator_forward.4} parent=1 // pred_check_branch
      %1647 = sbr.rel (0) target = $region25
    $region24: #{wgan_generator_forward.4} parent=1 // pred_region
      _
    $region25: #{wgan_generator_forward.4} parent=1 // pred_fallthru
      _
    // Predicated region
    $region26: #{wgan_generator_forward.4} parent=1 // pred_check
      _
    $region27: #{wgan_generator_forward.4} parent=1 // pred_check_branch
      %1649 = sbr.rel (0) target = $region29
    $region28: #{wgan_generator_forward.4} parent=1 // pred_region
      _
    $region29: #{wgan_generator_forward.4} parent=1 // pred_fallthru
      _
    // Predicated region
    $region30: #{wgan_generator_forward.4} parent=1 // pred_check
      _
    $region31: #{wgan_generator_forward.4} parent=1 // pred_check_branch
      %1651 = sbr.rel (0) target = $region33
    $region32: #{wgan_generator_forward.4} parent=1 // pred_region
      _
    $region33: #{wgan_generator_forward.4} parent=1 // pred_fallthru
      _
    // Predicated region
    $region34: #{wgan_generator_forward.4} parent=1 // pred_check
      _
    $region35: #{wgan_generator_forward.4} parent=1 // pred_check_branch
      %1653 = sbr.rel (0) target = $region37
    $region36: #{wgan_generator_forward.4} parent=1 // pred_region
      _
    $region37: #{wgan_generator_forward.4} parent=1 // pred_fallthru
      _
    %1654 = vsyncpa [#allocation3], 1

// kernel: wgan_generator_forward.5
$region0: #{wgan_generator_forward.5}
  #allocation0 [shape = 'u32[]', space=smem, size = 0x4, offset = 0x4, fixed_abs, tag = 'smem constant byte address 0x4 - core index']
  #allocation1 [shape = 'u32[144,128]{1,0:T(1,128)}', space=vmem, size = 0x12000, scoped, tag = 'internal scratch']
  %s0 = inlined_call_operand.vmem [shape: bf16[2,6,6,128], index: 0, kind: input, shape index: {}]
  %s1 = inlined_call_operand.hbm [shape: bf16[16,128,128], index: 1, kind: input, shape index: {}]
  %s2 = inlined_call_operand.vmem [shape: bf16[2,4,4,512], index: 2, kind: output, shape index: {0}]
  %s3 = inlined_call_operand.vmem [shape: f32[2,1,1,128], index: 3, kind: output, shape index: {1}]
  %s4 = inlined_call_operand.vmem [shape: f32[2,1,1,128], index: 4, kind: output, shape index: {2}]
  %5 = xla_tuple %s2, %s3, %s4
  %s6 = sld [smem:[#allocation0]]
  $region68: #{wgan_generator_forward.5} parent=0
    _
  %s8 = ssub.s32 1, %s6
  %s9 = scalar_select 0, %s8, %s6
  $region1: #{wgan_generator_forward.5} parent=0
    #allocation2 [shape = 'u8[524288]{0}', space=vmem, size = 0x80000, scoped, tag = 'input window, operand 1, single buffered']
    #allocation3 [shape = 's32[2]{0}', space=sflag, size = 0x8, scoped, tag = 'scoped memory for wgan_generator_forward.5']
    %10 = vsyncpa [#allocation3], 0
    loop: start=0, step=1, limit=4
    $region2: #{wgan_generator_forward.5} parent=1 // loop_pre_header
      _
    $region3: #{wgan_generator_forward.5} parent=1 // loop_header
      %s12 = sphi 0, %s16
      %p13 = scmp.ge.s32.totalorder %s12, 4
      %s19 = sphi 0, %s31
      %s20 = sphi 0, %s27
      %s21 = sphi 0, %s19
      %s22 = sphi 0, %s20
      %s23 = sphi 0, %s21
      %s24 = sphi 0, %s22
      %s34 = sphi 0, %s36
      %s37 = sphi 0, %s34
      %s38 = sphi 0, %s37
      %s54 = sphi 0, %s38
      %s58 = sphi 0, %s58
      %s60 = sphi 0, %s58
      %s61 = sphi 0, %s60
      %s75 = sphi 0, %s61
      %s83 = sphi 0, %s85
      %s86 = sphi 0, %s83
      %s87 = sphi 0, %s86
      %s103 = sphi 0, %s87
      %s111 = sphi 0, %s113
      %s114 = sphi 0, %s111
      %s115 = sphi 0, %s114
      %s131 = sphi 0, %s115
      %s139 = sphi 0, %s141
      %s142 = sphi 0, %s139
      %s143 = sphi 0, %s142
      %s159 = sphi 0, %s143
    $region4: #{wgan_generator_forward.5} parent=1 // loop_header_branch
      %15 = sbr.rel (%p13) target = $region8
    $region5: #{wgan_generator_forward.5} parent=1 // loop_body
      %s17 = ssub.s32 %s12, 1
      %s18 = ssub.s32 %s12, 2
      %s25 = sadd.s32 1, %s20
      %p26 = scmp.ge.s32.totalorder %s25, 1
      %s27 = scalar_select %p26, 0, %s25
      %s28 = sadd.s32 1, %s19
      %s29 = scalar_select %p26, %s28, %s19
      %p30 = scmp.ge.s32.totalorder %s29, 2
      %s31 = scalar_select %p30, 0, %s29
      %s32 = ssub.s32 %s19, %s31
      %p33 = scmp.eq.s32.totalorder %s32, 0
      %s35 = sadd.s32 %s34, 1
      %s36 = scalar_select %p33, %s34, %s35
      %p39 = pneg %p33
      %p40 = scmp.eq.s32.totalorder %s12, 1
      %p41 = por %p39, %p40
      %p42 = scmp.ne.s32.totalorder %s34, %s37
      %p43 = scmp.eq.s32.totalorder %s12, 0
      %p44 = por %p42, %p43
      %p45 = scmp.ne.s32.totalorder %s34, %s37
      %p46 = scmp.eq.s32.totalorder %s17, 1
      %p47 = por %p45, %p46
      %p48 = scmp.ne.s32.totalorder %s37, %s38
      %p49 = scmp.eq.s32.totalorder %s17, 0
      %p50 = por %p48, %p49
      %p51 = scmp.ne.s32.totalorder %s37, %s38
      %p52 = scmp.eq.s32.totalorder %s18, 1
      %p53 = por %p51, %p52
      %p55 = scmp.ne.s32.totalorder %s38, %s54
      %p56 = scmp.eq.s32.totalorder %s18, 0
      %p57 = por %p55, %p56
      %s59 = sadd.s32 %s58, 1
      %p62 = scmp.eq.s32.totalorder %s12, 1
      %p63 = scmp.ne.s32.totalorder %s58, %s60
      %p64 = scmp.eq.s32.totalorder %s12, 0
      %p65 = por %p63, %p64
      %p66 = scmp.ne.s32.totalorder %s58, %s60
      %p67 = scmp.eq.s32.totalorder %s17, 1
      %p68 = por %p66, %p67
      %p69 = scmp.ne.s32.totalorder %s60, %s61
      %p70 = scmp.eq.s32.totalorder %s17, 0
      %p71 = por %p69, %p70
      %p72 = scmp.ne.s32.totalorder %s60, %s61
      %p73 = scmp.eq.s32.totalorder %s18, 1
      %p74 = por %p72, %p73
      %p76 = scmp.ne.s32.totalorder %s61, %s75
      %p77 = scmp.eq.s32.totalorder %s18, 0
      %p78 = por %p76, %p77
      %s79 = ssub.s32 %s19, %s31
      %s80 = ssub.s32 %s20, %s27
      %s81 = sor.u32 %s79, %s80
      %p82 = scmp.eq.s32.totalorder %s81, 0
      %s84 = sadd.s32 %s83, 1
      %s85 = scalar_select %p82, %s83, %s84
      %p88 = pneg %p82
      %p89 = scmp.eq.s32.totalorder %s12, 1
      %p90 = por %p88, %p89
      %p91 = scmp.ne.s32.totalorder %s83, %s86
      %p92 = scmp.eq.s32.totalorder %s12, 0
      %p93 = por %p91, %p92
      %p94 = scmp.ne.s32.totalorder %s83, %s86
      %p95 = scmp.eq.s32.totalorder %s17, 1
      %p96 = por %p94, %p95
      %p97 = scmp.ne.s32.totalorder %s86, %s87
      %p98 = scmp.eq.s32.totalorder %s17, 0
      %p99 = por %p97, %p98
      %p100 = scmp.ne.s32.totalorder %s86, %s87
      %p101 = scmp.eq.s32.totalorder %s18, 1
      %p102 = por %p100, %p101
      %p104 = scmp.ne.s32.totalorder %s87, %s103
      %p105 = scmp.eq.s32.totalorder %s18, 0
      %p106 = por %p104, %p105
      %s107 = ssub.s32 %s19, %s31
      %s108 = ssub.s32 %s20, %s27
      %s109 = sor.u32 %s107, %s108
      %p110 = scmp.eq.s32.totalorder %s109, 0
      %s112 = sadd.s32 %s111, 1
      %s113 = scalar_select %p110, %s111, %s112
      %p116 = pneg %p110
      %p117 = scmp.eq.s32.totalorder %s12, 1
      %p118 = por %p116, %p117
      %p119 = scmp.ne.s32.totalorder %s111, %s114
      %p120 = scmp.eq.s32.totalorder %s12, 0
      %p121 = por %p119, %p120
      %p122 = scmp.ne.s32.totalorder %s111, %s114
      %p123 = scmp.eq.s32.totalorder %s17, 1
      %p124 = por %p122, %p123
      %p125 = scmp.ne.s32.totalorder %s114, %s115
      %p126 = scmp.eq.s32.totalorder %s17, 0
      %p127 = por %p125, %p126
      %p128 = scmp.ne.s32.totalorder %s114, %s115
      %p129 = scmp.eq.s32.totalorder %s18, 1
      %p130 = por %p128, %p129
      %p132 = scmp.ne.s32.totalorder %s115, %s131
      %p133 = scmp.eq.s32.totalorder %s18, 0
      %p134 = por %p132, %p133
      %s135 = ssub.s32 %s19, %s31
      %s136 = ssub.s32 %s20, %s27
      %s137 = sor.u32 %s135, %s136
      %p138 = scmp.eq.s32.totalorder %s137, 0
      %s140 = sadd.s32 %s139, 1
      %s141 = scalar_select %p138, %s139, %s140
      %p144 = pneg %p138
      %p145 = scmp.eq.s32.totalorder %s12, 1
      %p146 = por %p144, %p145
      %p147 = scmp.ne.s32.totalorder %s139, %s142
      %p148 = scmp.eq.s32.totalorder %s12, 0
      %p149 = por %p147, %p148
      %p150 = scmp.ne.s32.totalorder %s139, %s142
      %p151 = scmp.eq.s32.totalorder %s17, 1
      %p152 = por %p150, %p151
      %p153 = scmp.ne.s32.totalorder %s142, %s143
      %p154 = scmp.eq.s32.totalorder %s17, 0
      %p155 = por %p153, %p154
      %p156 = scmp.ne.s32.totalorder %s142, %s143
      %p157 = scmp.eq.s32.totalorder %s18, 1
      %p158 = por %p156, %p157
      %p160 = scmp.ne.s32.totalorder %s143, %s159
      %p161 = scmp.eq.s32.totalorder %s18, 0
      %p162 = por %p160, %p161
      %p163 = scmp.le.s32.totalorder 1, %s12
      %p164 = scmp.lt.s32.totalorder %s12, 3
      %p165 = pnand %p163, %p164
      %p166 = pneg %p165
      // Predicated region
      $region9: #{wgan_generator_forward.5} parent=5 // pred_check
        _
      $region10: #{wgan_generator_forward.5} parent=5 // pred_check_branch
        %168 = sbr.rel (%p165) target = $region12
      $region11: #{wgan_generator_forward.5} parent=5 // pred_region
        %s169 = ssub.s32 %s12, 1
        // Predicated region
        $region13: #{wgan_generator_forward.5} parent=11 // pred_check
          %p170 = pneg %p71
        $region14: #{wgan_generator_forward.5} parent=11 // pred_check_branch
          %172 = sbr.rel (%p170) target = $region16
        $region15: #{wgan_generator_forward.5} parent=11 // pred_region
          %s174 = ssub.s32 16384, 16384
          %175 = vsyncadd [#allocation3], %s174
          %s176 = sshll.u32 [#allocation2], 4
          %s177 = int_to_ptr.vmem [resolvable:$true] %s176
          %182 = dma.hbm_to_vmem [thread:$0]  %s1, 16384, %s177, [#allocation3], 64, 64, 4
        $region16: #{wgan_generator_forward.5} parent=11 // pred_fallthru
          _
      $region12: #{wgan_generator_forward.5} parent=5 // pred_fallthru
        _
      %p183 = scmp.lt.s32.totalorder %s12, 2
      // Predicated region
      $region17: #{wgan_generator_forward.5} parent=5 // pred_check
        %p184 = pneg %p183
      $region18: #{wgan_generator_forward.5} parent=5 // pred_check_branch
        %186 = sbr.rel (%p184) target = $region20
      $region19: #{wgan_generator_forward.5} parent=5 // pred_region
        // Predicated region
        $region21: #{wgan_generator_forward.5} parent=19 // pred_check
          %p187 = pneg %p44
        $region22: #{wgan_generator_forward.5} parent=19 // pred_check_branch
          %189 = sbr.rel (%p187) target = $region24
        $region23: #{wgan_generator_forward.5} parent=19 // pred_region
          %p190 = scmp.lt.s32.totalorder %s19, 1
          %s191 = scalar_select %p190, %s19, 1
          %s192 = smul.addr %s191, 6
          %s193 = smul.addr %s192, 4
          %s194 = scalar_lea.vmem %s0, %s193
        $region24: #{wgan_generator_forward.5} parent=19 // pred_fallthru
          _
      $region20: #{wgan_generator_forward.5} parent=5 // pred_fallthru
        _
      %p195 = scmp.le.s32.totalorder 1, %s12
      %p196 = scmp.lt.s32.totalorder %s12, 3
      %p197 = pnand %p195, %p196
      %p198 = pneg %p197
      // Predicated region
      $region25: #{wgan_generator_forward.5} parent=5 // pred_check
        _
      $region26: #{wgan_generator_forward.5} parent=5 // pred_check_branch
        %200 = sbr.rel (%p197) target = $region28
      $region27: #{wgan_generator_forward.5} parent=5 // pred_region
        %s201 = ssub.s32 %s12, 1
        // Predicated region
        $region29: #{wgan_generator_forward.5} parent=27 // pred_check
          %p202 = pneg %p71
        $region30: #{wgan_generator_forward.5} parent=27 // pred_check_branch
          %204 = sbr.rel (%p202) target = $region32
        $region31: #{wgan_generator_forward.5} parent=27 // pred_region
          %205 = dma.done [#allocation3], 16384
        $region32: #{wgan_generator_forward.5} parent=27 // pred_fallthru
          _
        %p206 = scmp.lt.s32.totalorder %s21, 1
        %s207 = scalar_select %p206, %s21, 1
        %s208 = smul.addr %s207, 6
        %s209 = smul.addr %s208, 4
        %s210 = scalar_lea.vmem %s0, %s209
        %p211 = pneg %p50
        %p212 = pneg %p47
        %p213 = pneg %p71
        %p214 = pneg %p68
        %p215 = pneg %p99
        %p216 = pneg %p96
        %s217 = smul.u32 4, %s22
        %p218 = scmp.lt.s32.totalorder %s21, 1
        %s219 = scalar_select %p218, %s21, 1
        %p220 = scmp.lt.s32.totalorder %s217, 3
        %s221 = scalar_select %p220, %s217, 3
        %s222 = smul.addr %s221, 4
        %s223 = smul.addr %s219, 16
        %s224 = sadd.s32 %s222, %s223
        %s225 = smul.addr %s224, 2
        %s226 = scalar_lea.vmem %s2, %s225
        %p227 = pneg %p127
        %p228 = pneg %p124
        %p229 = scmp.lt.s32.totalorder %s21, 1
        %s230 = scalar_select %p229, %s21, 1
        %p231 = scmp.lt.s32.totalorder %s22, 0
        %s232 = scalar_select %p231, %s22, 0
        %s233 = sadd.s32 %s232, %s230
        %s234 = scalar_lea.vmem %s3, %s233
        %p235 = pneg %p155
        %p236 = pneg %p152
        %p237 = scmp.lt.s32.totalorder %s21, 1
        %s238 = scalar_select %p237, %s21, 1
        %p239 = scmp.lt.s32.totalorder %s22, 0
        %s240 = scalar_select %p239, %s22, 0
        %s241 = sadd.s32 %s240, %s238
        %s242 = scalar_lea.vmem %s4, %s241
        %p243 = scmp.lt.s32.totalorder %s21, 1
        %s244 = scalar_select %p243, %s21, 1
        %s245 = smul.addr %s244, 6
        %s246 = smul.addr %s245, 4
        %s247 = scalar_lea.vmem %s0, %s246
        %s248 = smul.u32 4, %s22
        %p249 = scmp.lt.s32.totalorder %s21, 1
        %s250 = scalar_select %p249, %s21, 1
        %p251 = scmp.lt.s32.totalorder %s248, 3
        %s252 = scalar_select %p251, %s248, 3
        %s253 = smul.addr %s252, 4
        %s254 = smul.addr %s250, 16
        %s255 = sadd.s32 %s253, %s254
        %s256 = smul.addr %s255, 2
        %s257 = scalar_lea.vmem %s2, %s256
        %s258 = smul.u32 4, %s22
        %p259 = scmp.lt.s32.totalorder %s21, 1
        %s260 = scalar_select %p259, %s21, 1
        %p261 = scmp.lt.s32.totalorder %s22, 0
        %s262 = scalar_select %p261, %s22, 0
        %s263 = sadd.s32 %s262, %s260
        %s264 = scalar_lea.vmem %s3, %s263
        %p265 = scmp.lt.s32.totalorder %s21, 1
        %s266 = scalar_select %p265, %s21, 1
        %p267 = scmp.lt.s32.totalorder %s22, 0
        %s268 = scalar_select %p267, %s22, 0
        %s269 = sadd.s32 %s268, %s266
        %s270 = scalar_lea.vmem %s4, %s269
        %272 = vst [vmem:[%s264] sm:$0x1] 0.0
        %273 = vst [vmem:[%s270] sm:$0x1] 0.0
        %s274 = smul.u32 %s22, 4
        loop: start=0, step=1, limit=4
        $region33: #{wgan_generator_forward.5} parent=27 // loop_pre_header
          _
        $region34: #{wgan_generator_forward.5} parent=27 // loop_header
          %s276 = sphi 0, %s280
          %p277 = scmp.ge.s32.totalorder %s276, 4
        $region35: #{wgan_generator_forward.5} parent=27 // loop_header_branch
          %279 = sbr.rel (%p277) target = $region39
        $region36: #{wgan_generator_forward.5} parent=27 // loop_body
          %s281 = sadd.s32 %s274, %s276
          %s282 = smul.addr %s281, 4
          %s283 = scalar_lea.vmem %s247, %s282
          %v284 = vld [vmem:[%s283] sm:$0x3]
          %v285 = vld [vmem:[%s283] sm:$0x7]
          %v286 = vld [vmem:[%s283] sm:$0x6]
          %s287 = sadd.s32 %s281, 1
          %s288 = smul.addr %s287, 4
          %s289 = scalar_lea.vmem %s247, %s288
          %v290 = vld [vmem:[%s289] sm:$0x3]
          %v291 = vld [vmem:[%s289] sm:$0x7]
          %v292 = vld [vmem:[%s289] sm:$0x6]
          %s293 = sadd.s32 %s281, 2
          %s294 = smul.addr %s293, 4
          %s295 = scalar_lea.vmem %s247, %s294
          %v296 = vld [vmem:[%s295] sm:$0x3]
          %v297 = vld [vmem:[%s295] sm:$0x7]
          %v298 = vld [vmem:[%s295] sm:$0x6]
          %v299 = vld [vmem:[#allocation2] sm:$0xf]
          %v300 = vld [vmem:[#allocation2 + $0x4] sm:$0xf]
          %v301 = vld [vmem:[#allocation2 + $0x8] sm:$0xf]
          %v302 = vld [vmem:[#allocation2 + $0xc] sm:$0xf]
          %v303 = vld [vmem:[#allocation2 + $0x10] sm:$0xf]
          %v304 = vld [vmem:[#allocation2 + $0x14] sm:$0xf]
          %v305 = vld [vmem:[#allocation2 + $0x18] sm:$0xf]
          %v306 = vld [vmem:[#allocation2 + $0x1c] sm:$0xf]
          %v307 = vld [vmem:[#allocation2 + $0x20] sm:$0xf]
          %v308 = vld [vmem:[#allocation2 + $0x24] sm:$0xf]
          %v309 = vld [vmem:[#allocation2 + $0x28] sm:$0xf]
          %v310 = vld [vmem:[#allocation2 + $0x2c] sm:$0xf]
          %v311 = vld [vmem:[#allocation2 + $0x30] sm:$0xf]
          %v312 = vld [vmem:[#allocation2 + $0x34] sm:$0xf]
          %v313 = vld [vmem:[#allocation2 + $0x38] sm:$0xf]
          %v314 = vld [vmem:[#allocation2 + $0x3c] sm:$0xf]
          %s315 = scalar_lea.vmem [#allocation2], 64
          %v316 = vld [vmem:[%s315] sm:$0xf]
          %v317 = vld [vmem:[%s315 + $0x4] sm:$0xf]
          %v318 = vld [vmem:[%s315 + $0x8] sm:$0xf]
          %v319 = vld [vmem:[%s315 + $0xc] sm:$0xf]
          %v320 = vld [vmem:[%s315 + $0x10] sm:$0xf]
          %v321 = vld [vmem:[%s315 + $0x14] sm:$0xf]
          %v322 = vld [vmem:[%s315 + $0x18] sm:$0xf]
          %v323 = vld [vmem:[%s315 + $0x1c] sm:$0xf]
          %v324 = vld [vmem:[%s315 + $0x20] sm:$0xf]
          %v325 = vld [vmem:[%s315 + $0x24] sm:$0xf]
          %v326 = vld [vmem:[%s315 + $0x28] sm:$0xf]
          %v327 = vld [vmem:[%s315 + $0x2c] sm:$0xf]
          %v328 = vld [vmem:[%s315 + $0x30] sm:$0xf]
          %v329 = vld [vmem:[%s315 + $0x34] sm:$0xf]
          %v330 = vld [vmem:[%s315 + $0x38] sm:$0xf]
          %v331 = vld [vmem:[%s315 + $0x3c] sm:$0xf]
          %v333 = vunpack.c.l.b16 %v285
          %v334 = vpack.c.b16 %v333, %v333
          %v336 = vshrl.u32 %v334, 16
          %v338 = vshll.u32 %v334, 16
          %v340 = vrot.slane %v338, 1
          %v341 = vor.u32 %v336, %v340
          %v359 = vunpack.c.l.b16 %v316
          %v360 = vunpack.c.l.b16 %v317
          %v361 = vunpack.c.l.b16 %v318
          %v362 = vunpack.c.l.b16 %v319
          %v363 = vunpack.c.l.b16 %v320
          %v364 = vunpack.c.l.b16 %v321
          %v365 = vunpack.c.l.b16 %v322
          %v366 = vunpack.c.l.b16 %v323
          %v367 = vunpack.c.l.b16 %v324
          %v368 = vunpack.c.l.b16 %v325
          %v369 = vunpack.c.l.b16 %v326
          %v370 = vunpack.c.l.b16 %v327
          %v371 = vunpack.c.l.b16 %v328
          %v372 = vunpack.c.l.b16 %v329
          %v373 = vunpack.c.l.b16 %v330
          %v374 = vunpack.c.l.b16 %v331
          %v375 = vpack.c.b16 %v360, %v359
          %v376 = vpack.c.b16 %v362, %v361
          %v377 = vpack.c.b16 %v364, %v363
          %v378 = vpack.c.b16 %v366, %v365
          %v379 = vpack.c.b16 %v368, %v367
          %v380 = vpack.c.b16 %v370, %v369
          %v381 = vpack.c.b16 %v372, %v371
          %v382 = vpack.c.b16 %v374, %v373
          %391 = vmatprep.subr.bf16.mxu0 0
          %392 = vmatpush1.bf16.msra.mxu0 %v382
          %393 = vmatprep.subr.bf16.mxu0 0
          %394 = vmatpush1.bf16.msra.mxu0 %v381
          %395 = vmatprep.subr.bf16.mxu0 0
          %396 = vmatpush1.bf16.msra.mxu0 %v380
          %397 = vmatprep.subr.bf16.mxu0 0
          %398 = vmatpush1.bf16.msra.mxu0 %v379
          %399 = vmatprep.subr.bf16.mxu0 0
          %400 = vmatpush1.bf16.msra.mxu0 %v378
          %401 = vmatprep.subr.bf16.mxu0 0
          %402 = vmatpush1.bf16.msra.mxu0 %v377
          %403 = vmatprep.subr.bf16.mxu0 0
          %404 = vmatpush1.bf16.msra.mxu0 %v376
          %405 = vmatprep.subr.bf16.mxu0 0
          %406 = vmatpush1.bf16.msra.mxu0 %v375
          %407 = vmatprep.subr.bf16.mxu0 0
          %408 = vmatpush2.bf16.msra.mxu0 0
          %409 = vmatprep.subr.bf16.mxu0 0
          %410 = vmatpush2.bf16.msra.mxu0 0
          %411 = vmatprep.subr.bf16.mxu0 0
          %412 = vmatpush2.bf16.msra.mxu0 0
          %413 = vmatprep.subr.bf16.mxu0 0
          %414 = vmatpush2.bf16.msra.mxu0 0
          %415 = vmatprep.subr.bf16.mxu0 0
          %416 = vmatpush2.bf16.msra.mxu0 0
          %417 = vmatprep.subr.bf16.mxu0 0
          %418 = vmatpush2.bf16.msra.mxu0 0
          %419 = vmatprep.subr.bf16.mxu0 0
          %420 = vmatpush2.bf16.msra.mxu0 0
          %421 = vmatprep.subr.bf16.mxu0 0
          %422 = vmatpush2.bf16.msra.mxu0 0
          %423 = vmatprep.mubr.bf16.mxu0 0
          %424 = vmatmul.mubr.bf16.gmra.mxu0 %v341
          %v425 = vpop.f32.mrf.mxu0
          %v426 = vadd.f32 0.0, %v425
          %v427 = vpop.f32.mrf.mxu0
          %v428 = vpop.f32.mrf.mxu0
          %v429 = vpop.f32.mrf.mxu0
          %430 = vdwg.mxu0
          %v447 = vunpack.c.l.b16 %v299
          %v448 = vunpack.c.l.b16 %v300
          %v449 = vunpack.c.l.b16 %v301
          %v450 = vunpack.c.l.b16 %v302
          %v451 = vunpack.c.l.b16 %v303
          %v452 = vunpack.c.l.b16 %v304
          %v453 = vunpack.c.l.b16 %v305
          %v454 = vunpack.c.l.b16 %v306
          %v455 = vunpack.c.l.b16 %v307
          %v456 = vunpack.c.l.b16 %v308
          %v457 = vunpack.c.l.b16 %v309
          %v458 = vunpack.c.l.b16 %v310
          %v459 = vunpack.c.l.b16 %v311
          %v460 = vunpack.c.l.b16 %v312
          %v461 = vunpack.c.l.b16 %v313
          %v462 = vunpack.c.l.b16 %v314
          %v463 = vpack.c.b16 %v448, %v447
          %v464 = vpack.c.b16 %v450, %v449
          %v465 = vpack.c.b16 %v452, %v451
          %v466 = vpack.c.b16 %v454, %v453
          %v467 = vpack.c.b16 %v456, %v455
          %v468 = vpack.c.b16 %v458, %v457
          %v469 = vpack.c.b16 %v460, %v459
          %v470 = vpack.c.b16 %v462, %v461
          %479 = vmatprep.subr.bf16.mxu0 0
          %480 = vmatpush1.bf16.msra.mxu0 %v470
          %481 = vmatprep.subr.bf16.mxu0 0
          %482 = vmatpush1.bf16.msra.mxu0 %v469
          %483 = vmatprep.subr.bf16.mxu0 0
          %484 = vmatpush1.bf16.msra.mxu0 %v468
          %485 = vmatprep.subr.bf16.mxu0 0
          %486 = vmatpush1.bf16.msra.mxu0 %v467
          %487 = vmatprep.subr.bf16.mxu0 0
          %488 = vmatpush1.bf16.msra.mxu0 %v466
          %489 = vmatprep.subr.bf16.mxu0 0
          %490 = vmatpush1.bf16.msra.mxu0 %v465
          %491 = vmatprep.subr.bf16.mxu0 0
          %492 = vmatpush1.bf16.msra.mxu0 %v464
          %493 = vmatprep.subr.bf16.mxu0 0
          %494 = vmatpush1.bf16.msra.mxu0 %v463
          %495 = vmatprep.subr.bf16.mxu0 0
          %496 = vmatpush2.bf16.msra.mxu0 0
          %497 = vmatprep.subr.bf16.mxu0 0
          %498 = vmatpush2.bf16.msra.mxu0 0
          %499 = vmatprep.subr.bf16.mxu0 0
          %500 = vmatpush2.bf16.msra.mxu0 0
          %501 = vmatprep.subr.bf16.mxu0 0
          %502 = vmatpush2.bf16.msra.mxu0 0
          %503 = vmatprep.subr.bf16.mxu0 0
          %504 = vmatpush2.bf16.msra.mxu0 0
          %505 = vmatprep.subr.bf16.mxu0 0
          %506 = vmatpush2.bf16.msra.mxu0 0
          %507 = vmatprep.subr.bf16.mxu0 0
          %508 = vmatpush2.bf16.msra.mxu0 0
          %509 = vmatprep.subr.bf16.mxu0 0
          %510 = vmatpush2.bf16.msra.mxu0 0
          %511 = vmatprep.mubr.bf16.mxu0 0
          %512 = vmatmul.mubr.bf16.gmra.mxu0 %v284
          %v513 = vpop.f32.mrf.mxu0
          %v514 = vadd.f32 %v426, %v513
          %v515 = vpop.f32.mrf.mxu0
          %v516 = vpop.f32.mrf.mxu0
          %v517 = vpop.f32.mrf.mxu0
          %518 = vdwg.mxu0
          %s519 = scalar_lea.vmem [#allocation2], 128
          %v520 = vld [vmem:[%s519] sm:$0xf]
          %v521 = vld [vmem:[%s519 + $0x4] sm:$0xf]
          %v522 = vld [vmem:[%s519 + $0x8] sm:$0xf]
          %v523 = vld [vmem:[%s519 + $0xc] sm:$0xf]
          %v524 = vld [vmem:[%s519 + $0x10] sm:$0xf]
          %v525 = vld [vmem:[%s519 + $0x14] sm:$0xf]
          %v526 = vld [vmem:[%s519 + $0x18] sm:$0xf]
          %v527 = vld [vmem:[%s519 + $0x1c] sm:$0xf]
          %v528 = vld [vmem:[%s519 + $0x20] sm:$0xf]
          %v529 = vld [vmem:[%s519 + $0x24] sm:$0xf]
          %v530 = vld [vmem:[%s519 + $0x28] sm:$0xf]
          %v531 = vld [vmem:[%s519 + $0x2c] sm:$0xf]
          %v532 = vld [vmem:[%s519 + $0x30] sm:$0xf]
          %v533 = vld [vmem:[%s519 + $0x34] sm:$0xf]
          %v534 = vld [vmem:[%s519 + $0x38] sm:$0xf]
          %v535 = vld [vmem:[%s519 + $0x3c] sm:$0xf]
          %v552 = vunpack.c.l.b16 %v520
          %v553 = vunpack.c.l.b16 %v521
          %v554 = vunpack.c.l.b16 %v522
          %v555 = vunpack.c.l.b16 %v523
          %v556 = vunpack.c.l.b16 %v524
          %v557 = vunpack.c.l.b16 %v525
          %v558 = vunpack.c.l.b16 %v526
          %v559 = vunpack.c.l.b16 %v527
          %v560 = vunpack.c.l.b16 %v528
          %v561 = vunpack.c.l.b16 %v529
          %v562 = vunpack.c.l.b16 %v530
          %v563 = vunpack.c.l.b16 %v531
          %v564 = vunpack.c.l.b16 %v532
          %v565 = vunpack.c.l.b16 %v533
          %v566 = vunpack.c.l.b16 %v534
          %v567 = vunpack.c.l.b16 %v535
          %v568 = vpack.c.b16 %v553, %v552
          %v569 = vpack.c.b16 %v555, %v554
          %v570 = vpack.c.b16 %v557, %v556
          %v571 = vpack.c.b16 %v559, %v558
          %v572 = vpack.c.b16 %v561, %v560
          %v573 = vpack.c.b16 %v563, %v562
          %v574 = vpack.c.b16 %v565, %v564
          %v575 = vpack.c.b16 %v567, %v566
          %584 = vmatprep.subr.bf16.mxu0 0
          %585 = vmatpush1.bf16.msra.mxu0 %v575
          %586 = vmatprep.subr.bf16.mxu0 0
          %587 = vmatpush1.bf16.msra.mxu0 %v574
          %588 = vmatprep.subr.bf16.mxu0 0
          %589 = vmatpush1.bf16.msra.mxu0 %v573
          %590 = vmatprep.subr.bf16.mxu0 0
          %591 = vmatpush1.bf16.msra.mxu0 %v572
          %592 = vmatprep.subr.bf16.mxu0 0
          %593 = vmatpush1.bf16.msra.mxu0 %v571
          %594 = vmatprep.subr.bf16.mxu0 0
          %595 = vmatpush1.bf16.msra.mxu0 %v570
          %596 = vmatprep.subr.bf16.mxu0 0
          %597 = vmatpush1.bf16.msra.mxu0 %v569
          %598 = vmatprep.subr.bf16.mxu0 0
          %599 = vmatpush1.bf16.msra.mxu0 %v568
          %600 = vmatprep.subr.bf16.mxu0 0
          %601 = vmatpush2.bf16.msra.mxu0 0
          %602 = vmatprep.subr.bf16.mxu0 0
          %603 = vmatpush2.bf16.msra.mxu0 0
          %604 = vmatprep.subr.bf16.mxu0 0
          %605 = vmatpush2.bf16.msra.mxu0 0
          %606 = vmatprep.subr.bf16.mxu0 0
          %607 = vmatpush2.bf16.msra.mxu0 0
          %608 = vmatprep.subr.bf16.mxu0 0
          %609 = vmatpush2.bf16.msra.mxu0 0
          %610 = vmatprep.subr.bf16.mxu0 0
          %611 = vmatpush2.bf16.msra.mxu0 0
          %612 = vmatprep.subr.bf16.mxu0 0
          %613 = vmatpush2.bf16.msra.mxu0 0
          %614 = vmatprep.subr.bf16.mxu0 0
          %615 = vmatpush2.bf16.msra.mxu0 0
          %616 = vmatprep.mubr.bf16.mxu0 0
          %617 = vmatmul.mubr.bf16.gmra.mxu0 %v290
          %v618 = vpop.f32.mrf.mxu0
          %v619 = vadd.f32 0.0, %v618
          %v620 = vpop.f32.mrf.mxu0
          %v621 = vpop.f32.mrf.mxu0
          %v622 = vpop.f32.mrf.mxu0
          %623 = vdwg.mxu0
          %v624 = vadd.f32 %v514, %v619
          %s625 = scalar_lea.vmem [#allocation2], 192
          %v626 = vld [vmem:[%s625] sm:$0xf]
          %v627 = vld [vmem:[%s625 + $0x4] sm:$0xf]
          %v628 = vld [vmem:[%s625 + $0x8] sm:$0xf]
          %v629 = vld [vmem:[%s625 + $0xc] sm:$0xf]
          %v630 = vld [vmem:[%s625 + $0x10] sm:$0xf]
          %v631 = vld [vmem:[%s625 + $0x14] sm:$0xf]
          %v632 = vld [vmem:[%s625 + $0x18] sm:$0xf]
          %v633 = vld [vmem:[%s625 + $0x1c] sm:$0xf]
          %v634 = vld [vmem:[%s625 + $0x20] sm:$0xf]
          %v635 = vld [vmem:[%s625 + $0x24] sm:$0xf]
          %v636 = vld [vmem:[%s625 + $0x28] sm:$0xf]
          %v637 = vld [vmem:[%s625 + $0x2c] sm:$0xf]
          %v638 = vld [vmem:[%s625 + $0x30] sm:$0xf]
          %v639 = vld [vmem:[%s625 + $0x34] sm:$0xf]
          %v640 = vld [vmem:[%s625 + $0x38] sm:$0xf]
          %v641 = vld [vmem:[%s625 + $0x3c] sm:$0xf]
          %v643 = vunpack.c.l.b16 %v291
          %v644 = vpack.c.b16 %v643, %v643
          %v646 = vshrl.u32 %v644, 16
          %v648 = vshll.u32 %v644, 16
          %v650 = vrot.slane %v648, 1
          %v651 = vor.u32 %v646, %v650
          %v669 = vunpack.c.l.b16 %v626
          %v670 = vunpack.c.l.b16 %v627
          %v671 = vunpack.c.l.b16 %v628
          %v672 = vunpack.c.l.b16 %v629
          %v673 = vunpack.c.l.b16 %v630
          %v674 = vunpack.c.l.b16 %v631
          %v675 = vunpack.c.l.b16 %v632
          %v676 = vunpack.c.l.b16 %v633
          %v677 = vunpack.c.l.b16 %v634
          %v678 = vunpack.c.l.b16 %v635
          %v679 = vunpack.c.l.b16 %v636
          %v680 = vunpack.c.l.b16 %v637
          %v681 = vunpack.c.l.b16 %v638
          %v682 = vunpack.c.l.b16 %v639
          %v683 = vunpack.c.l.b16 %v640
          %v684 = vunpack.c.l.b16 %v641
          %v685 = vpack.c.b16 %v670, %v669
          %v686 = vpack.c.b16 %v672, %v671
          %v687 = vpack.c.b16 %v674, %v673
          %v688 = vpack.c.b16 %v676, %v675
          %v689 = vpack.c.b16 %v678, %v677
          %v690 = vpack.c.b16 %v680, %v679
          %v691 = vpack.c.b16 %v682, %v681
          %v692 = vpack.c.b16 %v684, %v683
          %701 = vmatprep.subr.bf16.mxu0 0
          %702 = vmatpush1.bf16.msra.mxu0 %v692
          %703 = vmatprep.subr.bf16.mxu0 0
          %704 = vmatpush1.bf16.msra.mxu0 %v691
          %705 = vmatprep.subr.bf16.mxu0 0
          %706 = vmatpush1.bf16.msra.mxu0 %v690
          %707 = vmatprep.subr.bf16.mxu0 0
          %708 = vmatpush1.bf16.msra.mxu0 %v689
          %709 = vmatprep.subr.bf16.mxu0 0
          %710 = vmatpush1.bf16.msra.mxu0 %v688
          %711 = vmatprep.subr.bf16.mxu0 0
          %712 = vmatpush1.bf16.msra.mxu0 %v687
          %713 = vmatprep.subr.bf16.mxu0 0
          %714 = vmatpush1.bf16.msra.mxu0 %v686
          %715 = vmatprep.subr.bf16.mxu0 0
          %716 = vmatpush1.bf16.msra.mxu0 %v685
          %717 = vmatprep.subr.bf16.mxu0 0
          %718 = vmatpush2.bf16.msra.mxu0 0
          %719 = vmatprep.subr.bf16.mxu0 0
          %720 = vmatpush2.bf16.msra.mxu0 0
          %721 = vmatprep.subr.bf16.mxu0 0
          %722 = vmatpush2.bf16.msra.mxu0 0
          %723 = vmatprep.subr.bf16.mxu0 0
          %724 = vmatpush2.bf16.msra.mxu0 0
          %725 = vmatprep.subr.bf16.mxu0 0
          %726 = vmatpush2.bf16.msra.mxu0 0
          %727 = vmatprep.subr.bf16.mxu0 0
          %728 = vmatpush2.bf16.msra.mxu0 0
          %729 = vmatprep.subr.bf16.mxu0 0
          %730 = vmatpush2.bf16.msra.mxu0 0
          %731 = vmatprep.subr.bf16.mxu0 0
          %732 = vmatpush2.bf16.msra.mxu0 0
          %733 = vmatprep.mubr.bf16.mxu0 0
          %734 = vmatmul.mubr.bf16.gmra.mxu0 %v651
          %v735 = vpop.f32.mrf.mxu0
          %v736 = vadd.f32 0.0, %v735
          %v737 = vpop.f32.mrf.mxu0
          %v738 = vpop.f32.mrf.mxu0
          %v739 = vpop.f32.mrf.mxu0
          %740 = vdwg.mxu0
          %v741 = vadd.f32 %v624, %v736
          %v742 = vld [vmem:[%s264] sm:$0x1]
          %vm743 = vcmask 1043456
          %v744 = vsel %vm743, %v741, 0.0
          %v745 = vrot.slane %v744, 4
          %v746 = vadd.f32 %v744, %v745
          %v747 = vrot.slane %v746, 2
          %v748 = vadd.f32 %v746, %v747
          %v749 = vrot.slane %v748, 1
          %v750 = vadd.f32 %v748, %v749
          %v751 = vadd.f32 %v742, %v750
          %752 = vst [vmem:[%s264] sm:$0x1] %v751
          %v753 = vld [vmem:[%s270] sm:$0x1]
          %v754 = vmul.f32 %v741, %v741
          %v755 = vsel %vm743, %v754, 0.0
          %v756 = vrot.slane %v755, 4
          %v757 = vadd.f32 %v755, %v756
          %v758 = vrot.slane %v757, 2
          %v759 = vadd.f32 %v757, %v758
          %v760 = vrot.slane %v759, 1
          %v761 = vadd.f32 %v759, %v760
          %v762 = vadd.f32 %v753, %v761
          %763 = vst [vmem:[%s270] sm:$0x1] %v762
          %v764 = vpack.c.bf16 %v741, %v741
          %s765 = smul.u32 %s276, 4
          %s766 = smul.addr %s765, 2
          %s767 = scalar_lea.vmem %s257, %s766
          %768 = vst [vmem:[%s767] sm:$0x3] %v764
          %s769 = scalar_lea.vmem [#allocation2], 256
          %v770 = vld [vmem:[%s769] sm:$0xf]
          %v771 = vld [vmem:[%s769 + $0x4] sm:$0xf]
          %v772 = vld [vmem:[%s769 + $0x8] sm:$0xf]
          %v773 = vld [vmem:[%s769 + $0xc] sm:$0xf]
          %v774 = vld [vmem:[%s769 + $0x10] sm:$0xf]
          %v775 = vld [vmem:[%s769 + $0x14] sm:$0xf]
          %v776 = vld [vmem:[%s769 + $0x18] sm:$0xf]
          %v777 = vld [vmem:[%s769 + $0x1c] sm:$0xf]
          %v778 = vld [vmem:[%s769 + $0x20] sm:$0xf]
          %v779 = vld [vmem:[%s769 + $0x24] sm:$0xf]
          %v780 = vld [vmem:[%s769 + $0x28] sm:$0xf]
          %v781 = vld [vmem:[%s769 + $0x2c] sm:$0xf]
          %v782 = vld [vmem:[%s769 + $0x30] sm:$0xf]
          %v783 = vld [vmem:[%s769 + $0x34] sm:$0xf]
          %v784 = vld [vmem:[%s769 + $0x38] sm:$0xf]
          %v785 = vld [vmem:[%s769 + $0x3c] sm:$0xf]
          %s786 = scalar_lea.vmem [#allocation2], 320
          %v787 = vld [vmem:[%s786] sm:$0xf]
          %v788 = vld [vmem:[%s786 + $0x4] sm:$0xf]
          %v789 = vld [vmem:[%s786 + $0x8] sm:$0xf]
          %v790 = vld [vmem:[%s786 + $0xc] sm:$0xf]
          %v791 = vld [vmem:[%s786 + $0x10] sm:$0xf]
          %v792 = vld [vmem:[%s786 + $0x14] sm:$0xf]
          %v793 = vld [vmem:[%s786 + $0x18] sm:$0xf]
          %v794 = vld [vmem:[%s786 + $0x1c] sm:$0xf]
          %v795 = vld [vmem:[%s786 + $0x20] sm:$0xf]
          %v796 = vld [vmem:[%s786 + $0x24] sm:$0xf]
          %v797 = vld [vmem:[%s786 + $0x28] sm:$0xf]
          %v798 = vld [vmem:[%s786 + $0x2c] sm:$0xf]
          %v799 = vld [vmem:[%s786 + $0x30] sm:$0xf]
          %v800 = vld [vmem:[%s786 + $0x34] sm:$0xf]
          %v801 = vld [vmem:[%s786 + $0x38] sm:$0xf]
          %v802 = vld [vmem:[%s786 + $0x3c] sm:$0xf]
          %v804 = vunpack.c.l.b16 %v286
          %v805 = vpack.c.b16 %v804, %v804
          %v806 = vrot.slane %v805, 1
          %v824 = vunpack.c.l.b16 %v787
          %v825 = vunpack.c.l.b16 %v788
          %v826 = vunpack.c.l.b16 %v789
          %v827 = vunpack.c.l.b16 %v790
          %v828 = vunpack.c.l.b16 %v791
          %v829 = vunpack.c.l.b16 %v792
          %v830 = vunpack.c.l.b16 %v793
          %v831 = vunpack.c.l.b16 %v794
          %v832 = vunpack.c.l.b16 %v795
          %v833 = vunpack.c.l.b16 %v796
          %v834 = vunpack.c.l.b16 %v797
          %v835 = vunpack.c.l.b16 %v798
          %v836 = vunpack.c.l.b16 %v799
          %v837 = vunpack.c.l.b16 %v800
          %v838 = vunpack.c.l.b16 %v801
          %v839 = vunpack.c.l.b16 %v802
          %v840 = vpack.c.b16 %v825, %v824
          %v841 = vpack.c.b16 %v827, %v826
          %v842 = vpack.c.b16 %v829, %v828
          %v843 = vpack.c.b16 %v831, %v830
          %v844 = vpack.c.b16 %v833, %v832
          %v845 = vpack.c.b16 %v835, %v834
          %v846 = vpack.c.b16 %v837, %v836
          %v847 = vpack.c.b16 %v839, %v838
          %856 = vmatprep.subr.bf16.mxu0 0
          %857 = vmatpush1.bf16.msra.mxu0 %v847
          %858 = vmatprep.subr.bf16.mxu0 0
          %859 = vmatpush1.bf16.msra.mxu0 %v846
          %860 = vmatprep.subr.bf16.mxu0 0
          %861 = vmatpush1.bf16.msra.mxu0 %v845
          %862 = vmatprep.subr.bf16.mxu0 0
          %863 = vmatpush1.bf16.msra.mxu0 %v844
          %864 = vmatprep.subr.bf16.mxu0 0
          %865 = vmatpush1.bf16.msra.mxu0 %v843
          %866 = vmatprep.subr.bf16.mxu0 0
          %867 = vmatpush1.bf16.msra.mxu0 %v842
          %868 = vmatprep.subr.bf16.mxu0 0
          %869 = vmatpush1.bf16.msra.mxu0 %v841
          %870 = vmatprep.subr.bf16.mxu0 0
          %871 = vmatpush1.bf16.msra.mxu0 %v840
          %872 = vmatprep.subr.bf16.mxu0 0
          %873 = vmatpush2.bf16.msra.mxu0 0
          %874 = vmatprep.subr.bf16.mxu0 0
          %875 = vmatpush2.bf16.msra.mxu0 0
          %876 = vmatprep.subr.bf16.mxu0 0
          %877 = vmatpush2.bf16.msra.mxu0 0
          %878 = vmatprep.subr.bf16.mxu0 0
          %879 = vmatpush2.bf16.msra.mxu0 0
          %880 = vmatprep.subr.bf16.mxu0 0
          %881 = vmatpush2.bf16.msra.mxu0 0
          %882 = vmatprep.subr.bf16.mxu0 0
          %883 = vmatpush2.bf16.msra.mxu0 0
          %884 = vmatprep.subr.bf16.mxu0 0
          %885 = vmatpush2.bf16.msra.mxu0 0
          %886 = vmatprep.subr.bf16.mxu0 0
          %887 = vmatpush2.bf16.msra.mxu0 0
          %888 = vmatprep.mubr.bf16.mxu0 0
          %889 = vmatmul.mubr.bf16.gmra.mxu0 %v806
          %v890 = vpop.f32.mrf.mxu0
          %v891 = vadd.f32 0.0, %v890
          %v892 = vpop.f32.mrf.mxu0
          %v893 = vpop.f32.mrf.mxu0
          %v894 = vpop.f32.mrf.mxu0
          %895 = vdwg.mxu0
          %v912 = vunpack.c.l.b16 %v770
          %v913 = vunpack.c.l.b16 %v771
          %v914 = vunpack.c.l.b16 %v772
          %v915 = vunpack.c.l.b16 %v773
          %v916 = vunpack.c.l.b16 %v774
          %v917 = vunpack.c.l.b16 %v775
          %v918 = vunpack.c.l.b16 %v776
          %v919 = vunpack.c.l.b16 %v777
          %v920 = vunpack.c.l.b16 %v778
          %v921 = vunpack.c.l.b16 %v779
          %v922 = vunpack.c.l.b16 %v780
          %v923 = vunpack.c.l.b16 %v781
          %v924 = vunpack.c.l.b16 %v782
          %v925 = vunpack.c.l.b16 %v783
          %v926 = vunpack.c.l.b16 %v784
          %v927 = vunpack.c.l.b16 %v785
          %v928 = vpack.c.b16 %v913, %v912
          %v929 = vpack.c.b16 %v915, %v914
          %v930 = vpack.c.b16 %v917, %v916
          %v931 = vpack.c.b16 %v919, %v918
          %v932 = vpack.c.b16 %v921, %v920
          %v933 = vpack.c.b16 %v923, %v922
          %v934 = vpack.c.b16 %v925, %v924
          %v935 = vpack.c.b16 %v927, %v926
          %944 = vmatprep.subr.bf16.mxu0 0
          %945 = vmatpush1.bf16.msra.mxu0 %v935
          %946 = vmatprep.subr.bf16.mxu0 0
          %947 = vmatpush1.bf16.msra.mxu0 %v934
          %948 = vmatprep.subr.bf16.mxu0 0
          %949 = vmatpush1.bf16.msra.mxu0 %v933
          %950 = vmatprep.subr.bf16.mxu0 0
          %951 = vmatpush1.bf16.msra.mxu0 %v932
          %952 = vmatprep.subr.bf16.mxu0 0
          %953 = vmatpush1.bf16.msra.mxu0 %v931
          %954 = vmatprep.subr.bf16.mxu0 0
          %955 = vmatpush1.bf16.msra.mxu0 %v930
          %956 = vmatprep.subr.bf16.mxu0 0
          %957 = vmatpush1.bf16.msra.mxu0 %v929
          %958 = vmatprep.subr.bf16.mxu0 0
          %959 = vmatpush1.bf16.msra.mxu0 %v928
          %960 = vmatprep.subr.bf16.mxu0 0
          %961 = vmatpush2.bf16.msra.mxu0 0
          %962 = vmatprep.subr.bf16.mxu0 0
          %963 = vmatpush2.bf16.msra.mxu0 0
          %964 = vmatprep.subr.bf16.mxu0 0
          %965 = vmatpush2.bf16.msra.mxu0 0
          %966 = vmatprep.subr.bf16.mxu0 0
          %967 = vmatpush2.bf16.msra.mxu0 0
          %968 = vmatprep.subr.bf16.mxu0 0
          %969 = vmatpush2.bf16.msra.mxu0 0
          %970 = vmatprep.subr.bf16.mxu0 0
          %971 = vmatpush2.bf16.msra.mxu0 0
          %972 = vmatprep.subr.bf16.mxu0 0
          %973 = vmatpush2.bf16.msra.mxu0 0
          %974 = vmatprep.subr.bf16.mxu0 0
          %975 = vmatpush2.bf16.msra.mxu0 0
          %976 = vmatprep.mubr.bf16.mxu0 0
          %977 = vmatmul.mubr.bf16.gmra.mxu0 %v341
          %v978 = vpop.f32.mrf.mxu0
          %v979 = vadd.f32 %v891, %v978
          %v980 = vpop.f32.mrf.mxu0
          %v981 = vpop.f32.mrf.mxu0
          %v982 = vpop.f32.mrf.mxu0
          %983 = vdwg.mxu0
          %s984 = scalar_lea.vmem [#allocation2], 384
          %v985 = vld [vmem:[%s984] sm:$0xf]
          %v986 = vld [vmem:[%s984 + $0x4] sm:$0xf]
          %v987 = vld [vmem:[%s984 + $0x8] sm:$0xf]
          %v988 = vld [vmem:[%s984 + $0xc] sm:$0xf]
          %v989 = vld [vmem:[%s984 + $0x10] sm:$0xf]
          %v990 = vld [vmem:[%s984 + $0x14] sm:$0xf]
          %v991 = vld [vmem:[%s984 + $0x18] sm:$0xf]
          %v992 = vld [vmem:[%s984 + $0x1c] sm:$0xf]
          %v993 = vld [vmem:[%s984 + $0x20] sm:$0xf]
          %v994 = vld [vmem:[%s984 + $0x24] sm:$0xf]
          %v995 = vld [vmem:[%s984 + $0x28] sm:$0xf]
          %v996 = vld [vmem:[%s984 + $0x2c] sm:$0xf]
          %v997 = vld [vmem:[%s984 + $0x30] sm:$0xf]
          %v998 = vld [vmem:[%s984 + $0x34] sm:$0xf]
          %v999 = vld [vmem:[%s984 + $0x38] sm:$0xf]
          %v1000 = vld [vmem:[%s984 + $0x3c] sm:$0xf]
          %v1017 = vunpack.c.l.b16 %v985
          %v1018 = vunpack.c.l.b16 %v986
          %v1019 = vunpack.c.l.b16 %v987
          %v1020 = vunpack.c.l.b16 %v988
          %v1021 = vunpack.c.l.b16 %v989
          %v1022 = vunpack.c.l.b16 %v990
          %v1023 = vunpack.c.l.b16 %v991
          %v1024 = vunpack.c.l.b16 %v992
          %v1025 = vunpack.c.l.b16 %v993
          %v1026 = vunpack.c.l.b16 %v994
          %v1027 = vunpack.c.l.b16 %v995
          %v1028 = vunpack.c.l.b16 %v996
          %v1029 = vunpack.c.l.b16 %v997
          %v1030 = vunpack.c.l.b16 %v998
          %v1031 = vunpack.c.l.b16 %v999
          %v1032 = vunpack.c.l.b16 %v1000
          %v1033 = vpack.c.b16 %v1018, %v1017
          %v1034 = vpack.c.b16 %v1020, %v1019
          %v1035 = vpack.c.b16 %v1022, %v1021
          %v1036 = vpack.c.b16 %v1024, %v1023
          %v1037 = vpack.c.b16 %v1026, %v1025
          %v1038 = vpack.c.b16 %v1028, %v1027
          %v1039 = vpack.c.b16 %v1030, %v1029
          %v1040 = vpack.c.b16 %v1032, %v1031
          %1049 = vmatprep.subr.bf16.mxu0 0
          %1050 = vmatpush1.bf16.msra.mxu0 %v1040
          %1051 = vmatprep.subr.bf16.mxu0 0
          %1052 = vmatpush1.bf16.msra.mxu0 %v1039
          %1053 = vmatprep.subr.bf16.mxu0 0
          %1054 = vmatpush1.bf16.msra.mxu0 %v1038
          %1055 = vmatprep.subr.bf16.mxu0 0
          %1056 = vmatpush1.bf16.msra.mxu0 %v1037
          %1057 = vmatprep.subr.bf16.mxu0 0
          %1058 = vmatpush1.bf16.msra.mxu0 %v1036
          %1059 = vmatprep.subr.bf16.mxu0 0
          %1060 = vmatpush1.bf16.msra.mxu0 %v1035
          %1061 = vmatprep.subr.bf16.mxu0 0
          %1062 = vmatpush1.bf16.msra.mxu0 %v1034
          %1063 = vmatprep.subr.bf16.mxu0 0
          %1064 = vmatpush1.bf16.msra.mxu0 %v1033
          %1065 = vmatprep.subr.bf16.mxu0 0
          %1066 = vmatpush2.bf16.msra.mxu0 0
          %1067 = vmatprep.subr.bf16.mxu0 0
          %1068 = vmatpush2.bf16.msra.mxu0 0
          %1069 = vmatprep.subr.bf16.mxu0 0
          %1070 = vmatpush2.bf16.msra.mxu0 0
          %1071 = vmatprep.subr.bf16.mxu0 0
          %1072 = vmatpush2.bf16.msra.mxu0 0
          %1073 = vmatprep.subr.bf16.mxu0 0
          %1074 = vmatpush2.bf16.msra.mxu0 0
          %1075 = vmatprep.subr.bf16.mxu0 0
          %1076 = vmatpush2.bf16.msra.mxu0 0
          %1077 = vmatprep.subr.bf16.mxu0 0
          %1078 = vmatpush2.bf16.msra.mxu0 0
          %1079 = vmatprep.subr.bf16.mxu0 0
          %1080 = vmatpush2.bf16.msra.mxu0 0
          %1081 = vmatprep.mubr.bf16.mxu0 0
          %1082 = vmatmul.mubr.bf16.gmra.mxu0 %v651
          %v1083 = vpop.f32.mrf.mxu0
          %v1084 = vadd.f32 0.0, %v1083
          %v1085 = vpop.f32.mrf.mxu0
          %v1086 = vpop.f32.mrf.mxu0
          %v1087 = vpop.f32.mrf.mxu0
          %1088 = vdwg.mxu0
          %v1089 = vadd.f32 %v979, %v1084
          %s1090 = scalar_lea.vmem [#allocation2], 448
          %v1091 = vld [vmem:[%s1090] sm:$0xf]
          %v1092 = vld [vmem:[%s1090 + $0x4] sm:$0xf]
          %v1093 = vld [vmem:[%s1090 + $0x8] sm:$0xf]
          %v1094 = vld [vmem:[%s1090 + $0xc] sm:$0xf]
          %v1095 = vld [vmem:[%s1090 + $0x10] sm:$0xf]
          %v1096 = vld [vmem:[%s1090 + $0x14] sm:$0xf]
          %v1097 = vld [vmem:[%s1090 + $0x18] sm:$0xf]
          %v1098 = vld [vmem:[%s1090 + $0x1c] sm:$0xf]
          %v1099 = vld [vmem:[%s1090 + $0x20] sm:$0xf]
          %v1100 = vld [vmem:[%s1090 + $0x24] sm:$0xf]
          %v1101 = vld [vmem:[%s1090 + $0x28] sm:$0xf]
          %v1102 = vld [vmem:[%s1090 + $0x2c] sm:$0xf]
          %v1103 = vld [vmem:[%s1090 + $0x30] sm:$0xf]
          %v1104 = vld [vmem:[%s1090 + $0x34] sm:$0xf]
          %v1105 = vld [vmem:[%s1090 + $0x38] sm:$0xf]
          %v1106 = vld [vmem:[%s1090 + $0x3c] sm:$0xf]
          %v1108 = vunpack.c.l.b16 %v292
          %v1109 = vpack.c.b16 %v1108, %v1108
          %v1110 = vrot.slane %v1109, 1
          %v1128 = vunpack.c.l.b16 %v1091
          %v1129 = vunpack.c.l.b16 %v1092
          %v1130 = vunpack.c.l.b16 %v1093
          %v1131 = vunpack.c.l.b16 %v1094
          %v1132 = vunpack.c.l.b16 %v1095
          %v1133 = vunpack.c.l.b16 %v1096
          %v1134 = vunpack.c.l.b16 %v1097
          %v1135 = vunpack.c.l.b16 %v1098
          %v1136 = vunpack.c.l.b16 %v1099
          %v1137 = vunpack.c.l.b16 %v1100
          %v1138 = vunpack.c.l.b16 %v1101
          %v1139 = vunpack.c.l.b16 %v1102
          %v1140 = vunpack.c.l.b16 %v1103
          %v1141 = vunpack.c.l.b16 %v1104
          %v1142 = vunpack.c.l.b16 %v1105
          %v1143 = vunpack.c.l.b16 %v1106
          %v1144 = vpack.c.b16 %v1129, %v1128
          %v1145 = vpack.c.b16 %v1131, %v1130
          %v1146 = vpack.c.b16 %v1133, %v1132
          %v1147 = vpack.c.b16 %v1135, %v1134
          %v1148 = vpack.c.b16 %v1137, %v1136
          %v1149 = vpack.c.b16 %v1139, %v1138
          %v1150 = vpack.c.b16 %v1141, %v1140
          %v1151 = vpack.c.b16 %v1143, %v1142
          %1160 = vmatprep.subr.bf16.mxu0 0
          %1161 = vmatpush1.bf16.msra.mxu0 %v1151
          %1162 = vmatprep.subr.bf16.mxu0 0
          %1163 = vmatpush1.bf16.msra.mxu0 %v1150
          %1164 = vmatprep.subr.bf16.mxu0 0
          %1165 = vmatpush1.bf16.msra.mxu0 %v1149
          %1166 = vmatprep.subr.bf16.mxu0 0
          %1167 = vmatpush1.bf16.msra.mxu0 %v1148
          %1168 = vmatprep.subr.bf16.mxu0 0
          %1169 = vmatpush1.bf16.msra.mxu0 %v1147
          %1170 = vmatprep.subr.bf16.mxu0 0
          %1171 = vmatpush1.bf16.msra.mxu0 %v1146
          %1172 = vmatprep.subr.bf16.mxu0 0
          %1173 = vmatpush1.bf16.msra.mxu0 %v1145
          %1174 = vmatprep.subr.bf16.mxu0 0
          %1175 = vmatpush1.bf16.msra.mxu0 %v1144
          %1176 = vmatprep.subr.bf16.mxu0 0
          %1177 = vmatpush2.bf16.msra.mxu0 0
          %1178 = vmatprep.subr.bf16.mxu0 0
          %1179 = vmatpush2.bf16.msra.mxu0 0
          %1180 = vmatprep.subr.bf16.mxu0 0
          %1181 = vmatpush2.bf16.msra.mxu0 0
          %1182 = vmatprep.subr.bf16.mxu0 0
          %1183 = vmatpush2.bf16.msra.mxu0 0
          %1184 = vmatprep.subr.bf16.mxu0 0
          %1185 = vmatpush2.bf16.msra.mxu0 0
          %1186 = vmatprep.subr.bf16.mxu0 0
          %1187 = vmatpush2.bf16.msra.mxu0 0
          %1188 = vmatprep.subr.bf16.mxu0 0
          %1189 = vmatpush2.bf16.msra.mxu0 0
          %1190 = vmatprep.subr.bf16.mxu0 0
          %1191 = vmatpush2.bf16.msra.mxu0 0
          %1192 = vmatprep.mubr.bf16.mxu0 0
          %1193 = vmatmul.mubr.bf16.gmra.mxu0 %v1110
          %v1194 = vpop.f32.mrf.mxu0
          %v1195 = vadd.f32 0.0, %v1194
          %v1196 = vpop.f32.mrf.mxu0
          %v1197 = vpop.f32.mrf.mxu0
          %v1198 = vpop.f32.mrf.mxu0
          %1199 = vdwg.mxu0
          %v1200 = vadd.f32 %v1089, %v1195
          %v1201 = vld [vmem:[%s264] sm:$0x1]
          %v1202 = vsel %vm743, %v1200, 0.0
          %v1203 = vrot.slane %v1202, 4
          %v1204 = vadd.f32 %v1202, %v1203
          %v1205 = vrot.slane %v1204, 2
          %v1206 = vadd.f32 %v1204, %v1205
          %v1207 = vrot.slane %v1206, 1
          %v1208 = vadd.f32 %v1206, %v1207
          %v1209 = vadd.f32 %v1201, %v1208
          %1210 = vst [vmem:[%s264] sm:$0x1] %v1209
          %v1211 = vld [vmem:[%s270] sm:$0x1]
          %v1212 = vmul.f32 %v1200, %v1200
          %v1213 = vsel %vm743, %v1212, 0.0
          %v1214 = vrot.slane %v1213, 4
          %v1215 = vadd.f32 %v1213, %v1214
          %v1216 = vrot.slane %v1215, 2
          %v1217 = vadd.f32 %v1215, %v1216
          %v1218 = vrot.slane %v1217, 1
          %v1219 = vadd.f32 %v1217, %v1218
          %v1220 = vadd.f32 %v1211, %v1219
          %1221 = vst [vmem:[%s270] sm:$0x1] %v1220
          %v1222 = vpack.c.bf16 %v1200, %v1200
          %1223 = vst [vmem:[%s767 + $0x2] sm:$0x3] %v1222
          %s1224 = scalar_lea.vmem [#allocation2], 512
          %v1225 = vld [vmem:[%s1224] sm:$0xf]
          %v1226 = vld [vmem:[%s1224 + $0x4] sm:$0xf]
          %v1227 = vld [vmem:[%s1224 + $0x8] sm:$0xf]
          %v1228 = vld [vmem:[%s1224 + $0xc] sm:$0xf]
          %v1229 = vld [vmem:[%s1224 + $0x10] sm:$0xf]
          %v1230 = vld [vmem:[%s1224 + $0x14] sm:$0xf]
          %v1231 = vld [vmem:[%s1224 + $0x18] sm:$0xf]
          %v1232 = vld [vmem:[%s1224 + $0x1c] sm:$0xf]
          %v1233 = vld [vmem:[%s1224 + $0x20] sm:$0xf]
          %v1234 = vld [vmem:[%s1224 + $0x24] sm:$0xf]
          %v1235 = vld [vmem:[%s1224 + $0x28] sm:$0xf]
          %v1236 = vld [vmem:[%s1224 + $0x2c] sm:$0xf]
          %v1237 = vld [vmem:[%s1224 + $0x30] sm:$0xf]
          %v1238 = vld [vmem:[%s1224 + $0x34] sm:$0xf]
          %v1239 = vld [vmem:[%s1224 + $0x38] sm:$0xf]
          %v1240 = vld [vmem:[%s1224 + $0x3c] sm:$0xf]
          %s1241 = scalar_lea.vmem [#allocation2], 576
          %v1242 = vld [vmem:[%s1241] sm:$0xf]
          %v1243 = vld [vmem:[%s1241 + $0x4] sm:$0xf]
          %v1244 = vld [vmem:[%s1241 + $0x8] sm:$0xf]
          %v1245 = vld [vmem:[%s1241 + $0xc] sm:$0xf]
          %v1246 = vld [vmem:[%s1241 + $0x10] sm:$0xf]
          %v1247 = vld [vmem:[%s1241 + $0x14] sm:$0xf]
          %v1248 = vld [vmem:[%s1241 + $0x18] sm:$0xf]
          %v1249 = vld [vmem:[%s1241 + $0x1c] sm:$0xf]
          %v1250 = vld [vmem:[%s1241 + $0x20] sm:$0xf]
          %v1251 = vld [vmem:[%s1241 + $0x24] sm:$0xf]
          %v1252 = vld [vmem:[%s1241 + $0x28] sm:$0xf]
          %v1253 = vld [vmem:[%s1241 + $0x2c] sm:$0xf]
          %v1254 = vld [vmem:[%s1241 + $0x30] sm:$0xf]
          %v1255 = vld [vmem:[%s1241 + $0x34] sm:$0xf]
          %v1256 = vld [vmem:[%s1241 + $0x38] sm:$0xf]
          %v1257 = vld [vmem:[%s1241 + $0x3c] sm:$0xf]
          %v1274 = vunpack.c.l.b16 %v1242
          %v1275 = vunpack.c.l.b16 %v1243
          %v1276 = vunpack.c.l.b16 %v1244
          %v1277 = vunpack.c.l.b16 %v1245
          %v1278 = vunpack.c.l.b16 %v1246
          %v1279 = vunpack.c.l.b16 %v1247
          %v1280 = vunpack.c.l.b16 %v1248
          %v1281 = vunpack.c.l.b16 %v1249
          %v1282 = vunpack.c.l.b16 %v1250
          %v1283 = vunpack.c.l.b16 %v1251
          %v1284 = vunpack.c.l.b16 %v1252
          %v1285 = vunpack.c.l.b16 %v1253
          %v1286 = vunpack.c.l.b16 %v1254
          %v1287 = vunpack.c.l.b16 %v1255
          %v1288 = vunpack.c.l.b16 %v1256
          %v1289 = vunpack.c.l.b16 %v1257
          %v1290 = vpack.c.b16 %v1275, %v1274
          %v1291 = vpack.c.b16 %v1277, %v1276
          %v1292 = vpack.c.b16 %v1279, %v1278
          %v1293 = vpack.c.b16 %v1281, %v1280
          %v1294 = vpack.c.b16 %v1283, %v1282
          %v1295 = vpack.c.b16 %v1285, %v1284
          %v1296 = vpack.c.b16 %v1287, %v1286
          %v1297 = vpack.c.b16 %v1289, %v1288
          %1306 = vmatprep.subr.bf16.mxu0 0
          %1307 = vmatpush1.bf16.msra.mxu0 %v1297
          %1308 = vmatprep.subr.bf16.mxu0 0
          %1309 = vmatpush1.bf16.msra.mxu0 %v1296
          %1310 = vmatprep.subr.bf16.mxu0 0
          %1311 = vmatpush1.bf16.msra.mxu0 %v1295
          %1312 = vmatprep.subr.bf16.mxu0 0
          %1313 = vmatpush1.bf16.msra.mxu0 %v1294
          %1314 = vmatprep.subr.bf16.mxu0 0
          %1315 = vmatpush1.bf16.msra.mxu0 %v1293
          %1316 = vmatprep.subr.bf16.mxu0 0
          %1317 = vmatpush1.bf16.msra.mxu0 %v1292
          %1318 = vmatprep.subr.bf16.mxu0 0
          %1319 = vmatpush1.bf16.msra.mxu0 %v1291
          %1320 = vmatprep.subr.bf16.mxu0 0
          %1321 = vmatpush1.bf16.msra.mxu0 %v1290
          %1322 = vmatprep.subr.bf16.mxu0 0
          %1323 = vmatpush2.bf16.msra.mxu0 0
          %1324 = vmatprep.subr.bf16.mxu0 0
          %1325 = vmatpush2.bf16.msra.mxu0 0
          %1326 = vmatprep.subr.bf16.mxu0 0
          %1327 = vmatpush2.bf16.msra.mxu0 0
          %1328 = vmatprep.subr.bf16.mxu0 0
          %1329 = vmatpush2.bf16.msra.mxu0 0
          %1330 = vmatprep.subr.bf16.mxu0 0
          %1331 = vmatpush2.bf16.msra.mxu0 0
          %1332 = vmatprep.subr.bf16.mxu0 0
          %1333 = vmatpush2.bf16.msra.mxu0 0
          %1334 = vmatprep.subr.bf16.mxu0 0
          %1335 = vmatpush2.bf16.msra.mxu0 0
          %1336 = vmatprep.subr.bf16.mxu0 0
          %1337 = vmatpush2.bf16.msra.mxu0 0
          %1338 = vmatprep.mubr.bf16.mxu0 0
          %1339 = vmatmul.mubr.bf16.gmra.mxu0 %v651
          %v1340 = vpop.f32.mrf.mxu0
          %v1341 = vadd.f32 0.0, %v1340
          %v1342 = vpop.f32.mrf.mxu0
          %v1343 = vpop.f32.mrf.mxu0
          %v1344 = vpop.f32.mrf.mxu0
          %1345 = vdwg.mxu0
          %v1362 = vunpack.c.l.b16 %v1225
          %v1363 = vunpack.c.l.b16 %v1226
          %v1364 = vunpack.c.l.b16 %v1227
          %v1365 = vunpack.c.l.b16 %v1228
          %v1366 = vunpack.c.l.b16 %v1229
          %v1367 = vunpack.c.l.b16 %v1230
          %v1368 = vunpack.c.l.b16 %v1231
          %v1369 = vunpack.c.l.b16 %v1232
          %v1370 = vunpack.c.l.b16 %v1233
          %v1371 = vunpack.c.l.b16 %v1234
          %v1372 = vunpack.c.l.b16 %v1235
          %v1373 = vunpack.c.l.b16 %v1236
          %v1374 = vunpack.c.l.b16 %v1237
          %v1375 = vunpack.c.l.b16 %v1238
          %v1376 = vunpack.c.l.b16 %v1239
          %v1377 = vunpack.c.l.b16 %v1240
          %v1378 = vpack.c.b16 %v1363, %v1362
          %v1379 = vpack.c.b16 %v1365, %v1364
          %v1380 = vpack.c.b16 %v1367, %v1366
          %v1381 = vpack.c.b16 %v1369, %v1368
          %v1382 = vpack.c.b16 %v1371, %v1370
          %v1383 = vpack.c.b16 %v1373, %v1372
          %v1384 = vpack.c.b16 %v1375, %v1374
          %v1385 = vpack.c.b16 %v1377, %v1376
          %1394 = vmatprep.subr.bf16.mxu0 0
          %1395 = vmatpush1.bf16.msra.mxu0 %v1385
          %1396 = vmatprep.subr.bf16.mxu0 0
          %1397 = vmatpush1.bf16.msra.mxu0 %v1384
          %1398 = vmatprep.subr.bf16.mxu0 0
          %1399 = vmatpush1.bf16.msra.mxu0 %v1383
          %1400 = vmatprep.subr.bf16.mxu0 0
          %1401 = vmatpush1.bf16.msra.mxu0 %v1382
          %1402 = vmatprep.subr.bf16.mxu0 0
          %1403 = vmatpush1.bf16.msra.mxu0 %v1381
          %1404 = vmatprep.subr.bf16.mxu0 0
          %1405 = vmatpush1.bf16.msra.mxu0 %v1380
          %1406 = vmatprep.subr.bf16.mxu0 0
          %1407 = vmatpush1.bf16.msra.mxu0 %v1379
          %1408 = vmatprep.subr.bf16.mxu0 0
          %1409 = vmatpush1.bf16.msra.mxu0 %v1378
          %1410 = vmatprep.subr.bf16.mxu0 0
          %1411 = vmatpush2.bf16.msra.mxu0 0
          %1412 = vmatprep.subr.bf16.mxu0 0
          %1413 = vmatpush2.bf16.msra.mxu0 0
          %1414 = vmatprep.subr.bf16.mxu0 0
          %1415 = vmatpush2.bf16.msra.mxu0 0
          %1416 = vmatprep.subr.bf16.mxu0 0
          %1417 = vmatpush2.bf16.msra.mxu0 0
          %1418 = vmatprep.subr.bf16.mxu0 0
          %1419 = vmatpush2.bf16.msra.mxu0 0
          %1420 = vmatprep.subr.bf16.mxu0 0
          %1421 = vmatpush2.bf16.msra.mxu0 0
          %1422 = vmatprep.subr.bf16.mxu0 0
          %1423 = vmatpush2.bf16.msra.mxu0 0
          %1424 = vmatprep.subr.bf16.mxu0 0
          %1425 = vmatpush2.bf16.msra.mxu0 0
          %1426 = vmatprep.mubr.bf16.mxu0 0
          %1427 = vmatmul.mubr.bf16.gmra.mxu0 %v290
          %v1428 = vpop.f32.mrf.mxu0
          %v1429 = vadd.f32 %v1341, %v1428
          %v1430 = vpop.f32.mrf.mxu0
          %v1431 = vpop.f32.mrf.mxu0
          %v1432 = vpop.f32.mrf.mxu0
          %1433 = vdwg.mxu0
          %s1434 = scalar_lea.vmem [#allocation2], 640
          %v1435 = vld [vmem:[%s1434] sm:$0xf]
          %v1436 = vld [vmem:[%s1434 + $0x4] sm:$0xf]
          %v1437 = vld [vmem:[%s1434 + $0x8] sm:$0xf]
          %v1438 = vld [vmem:[%s1434 + $0xc] sm:$0xf]
          %v1439 = vld [vmem:[%s1434 + $0x10] sm:$0xf]
          %v1440 = vld [vmem:[%s1434 + $0x14] sm:$0xf]
          %v1441 = vld [vmem:[%s1434 + $0x18] sm:$0xf]
          %v1442 = vld [vmem:[%s1434 + $0x1c] sm:$0xf]
          %v1443 = vld [vmem:[%s1434 + $0x20] sm:$0xf]
          %v1444 = vld [vmem:[%s1434 + $0x24] sm:$0xf]
          %v1445 = vld [vmem:[%s1434 + $0x28] sm:$0xf]
          %v1446 = vld [vmem:[%s1434 + $0x2c] sm:$0xf]
          %v1447 = vld [vmem:[%s1434 + $0x30] sm:$0xf]
          %v1448 = vld [vmem:[%s1434 + $0x34] sm:$0xf]
          %v1449 = vld [vmem:[%s1434 + $0x38] sm:$0xf]
          %v1450 = vld [vmem:[%s1434 + $0x3c] sm:$0xf]
          %v1467 = vunpack.c.l.b16 %v1435
          %v1468 = vunpack.c.l.b16 %v1436
          %v1469 = vunpack.c.l.b16 %v1437
          %v1470 = vunpack.c.l.b16 %v1438
          %v1471 = vunpack.c.l.b16 %v1439
          %v1472 = vunpack.c.l.b16 %v1440
          %v1473 = vunpack.c.l.b16 %v1441
          %v1474 = vunpack.c.l.b16 %v1442
          %v1475 = vunpack.c.l.b16 %v1443
          %v1476 = vunpack.c.l.b16 %v1444
          %v1477 = vunpack.c.l.b16 %v1445
          %v1478 = vunpack.c.l.b16 %v1446
          %v1479 = vunpack.c.l.b16 %v1447
          %v1480 = vunpack.c.l.b16 %v1448
          %v1481 = vunpack.c.l.b16 %v1449
          %v1482 = vunpack.c.l.b16 %v1450
          %v1483 = vpack.c.b16 %v1468, %v1467
          %v1484 = vpack.c.b16 %v1470, %v1469
          %v1485 = vpack.c.b16 %v1472, %v1471
          %v1486 = vpack.c.b16 %v1474, %v1473
          %v1487 = vpack.c.b16 %v1476, %v1475
          %v1488 = vpack.c.b16 %v1478, %v1477
          %v1489 = vpack.c.b16 %v1480, %v1479
          %v1490 = vpack.c.b16 %v1482, %v1481
          %1499 = vmatprep.subr.bf16.mxu0 0
          %1500 = vmatpush1.bf16.msra.mxu0 %v1490
          %1501 = vmatprep.subr.bf16.mxu0 0
          %1502 = vmatpush1.bf16.msra.mxu0 %v1489
          %1503 = vmatprep.subr.bf16.mxu0 0
          %1504 = vmatpush1.bf16.msra.mxu0 %v1488
          %1505 = vmatprep.subr.bf16.mxu0 0
          %1506 = vmatpush1.bf16.msra.mxu0 %v1487
          %1507 = vmatprep.subr.bf16.mxu0 0
          %1508 = vmatpush1.bf16.msra.mxu0 %v1486
          %1509 = vmatprep.subr.bf16.mxu0 0
          %1510 = vmatpush1.bf16.msra.mxu0 %v1485
          %1511 = vmatprep.subr.bf16.mxu0 0
          %1512 = vmatpush1.bf16.msra.mxu0 %v1484
          %1513 = vmatprep.subr.bf16.mxu0 0
          %1514 = vmatpush1.bf16.msra.mxu0 %v1483
          %1515 = vmatprep.subr.bf16.mxu0 0
          %1516 = vmatpush2.bf16.msra.mxu0 0
          %1517 = vmatprep.subr.bf16.mxu0 0
          %1518 = vmatpush2.bf16.msra.mxu0 0
          %1519 = vmatprep.subr.bf16.mxu0 0
          %1520 = vmatpush2.bf16.msra.mxu0 0
          %1521 = vmatprep.subr.bf16.mxu0 0
          %1522 = vmatpush2.bf16.msra.mxu0 0
          %1523 = vmatprep.subr.bf16.mxu0 0
          %1524 = vmatpush2.bf16.msra.mxu0 0
          %1525 = vmatprep.subr.bf16.mxu0 0
          %1526 = vmatpush2.bf16.msra.mxu0 0
          %1527 = vmatprep.subr.bf16.mxu0 0
          %1528 = vmatpush2.bf16.msra.mxu0 0
          %1529 = vmatprep.subr.bf16.mxu0 0
          %1530 = vmatpush2.bf16.msra.mxu0 0
          %1531 = vmatprep.mubr.bf16.mxu0 0
          %1532 = vmatmul.mubr.bf16.gmra.mxu0 %v296
          %v1533 = vpop.f32.mrf.mxu0
          %v1534 = vadd.f32 0.0, %v1533
          %v1535 = vpop.f32.mrf.mxu0
          %v1536 = vpop.f32.mrf.mxu0
          %v1537 = vpop.f32.mrf.mxu0
          %1538 = vdwg.mxu0
          %v1539 = vadd.f32 %v1429, %v1534
          %s1540 = scalar_lea.vmem [#allocation2], 704
          %v1541 = vld [vmem:[%s1540] sm:$0xf]
          %v1542 = vld [vmem:[%s1540 + $0x4] sm:$0xf]
          %v1543 = vld [vmem:[%s1540 + $0x8] sm:$0xf]
          %v1544 = vld [vmem:[%s1540 + $0xc] sm:$0xf]
          %v1545 = vld [vmem:[%s1540 + $0x10] sm:$0xf]
          %v1546 = vld [vmem:[%s1540 + $0x14] sm:$0xf]
          %v1547 = vld [vmem:[%s1540 + $0x18] sm:$0xf]
          %v1548 = vld [vmem:[%s1540 + $0x1c] sm:$0xf]
          %v1549 = vld [vmem:[%s1540 + $0x20] sm:$0xf]
          %v1550 = vld [vmem:[%s1540 + $0x24] sm:$0xf]
          %v1551 = vld [vmem:[%s1540 + $0x28] sm:$0xf]
          %v1552 = vld [vmem:[%s1540 + $0x2c] sm:$0xf]
          %v1553 = vld [vmem:[%s1540 + $0x30] sm:$0xf]
          %v1554 = vld [vmem:[%s1540 + $0x34] sm:$0xf]
          %v1555 = vld [vmem:[%s1540 + $0x38] sm:$0xf]
          %v1556 = vld [vmem:[%s1540 + $0x3c] sm:$0xf]
          %v1558 = vunpack.c.l.b16 %v297
          %v1559 = vpack.c.b16 %v1558, %v1558
          %v1561 = vshrl.u32 %v1559, 16
          %v1563 = vshll.u32 %v1559, 16
          %v1565 = vrot.slane %v1563, 1
          %v1566 = vor.u32 %v1561, %v1565
          %v1584 = vunpack.c.l.b16 %v1541
          %v1585 = vunpack.c.l.b16 %v1542
          %v1586 = vunpack.c.l.b16 %v1543
          %v1587 = vunpack.c.l.b16 %v1544
          %v1588 = vunpack.c.l.b16 %v1545
          %v1589 = vunpack.c.l.b16 %v1546
          %v1590 = vunpack.c.l.b16 %v1547
          %v1591 = vunpack.c.l.b16 %v1548
          %v1592 = vunpack.c.l.b16 %v1549
          %v1593 = vunpack.c.l.b16 %v1550
          %v1594 = vunpack.c.l.b16 %v1551
          %v1595 = vunpack.c.l.b16 %v1552
          %v1596 = vunpack.c.l.b16 %v1553
          %v1597 = vunpack.c.l.b16 %v1554
          %v1598 = vunpack.c.l.b16 %v1555
          %v1599 = vunpack.c.l.b16 %v1556
          %v1600 = vpack.c.b16 %v1585, %v1584
          %v1601 = vpack.c.b16 %v1587, %v1586
          %v1602 = vpack.c.b16 %v1589, %v1588
          %v1603 = vpack.c.b16 %v1591, %v1590
          %v1604 = vpack.c.b16 %v1593, %v1592
          %v1605 = vpack.c.b16 %v1595, %v1594
          %v1606 = vpack.c.b16 %v1597, %v1596
          %v1607 = vpack.c.b16 %v1599, %v1598
          %1616 = vmatprep.subr.bf16.mxu0 0
          %1617 = vmatpush1.bf16.msra.mxu0 %v1607
          %1618 = vmatprep.subr.bf16.mxu0 0
          %1619 = vmatpush1.bf16.msra.mxu0 %v1606
          %1620 = vmatprep.subr.bf16.mxu0 0
          %1621 = vmatpush1.bf16.msra.mxu0 %v1605
          %1622 = vmatprep.subr.bf16.mxu0 0
          %1623 = vmatpush1.bf16.msra.mxu0 %v1604
          %1624 = vmatprep.subr.bf16.mxu0 0
          %1625 = vmatpush1.bf16.msra.mxu0 %v1603
          %1626 = vmatprep.subr.bf16.mxu0 0
          %1627 = vmatpush1.bf16.msra.mxu0 %v1602
          %1628 = vmatprep.subr.bf16.mxu0 0
          %1629 = vmatpush1.bf16.msra.mxu0 %v1601
          %1630 = vmatprep.subr.bf16.mxu0 0
          %1631 = vmatpush1.bf16.msra.mxu0 %v1600
          %1632 = vmatprep.subr.bf16.mxu0 0
          %1633 = vmatpush2.bf16.msra.mxu0 0
          %1634 = vmatprep.subr.bf16.mxu0 0
          %1635 = vmatpush2.bf16.msra.mxu0 0
          %1636 = vmatprep.subr.bf16.mxu0 0
          %1637 = vmatpush2.bf16.msra.mxu0 0
          %1638 = vmatprep.subr.bf16.mxu0 0
          %1639 = vmatpush2.bf16.msra.mxu0 0
          %1640 = vmatprep.subr.bf16.mxu0 0
          %1641 = vmatpush2.bf16.msra.mxu0 0
          %1642 = vmatprep.subr.bf16.mxu0 0
          %1643 = vmatpush2.bf16.msra.mxu0 0
          %1644 = vmatprep.subr.bf16.mxu0 0
          %1645 = vmatpush2.bf16.msra.mxu0 0
          %1646 = vmatprep.subr.bf16.mxu0 0
          %1647 = vmatpush2.bf16.msra.mxu0 0
          %1648 = vmatprep.mubr.bf16.mxu0 0
          %1649 = vmatmul.mubr.bf16.gmra.mxu0 %v1566
          %v1650 = vpop.f32.mrf.mxu0
          %v1651 = vadd.f32 0.0, %v1650
          %v1652 = vpop.f32.mrf.mxu0
          %v1653 = vpop.f32.mrf.mxu0
          %v1654 = vpop.f32.mrf.mxu0
          %1655 = vdwg.mxu0
          %v1656 = vadd.f32 %v1539, %v1651
          %v1657 = vld [vmem:[%s264] sm:$0x1]
          %v1658 = vsel %vm743, %v1656, 0.0
          %v1659 = vrot.slane %v1658, 4
          %v1660 = vadd.f32 %v1658, %v1659
          %v1661 = vrot.slane %v1660, 2
          %v1662 = vadd.f32 %v1660, %v1661
          %v1663 = vrot.slane %v1662, 1
          %v1664 = vadd.f32 %v1662, %v1663
          %v1665 = vadd.f32 %v1657, %v1664
          %1666 = vst [vmem:[%s264] sm:$0x1] %v1665
          %v1667 = vld [vmem:[%s270] sm:$0x1]
          %v1668 = vmul.f32 %v1656, %v1656
          %v1669 = vsel %vm743, %v1668, 0.0
          %v1670 = vrot.slane %v1669, 4
          %v1671 = vadd.f32 %v1669, %v1670
          %v1672 = vrot.slane %v1671, 2
          %v1673 = vadd.f32 %v1671, %v1672
          %v1674 = vrot.slane %v1673, 1
          %v1675 = vadd.f32 %v1673, %v1674
          %v1676 = vadd.f32 %v1667, %v1675
          %1677 = vst [vmem:[%s270] sm:$0x1] %v1676
          %v1678 = vpack.c.bf16 %v1656, %v1656
          %1679 = vst [vmem:[%s767 + $0x4] sm:$0x3] %v1678
          %s1680 = scalar_lea.vmem [#allocation2], 768
          %v1681 = vld [vmem:[%s1680] sm:$0xf]
          %v1682 = vld [vmem:[%s1680 + $0x4] sm:$0xf]
          %v1683 = vld [vmem:[%s1680 + $0x8] sm:$0xf]
          %v1684 = vld [vmem:[%s1680 + $0xc] sm:$0xf]
          %v1685 = vld [vmem:[%s1680 + $0x10] sm:$0xf]
          %v1686 = vld [vmem:[%s1680 + $0x14] sm:$0xf]
          %v1687 = vld [vmem:[%s1680 + $0x18] sm:$0xf]
          %v1688 = vld [vmem:[%s1680 + $0x1c] sm:$0xf]
          %v1689 = vld [vmem:[%s1680 + $0x20] sm:$0xf]
          %v1690 = vld [vmem:[%s1680 + $0x24] sm:$0xf]
          %v1691 = vld [vmem:[%s1680 + $0x28] sm:$0xf]
          %v1692 = vld [vmem:[%s1680 + $0x2c] sm:$0xf]
          %v1693 = vld [vmem:[%s1680 + $0x30] sm:$0xf]
          %v1694 = vld [vmem:[%s1680 + $0x34] sm:$0xf]
          %v1695 = vld [vmem:[%s1680 + $0x38] sm:$0xf]
          %v1696 = vld [vmem:[%s1680 + $0x3c] sm:$0xf]
          %s1697 = scalar_lea.vmem [#allocation2], 832
          %v1698 = vld [vmem:[%s1697] sm:$0xf]
          %v1699 = vld [vmem:[%s1697 + $0x4] sm:$0xf]
          %v1700 = vld [vmem:[%s1697 + $0x8] sm:$0xf]
          %v1701 = vld [vmem:[%s1697 + $0xc] sm:$0xf]
          %v1702 = vld [vmem:[%s1697 + $0x10] sm:$0xf]
          %v1703 = vld [vmem:[%s1697 + $0x14] sm:$0xf]
          %v1704 = vld [vmem:[%s1697 + $0x18] sm:$0xf]
          %v1705 = vld [vmem:[%s1697 + $0x1c] sm:$0xf]
          %v1706 = vld [vmem:[%s1697 + $0x20] sm:$0xf]
          %v1707 = vld [vmem:[%s1697 + $0x24] sm:$0xf]
          %v1708 = vld [vmem:[%s1697 + $0x28] sm:$0xf]
          %v1709 = vld [vmem:[%s1697 + $0x2c] sm:$0xf]
          %v1710 = vld [vmem:[%s1697 + $0x30] sm:$0xf]
          %v1711 = vld [vmem:[%s1697 + $0x34] sm:$0xf]
          %v1712 = vld [vmem:[%s1697 + $0x38] sm:$0xf]
          %v1713 = vld [vmem:[%s1697 + $0x3c] sm:$0xf]
          %v1730 = vunpack.c.l.b16 %v1698
          %v1731 = vunpack.c.l.b16 %v1699
          %v1732 = vunpack.c.l.b16 %v1700
          %v1733 = vunpack.c.l.b16 %v1701
          %v1734 = vunpack.c.l.b16 %v1702
          %v1735 = vunpack.c.l.b16 %v1703
          %v1736 = vunpack.c.l.b16 %v1704
          %v1737 = vunpack.c.l.b16 %v1705
          %v1738 = vunpack.c.l.b16 %v1706
          %v1739 = vunpack.c.l.b16 %v1707
          %v1740 = vunpack.c.l.b16 %v1708
          %v1741 = vunpack.c.l.b16 %v1709
          %v1742 = vunpack.c.l.b16 %v1710
          %v1743 = vunpack.c.l.b16 %v1711
          %v1744 = vunpack.c.l.b16 %v1712
          %v1745 = vunpack.c.l.b16 %v1713
          %v1746 = vpack.c.b16 %v1731, %v1730
          %v1747 = vpack.c.b16 %v1733, %v1732
          %v1748 = vpack.c.b16 %v1735, %v1734
          %v1749 = vpack.c.b16 %v1737, %v1736
          %v1750 = vpack.c.b16 %v1739, %v1738
          %v1751 = vpack.c.b16 %v1741, %v1740
          %v1752 = vpack.c.b16 %v1743, %v1742
          %v1753 = vpack.c.b16 %v1745, %v1744
          %1762 = vmatprep.subr.bf16.mxu0 0
          %1763 = vmatpush1.bf16.msra.mxu0 %v1753
          %1764 = vmatprep.subr.bf16.mxu0 0
          %1765 = vmatpush1.bf16.msra.mxu0 %v1752
          %1766 = vmatprep.subr.bf16.mxu0 0
          %1767 = vmatpush1.bf16.msra.mxu0 %v1751
          %1768 = vmatprep.subr.bf16.mxu0 0
          %1769 = vmatpush1.bf16.msra.mxu0 %v1750
          %1770 = vmatprep.subr.bf16.mxu0 0
          %1771 = vmatpush1.bf16.msra.mxu0 %v1749
          %1772 = vmatprep.subr.bf16.mxu0 0
          %1773 = vmatpush1.bf16.msra.mxu0 %v1748
          %1774 = vmatprep.subr.bf16.mxu0 0
          %1775 = vmatpush1.bf16.msra.mxu0 %v1747
          %1776 = vmatprep.subr.bf16.mxu0 0
          %1777 = vmatpush1.bf16.msra.mxu0 %v1746
          %1778 = vmatprep.subr.bf16.mxu0 0
          %1779 = vmatpush2.bf16.msra.mxu0 0
          %1780 = vmatprep.subr.bf16.mxu0 0
          %1781 = vmatpush2.bf16.msra.mxu0 0
          %1782 = vmatprep.subr.bf16.mxu0 0
          %1783 = vmatpush2.bf16.msra.mxu0 0
          %1784 = vmatprep.subr.bf16.mxu0 0
          %1785 = vmatpush2.bf16.msra.mxu0 0
          %1786 = vmatprep.subr.bf16.mxu0 0
          %1787 = vmatpush2.bf16.msra.mxu0 0
          %1788 = vmatprep.subr.bf16.mxu0 0
          %1789 = vmatpush2.bf16.msra.mxu0 0
          %1790 = vmatprep.subr.bf16.mxu0 0
          %1791 = vmatpush2.bf16.msra.mxu0 0
          %1792 = vmatprep.subr.bf16.mxu0 0
          %1793 = vmatpush2.bf16.msra.mxu0 0
          %1794 = vmatprep.mubr.bf16.mxu0 0
          %1795 = vmatmul.mubr.bf16.gmra.mxu0 %v1110
          %v1796 = vpop.f32.mrf.mxu0
          %v1797 = vadd.f32 0.0, %v1796
          %v1798 = vpop.f32.mrf.mxu0
          %v1799 = vpop.f32.mrf.mxu0
          %v1800 = vpop.f32.mrf.mxu0
          %1801 = vdwg.mxu0
          %v1818 = vunpack.c.l.b16 %v1681
          %v1819 = vunpack.c.l.b16 %v1682
          %v1820 = vunpack.c.l.b16 %v1683
          %v1821 = vunpack.c.l.b16 %v1684
          %v1822 = vunpack.c.l.b16 %v1685
          %v1823 = vunpack.c.l.b16 %v1686
          %v1824 = vunpack.c.l.b16 %v1687
          %v1825 = vunpack.c.l.b16 %v1688
          %v1826 = vunpack.c.l.b16 %v1689
          %v1827 = vunpack.c.l.b16 %v1690
          %v1828 = vunpack.c.l.b16 %v1691
          %v1829 = vunpack.c.l.b16 %v1692
          %v1830 = vunpack.c.l.b16 %v1693
          %v1831 = vunpack.c.l.b16 %v1694
          %v1832 = vunpack.c.l.b16 %v1695
          %v1833 = vunpack.c.l.b16 %v1696
          %v1834 = vpack.c.b16 %v1819, %v1818
          %v1835 = vpack.c.b16 %v1821, %v1820
          %v1836 = vpack.c.b16 %v1823, %v1822
          %v1837 = vpack.c.b16 %v1825, %v1824
          %v1838 = vpack.c.b16 %v1827, %v1826
          %v1839 = vpack.c.b16 %v1829, %v1828
          %v1840 = vpack.c.b16 %v1831, %v1830
          %v1841 = vpack.c.b16 %v1833, %v1832
          %1850 = vmatprep.subr.bf16.mxu0 0
          %1851 = vmatpush1.bf16.msra.mxu0 %v1841
          %1852 = vmatprep.subr.bf16.mxu0 0
          %1853 = vmatpush1.bf16.msra.mxu0 %v1840
          %1854 = vmatprep.subr.bf16.mxu0 0
          %1855 = vmatpush1.bf16.msra.mxu0 %v1839
          %1856 = vmatprep.subr.bf16.mxu0 0
          %1857 = vmatpush1.bf16.msra.mxu0 %v1838
          %1858 = vmatprep.subr.bf16.mxu0 0
          %1859 = vmatpush1.bf16.msra.mxu0 %v1837
          %1860 = vmatprep.subr.bf16.mxu0 0
          %1861 = vmatpush1.bf16.msra.mxu0 %v1836
          %1862 = vmatprep.subr.bf16.mxu0 0
          %1863 = vmatpush1.bf16.msra.mxu0 %v1835
          %1864 = vmatprep.subr.bf16.mxu0 0
          %1865 = vmatpush1.bf16.msra.mxu0 %v1834
          %1866 = vmatprep.subr.bf16.mxu0 0
          %1867 = vmatpush2.bf16.msra.mxu0 0
          %1868 = vmatprep.subr.bf16.mxu0 0
          %1869 = vmatpush2.bf16.msra.mxu0 0
          %1870 = vmatprep.subr.bf16.mxu0 0
          %1871 = vmatpush2.bf16.msra.mxu0 0
          %1872 = vmatprep.subr.bf16.mxu0 0
          %1873 = vmatpush2.bf16.msra.mxu0 0
          %1874 = vmatprep.subr.bf16.mxu0 0
          %1875 = vmatpush2.bf16.msra.mxu0 0
          %1876 = vmatprep.subr.bf16.mxu0 0
          %1877 = vmatpush2.bf16.msra.mxu0 0
          %1878 = vmatprep.subr.bf16.mxu0 0
          %1879 = vmatpush2.bf16.msra.mxu0 0
          %1880 = vmatprep.subr.bf16.mxu0 0
          %1881 = vmatpush2.bf16.msra.mxu0 0
          %1882 = vmatprep.mubr.bf16.mxu0 0
          %1883 = vmatmul.mubr.bf16.gmra.mxu0 %v651
          %v1884 = vpop.f32.mrf.mxu0
          %v1885 = vadd.f32 %v1797, %v1884
          %v1886 = vpop.f32.mrf.mxu0
          %v1887 = vpop.f32.mrf.mxu0
          %v1888 = vpop.f32.mrf.mxu0
          %1889 = vdwg.mxu0
          %s1890 = scalar_lea.vmem [#allocation2], 896
          %v1891 = vld [vmem:[%s1890] sm:$0xf]
          %v1892 = vld [vmem:[%s1890 + $0x4] sm:$0xf]
          %v1893 = vld [vmem:[%s1890 + $0x8] sm:$0xf]
          %v1894 = vld [vmem:[%s1890 + $0xc] sm:$0xf]
          %v1895 = vld [vmem:[%s1890 + $0x10] sm:$0xf]
          %v1896 = vld [vmem:[%s1890 + $0x14] sm:$0xf]
          %v1897 = vld [vmem:[%s1890 + $0x18] sm:$0xf]
          %v1898 = vld [vmem:[%s1890 + $0x1c] sm:$0xf]
          %v1899 = vld [vmem:[%s1890 + $0x20] sm:$0xf]
          %v1900 = vld [vmem:[%s1890 + $0x24] sm:$0xf]
          %v1901 = vld [vmem:[%s1890 + $0x28] sm:$0xf]
          %v1902 = vld [vmem:[%s1890 + $0x2c] sm:$0xf]
          %v1903 = vld [vmem:[%s1890 + $0x30] sm:$0xf]
          %v1904 = vld [vmem:[%s1890 + $0x34] sm:$0xf]
          %v1905 = vld [vmem:[%s1890 + $0x38] sm:$0xf]
          %v1906 = vld [vmem:[%s1890 + $0x3c] sm:$0xf]
          %v1923 = vunpack.c.l.b16 %v1891
          %v1924 = vunpack.c.l.b16 %v1892
          %v1925 = vunpack.c.l.b16 %v1893
          %v1926 = vunpack.c.l.b16 %v1894
          %v1927 = vunpack.c.l.b16 %v1895
          %v1928 = vunpack.c.l.b16 %v1896
          %v1929 = vunpack.c.l.b16 %v1897
          %v1930 = vunpack.c.l.b16 %v1898
          %v1931 = vunpack.c.l.b16 %v1899
          %v1932 = vunpack.c.l.b16 %v1900
          %v1933 = vunpack.c.l.b16 %v1901
          %v1934 = vunpack.c.l.b16 %v1902
          %v1935 = vunpack.c.l.b16 %v1903
          %v1936 = vunpack.c.l.b16 %v1904
          %v1937 = vunpack.c.l.b16 %v1905
          %v1938 = vunpack.c.l.b16 %v1906
          %v1939 = vpack.c.b16 %v1924, %v1923
          %v1940 = vpack.c.b16 %v1926, %v1925
          %v1941 = vpack.c.b16 %v1928, %v1927
          %v1942 = vpack.c.b16 %v1930, %v1929
          %v1943 = vpack.c.b16 %v1932, %v1931
          %v1944 = vpack.c.b16 %v1934, %v1933
          %v1945 = vpack.c.b16 %v1936, %v1935
          %v1946 = vpack.c.b16 %v1938, %v1937
          %1955 = vmatprep.subr.bf16.mxu0 0
          %1956 = vmatpush1.bf16.msra.mxu0 %v1946
          %1957 = vmatprep.subr.bf16.mxu0 0
          %1958 = vmatpush1.bf16.msra.mxu0 %v1945
          %1959 = vmatprep.subr.bf16.mxu0 0
          %1960 = vmatpush1.bf16.msra.mxu0 %v1944
          %1961 = vmatprep.subr.bf16.mxu0 0
          %1962 = vmatpush1.bf16.msra.mxu0 %v1943
          %1963 = vmatprep.subr.bf16.mxu0 0
          %1964 = vmatpush1.bf16.msra.mxu0 %v1942
          %1965 = vmatprep.subr.bf16.mxu0 0
          %1966 = vmatpush1.bf16.msra.mxu0 %v1941
          %1967 = vmatprep.subr.bf16.mxu0 0
          %1968 = vmatpush1.bf16.msra.mxu0 %v1940
          %1969 = vmatprep.subr.bf16.mxu0 0
          %1970 = vmatpush1.bf16.msra.mxu0 %v1939
          %1971 = vmatprep.subr.bf16.mxu0 0
          %1972 = vmatpush2.bf16.msra.mxu0 0
          %1973 = vmatprep.subr.bf16.mxu0 0
          %1974 = vmatpush2.bf16.msra.mxu0 0
          %1975 = vmatprep.subr.bf16.mxu0 0
          %1976 = vmatpush2.bf16.msra.mxu0 0
          %1977 = vmatprep.subr.bf16.mxu0 0
          %1978 = vmatpush2.bf16.msra.mxu0 0
          %1979 = vmatprep.subr.bf16.mxu0 0
          %1980 = vmatpush2.bf16.msra.mxu0 0
          %1981 = vmatprep.subr.bf16.mxu0 0
          %1982 = vmatpush2.bf16.msra.mxu0 0
          %1983 = vmatprep.subr.bf16.mxu0 0
          %1984 = vmatpush2.bf16.msra.mxu0 0
          %1985 = vmatprep.subr.bf16.mxu0 0
          %1986 = vmatpush2.bf16.msra.mxu0 0
          %1987 = vmatprep.mubr.bf16.mxu0 0
          %1988 = vmatmul.mubr.bf16.gmra.mxu0 %v1566
          %v1989 = vpop.f32.mrf.mxu0
          %v1990 = vadd.f32 0.0, %v1989
          %v1991 = vpop.f32.mrf.mxu0
          %v1992 = vpop.f32.mrf.mxu0
          %v1993 = vpop.f32.mrf.mxu0
          %1994 = vdwg.mxu0
          %v1995 = vadd.f32 %v1885, %v1990
          %s1996 = scalar_lea.vmem [#allocation2], 960
          %v1997 = vld [vmem:[%s1996] sm:$0xf]
          %v1998 = vld [vmem:[%s1996 + $0x4] sm:$0xf]
          %v1999 = vld [vmem:[%s1996 + $0x8] sm:$0xf]
          %v2000 = vld [vmem:[%s1996 + $0xc] sm:$0xf]
          %v2001 = vld [vmem:[%s1996 + $0x10] sm:$0xf]
          %v2002 = vld [vmem:[%s1996 + $0x14] sm:$0xf]
          %v2003 = vld [vmem:[%s1996 + $0x18] sm:$0xf]
          %v2004 = vld [vmem:[%s1996 + $0x1c] sm:$0xf]
          %v2005 = vld [vmem:[%s1996 + $0x20] sm:$0xf]
          %v2006 = vld [vmem:[%s1996 + $0x24] sm:$0xf]
          %v2007 = vld [vmem:[%s1996 + $0x28] sm:$0xf]
          %v2008 = vld [vmem:[%s1996 + $0x2c] sm:$0xf]
          %v2009 = vld [vmem:[%s1996 + $0x30] sm:$0xf]
          %v2010 = vld [vmem:[%s1996 + $0x34] sm:$0xf]
          %v2011 = vld [vmem:[%s1996 + $0x38] sm:$0xf]
          %v2012 = vld [vmem:[%s1996 + $0x3c] sm:$0xf]
          %v2014 = vunpack.c.l.b16 %v298
          %v2015 = vpack.c.b16 %v2014, %v2014
          %v2016 = vrot.slane %v2015, 1
          %v2034 = vunpack.c.l.b16 %v1997
          %v2035 = vunpack.c.l.b16 %v1998
          %v2036 = vunpack.c.l.b16 %v1999
          %v2037 = vunpack.c.l.b16 %v2000
          %v2038 = vunpack.c.l.b16 %v2001
          %v2039 = vunpack.c.l.b16 %v2002
          %v2040 = vunpack.c.l.b16 %v2003
          %v2041 = vunpack.c.l.b16 %v2004
          %v2042 = vunpack.c.l.b16 %v2005
          %v2043 = vunpack.c.l.b16 %v2006
          %v2044 = vunpack.c.l.b16 %v2007
          %v2045 = vunpack.c.l.b16 %v2008
          %v2046 = vunpack.c.l.b16 %v2009
          %v2047 = vunpack.c.l.b16 %v2010
          %v2048 = vunpack.c.l.b16 %v2011
          %v2049 = vunpack.c.l.b16 %v2012
          %v2050 = vpack.c.b16 %v2035, %v2034
          %v2051 = vpack.c.b16 %v2037, %v2036
          %v2052 = vpack.c.b16 %v2039, %v2038
          %v2053 = vpack.c.b16 %v2041, %v2040
          %v2054 = vpack.c.b16 %v2043, %v2042
          %v2055 = vpack.c.b16 %v2045, %v2044
          %v2056 = vpack.c.b16 %v2047, %v2046
          %v2057 = vpack.c.b16 %v2049, %v2048
          %2066 = vmatprep.subr.bf16.mxu0 0
          %2067 = vmatpush1.bf16.msra.mxu0 %v2057
          %2068 = vmatprep.subr.bf16.mxu0 0
          %2069 = vmatpush1.bf16.msra.mxu0 %v2056
          %2070 = vmatprep.subr.bf16.mxu0 0
          %2071 = vmatpush1.bf16.msra.mxu0 %v2055
          %2072 = vmatprep.subr.bf16.mxu0 0
          %2073 = vmatpush1.bf16.msra.mxu0 %v2054
          %2074 = vmatprep.subr.bf16.mxu0 0
          %2075 = vmatpush1.bf16.msra.mxu0 %v2053
          %2076 = vmatprep.subr.bf16.mxu0 0
          %2077 = vmatpush1.bf16.msra.mxu0 %v2052
          %2078 = vmatprep.subr.bf16.mxu0 0
          %2079 = vmatpush1.bf16.msra.mxu0 %v2051
          %2080 = vmatprep.subr.bf16.mxu0 0
          %2081 = vmatpush1.bf16.msra.mxu0 %v2050
          %2082 = vmatprep.subr.bf16.mxu0 0
          %2083 = vmatpush2.bf16.msra.mxu0 0
          %2084 = vmatprep.subr.bf16.mxu0 0
          %2085 = vmatpush2.bf16.msra.mxu0 0
          %2086 = vmatprep.subr.bf16.mxu0 0
          %2087 = vmatpush2.bf16.msra.mxu0 0
          %2088 = vmatprep.subr.bf16.mxu0 0
          %2089 = vmatpush2.bf16.msra.mxu0 0
          %2090 = vmatprep.subr.bf16.mxu0 0
          %2091 = vmatpush2.bf16.msra.mxu0 0
          %2092 = vmatprep.subr.bf16.mxu0 0
          %2093 = vmatpush2.bf16.msra.mxu0 0
          %2094 = vmatprep.subr.bf16.mxu0 0
          %2095 = vmatpush2.bf16.msra.mxu0 0
          %2096 = vmatprep.subr.bf16.mxu0 0
          %2097 = vmatpush2.bf16.msra.mxu0 0
          %2098 = vmatprep.mubr.bf16.mxu0 0
          %2099 = vmatmul.mubr.bf16.gmra.mxu0 %v2016
          %v2100 = vpop.f32.mrf.mxu0
          %v2101 = vadd.f32 0.0, %v2100
          %v2102 = vpop.f32.mrf.mxu0
          %v2103 = vpop.f32.mrf.mxu0
          %v2104 = vpop.f32.mrf.mxu0
          %2105 = vdwg.mxu0
          %v2106 = vadd.f32 %v1995, %v2101
          %v2107 = vld [vmem:[%s264] sm:$0x1]
          %v2108 = vsel %vm743, %v2106, 0.0
          %v2109 = vrot.slane %v2108, 4
          %v2110 = vadd.f32 %v2108, %v2109
          %v2111 = vrot.slane %v2110, 2
          %v2112 = vadd.f32 %v2110, %v2111
          %v2113 = vrot.slane %v2112, 1
          %v2114 = vadd.f32 %v2112, %v2113
          %v2115 = vadd.f32 %v2107, %v2114
          %2116 = vst [vmem:[%s264] sm:$0x1] %v2115
          %v2117 = vld [vmem:[%s270] sm:$0x1]
          %v2118 = vmul.f32 %v2106, %v2106
          %v2119 = vsel %vm743, %v2118, 0.0
          %v2120 = vrot.slane %v2119, 4
          %v2121 = vadd.f32 %v2119, %v2120
          %v2122 = vrot.slane %v2121, 2
          %v2123 = vadd.f32 %v2121, %v2122
          %v2124 = vrot.slane %v2123, 1
          %v2125 = vadd.f32 %v2123, %v2124
          %v2126 = vadd.f32 %v2117, %v2125
          %2127 = vst [vmem:[%s270] sm:$0x1] %v2126
          %v2128 = vpack.c.bf16 %v2106, %v2106
          %2129 = vst [vmem:[%s767 + $0x6] sm:$0x3] %v2128
        $region37: #{wgan_generator_forward.5} parent=27 // loop_footer
          %s280 = sadd.s32 1, %s276
        $region38: #{wgan_generator_forward.5} parent=27 // loop_footer_branch
          %275 = sbr.rel target = $region34
        $region39: #{wgan_generator_forward.5} parent=27 // loop_exit
          _
        %s2130 = smul.u32 4, %s22
        %p2131 = scmp.lt.s32.totalorder %s21, 1
        %s2132 = scalar_select %p2131, %s21, 1
        %p2133 = scmp.lt.s32.totalorder %s2130, 3
        %s2134 = scalar_select %p2133, %s2130, 3
        %s2135 = smul.addr %s2134, 4
        %s2136 = smul.addr %s2132, 16
        %s2137 = sadd.s32 %s2135, %s2136
        %s2138 = smul.addr %s2137, 2
        %s2139 = scalar_lea.vmem %s2, %s2138
        %p2140 = scmp.lt.s32.totalorder %s21, 1
        %s2141 = scalar_select %p2140, %s21, 1
        %p2142 = scmp.lt.s32.totalorder %s22, 0
        %s2143 = scalar_select %p2142, %s22, 0
        %s2144 = sadd.s32 %s2143, %s2141
        %s2145 = scalar_lea.vmem %s3, %s2144
        %p2146 = scmp.lt.s32.totalorder %s21, 1
        %s2147 = scalar_select %p2146, %s21, 1
        %p2148 = scmp.lt.s32.totalorder %s22, 0
        %s2149 = scalar_select %p2148, %s22, 0
        %s2150 = sadd.s32 %s2149, %s2147
        %s2151 = scalar_lea.vmem %s4, %s2150
        // Predicated region
        $region40: #{wgan_generator_forward.5} parent=27 // pred_check
          %p2152 = pneg %p96
        $region41: #{wgan_generator_forward.5} parent=27 // pred_check_branch
          %2154 = sbr.rel (%p2152) target = $region43
        $region42: #{wgan_generator_forward.5} parent=27 // pred_region
          %s2155 = smul.u32 4, %s22
        $region43: #{wgan_generator_forward.5} parent=27 // pred_fallthru
          _
        // Predicated region
        $region44: #{wgan_generator_forward.5} parent=27 // pred_check
          %p2156 = pneg %p124
        $region45: #{wgan_generator_forward.5} parent=27 // pred_check_branch
          %2158 = sbr.rel (%p2156) target = $region47
        $region46: #{wgan_generator_forward.5} parent=27 // pred_region
          _
        $region47: #{wgan_generator_forward.5} parent=27 // pred_fallthru
          _
        // Predicated region
        $region48: #{wgan_generator_forward.5} parent=27 // pred_check
          %p2159 = pneg %p152
        $region49: #{wgan_generator_forward.5} parent=27 // pred_check_branch
          %2161 = sbr.rel (%p2159) target = $region51
        $region50: #{wgan_generator_forward.5} parent=27 // pred_region
          _
        $region51: #{wgan_generator_forward.5} parent=27 // pred_fallthru
          _
      $region28: #{wgan_generator_forward.5} parent=5 // pred_fallthru
        _
      %p2162 = scmp.le.s32.totalorder 2, %s12
      // Predicated region
      $region52: #{wgan_generator_forward.5} parent=5 // pred_check
        %p2163 = pneg %p2162
      $region53: #{wgan_generator_forward.5} parent=5 // pred_check_branch
        %2165 = sbr.rel (%p2163) target = $region55
      $region54: #{wgan_generator_forward.5} parent=5 // pred_region
        %s2166 = ssub.s32 %s12, 2
        // Predicated region
        $region56: #{wgan_generator_forward.5} parent=54 // pred_check
          %p2167 = pneg %p102
        $region57: #{wgan_generator_forward.5} parent=54 // pred_check_branch
          %2169 = sbr.rel (%p2167) target = $region59
        $region58: #{wgan_generator_forward.5} parent=54 // pred_region
          %s2170 = smul.u32 4, %s24
          %p2171 = scmp.lt.s32.totalorder %s23, 1
          %s2172 = scalar_select %p2171, %s23, 1
          %p2173 = scmp.lt.s32.totalorder %s2170, 3
          %s2174 = scalar_select %p2173, %s2170, 3
          %s2175 = smul.addr %s2174, 4
          %s2176 = smul.addr %s2172, 16
          %s2177 = sadd.s32 %s2175, %s2176
          %s2178 = smul.addr %s2177, 2
          %s2179 = scalar_lea.vmem %s2, %s2178
        $region59: #{wgan_generator_forward.5} parent=54 // pred_fallthru
          _
        // Predicated region
        $region60: #{wgan_generator_forward.5} parent=54 // pred_check
          %p2180 = pneg %p130
        $region61: #{wgan_generator_forward.5} parent=54 // pred_check_branch
          %2182 = sbr.rel (%p2180) target = $region63
        $region62: #{wgan_generator_forward.5} parent=54 // pred_region
          %p2183 = scmp.lt.s32.totalorder %s23, 1
          %s2184 = scalar_select %p2183, %s23, 1
          %p2185 = scmp.lt.s32.totalorder %s24, 0
          %s2186 = scalar_select %p2185, %s24, 0
          %s2187 = sadd.s32 %s2186, %s2184
          %s2188 = scalar_lea.vmem %s3, %s2187
        $region63: #{wgan_generator_forward.5} parent=54 // pred_fallthru
          _
        // Predicated region
        $region64: #{wgan_generator_forward.5} parent=54 // pred_check
          %p2189 = pneg %p158
        $region65: #{wgan_generator_forward.5} parent=54 // pred_check_branch
          %2191 = sbr.rel (%p2189) target = $region67
        $region66: #{wgan_generator_forward.5} parent=54 // pred_region
          %p2192 = scmp.lt.s32.totalorder %s23, 1
          %s2193 = scalar_select %p2192, %s23, 1
          %p2194 = scmp.lt.s32.totalorder %s24, 0
          %s2195 = scalar_select %p2194, %s24, 0
          %s2196 = sadd.s32 %s2195, %s2193
          %s2197 = scalar_lea.vmem %s4, %s2196
        $region67: #{wgan_generator_forward.5} parent=54 // pred_fallthru
          _
      $region55: #{wgan_generator_forward.5} parent=5 // pred_fallthru
        _
    $region6: #{wgan_generator_forward.5} parent=1 // loop_footer
      %s16 = sadd.s32 1, %s12
    $region7: #{wgan_generator_forward.5} parent=1 // loop_footer_branch
      %11 = sbr.rel target = $region3
    $region8: #{wgan_generator_forward.5} parent=1 // loop_exit
      _
    %2198 = vsyncpa [#allocation3], 1
    %s2199 = scalar_lea.sflag [#allocation3], 1
    %2200 = vsyncpa %s2199, 1

// kernel: wgan_generator_forward.7
$region0: #{wgan_generator_forward.7}
  #allocation0 [shape = 'u32[]', space=smem, size = 0x4, offset = 0x4, fixed_abs, tag = 'smem constant byte address 0x4 - core index']
  #allocation1 [shape = 'u32[144,128]{1,0:T(1,128)}', space=vmem, size = 0x12000, scoped, tag = 'internal scratch']
  %s0 = inlined_call_operand.vmem [shape: bf16[2,18,18,32], index: 0, kind: input, shape index: {}]
  %s1 = inlined_call_operand.vmem [shape: bf16[16,32,128], index: 1, kind: input, shape index: {}]
  %s2 = inlined_call_operand.vmem [shape: f32[2,16,16,512], index: 2, kind: output, shape index: {}]
  %s3 = sld [smem:[#allocation0]]
  $region48: #{wgan_generator_forward.7} parent=0
    _
  %s5 = ssub.s32 1, %s3
  %s6 = scalar_select 0, %s5, %s3
  loop: start=0, step=1, limit=6
  $region2: #{wgan_generator_forward.7} parent=0 // loop_pre_header
    _
  $region3: #{wgan_generator_forward.7} parent=0 // loop_header
    %s8 = sphi 0, %s12
    %p9 = scmp.ge.s32.totalorder %s8, 6
    %s15 = sphi 0, %s27
    %s16 = sphi 0, %s23
    %s17 = sphi 0, %s15
    %s18 = sphi 0, %s16
    %s19 = sphi 0, %s17
    %s20 = sphi 0, %s18
    %s30 = sphi 0, %s32
    %s33 = sphi 0, %s30
    %s34 = sphi 0, %s33
    %s50 = sphi 0, %s34
    %s54 = sphi 0, %s54
    %s56 = sphi 0, %s54
    %s57 = sphi 0, %s56
    %s71 = sphi 0, %s57
    %s79 = sphi 0, %s81
    %s82 = sphi 0, %s79
    %s83 = sphi 0, %s82
    %s99 = sphi 0, %s83
  $region4: #{wgan_generator_forward.7} parent=0 // loop_header_branch
    %11 = sbr.rel (%p9) target = $region8
  $region5: #{wgan_generator_forward.7} parent=0 // loop_body
    %s13 = ssub.s32 %s8, 1
    %s14 = ssub.s32 %s8, 2
    %s21 = sadd.s32 1, %s16
    %p22 = scmp.ge.s32.totalorder %s21, 2
    %s23 = scalar_select %p22, 0, %s21
    %s24 = sadd.s32 1, %s15
    %s25 = scalar_select %p22, %s24, %s15
    %p26 = scmp.ge.s32.totalorder %s25, 2
    %s27 = scalar_select %p26, 0, %s25
    %s28 = ssub.s32 %s15, %s27
    %p29 = scmp.eq.s32.totalorder %s28, 0
    %s31 = sadd.s32 %s30, 1
    %s32 = scalar_select %p29, %s30, %s31
    %p35 = pneg %p29
    %p36 = scmp.eq.s32.totalorder %s8, 3
    %p37 = por %p35, %p36
    %p38 = scmp.ne.s32.totalorder %s30, %s33
    %p39 = scmp.eq.s32.totalorder %s8, 0
    %p40 = por %p38, %p39
    %p41 = scmp.ne.s32.totalorder %s30, %s33
    %p42 = scmp.eq.s32.totalorder %s13, 3
    %p43 = por %p41, %p42
    %p44 = scmp.ne.s32.totalorder %s33, %s34
    %p45 = scmp.eq.s32.totalorder %s13, 0
    %p46 = por %p44, %p45
    %p47 = scmp.ne.s32.totalorder %s33, %s34
    %p48 = scmp.eq.s32.totalorder %s14, 3
    %p49 = por %p47, %p48
    %p51 = scmp.ne.s32.totalorder %s34, %s50
    %p52 = scmp.eq.s32.totalorder %s14, 0
    %p53 = por %p51, %p52
    %s55 = sadd.s32 %s54, 1
    %p58 = scmp.eq.s32.totalorder %s8, 3
    %p59 = scmp.ne.s32.totalorder %s54, %s56
    %p60 = scmp.eq.s32.totalorder %s8, 0
    %p61 = por %p59, %p60
    %p62 = scmp.ne.s32.totalorder %s54, %s56
    %p63 = scmp.eq.s32.totalorder %s13, 3
    %p64 = por %p62, %p63
    %p65 = scmp.ne.s32.totalorder %s56, %s57
    %p66 = scmp.eq.s32.totalorder %s13, 0
    %p67 = por %p65, %p66
    %p68 = scmp.ne.s32.totalorder %s56, %s57
    %p69 = scmp.eq.s32.totalorder %s14, 3
    %p70 = por %p68, %p69
    %p72 = scmp.ne.s32.totalorder %s57, %s71
    %p73 = scmp.eq.s32.totalorder %s14, 0
    %p74 = por %p72, %p73
    %s75 = ssub.s32 %s15, %s27
    %s76 = ssub.s32 %s16, %s23
    %s77 = sor.u32 %s75, %s76
    %p78 = scmp.eq.s32.totalorder %s77, 0
    %s80 = sadd.s32 %s79, 1
    %s81 = scalar_select %p78, %s79, %s80
    %p84 = pneg %p78
    %p85 = scmp.eq.s32.totalorder %s8, 3
    %p86 = por %p84, %p85
    %p87 = scmp.ne.s32.totalorder %s79, %s82
    %p88 = scmp.eq.s32.totalorder %s8, 0
    %p89 = por %p87, %p88
    %p90 = scmp.ne.s32.totalorder %s79, %s82
    %p91 = scmp.eq.s32.totalorder %s13, 3
    %p92 = por %p90, %p91
    %p93 = scmp.ne.s32.totalorder %s82, %s83
    %p94 = scmp.eq.s32.totalorder %s13, 0
    %p95 = por %p93, %p94
    %p96 = scmp.ne.s32.totalorder %s82, %s83
    %p97 = scmp.eq.s32.totalorder %s14, 3
    %p98 = por %p96, %p97
    %p100 = scmp.ne.s32.totalorder %s83, %s99
    %p101 = scmp.eq.s32.totalorder %s14, 0
    %p102 = por %p100, %p101
    %p103 = scmp.le.s32.totalorder 1, %s8
    %p104 = scmp.lt.s32.totalorder %s8, 5
    %p105 = pnand %p103, %p104
    %p106 = pneg %p105
    // Predicated region
    $region9: #{wgan_generator_forward.7} parent=5 // pred_check
      _
    $region10: #{wgan_generator_forward.7} parent=5 // pred_check_branch
      %108 = sbr.rel (%p105) target = $region12
    $region11: #{wgan_generator_forward.7} parent=5 // pred_region
      %s109 = ssub.s32 %s8, 1
      // Predicated region
      $region13: #{wgan_generator_forward.7} parent=11 // pred_check
        %p110 = pneg %p67
      $region14: #{wgan_generator_forward.7} parent=11 // pred_check_branch
        %112 = sbr.rel (%p110) target = $region16
      $region15: #{wgan_generator_forward.7} parent=11 // pred_region
        _
      $region16: #{wgan_generator_forward.7} parent=11 // pred_fallthru
        _
    $region12: #{wgan_generator_forward.7} parent=5 // pred_fallthru
      _
    %p113 = scmp.lt.s32.totalorder %s8, 4
    // Predicated region
    $region17: #{wgan_generator_forward.7} parent=5 // pred_check
      %p114 = pneg %p113
    $region18: #{wgan_generator_forward.7} parent=5 // pred_check_branch
      %116 = sbr.rel (%p114) target = $region20
    $region19: #{wgan_generator_forward.7} parent=5 // pred_region
      // Predicated region
      $region21: #{wgan_generator_forward.7} parent=19 // pred_check
        %p117 = pneg %p40
      $region22: #{wgan_generator_forward.7} parent=19 // pred_check_branch
        %119 = sbr.rel (%p117) target = $region24
      $region23: #{wgan_generator_forward.7} parent=19 // pred_region
        %p120 = scmp.lt.s32.totalorder %s15, 1
        %s121 = scalar_select %p120, %s15, 1
        %s122 = smul.addr %s121, 54
        %s123 = smul.addr %s122, 4
        %s124 = scalar_lea.vmem %s0, %s123
      $region24: #{wgan_generator_forward.7} parent=19 // pred_fallthru
        _
    $region20: #{wgan_generator_forward.7} parent=5 // pred_fallthru
      _
    %p125 = scmp.le.s32.totalorder 1, %s8
    %p126 = scmp.lt.s32.totalorder %s8, 5
    %p127 = pnand %p125, %p126
    %p128 = pneg %p127
    // Predicated region
    $region25: #{wgan_generator_forward.7} parent=5 // pred_check
      _
    $region26: #{wgan_generator_forward.7} parent=5 // pred_check_branch
      %130 = sbr.rel (%p127) target = $region28
    $region27: #{wgan_generator_forward.7} parent=5 // pred_region
      %s131 = ssub.s32 %s8, 1
      %p132 = scmp.lt.s32.totalorder %s17, 1
      %s133 = scalar_select %p132, %s17, 1
      %s134 = smul.addr %s133, 54
      %s135 = smul.addr %s134, 4
      %s136 = scalar_lea.vmem %s0, %s135
      %p137 = pneg %p46
      %p138 = pneg %p43
      %p139 = pneg %p67
      %p140 = pneg %p64
      %p141 = pneg %p95
      %p142 = pneg %p92
      %s143 = smul.u32 8, %s18
      %p144 = scmp.lt.s32.totalorder %s17, 1
      %s145 = scalar_select %p144, %s17, 1
      %p146 = scmp.lt.s32.totalorder %s143, 15
      %s147 = scalar_select %p146, %s143, 15
      %s148 = smul.addr %s147, 8
      %s149 = smul.addr %s145, 128
      %s150 = sadd.s32 %s148, %s149
      %s151 = smul.addr %s150, 8
      %s152 = scalar_lea.vmem %s2, %s151
      %p153 = scmp.lt.s32.totalorder %s17, 1
      %s154 = scalar_select %p153, %s17, 1
      %s155 = smul.addr %s154, 54
      %s156 = smul.addr %s155, 4
      %s157 = scalar_lea.vmem %s0, %s156
      %s158 = smul.u32 8, %s18
      %p159 = scmp.lt.s32.totalorder %s17, 1
      %s160 = scalar_select %p159, %s17, 1
      %p161 = scmp.lt.s32.totalorder %s158, 15
      %s162 = scalar_select %p161, %s158, 15
      %s163 = smul.addr %s162, 8
      %s164 = smul.addr %s160, 128
      %s165 = sadd.s32 %s163, %s164
      %s166 = smul.addr %s165, 8
      %s167 = scalar_lea.vmem %s2, %s166
      %s168 = smul.u32 8, %s18
      %s170 = smul.u32 %s18, 8
      loop: start=0, step=1, limit=8
      $region29: #{wgan_generator_forward.7} parent=27 // loop_pre_header
        _
      $region30: #{wgan_generator_forward.7} parent=27 // loop_header
        %s172 = sphi 0, %s176
        %p173 = scmp.ge.s32.totalorder %s172, 8
      $region31: #{wgan_generator_forward.7} parent=27 // loop_header_branch
        %175 = sbr.rel (%p173) target = $region35
      $region32: #{wgan_generator_forward.7} parent=27 // loop_body
        %s177 = sadd.s32 %s170, %s172
        %s178 = smul.u32 %s177, 3
        %s179 = smul.addr %s178, 4
        %s180 = scalar_lea.vmem %s157, %s179
        %v181 = vld [vmem:[%s180] sm:$0xf]
        %v182 = vld [vmem:[%s180 + $0x4] sm:$0xf]
        %v183 = vld [vmem:[%s180 + $0x8] sm:$0x1]
        %v184 = vld [vmem:[%s180] sm:$0xe]
        %s185 = sadd.s32 %s177, 1
        %s186 = smul.u32 %s185, 3
        %s187 = smul.addr %s186, 4
        %s188 = scalar_lea.vmem %s157, %s187
        %v189 = vld [vmem:[%s188] sm:$0xf]
        %v190 = vld [vmem:[%s188 + $0x4] sm:$0xf]
        %v191 = vld [vmem:[%s188 + $0x8] sm:$0x1]
        %v192 = vld [vmem:[%s188] sm:$0xe]
        %s193 = sadd.s32 %s177, 2
        %s194 = smul.u32 %s193, 3
        %s195 = smul.addr %s194, 4
        %s196 = scalar_lea.vmem %s157, %s195
        %v197 = vld [vmem:[%s196] sm:$0xf]
        %v198 = vld [vmem:[%s196 + $0x4] sm:$0xf]
        %v199 = vld [vmem:[%s196 + $0x8] sm:$0x1]
        %v200 = vld [vmem:[%s196] sm:$0xe]
        %v201 = vld [vmem:[%s1] sm:$0xf]
        %v202 = vld [vmem:[%s1 + $0x4] sm:$0xf]
        %v203 = vld [vmem:[%s1 + $0x8] sm:$0xf]
        %v204 = vld [vmem:[%s1 + $0xc] sm:$0xf]
        %s205 = scalar_lea.vmem %s1, 16
        %v206 = vld [vmem:[%s205] sm:$0xf]
        %v207 = vld [vmem:[%s205 + $0x4] sm:$0xf]
        %v208 = vld [vmem:[%s205 + $0x8] sm:$0xf]
        %v209 = vld [vmem:[%s205 + $0xc] sm:$0xf]
        %v213 = vunpack.c.l.b16 %v181
        %v214 = vunpack.c.l.b16 %v182
        %v215 = vunpack.c.l.b16 %v183
        %v216 = vpack.c.b16 %v214, %v213
        %v217 = vpack.c.b16 %v215, %v215
        %vm218 = vsmask.f32 7424
        %v220 = vshrl.u32 %v216, 16
        %v222 = vshll.u32 %v216, 16
        %v224 = vrot.slane %v222, 1
        %v225 = vor.u32 %v220, %v224
        %v227 = vshll.u32 %v217, 16
        %v229 = vrot.slane %v227, 1
        %v230 = vsel %vm218, %v225, %v229
        %v235 = vunpack.c.l.b16 %v206
        %v236 = vunpack.c.l.b16 %v207
        %v237 = vunpack.c.l.b16 %v208
        %v238 = vunpack.c.l.b16 %v209
        %v239 = vpack.c.b16 %v236, %v235
        %v240 = vpack.c.b16 %v238, %v237
        %vm243 = vcmask 261120
        %v245 = vsel %vm243, %v230, 0
        %247 = vmatprep.subr.bf16.mxu0 0
        %248 = vmatpush1.bf16.msra.mxu0 0
        %249 = vmatprep.subr.bf16.mxu0 0
        %250 = vmatpush1.bf16.msra.mxu0 0
        %251 = vmatprep.subr.bf16.mxu0 0
        %252 = vmatpush1.bf16.msra.mxu0 0
        %253 = vmatprep.subr.bf16.mxu0 0
        %254 = vmatpush1.bf16.msra.mxu0 0
        %255 = vmatprep.subr.bf16.mxu0 0
        %256 = vmatpush1.bf16.msra.mxu0 0
        %257 = vmatprep.subr.bf16.mxu0 0
        %258 = vmatpush1.bf16.msra.mxu0 0
        %259 = vmatprep.subr.bf16.mxu0 0
        %260 = vmatpush1.bf16.msra.mxu0 %v240
        %261 = vmatprep.subr.bf16.mxu0 0
        %262 = vmatpush1.bf16.msra.mxu0 %v239
        %263 = vmatprep.subr.bf16.mxu0 0
        %264 = vmatpush2.bf16.msra.mxu0 0
        %265 = vmatprep.subr.bf16.mxu0 0
        %266 = vmatpush2.bf16.msra.mxu0 0
        %267 = vmatprep.subr.bf16.mxu0 0
        %268 = vmatpush2.bf16.msra.mxu0 0
        %269 = vmatprep.subr.bf16.mxu0 0
        %270 = vmatpush2.bf16.msra.mxu0 0
        %271 = vmatprep.subr.bf16.mxu0 0
        %272 = vmatpush2.bf16.msra.mxu0 0
        %273 = vmatprep.subr.bf16.mxu0 0
        %274 = vmatpush2.bf16.msra.mxu0 0
        %275 = vmatprep.subr.bf16.mxu0 0
        %276 = vmatpush2.bf16.msra.mxu0 0
        %277 = vmatprep.subr.bf16.mxu0 0
        %278 = vmatpush2.bf16.msra.mxu0 0
        %279 = vmatprep.mubr.bf16.mxu0 0
        %280 = vmatmul.mubr.bf16.gmra.mxu0 %v245
        %v281 = vpop.f32.mrf.mxu0
        %v282 = vadd.f32 0.0, %v281
        %v283 = vpop.f32.mrf.mxu0
        %v284 = vpop.f32.mrf.mxu0
        %v285 = vadd.f32 0.0, %v284
        %v286 = vpop.f32.mrf.mxu0
        %287 = vdwg.mxu0
        %v292 = vunpack.c.l.b16 %v201
        %v293 = vunpack.c.l.b16 %v202
        %v294 = vunpack.c.l.b16 %v203
        %v295 = vunpack.c.l.b16 %v204
        %v296 = vpack.c.b16 %v293, %v292
        %v297 = vpack.c.b16 %v295, %v294
        %v300 = vsel %vm243, %v216, 0
        %302 = vmatprep.subr.bf16.mxu0 0
        %303 = vmatpush1.bf16.msra.mxu0 0
        %304 = vmatprep.subr.bf16.mxu0 0
        %305 = vmatpush1.bf16.msra.mxu0 0
        %306 = vmatprep.subr.bf16.mxu0 0
        %307 = vmatpush1.bf16.msra.mxu0 0
        %308 = vmatprep.subr.bf16.mxu0 0
        %309 = vmatpush1.bf16.msra.mxu0 0
        %310 = vmatprep.subr.bf16.mxu0 0
        %311 = vmatpush1.bf16.msra.mxu0 0
        %312 = vmatprep.subr.bf16.mxu0 0
        %313 = vmatpush1.bf16.msra.mxu0 0
        %314 = vmatprep.subr.bf16.mxu0 0
        %315 = vmatpush1.bf16.msra.mxu0 %v297
        %316 = vmatprep.subr.bf16.mxu0 0
        %317 = vmatpush1.bf16.msra.mxu0 %v296
        %318 = vmatprep.subr.bf16.mxu0 0
        %319 = vmatpush2.bf16.msra.mxu0 0
        %320 = vmatprep.subr.bf16.mxu0 0
        %321 = vmatpush2.bf16.msra.mxu0 0
        %322 = vmatprep.subr.bf16.mxu0 0
        %323 = vmatpush2.bf16.msra.mxu0 0
        %324 = vmatprep.subr.bf16.mxu0 0
        %325 = vmatpush2.bf16.msra.mxu0 0
        %326 = vmatprep.subr.bf16.mxu0 0
        %327 = vmatpush2.bf16.msra.mxu0 0
        %328 = vmatprep.subr.bf16.mxu0 0
        %329 = vmatpush2.bf16.msra.mxu0 0
        %330 = vmatprep.subr.bf16.mxu0 0
        %331 = vmatpush2.bf16.msra.mxu0 0
        %332 = vmatprep.subr.bf16.mxu0 0
        %333 = vmatpush2.bf16.msra.mxu0 0
        %334 = vmatprep.mubr.bf16.mxu0 0
        %335 = vmatmul.mubr.bf16.gmra.mxu0 %v300
        %v336 = vpop.f32.mrf.mxu0
        %v337 = vadd.f32 %v282, %v336
        %v338 = vpop.f32.mrf.mxu0
        %v339 = vpop.f32.mrf.mxu0
        %v340 = vadd.f32 %v285, %v339
        %v341 = vpop.f32.mrf.mxu0
        %342 = vdwg.mxu0
        %s343 = scalar_lea.vmem %s1, 32
        %v344 = vld [vmem:[%s343] sm:$0xf]
        %v345 = vld [vmem:[%s343 + $0x4] sm:$0xf]
        %v346 = vld [vmem:[%s343 + $0x8] sm:$0xf]
        %v347 = vld [vmem:[%s343 + $0xc] sm:$0xf]
        %v350 = vunpack.c.l.b16 %v189
        %v351 = vunpack.c.l.b16 %v190
        %v352 = vpack.c.b16 %v351, %v350
        %v357 = vunpack.c.l.b16 %v344
        %v358 = vunpack.c.l.b16 %v345
        %v359 = vunpack.c.l.b16 %v346
        %v360 = vunpack.c.l.b16 %v347
        %v361 = vpack.c.b16 %v358, %v357
        %v362 = vpack.c.b16 %v360, %v359
        %v366 = vsel %vm243, %v352, 0
        %368 = vmatprep.subr.bf16.mxu0 0
        %369 = vmatpush1.bf16.msra.mxu0 0
        %370 = vmatprep.subr.bf16.mxu0 0
        %371 = vmatpush1.bf16.msra.mxu0 0
        %372 = vmatprep.subr.bf16.mxu0 0
        %373 = vmatpush1.bf16.msra.mxu0 0
        %374 = vmatprep.subr.bf16.mxu0 0
        %375 = vmatpush1.bf16.msra.mxu0 0
        %376 = vmatprep.subr.bf16.mxu0 0
        %377 = vmatpush1.bf16.msra.mxu0 0
        %378 = vmatprep.subr.bf16.mxu0 0
        %379 = vmatpush1.bf16.msra.mxu0 0
        %380 = vmatprep.subr.bf16.mxu0 0
        %381 = vmatpush1.bf16.msra.mxu0 %v362
        %382 = vmatprep.subr.bf16.mxu0 0
        %383 = vmatpush1.bf16.msra.mxu0 %v361
        %384 = vmatprep.subr.bf16.mxu0 0
        %385 = vmatpush2.bf16.msra.mxu0 0
        %386 = vmatprep.subr.bf16.mxu0 0
        %387 = vmatpush2.bf16.msra.mxu0 0
        %388 = vmatprep.subr.bf16.mxu0 0
        %389 = vmatpush2.bf16.msra.mxu0 0
        %390 = vmatprep.subr.bf16.mxu0 0
        %391 = vmatpush2.bf16.msra.mxu0 0
        %392 = vmatprep.subr.bf16.mxu0 0
        %393 = vmatpush2.bf16.msra.mxu0 0
        %394 = vmatprep.subr.bf16.mxu0 0
        %395 = vmatpush2.bf16.msra.mxu0 0
        %396 = vmatprep.subr.bf16.mxu0 0
        %397 = vmatpush2.bf16.msra.mxu0 0
        %398 = vmatprep.subr.bf16.mxu0 0
        %399 = vmatpush2.bf16.msra.mxu0 0
        %400 = vmatprep.mubr.bf16.mxu0 0
        %401 = vmatmul.mubr.bf16.gmra.mxu0 %v366
        %v402 = vpop.f32.mrf.mxu0
        %v403 = vadd.f32 0.0, %v402
        %v404 = vpop.f32.mrf.mxu0
        %v405 = vpop.f32.mrf.mxu0
        %v406 = vadd.f32 0.0, %v405
        %v407 = vpop.f32.mrf.mxu0
        %408 = vdwg.mxu0
        %v409 = vadd.f32 %v337, %v403
        %v410 = vadd.f32 %v340, %v406
        %s411 = scalar_lea.vmem %s1, 48
        %v412 = vld [vmem:[%s411] sm:$0xf]
        %v413 = vld [vmem:[%s411 + $0x4] sm:$0xf]
        %v414 = vld [vmem:[%s411 + $0x8] sm:$0xf]
        %v415 = vld [vmem:[%s411 + $0xc] sm:$0xf]
        %v417 = vunpack.c.l.b16 %v191
        %v418 = vpack.c.b16 %v417, %v417
        %v419 = vshrl.u32 %v352, 16
        %v421 = vshll.u32 %v352, 16
        %v423 = vrot.slane %v421, 1
        %v424 = vor.u32 %v419, %v423
        %v426 = vshll.u32 %v418, 16
        %v428 = vrot.slane %v426, 1
        %v429 = vsel %vm218, %v424, %v428
        %v434 = vunpack.c.l.b16 %v412
        %v435 = vunpack.c.l.b16 %v413
        %v436 = vunpack.c.l.b16 %v414
        %v437 = vunpack.c.l.b16 %v415
        %v438 = vpack.c.b16 %v435, %v434
        %v439 = vpack.c.b16 %v437, %v436
        %v443 = vsel %vm243, %v429, 0
        %445 = vmatprep.subr.bf16.mxu0 0
        %446 = vmatpush1.bf16.msra.mxu0 0
        %447 = vmatprep.subr.bf16.mxu0 0
        %448 = vmatpush1.bf16.msra.mxu0 0
        %449 = vmatprep.subr.bf16.mxu0 0
        %450 = vmatpush1.bf16.msra.mxu0 0
        %451 = vmatprep.subr.bf16.mxu0 0
        %452 = vmatpush1.bf16.msra.mxu0 0
        %453 = vmatprep.subr.bf16.mxu0 0
        %454 = vmatpush1.bf16.msra.mxu0 0
        %455 = vmatprep.subr.bf16.mxu0 0
        %456 = vmatpush1.bf16.msra.mxu0 0
        %457 = vmatprep.subr.bf16.mxu0 0
        %458 = vmatpush1.bf16.msra.mxu0 %v439
        %459 = vmatprep.subr.bf16.mxu0 0
        %460 = vmatpush1.bf16.msra.mxu0 %v438
        %461 = vmatprep.subr.bf16.mxu0 0
        %462 = vmatpush2.bf16.msra.mxu0 0
        %463 = vmatprep.subr.bf16.mxu0 0
        %464 = vmatpush2.bf16.msra.mxu0 0
        %465 = vmatprep.subr.bf16.mxu0 0
        %466 = vmatpush2.bf16.msra.mxu0 0
        %467 = vmatprep.subr.bf16.mxu0 0
        %468 = vmatpush2.bf16.msra.mxu0 0
        %469 = vmatprep.subr.bf16.mxu0 0
        %470 = vmatpush2.bf16.msra.mxu0 0
        %471 = vmatprep.subr.bf16.mxu0 0
        %472 = vmatpush2.bf16.msra.mxu0 0
        %473 = vmatprep.subr.bf16.mxu0 0
        %474 = vmatpush2.bf16.msra.mxu0 0
        %475 = vmatprep.subr.bf16.mxu0 0
        %476 = vmatpush2.bf16.msra.mxu0 0
        %477 = vmatprep.mubr.bf16.mxu0 0
        %478 = vmatmul.mubr.bf16.gmra.mxu0 %v443
        %v479 = vpop.f32.mrf.mxu0
        %v480 = vadd.f32 0.0, %v479
        %v481 = vpop.f32.mrf.mxu0
        %v482 = vpop.f32.mrf.mxu0
        %v483 = vadd.f32 0.0, %v482
        %v484 = vpop.f32.mrf.mxu0
        %485 = vdwg.mxu0
        %v486 = vadd.f32 %v409, %v480
        %v487 = vadd.f32 %v410, %v483
        %v488 = vtanh.pop %v486
        %v489 = vtanh.pop %v487
        %s490 = smul.u32 %s172, 8
        %s491 = smul.addr %s490, 8
        %s492 = scalar_lea.vmem %s167, %s491
        %493 = vst [vmem:[%s492] sm:$0xff] %v488
        %494 = vst [vmem:[%s492 + $0x20] sm:$0xff] %v489
        %s495 = scalar_lea.vmem %s1, 64
        %v496 = vld [vmem:[%s495] sm:$0xf]
        %v497 = vld [vmem:[%s495 + $0x4] sm:$0xf]
        %v498 = vld [vmem:[%s495 + $0x8] sm:$0xf]
        %v499 = vld [vmem:[%s495 + $0xc] sm:$0xf]
        %s500 = scalar_lea.vmem %s1, 80
        %v501 = vld [vmem:[%s500] sm:$0xf]
        %v502 = vld [vmem:[%s500 + $0x4] sm:$0xf]
        %v503 = vld [vmem:[%s500 + $0x8] sm:$0xf]
        %v504 = vld [vmem:[%s500 + $0xc] sm:$0xf]
        %v506 = vunpack.c.l.b16 %v184
        %v507 = vpack.c.b16 %v214, %v506
        %vm508 = vcmask 1046528
        %v509 = vrot.slane %v507, 1
        %v510 = vrot.slane %v217, 1
        %v511 = vsel %vm508, %v509, %v510
        %v516 = vunpack.c.l.b16 %v501
        %v517 = vunpack.c.l.b16 %v502
        %v518 = vunpack.c.l.b16 %v503
        %v519 = vunpack.c.l.b16 %v504
        %v520 = vpack.c.b16 %v517, %v516
        %v521 = vpack.c.b16 %v519, %v518
        %v525 = vsel %vm243, %v511, 0
        %527 = vmatprep.subr.bf16.mxu0 0
        %528 = vmatpush1.bf16.msra.mxu0 0
        %529 = vmatprep.subr.bf16.mxu0 0
        %530 = vmatpush1.bf16.msra.mxu0 0
        %531 = vmatprep.subr.bf16.mxu0 0
        %532 = vmatpush1.bf16.msra.mxu0 0
        %533 = vmatprep.subr.bf16.mxu0 0
        %534 = vmatpush1.bf16.msra.mxu0 0
        %535 = vmatprep.subr.bf16.mxu0 0
        %536 = vmatpush1.bf16.msra.mxu0 0
        %537 = vmatprep.subr.bf16.mxu0 0
        %538 = vmatpush1.bf16.msra.mxu0 0
        %539 = vmatprep.subr.bf16.mxu0 0
        %540 = vmatpush1.bf16.msra.mxu0 %v521
        %541 = vmatprep.subr.bf16.mxu0 0
        %542 = vmatpush1.bf16.msra.mxu0 %v520
        %543 = vmatprep.subr.bf16.mxu0 0
        %544 = vmatpush2.bf16.msra.mxu0 0
        %545 = vmatprep.subr.bf16.mxu0 0
        %546 = vmatpush2.bf16.msra.mxu0 0
        %547 = vmatprep.subr.bf16.mxu0 0
        %548 = vmatpush2.bf16.msra.mxu0 0
        %549 = vmatprep.subr.bf16.mxu0 0
        %550 = vmatpush2.bf16.msra.mxu0 0
        %551 = vmatprep.subr.bf16.mxu0 0
        %552 = vmatpush2.bf16.msra.mxu0 0
        %553 = vmatprep.subr.bf16.mxu0 0
        %554 = vmatpush2.bf16.msra.mxu0 0
        %555 = vmatprep.subr.bf16.mxu0 0
        %556 = vmatpush2.bf16.msra.mxu0 0
        %557 = vmatprep.subr.bf16.mxu0 0
        %558 = vmatpush2.bf16.msra.mxu0 0
        %559 = vmatprep.mubr.bf16.mxu0 0
        %560 = vmatmul.mubr.bf16.gmra.mxu0 %v525
        %v561 = vpop.f32.mrf.mxu0
        %v562 = vadd.f32 0.0, %v561
        %v563 = vpop.f32.mrf.mxu0
        %v564 = vpop.f32.mrf.mxu0
        %v565 = vadd.f32 0.0, %v564
        %v566 = vpop.f32.mrf.mxu0
        %567 = vdwg.mxu0
        %v572 = vunpack.c.l.b16 %v496
        %v573 = vunpack.c.l.b16 %v497
        %v574 = vunpack.c.l.b16 %v498
        %v575 = vunpack.c.l.b16 %v499
        %v576 = vpack.c.b16 %v573, %v572
        %v577 = vpack.c.b16 %v575, %v574
        %580 = vmatprep.subr.bf16.mxu0 0
        %581 = vmatpush1.bf16.msra.mxu0 0
        %582 = vmatprep.subr.bf16.mxu0 0
        %583 = vmatpush1.bf16.msra.mxu0 0
        %584 = vmatprep.subr.bf16.mxu0 0
        %585 = vmatpush1.bf16.msra.mxu0 0
        %586 = vmatprep.subr.bf16.mxu0 0
        %587 = vmatpush1.bf16.msra.mxu0 0
        %588 = vmatprep.subr.bf16.mxu0 0
        %589 = vmatpush1.bf16.msra.mxu0 0
        %590 = vmatprep.subr.bf16.mxu0 0
        %591 = vmatpush1.bf16.msra.mxu0 0
        %592 = vmatprep.subr.bf16.mxu0 0
        %593 = vmatpush1.bf16.msra.mxu0 %v577
        %594 = vmatprep.subr.bf16.mxu0 0
        %595 = vmatpush1.bf16.msra.mxu0 %v576
        %596 = vmatprep.subr.bf16.mxu0 0
        %597 = vmatpush2.bf16.msra.mxu0 0
        %598 = vmatprep.subr.bf16.mxu0 0
        %599 = vmatpush2.bf16.msra.mxu0 0
        %600 = vmatprep.subr.bf16.mxu0 0
        %601 = vmatpush2.bf16.msra.mxu0 0
        %602 = vmatprep.subr.bf16.mxu0 0
        %603 = vmatpush2.bf16.msra.mxu0 0
        %604 = vmatprep.subr.bf16.mxu0 0
        %605 = vmatpush2.bf16.msra.mxu0 0
        %606 = vmatprep.subr.bf16.mxu0 0
        %607 = vmatpush2.bf16.msra.mxu0 0
        %608 = vmatprep.subr.bf16.mxu0 0
        %609 = vmatpush2.bf16.msra.mxu0 0
        %610 = vmatprep.subr.bf16.mxu0 0
        %611 = vmatpush2.bf16.msra.mxu0 0
        %612 = vmatprep.mubr.bf16.mxu0 0
        %613 = vmatmul.mubr.bf16.gmra.mxu0 %v245
        %v614 = vpop.f32.mrf.mxu0
        %v615 = vadd.f32 %v562, %v614
        %v616 = vpop.f32.mrf.mxu0
        %v617 = vpop.f32.mrf.mxu0
        %v618 = vadd.f32 %v565, %v617
        %v619 = vpop.f32.mrf.mxu0
        %620 = vdwg.mxu0
        %s621 = scalar_lea.vmem %s1, 96
        %v622 = vld [vmem:[%s621] sm:$0xf]
        %v623 = vld [vmem:[%s621 + $0x4] sm:$0xf]
        %v624 = vld [vmem:[%s621 + $0x8] sm:$0xf]
        %v625 = vld [vmem:[%s621 + $0xc] sm:$0xf]
        %v630 = vunpack.c.l.b16 %v622
        %v631 = vunpack.c.l.b16 %v623
        %v632 = vunpack.c.l.b16 %v624
        %v633 = vunpack.c.l.b16 %v625
        %v634 = vpack.c.b16 %v631, %v630
        %v635 = vpack.c.b16 %v633, %v632
        %638 = vmatprep.subr.bf16.mxu0 0
        %639 = vmatpush1.bf16.msra.mxu0 0
        %640 = vmatprep.subr.bf16.mxu0 0
        %641 = vmatpush1.bf16.msra.mxu0 0
        %642 = vmatprep.subr.bf16.mxu0 0
        %643 = vmatpush1.bf16.msra.mxu0 0
        %644 = vmatprep.subr.bf16.mxu0 0
        %645 = vmatpush1.bf16.msra.mxu0 0
        %646 = vmatprep.subr.bf16.mxu0 0
        %647 = vmatpush1.bf16.msra.mxu0 0
        %648 = vmatprep.subr.bf16.mxu0 0
        %649 = vmatpush1.bf16.msra.mxu0 0
        %650 = vmatprep.subr.bf16.mxu0 0
        %651 = vmatpush1.bf16.msra.mxu0 %v635
        %652 = vmatprep.subr.bf16.mxu0 0
        %653 = vmatpush1.bf16.msra.mxu0 %v634
        %654 = vmatprep.subr.bf16.mxu0 0
        %655 = vmatpush2.bf16.msra.mxu0 0
        %656 = vmatprep.subr.bf16.mxu0 0
        %657 = vmatpush2.bf16.msra.mxu0 0
        %658 = vmatprep.subr.bf16.mxu0 0
        %659 = vmatpush2.bf16.msra.mxu0 0
        %660 = vmatprep.subr.bf16.mxu0 0
        %661 = vmatpush2.bf16.msra.mxu0 0
        %662 = vmatprep.subr.bf16.mxu0 0
        %663 = vmatpush2.bf16.msra.mxu0 0
        %664 = vmatprep.subr.bf16.mxu0 0
        %665 = vmatpush2.bf16.msra.mxu0 0
        %666 = vmatprep.subr.bf16.mxu0 0
        %667 = vmatpush2.bf16.msra.mxu0 0
        %668 = vmatprep.subr.bf16.mxu0 0
        %669 = vmatpush2.bf16.msra.mxu0 0
        %670 = vmatprep.mubr.bf16.mxu0 0
        %671 = vmatmul.mubr.bf16.gmra.mxu0 %v443
        %v672 = vpop.f32.mrf.mxu0
        %v673 = vadd.f32 0.0, %v672
        %v674 = vpop.f32.mrf.mxu0
        %v675 = vpop.f32.mrf.mxu0
        %v676 = vadd.f32 0.0, %v675
        %v677 = vpop.f32.mrf.mxu0
        %678 = vdwg.mxu0
        %v679 = vadd.f32 %v615, %v673
        %v680 = vadd.f32 %v618, %v676
        %s681 = scalar_lea.vmem %s1, 112
        %v682 = vld [vmem:[%s681] sm:$0xf]
        %v683 = vld [vmem:[%s681 + $0x4] sm:$0xf]
        %v684 = vld [vmem:[%s681 + $0x8] sm:$0xf]
        %v685 = vld [vmem:[%s681 + $0xc] sm:$0xf]
        %v687 = vunpack.c.l.b16 %v192
        %v688 = vpack.c.b16 %v351, %v687
        %v689 = vrot.slane %v688, 1
        %v690 = vrot.slane %v418, 1
        %v691 = vsel %vm508, %v689, %v690
        %v696 = vunpack.c.l.b16 %v682
        %v697 = vunpack.c.l.b16 %v683
        %v698 = vunpack.c.l.b16 %v684
        %v699 = vunpack.c.l.b16 %v685
        %v700 = vpack.c.b16 %v697, %v696
        %v701 = vpack.c.b16 %v699, %v698
        %v705 = vsel %vm243, %v691, 0
        %707 = vmatprep.subr.bf16.mxu0 0
        %708 = vmatpush1.bf16.msra.mxu0 0
        %709 = vmatprep.subr.bf16.mxu0 0
        %710 = vmatpush1.bf16.msra.mxu0 0
        %711 = vmatprep.subr.bf16.mxu0 0
        %712 = vmatpush1.bf16.msra.mxu0 0
        %713 = vmatprep.subr.bf16.mxu0 0
        %714 = vmatpush1.bf16.msra.mxu0 0
        %715 = vmatprep.subr.bf16.mxu0 0
        %716 = vmatpush1.bf16.msra.mxu0 0
        %717 = vmatprep.subr.bf16.mxu0 0
        %718 = vmatpush1.bf16.msra.mxu0 0
        %719 = vmatprep.subr.bf16.mxu0 0
        %720 = vmatpush1.bf16.msra.mxu0 %v701
        %721 = vmatprep.subr.bf16.mxu0 0
        %722 = vmatpush1.bf16.msra.mxu0 %v700
        %723 = vmatprep.subr.bf16.mxu0 0
        %724 = vmatpush2.bf16.msra.mxu0 0
        %725 = vmatprep.subr.bf16.mxu0 0
        %726 = vmatpush2.bf16.msra.mxu0 0
        %727 = vmatprep.subr.bf16.mxu0 0
        %728 = vmatpush2.bf16.msra.mxu0 0
        %729 = vmatprep.subr.bf16.mxu0 0
        %730 = vmatpush2.bf16.msra.mxu0 0
        %731 = vmatprep.subr.bf16.mxu0 0
        %732 = vmatpush2.bf16.msra.mxu0 0
        %733 = vmatprep.subr.bf16.mxu0 0
        %734 = vmatpush2.bf16.msra.mxu0 0
        %735 = vmatprep.subr.bf16.mxu0 0
        %736 = vmatpush2.bf16.msra.mxu0 0
        %737 = vmatprep.subr.bf16.mxu0 0
        %738 = vmatpush2.bf16.msra.mxu0 0
        %739 = vmatprep.mubr.bf16.mxu0 0
        %740 = vmatmul.mubr.bf16.gmra.mxu0 %v705
        %v741 = vpop.f32.mrf.mxu0
        %v742 = vadd.f32 0.0, %v741
        %v743 = vpop.f32.mrf.mxu0
        %v744 = vpop.f32.mrf.mxu0
        %v745 = vadd.f32 0.0, %v744
        %v746 = vpop.f32.mrf.mxu0
        %747 = vdwg.mxu0
        %v748 = vadd.f32 %v679, %v742
        %v749 = vadd.f32 %v680, %v745
        %v750 = vtanh.pop %v748
        %v751 = vtanh.pop %v749
        %752 = vst [vmem:[%s492 + $0x8] sm:$0xff] %v750
        %753 = vst [vmem:[%s492 + $0x28] sm:$0xff] %v751
        %s754 = scalar_lea.vmem %s1, 128
        %v755 = vld [vmem:[%s754] sm:$0xf]
        %v756 = vld [vmem:[%s754 + $0x4] sm:$0xf]
        %v757 = vld [vmem:[%s754 + $0x8] sm:$0xf]
        %v758 = vld [vmem:[%s754 + $0xc] sm:$0xf]
        %s759 = scalar_lea.vmem %s1, 144
        %v760 = vld [vmem:[%s759] sm:$0xf]
        %v761 = vld [vmem:[%s759 + $0x4] sm:$0xf]
        %v762 = vld [vmem:[%s759 + $0x8] sm:$0xf]
        %v763 = vld [vmem:[%s759 + $0xc] sm:$0xf]
        %v768 = vunpack.c.l.b16 %v760
        %v769 = vunpack.c.l.b16 %v761
        %v770 = vunpack.c.l.b16 %v762
        %v771 = vunpack.c.l.b16 %v763
        %v772 = vpack.c.b16 %v769, %v768
        %v773 = vpack.c.b16 %v771, %v770
        %776 = vmatprep.subr.bf16.mxu0 0
        %777 = vmatpush1.bf16.msra.mxu0 0
        %778 = vmatprep.subr.bf16.mxu0 0
        %779 = vmatpush1.bf16.msra.mxu0 0
        %780 = vmatprep.subr.bf16.mxu0 0
        %781 = vmatpush1.bf16.msra.mxu0 0
        %782 = vmatprep.subr.bf16.mxu0 0
        %783 = vmatpush1.bf16.msra.mxu0 0
        %784 = vmatprep.subr.bf16.mxu0 0
        %785 = vmatpush1.bf16.msra.mxu0 0
        %786 = vmatprep.subr.bf16.mxu0 0
        %787 = vmatpush1.bf16.msra.mxu0 0
        %788 = vmatprep.subr.bf16.mxu0 0
        %789 = vmatpush1.bf16.msra.mxu0 %v773
        %790 = vmatprep.subr.bf16.mxu0 0
        %791 = vmatpush1.bf16.msra.mxu0 %v772
        %792 = vmatprep.subr.bf16.mxu0 0
        %793 = vmatpush2.bf16.msra.mxu0 0
        %794 = vmatprep.subr.bf16.mxu0 0
        %795 = vmatpush2.bf16.msra.mxu0 0
        %796 = vmatprep.subr.bf16.mxu0 0
        %797 = vmatpush2.bf16.msra.mxu0 0
        %798 = vmatprep.subr.bf16.mxu0 0
        %799 = vmatpush2.bf16.msra.mxu0 0
        %800 = vmatprep.subr.bf16.mxu0 0
        %801 = vmatpush2.bf16.msra.mxu0 0
        %802 = vmatprep.subr.bf16.mxu0 0
        %803 = vmatpush2.bf16.msra.mxu0 0
        %804 = vmatprep.subr.bf16.mxu0 0
        %805 = vmatpush2.bf16.msra.mxu0 0
        %806 = vmatprep.subr.bf16.mxu0 0
        %807 = vmatpush2.bf16.msra.mxu0 0
        %808 = vmatprep.mubr.bf16.mxu0 0
        %809 = vmatmul.mubr.bf16.gmra.mxu0 %v443
        %v810 = vpop.f32.mrf.mxu0
        %v811 = vadd.f32 0.0, %v810
        %v812 = vpop.f32.mrf.mxu0
        %v813 = vpop.f32.mrf.mxu0
        %v814 = vadd.f32 0.0, %v813
        %v815 = vpop.f32.mrf.mxu0
        %816 = vdwg.mxu0
        %v821 = vunpack.c.l.b16 %v755
        %v822 = vunpack.c.l.b16 %v756
        %v823 = vunpack.c.l.b16 %v757
        %v824 = vunpack.c.l.b16 %v758
        %v825 = vpack.c.b16 %v822, %v821
        %v826 = vpack.c.b16 %v824, %v823
        %829 = vmatprep.subr.bf16.mxu0 0
        %830 = vmatpush1.bf16.msra.mxu0 0
        %831 = vmatprep.subr.bf16.mxu0 0
        %832 = vmatpush1.bf16.msra.mxu0 0
        %833 = vmatprep.subr.bf16.mxu0 0
        %834 = vmatpush1.bf16.msra.mxu0 0
        %835 = vmatprep.subr.bf16.mxu0 0
        %836 = vmatpush1.bf16.msra.mxu0 0
        %837 = vmatprep.subr.bf16.mxu0 0
        %838 = vmatpush1.bf16.msra.mxu0 0
        %839 = vmatprep.subr.bf16.mxu0 0
        %840 = vmatpush1.bf16.msra.mxu0 0
        %841 = vmatprep.subr.bf16.mxu0 0
        %842 = vmatpush1.bf16.msra.mxu0 %v826
        %843 = vmatprep.subr.bf16.mxu0 0
        %844 = vmatpush1.bf16.msra.mxu0 %v825
        %845 = vmatprep.subr.bf16.mxu0 0
        %846 = vmatpush2.bf16.msra.mxu0 0
        %847 = vmatprep.subr.bf16.mxu0 0
        %848 = vmatpush2.bf16.msra.mxu0 0
        %849 = vmatprep.subr.bf16.mxu0 0
        %850 = vmatpush2.bf16.msra.mxu0 0
        %851 = vmatprep.subr.bf16.mxu0 0
        %852 = vmatpush2.bf16.msra.mxu0 0
        %853 = vmatprep.subr.bf16.mxu0 0
        %854 = vmatpush2.bf16.msra.mxu0 0
        %855 = vmatprep.subr.bf16.mxu0 0
        %856 = vmatpush2.bf16.msra.mxu0 0
        %857 = vmatprep.subr.bf16.mxu0 0
        %858 = vmatpush2.bf16.msra.mxu0 0
        %859 = vmatprep.subr.bf16.mxu0 0
        %860 = vmatpush2.bf16.msra.mxu0 0
        %861 = vmatprep.mubr.bf16.mxu0 0
        %862 = vmatmul.mubr.bf16.gmra.mxu0 %v366
        %v863 = vpop.f32.mrf.mxu0
        %v864 = vadd.f32 %v811, %v863
        %v865 = vpop.f32.mrf.mxu0
        %v866 = vpop.f32.mrf.mxu0
        %v867 = vadd.f32 %v814, %v866
        %v868 = vpop.f32.mrf.mxu0
        %869 = vdwg.mxu0
        %s870 = scalar_lea.vmem %s1, 160
        %v871 = vld [vmem:[%s870] sm:$0xf]
        %v872 = vld [vmem:[%s870 + $0x4] sm:$0xf]
        %v873 = vld [vmem:[%s870 + $0x8] sm:$0xf]
        %v874 = vld [vmem:[%s870 + $0xc] sm:$0xf]
        %v877 = vunpack.c.l.b16 %v197
        %v878 = vunpack.c.l.b16 %v198
        %v879 = vpack.c.b16 %v878, %v877
        %v884 = vunpack.c.l.b16 %v871
        %v885 = vunpack.c.l.b16 %v872
        %v886 = vunpack.c.l.b16 %v873
        %v887 = vunpack.c.l.b16 %v874
        %v888 = vpack.c.b16 %v885, %v884
        %v889 = vpack.c.b16 %v887, %v886
        %v893 = vsel %vm243, %v879, 0
        %895 = vmatprep.subr.bf16.mxu0 0
        %896 = vmatpush1.bf16.msra.mxu0 0
        %897 = vmatprep.subr.bf16.mxu0 0
        %898 = vmatpush1.bf16.msra.mxu0 0
        %899 = vmatprep.subr.bf16.mxu0 0
        %900 = vmatpush1.bf16.msra.mxu0 0
        %901 = vmatprep.subr.bf16.mxu0 0
        %902 = vmatpush1.bf16.msra.mxu0 0
        %903 = vmatprep.subr.bf16.mxu0 0
        %904 = vmatpush1.bf16.msra.mxu0 0
        %905 = vmatprep.subr.bf16.mxu0 0
        %906 = vmatpush1.bf16.msra.mxu0 0
        %907 = vmatprep.subr.bf16.mxu0 0
        %908 = vmatpush1.bf16.msra.mxu0 %v889
        %909 = vmatprep.subr.bf16.mxu0 0
        %910 = vmatpush1.bf16.msra.mxu0 %v888
        %911 = vmatprep.subr.bf16.mxu0 0
        %912 = vmatpush2.bf16.msra.mxu0 0
        %913 = vmatprep.subr.bf16.mxu0 0
        %914 = vmatpush2.bf16.msra.mxu0 0
        %915 = vmatprep.subr.bf16.mxu0 0
        %916 = vmatpush2.bf16.msra.mxu0 0
        %917 = vmatprep.subr.bf16.mxu0 0
        %918 = vmatpush2.bf16.msra.mxu0 0
        %919 = vmatprep.subr.bf16.mxu0 0
        %920 = vmatpush2.bf16.msra.mxu0 0
        %921 = vmatprep.subr.bf16.mxu0 0
        %922 = vmatpush2.bf16.msra.mxu0 0
        %923 = vmatprep.subr.bf16.mxu0 0
        %924 = vmatpush2.bf16.msra.mxu0 0
        %925 = vmatprep.subr.bf16.mxu0 0
        %926 = vmatpush2.bf16.msra.mxu0 0
        %927 = vmatprep.mubr.bf16.mxu0 0
        %928 = vmatmul.mubr.bf16.gmra.mxu0 %v893
        %v929 = vpop.f32.mrf.mxu0
        %v930 = vadd.f32 0.0, %v929
        %v931 = vpop.f32.mrf.mxu0
        %v932 = vpop.f32.mrf.mxu0
        %v933 = vadd.f32 0.0, %v932
        %v934 = vpop.f32.mrf.mxu0
        %935 = vdwg.mxu0
        %v936 = vadd.f32 %v864, %v930
        %v937 = vadd.f32 %v867, %v933
        %s938 = scalar_lea.vmem %s1, 176
        %v939 = vld [vmem:[%s938] sm:$0xf]
        %v940 = vld [vmem:[%s938 + $0x4] sm:$0xf]
        %v941 = vld [vmem:[%s938 + $0x8] sm:$0xf]
        %v942 = vld [vmem:[%s938 + $0xc] sm:$0xf]
        %v944 = vunpack.c.l.b16 %v199
        %v945 = vpack.c.b16 %v944, %v944
        %v946 = vshrl.u32 %v879, 16
        %v948 = vshll.u32 %v879, 16
        %v950 = vrot.slane %v948, 1
        %v951 = vor.u32 %v946, %v950
        %v953 = vshll.u32 %v945, 16
        %v955 = vrot.slane %v953, 1
        %v956 = vsel %vm218, %v951, %v955
        %v961 = vunpack.c.l.b16 %v939
        %v962 = vunpack.c.l.b16 %v940
        %v963 = vunpack.c.l.b16 %v941
        %v964 = vunpack.c.l.b16 %v942
        %v965 = vpack.c.b16 %v962, %v961
        %v966 = vpack.c.b16 %v964, %v963
        %v970 = vsel %vm243, %v956, 0
        %972 = vmatprep.subr.bf16.mxu0 0
        %973 = vmatpush1.bf16.msra.mxu0 0
        %974 = vmatprep.subr.bf16.mxu0 0
        %975 = vmatpush1.bf16.msra.mxu0 0
        %976 = vmatprep.subr.bf16.mxu0 0
        %977 = vmatpush1.bf16.msra.mxu0 0
        %978 = vmatprep.subr.bf16.mxu0 0
        %979 = vmatpush1.bf16.msra.mxu0 0
        %980 = vmatprep.subr.bf16.mxu0 0
        %981 = vmatpush1.bf16.msra.mxu0 0
        %982 = vmatprep.subr.bf16.mxu0 0
        %983 = vmatpush1.bf16.msra.mxu0 0
        %984 = vmatprep.subr.bf16.mxu0 0
        %985 = vmatpush1.bf16.msra.mxu0 %v966
        %986 = vmatprep.subr.bf16.mxu0 0
        %987 = vmatpush1.bf16.msra.mxu0 %v965
        %988 = vmatprep.subr.bf16.mxu0 0
        %989 = vmatpush2.bf16.msra.mxu0 0
        %990 = vmatprep.subr.bf16.mxu0 0
        %991 = vmatpush2.bf16.msra.mxu0 0
        %992 = vmatprep.subr.bf16.mxu0 0
        %993 = vmatpush2.bf16.msra.mxu0 0
        %994 = vmatprep.subr.bf16.mxu0 0
        %995 = vmatpush2.bf16.msra.mxu0 0
        %996 = vmatprep.subr.bf16.mxu0 0
        %997 = vmatpush2.bf16.msra.mxu0 0
        %998 = vmatprep.subr.bf16.mxu0 0
        %999 = vmatpush2.bf16.msra.mxu0 0
        %1000 = vmatprep.subr.bf16.mxu0 0
        %1001 = vmatpush2.bf16.msra.mxu0 0
        %1002 = vmatprep.subr.bf16.mxu0 0
        %1003 = vmatpush2.bf16.msra.mxu0 0
        %1004 = vmatprep.mubr.bf16.mxu0 0
        %1005 = vmatmul.mubr.bf16.gmra.mxu0 %v970
        %v1006 = vpop.f32.mrf.mxu0
        %v1007 = vadd.f32 0.0, %v1006
        %v1008 = vpop.f32.mrf.mxu0
        %v1009 = vpop.f32.mrf.mxu0
        %v1010 = vadd.f32 0.0, %v1009
        %v1011 = vpop.f32.mrf.mxu0
        %1012 = vdwg.mxu0
        %v1013 = vadd.f32 %v936, %v1007
        %v1014 = vadd.f32 %v937, %v1010
        %v1015 = vtanh.pop %v1013
        %v1016 = vtanh.pop %v1014
        %1017 = vst [vmem:[%s492 + $0x10] sm:$0xff] %v1015
        %1018 = vst [vmem:[%s492 + $0x30] sm:$0xff] %v1016
        %s1019 = scalar_lea.vmem %s1, 192
        %v1020 = vld [vmem:[%s1019] sm:$0xf]
        %v1021 = vld [vmem:[%s1019 + $0x4] sm:$0xf]
        %v1022 = vld [vmem:[%s1019 + $0x8] sm:$0xf]
        %v1023 = vld [vmem:[%s1019 + $0xc] sm:$0xf]
        %s1024 = scalar_lea.vmem %s1, 208
        %v1025 = vld [vmem:[%s1024] sm:$0xf]
        %v1026 = vld [vmem:[%s1024 + $0x4] sm:$0xf]
        %v1027 = vld [vmem:[%s1024 + $0x8] sm:$0xf]
        %v1028 = vld [vmem:[%s1024 + $0xc] sm:$0xf]
        %v1033 = vunpack.c.l.b16 %v1025
        %v1034 = vunpack.c.l.b16 %v1026
        %v1035 = vunpack.c.l.b16 %v1027
        %v1036 = vunpack.c.l.b16 %v1028
        %v1037 = vpack.c.b16 %v1034, %v1033
        %v1038 = vpack.c.b16 %v1036, %v1035
        %1041 = vmatprep.subr.bf16.mxu0 0
        %1042 = vmatpush1.bf16.msra.mxu0 0
        %1043 = vmatprep.subr.bf16.mxu0 0
        %1044 = vmatpush1.bf16.msra.mxu0 0
        %1045 = vmatprep.subr.bf16.mxu0 0
        %1046 = vmatpush1.bf16.msra.mxu0 0
        %1047 = vmatprep.subr.bf16.mxu0 0
        %1048 = vmatpush1.bf16.msra.mxu0 0
        %1049 = vmatprep.subr.bf16.mxu0 0
        %1050 = vmatpush1.bf16.msra.mxu0 0
        %1051 = vmatprep.subr.bf16.mxu0 0
        %1052 = vmatpush1.bf16.msra.mxu0 0
        %1053 = vmatprep.subr.bf16.mxu0 0
        %1054 = vmatpush1.bf16.msra.mxu0 %v1038
        %1055 = vmatprep.subr.bf16.mxu0 0
        %1056 = vmatpush1.bf16.msra.mxu0 %v1037
        %1057 = vmatprep.subr.bf16.mxu0 0
        %1058 = vmatpush2.bf16.msra.mxu0 0
        %1059 = vmatprep.subr.bf16.mxu0 0
        %1060 = vmatpush2.bf16.msra.mxu0 0
        %1061 = vmatprep.subr.bf16.mxu0 0
        %1062 = vmatpush2.bf16.msra.mxu0 0
        %1063 = vmatprep.subr.bf16.mxu0 0
        %1064 = vmatpush2.bf16.msra.mxu0 0
        %1065 = vmatprep.subr.bf16.mxu0 0
        %1066 = vmatpush2.bf16.msra.mxu0 0
        %1067 = vmatprep.subr.bf16.mxu0 0
        %1068 = vmatpush2.bf16.msra.mxu0 0
        %1069 = vmatprep.subr.bf16.mxu0 0
        %1070 = vmatpush2.bf16.msra.mxu0 0
        %1071 = vmatprep.subr.bf16.mxu0 0
        %1072 = vmatpush2.bf16.msra.mxu0 0
        %1073 = vmatprep.mubr.bf16.mxu0 0
        %1074 = vmatmul.mubr.bf16.gmra.mxu0 %v705
        %v1075 = vpop.f32.mrf.mxu0
        %v1076 = vadd.f32 0.0, %v1075
        %v1077 = vpop.f32.mrf.mxu0
        %v1078 = vpop.f32.mrf.mxu0
        %v1079 = vadd.f32 0.0, %v1078
        %v1080 = vpop.f32.mrf.mxu0
        %1081 = vdwg.mxu0
        %v1086 = vunpack.c.l.b16 %v1020
        %v1087 = vunpack.c.l.b16 %v1021
        %v1088 = vunpack.c.l.b16 %v1022
        %v1089 = vunpack.c.l.b16 %v1023
        %v1090 = vpack.c.b16 %v1087, %v1086
        %v1091 = vpack.c.b16 %v1089, %v1088
        %1094 = vmatprep.subr.bf16.mxu0 0
        %1095 = vmatpush1.bf16.msra.mxu0 0
        %1096 = vmatprep.subr.bf16.mxu0 0
        %1097 = vmatpush1.bf16.msra.mxu0 0
        %1098 = vmatprep.subr.bf16.mxu0 0
        %1099 = vmatpush1.bf16.msra.mxu0 0
        %1100 = vmatprep.subr.bf16.mxu0 0
        %1101 = vmatpush1.bf16.msra.mxu0 0
        %1102 = vmatprep.subr.bf16.mxu0 0
        %1103 = vmatpush1.bf16.msra.mxu0 0
        %1104 = vmatprep.subr.bf16.mxu0 0
        %1105 = vmatpush1.bf16.msra.mxu0 0
        %1106 = vmatprep.subr.bf16.mxu0 0
        %1107 = vmatpush1.bf16.msra.mxu0 %v1091
        %1108 = vmatprep.subr.bf16.mxu0 0
        %1109 = vmatpush1.bf16.msra.mxu0 %v1090
        %1110 = vmatprep.subr.bf16.mxu0 0
        %1111 = vmatpush2.bf16.msra.mxu0 0
        %1112 = vmatprep.subr.bf16.mxu0 0
        %1113 = vmatpush2.bf16.msra.mxu0 0
        %1114 = vmatprep.subr.bf16.mxu0 0
        %1115 = vmatpush2.bf16.msra.mxu0 0
        %1116 = vmatprep.subr.bf16.mxu0 0
        %1117 = vmatpush2.bf16.msra.mxu0 0
        %1118 = vmatprep.subr.bf16.mxu0 0
        %1119 = vmatpush2.bf16.msra.mxu0 0
        %1120 = vmatprep.subr.bf16.mxu0 0
        %1121 = vmatpush2.bf16.msra.mxu0 0
        %1122 = vmatprep.subr.bf16.mxu0 0
        %1123 = vmatpush2.bf16.msra.mxu0 0
        %1124 = vmatprep.subr.bf16.mxu0 0
        %1125 = vmatpush2.bf16.msra.mxu0 0
        %1126 = vmatprep.mubr.bf16.mxu0 0
        %1127 = vmatmul.mubr.bf16.gmra.mxu0 %v443
        %v1128 = vpop.f32.mrf.mxu0
        %v1129 = vadd.f32 %v1076, %v1128
        %v1130 = vpop.f32.mrf.mxu0
        %v1131 = vpop.f32.mrf.mxu0
        %v1132 = vadd.f32 %v1079, %v1131
        %v1133 = vpop.f32.mrf.mxu0
        %1134 = vdwg.mxu0
        %s1135 = scalar_lea.vmem %s1, 224
        %v1136 = vld [vmem:[%s1135] sm:$0xf]
        %v1137 = vld [vmem:[%s1135 + $0x4] sm:$0xf]
        %v1138 = vld [vmem:[%s1135 + $0x8] sm:$0xf]
        %v1139 = vld [vmem:[%s1135 + $0xc] sm:$0xf]
        %v1144 = vunpack.c.l.b16 %v1136
        %v1145 = vunpack.c.l.b16 %v1137
        %v1146 = vunpack.c.l.b16 %v1138
        %v1147 = vunpack.c.l.b16 %v1139
        %v1148 = vpack.c.b16 %v1145, %v1144
        %v1149 = vpack.c.b16 %v1147, %v1146
        %1152 = vmatprep.subr.bf16.mxu0 0
        %1153 = vmatpush1.bf16.msra.mxu0 0
        %1154 = vmatprep.subr.bf16.mxu0 0
        %1155 = vmatpush1.bf16.msra.mxu0 0
        %1156 = vmatprep.subr.bf16.mxu0 0
        %1157 = vmatpush1.bf16.msra.mxu0 0
        %1158 = vmatprep.subr.bf16.mxu0 0
        %1159 = vmatpush1.bf16.msra.mxu0 0
        %1160 = vmatprep.subr.bf16.mxu0 0
        %1161 = vmatpush1.bf16.msra.mxu0 0
        %1162 = vmatprep.subr.bf16.mxu0 0
        %1163 = vmatpush1.bf16.msra.mxu0 0
        %1164 = vmatprep.subr.bf16.mxu0 0
        %1165 = vmatpush1.bf16.msra.mxu0 %v1149
        %1166 = vmatprep.subr.bf16.mxu0 0
        %1167 = vmatpush1.bf16.msra.mxu0 %v1148
        %1168 = vmatprep.subr.bf16.mxu0 0
        %1169 = vmatpush2.bf16.msra.mxu0 0
        %1170 = vmatprep.subr.bf16.mxu0 0
        %1171 = vmatpush2.bf16.msra.mxu0 0
        %1172 = vmatprep.subr.bf16.mxu0 0
        %1173 = vmatpush2.bf16.msra.mxu0 0
        %1174 = vmatprep.subr.bf16.mxu0 0
        %1175 = vmatpush2.bf16.msra.mxu0 0
        %1176 = vmatprep.subr.bf16.mxu0 0
        %1177 = vmatpush2.bf16.msra.mxu0 0
        %1178 = vmatprep.subr.bf16.mxu0 0
        %1179 = vmatpush2.bf16.msra.mxu0 0
        %1180 = vmatprep.subr.bf16.mxu0 0
        %1181 = vmatpush2.bf16.msra.mxu0 0
        %1182 = vmatprep.subr.bf16.mxu0 0
        %1183 = vmatpush2.bf16.msra.mxu0 0
        %1184 = vmatprep.mubr.bf16.mxu0 0
        %1185 = vmatmul.mubr.bf16.gmra.mxu0 %v970
        %v1186 = vpop.f32.mrf.mxu0
        %v1187 = vadd.f32 0.0, %v1186
        %v1188 = vpop.f32.mrf.mxu0
        %v1189 = vpop.f32.mrf.mxu0
        %v1190 = vadd.f32 0.0, %v1189
        %v1191 = vpop.f32.mrf.mxu0
        %1192 = vdwg.mxu0
        %v1193 = vadd.f32 %v1129, %v1187
        %v1194 = vadd.f32 %v1132, %v1190
        %s1195 = scalar_lea.vmem %s1, 240
        %v1196 = vld [vmem:[%s1195] sm:$0xf]
        %v1197 = vld [vmem:[%s1195 + $0x4] sm:$0xf]
        %v1198 = vld [vmem:[%s1195 + $0x8] sm:$0xf]
        %v1199 = vld [vmem:[%s1195 + $0xc] sm:$0xf]
        %v1201 = vunpack.c.l.b16 %v200
        %v1202 = vpack.c.b16 %v878, %v1201
        %v1203 = vrot.slane %v1202, 1
        %v1204 = vrot.slane %v945, 1
        %v1205 = vsel %vm508, %v1203, %v1204
        %v1210 = vunpack.c.l.b16 %v1196
        %v1211 = vunpack.c.l.b16 %v1197
        %v1212 = vunpack.c.l.b16 %v1198
        %v1213 = vunpack.c.l.b16 %v1199
        %v1214 = vpack.c.b16 %v1211, %v1210
        %v1215 = vpack.c.b16 %v1213, %v1212
        %v1219 = vsel %vm243, %v1205, 0
        %1221 = vmatprep.subr.bf16.mxu0 0
        %1222 = vmatpush1.bf16.msra.mxu0 0
        %1223 = vmatprep.subr.bf16.mxu0 0
        %1224 = vmatpush1.bf16.msra.mxu0 0
        %1225 = vmatprep.subr.bf16.mxu0 0
        %1226 = vmatpush1.bf16.msra.mxu0 0
        %1227 = vmatprep.subr.bf16.mxu0 0
        %1228 = vmatpush1.bf16.msra.mxu0 0
        %1229 = vmatprep.subr.bf16.mxu0 0
        %1230 = vmatpush1.bf16.msra.mxu0 0
        %1231 = vmatprep.subr.bf16.mxu0 0
        %1232 = vmatpush1.bf16.msra.mxu0 0
        %1233 = vmatprep.subr.bf16.mxu0 0
        %1234 = vmatpush1.bf16.msra.mxu0 %v1215
        %1235 = vmatprep.subr.bf16.mxu0 0
        %1236 = vmatpush1.bf16.msra.mxu0 %v1214
        %1237 = vmatprep.subr.bf16.mxu0 0
        %1238 = vmatpush2.bf16.msra.mxu0 0
        %1239 = vmatprep.subr.bf16.mxu0 0
        %1240 = vmatpush2.bf16.msra.mxu0 0
        %1241 = vmatprep.subr.bf16.mxu0 0
        %1242 = vmatpush2.bf16.msra.mxu0 0
        %1243 = vmatprep.subr.bf16.mxu0 0
        %1244 = vmatpush2.bf16.msra.mxu0 0
        %1245 = vmatprep.subr.bf16.mxu0 0
        %1246 = vmatpush2.bf16.msra.mxu0 0
        %1247 = vmatprep.subr.bf16.mxu0 0
        %1248 = vmatpush2.bf16.msra.mxu0 0
        %1249 = vmatprep.subr.bf16.mxu0 0
        %1250 = vmatpush2.bf16.msra.mxu0 0
        %1251 = vmatprep.subr.bf16.mxu0 0
        %1252 = vmatpush2.bf16.msra.mxu0 0
        %1253 = vmatprep.mubr.bf16.mxu0 0
        %1254 = vmatmul.mubr.bf16.gmra.mxu0 %v1219
        %v1255 = vpop.f32.mrf.mxu0
        %v1256 = vadd.f32 0.0, %v1255
        %v1257 = vpop.f32.mrf.mxu0
        %v1258 = vpop.f32.mrf.mxu0
        %v1259 = vadd.f32 0.0, %v1258
        %v1260 = vpop.f32.mrf.mxu0
        %1261 = vdwg.mxu0
        %v1262 = vadd.f32 %v1193, %v1256
        %v1263 = vadd.f32 %v1194, %v1259
        %v1264 = vtanh.pop %v1262
        %v1265 = vtanh.pop %v1263
        %1266 = vst [vmem:[%s492 + $0x18] sm:$0xff] %v1264
        %1267 = vst [vmem:[%s492 + $0x38] sm:$0xff] %v1265
      $region33: #{wgan_generator_forward.7} parent=27 // loop_footer
        %s176 = sadd.s32 1, %s172
      $region34: #{wgan_generator_forward.7} parent=27 // loop_footer_branch
        %171 = sbr.rel target = $region30
      $region35: #{wgan_generator_forward.7} parent=27 // loop_exit
        _
      %s1268 = smul.u32 8, %s18
      %p1269 = scmp.lt.s32.totalorder %s17, 1
      %s1270 = scalar_select %p1269, %s17, 1
      %p1271 = scmp.lt.s32.totalorder %s1268, 15
      %s1272 = scalar_select %p1271, %s1268, 15
      %s1273 = smul.addr %s1272, 8
      %s1274 = smul.addr %s1270, 128
      %s1275 = sadd.s32 %s1273, %s1274
      %s1276 = smul.addr %s1275, 8
      %s1277 = scalar_lea.vmem %s2, %s1276
      // Predicated region
      $region36: #{wgan_generator_forward.7} parent=27 // pred_check
        %p1278 = pneg %p92
      $region37: #{wgan_generator_forward.7} parent=27 // pred_check_branch
        %1280 = sbr.rel (%p1278) target = $region39
      $region38: #{wgan_generator_forward.7} parent=27 // pred_region
        %s1281 = smul.u32 8, %s18
      $region39: #{wgan_generator_forward.7} parent=27 // pred_fallthru
        _
    $region28: #{wgan_generator_forward.7} parent=5 // pred_fallthru
      _
    %p1282 = scmp.le.s32.totalorder 2, %s8
    // Predicated region
    $region40: #{wgan_generator_forward.7} parent=5 // pred_check
      %p1283 = pneg %p1282
    $region41: #{wgan_generator_forward.7} parent=5 // pred_check_branch
      %1285 = sbr.rel (%p1283) target = $region43
    $region42: #{wgan_generator_forward.7} parent=5 // pred_region
      %s1286 = ssub.s32 %s8, 2
      // Predicated region
      $region44: #{wgan_generator_forward.7} parent=42 // pred_check
        %p1287 = pneg %p98
      $region45: #{wgan_generator_forward.7} parent=42 // pred_check_branch
        %1289 = sbr.rel (%p1287) target = $region47
      $region46: #{wgan_generator_forward.7} parent=42 // pred_region
        %s1290 = smul.u32 8, %s20
        %p1291 = scmp.lt.s32.totalorder %s19, 1
        %s1292 = scalar_select %p1291, %s19, 1
        %p1293 = scmp.lt.s32.totalorder %s1290, 15
        %s1294 = scalar_select %p1293, %s1290, 15
        %s1295 = smul.addr %s1294, 8
        %s1296 = smul.addr %s1292, 128
        %s1297 = sadd.s32 %s1295, %s1296
        %s1298 = smul.addr %s1297, 8
        %s1299 = scalar_lea.vmem %s2, %s1298
      $region47: #{wgan_generator_forward.7} parent=42 // pred_fallthru
        _
    $region43: #{wgan_generator_forward.7} parent=5 // pred_fallthru
      _
  $region6: #{wgan_generator_forward.7} parent=0 // loop_footer
    %s12 = sadd.s32 1, %s8
  $region7: #{wgan_generator_forward.7} parent=0 // loop_footer_branch
    %7 = sbr.rel target = $region3
  $region8: #{wgan_generator_forward.7} parent=0 // loop_exit
    _

// kernel: wgan_generator_forward.6
$region0: #{wgan_generator_forward.6}
  #allocation0 [shape = 'u32[]', space=smem, size = 0x4, offset = 0x4, fixed_abs, tag = 'smem constant byte address 0x4 - core index']
  #allocation1 [shape = 'u32[144,128]{1,0:T(1,128)}', space=vmem, size = 0x12000, scoped, tag = 'internal scratch']
  %s0 = inlined_call_operand.vmem [shape: bf16[2,10,10,64], index: 0, kind: input, shape index: {}]
  %s1 = inlined_call_operand.vmem [shape: bf16[16,64,128], index: 1, kind: input, shape index: {}]
  %s2 = inlined_call_operand.vmem [shape: bf16[2,8,8,512], index: 2, kind: output, shape index: {0}]
  %s3 = inlined_call_operand.vmem [shape: f32[2,2,1,128], index: 3, kind: output, shape index: {1}]
  %s4 = inlined_call_operand.vmem [shape: f32[2,2,1,128], index: 4, kind: output, shape index: {2}]
  %5 = xla_tuple %s2, %s3, %s4
  %s6 = sld [smem:[#allocation0]]
  $region64: #{wgan_generator_forward.6} parent=0
    _
  %s8 = ssub.s32 1, %s6
  %s9 = scalar_select 0, %s8, %s6
  loop: start=0, step=1, limit=6
  $region2: #{wgan_generator_forward.6} parent=0 // loop_pre_header
    _
  $region3: #{wgan_generator_forward.6} parent=0 // loop_header
    %s11 = sphi 0, %s15
    %p12 = scmp.ge.s32.totalorder %s11, 6
    %s18 = sphi 0, %s30
    %s19 = sphi 0, %s26
    %s20 = sphi 0, %s18
    %s21 = sphi 0, %s19
    %s22 = sphi 0, %s20
    %s23 = sphi 0, %s21
    %s33 = sphi 0, %s35
    %s36 = sphi 0, %s33
    %s37 = sphi 0, %s36
    %s53 = sphi 0, %s37
    %s57 = sphi 0, %s57
    %s59 = sphi 0, %s57
    %s60 = sphi 0, %s59
    %s74 = sphi 0, %s60
    %s82 = sphi 0, %s84
    %s85 = sphi 0, %s82
    %s86 = sphi 0, %s85
    %s102 = sphi 0, %s86
    %s110 = sphi 0, %s112
    %s113 = sphi 0, %s110
    %s114 = sphi 0, %s113
    %s130 = sphi 0, %s114
    %s138 = sphi 0, %s140
    %s141 = sphi 0, %s138
    %s142 = sphi 0, %s141
    %s158 = sphi 0, %s142
  $region4: #{wgan_generator_forward.6} parent=0 // loop_header_branch
    %14 = sbr.rel (%p12) target = $region8
  $region5: #{wgan_generator_forward.6} parent=0 // loop_body
    %s16 = ssub.s32 %s11, 1
    %s17 = ssub.s32 %s11, 2
    %s24 = sadd.s32 1, %s19
    %p25 = scmp.ge.s32.totalorder %s24, 2
    %s26 = scalar_select %p25, 0, %s24
    %s27 = sadd.s32 1, %s18
    %s28 = scalar_select %p25, %s27, %s18
    %p29 = scmp.ge.s32.totalorder %s28, 2
    %s30 = scalar_select %p29, 0, %s28
    %s31 = ssub.s32 %s18, %s30
    %p32 = scmp.eq.s32.totalorder %s31, 0
    %s34 = sadd.s32 %s33, 1
    %s35 = scalar_select %p32, %s33, %s34
    %p38 = pneg %p32
    %p39 = scmp.eq.s32.totalorder %s11, 3
    %p40 = por %p38, %p39
    %p41 = scmp.ne.s32.totalorder %s33, %s36
    %p42 = scmp.eq.s32.totalorder %s11, 0
    %p43 = por %p41, %p42
    %p44 = scmp.ne.s32.totalorder %s33, %s36
    %p45 = scmp.eq.s32.totalorder %s16, 3
    %p46 = por %p44, %p45
    %p47 = scmp.ne.s32.totalorder %s36, %s37
    %p48 = scmp.eq.s32.totalorder %s16, 0
    %p49 = por %p47, %p48
    %p50 = scmp.ne.s32.totalorder %s36, %s37
    %p51 = scmp.eq.s32.totalorder %s17, 3
    %p52 = por %p50, %p51
    %p54 = scmp.ne.s32.totalorder %s37, %s53
    %p55 = scmp.eq.s32.totalorder %s17, 0
    %p56 = por %p54, %p55
    %s58 = sadd.s32 %s57, 1
    %p61 = scmp.eq.s32.totalorder %s11, 3
    %p62 = scmp.ne.s32.totalorder %s57, %s59
    %p63 = scmp.eq.s32.totalorder %s11, 0
    %p64 = por %p62, %p63
    %p65 = scmp.ne.s32.totalorder %s57, %s59
    %p66 = scmp.eq.s32.totalorder %s16, 3
    %p67 = por %p65, %p66
    %p68 = scmp.ne.s32.totalorder %s59, %s60
    %p69 = scmp.eq.s32.totalorder %s16, 0
    %p70 = por %p68, %p69
    %p71 = scmp.ne.s32.totalorder %s59, %s60
    %p72 = scmp.eq.s32.totalorder %s17, 3
    %p73 = por %p71, %p72
    %p75 = scmp.ne.s32.totalorder %s60, %s74
    %p76 = scmp.eq.s32.totalorder %s17, 0
    %p77 = por %p75, %p76
    %s78 = ssub.s32 %s18, %s30
    %s79 = ssub.s32 %s19, %s26
    %s80 = sor.u32 %s78, %s79
    %p81 = scmp.eq.s32.totalorder %s80, 0
    %s83 = sadd.s32 %s82, 1
    %s84 = scalar_select %p81, %s82, %s83
    %p87 = pneg %p81
    %p88 = scmp.eq.s32.totalorder %s11, 3
    %p89 = por %p87, %p88
    %p90 = scmp.ne.s32.totalorder %s82, %s85
    %p91 = scmp.eq.s32.totalorder %s11, 0
    %p92 = por %p90, %p91
    %p93 = scmp.ne.s32.totalorder %s82, %s85
    %p94 = scmp.eq.s32.totalorder %s16, 3
    %p95 = por %p93, %p94
    %p96 = scmp.ne.s32.totalorder %s85, %s86
    %p97 = scmp.eq.s32.totalorder %s16, 0
    %p98 = por %p96, %p97
    %p99 = scmp.ne.s32.totalorder %s85, %s86
    %p100 = scmp.eq.s32.totalorder %s17, 3
    %p101 = por %p99, %p100
    %p103 = scmp.ne.s32.totalorder %s86, %s102
    %p104 = scmp.eq.s32.totalorder %s17, 0
    %p105 = por %p103, %p104
    %s106 = ssub.s32 %s18, %s30
    %s107 = ssub.s32 %s19, %s26
    %s108 = sor.u32 %s106, %s107
    %p109 = scmp.eq.s32.totalorder %s108, 0
    %s111 = sadd.s32 %s110, 1
    %s112 = scalar_select %p109, %s110, %s111
    %p115 = pneg %p109
    %p116 = scmp.eq.s32.totalorder %s11, 3
    %p117 = por %p115, %p116
    %p118 = scmp.ne.s32.totalorder %s110, %s113
    %p119 = scmp.eq.s32.totalorder %s11, 0
    %p120 = por %p118, %p119
    %p121 = scmp.ne.s32.totalorder %s110, %s113
    %p122 = scmp.eq.s32.totalorder %s16, 3
    %p123 = por %p121, %p122
    %p124 = scmp.ne.s32.totalorder %s113, %s114
    %p125 = scmp.eq.s32.totalorder %s16, 0
    %p126 = por %p124, %p125
    %p127 = scmp.ne.s32.totalorder %s113, %s114
    %p128 = scmp.eq.s32.totalorder %s17, 3
    %p129 = por %p127, %p128
    %p131 = scmp.ne.s32.totalorder %s114, %s130
    %p132 = scmp.eq.s32.totalorder %s17, 0
    %p133 = por %p131, %p132
    %s134 = ssub.s32 %s18, %s30
    %s135 = ssub.s32 %s19, %s26
    %s136 = sor.u32 %s134, %s135
    %p137 = scmp.eq.s32.totalorder %s136, 0
    %s139 = sadd.s32 %s138, 1
    %s140 = scalar_select %p137, %s138, %s139
    %p143 = pneg %p137
    %p144 = scmp.eq.s32.totalorder %s11, 3
    %p145 = por %p143, %p144
    %p146 = scmp.ne.s32.totalorder %s138, %s141
    %p147 = scmp.eq.s32.totalorder %s11, 0
    %p148 = por %p146, %p147
    %p149 = scmp.ne.s32.totalorder %s138, %s141
    %p150 = scmp.eq.s32.totalorder %s16, 3
    %p151 = por %p149, %p150
    %p152 = scmp.ne.s32.totalorder %s141, %s142
    %p153 = scmp.eq.s32.totalorder %s16, 0
    %p154 = por %p152, %p153
    %p155 = scmp.ne.s32.totalorder %s141, %s142
    %p156 = scmp.eq.s32.totalorder %s17, 3
    %p157 = por %p155, %p156
    %p159 = scmp.ne.s32.totalorder %s142, %s158
    %p160 = scmp.eq.s32.totalorder %s17, 0
    %p161 = por %p159, %p160
    %p162 = scmp.le.s32.totalorder 1, %s11
    %p163 = scmp.lt.s32.totalorder %s11, 5
    %p164 = pnand %p162, %p163
    %p165 = pneg %p164
    // Predicated region
    $region9: #{wgan_generator_forward.6} parent=5 // pred_check
      _
    $region10: #{wgan_generator_forward.6} parent=5 // pred_check_branch
      %167 = sbr.rel (%p164) target = $region12
    $region11: #{wgan_generator_forward.6} parent=5 // pred_region
      %s168 = ssub.s32 %s11, 1
      // Predicated region
      $region13: #{wgan_generator_forward.6} parent=11 // pred_check
        %p169 = pneg %p70
      $region14: #{wgan_generator_forward.6} parent=11 // pred_check_branch
        %171 = sbr.rel (%p169) target = $region16
      $region15: #{wgan_generator_forward.6} parent=11 // pred_region
        _
      $region16: #{wgan_generator_forward.6} parent=11 // pred_fallthru
        _
    $region12: #{wgan_generator_forward.6} parent=5 // pred_fallthru
      _
    %p172 = scmp.lt.s32.totalorder %s11, 4
    // Predicated region
    $region17: #{wgan_generator_forward.6} parent=5 // pred_check
      %p173 = pneg %p172
    $region18: #{wgan_generator_forward.6} parent=5 // pred_check_branch
      %175 = sbr.rel (%p173) target = $region20
    $region19: #{wgan_generator_forward.6} parent=5 // pred_region
      // Predicated region
      $region21: #{wgan_generator_forward.6} parent=19 // pred_check
        %p176 = pneg %p43
      $region22: #{wgan_generator_forward.6} parent=19 // pred_check_branch
        %178 = sbr.rel (%p176) target = $region24
      $region23: #{wgan_generator_forward.6} parent=19 // pred_region
        %p179 = scmp.lt.s32.totalorder %s18, 1
        %s180 = scalar_select %p179, %s18, 1
        %s181 = smul.addr %s180, 20
        %s182 = smul.addr %s181, 4
        %s183 = scalar_lea.vmem %s0, %s182
      $region24: #{wgan_generator_forward.6} parent=19 // pred_fallthru
        _
    $region20: #{wgan_generator_forward.6} parent=5 // pred_fallthru
      _
    %p184 = scmp.le.s32.totalorder 1, %s11
    %p185 = scmp.lt.s32.totalorder %s11, 5
    %p186 = pnand %p184, %p185
    %p187 = pneg %p186
    // Predicated region
    $region25: #{wgan_generator_forward.6} parent=5 // pred_check
      _
    $region26: #{wgan_generator_forward.6} parent=5 // pred_check_branch
      %189 = sbr.rel (%p186) target = $region28
    $region27: #{wgan_generator_forward.6} parent=5 // pred_region
      %s190 = ssub.s32 %s11, 1
      %p191 = scmp.lt.s32.totalorder %s20, 1
      %s192 = scalar_select %p191, %s20, 1
      %s193 = smul.addr %s192, 20
      %s194 = smul.addr %s193, 4
      %s195 = scalar_lea.vmem %s0, %s194
      %p196 = pneg %p49
      %p197 = pneg %p46
      %p198 = pneg %p70
      %p199 = pneg %p67
      %p200 = pneg %p98
      %p201 = pneg %p95
      %s202 = smul.u32 4, %s21
      %p203 = scmp.lt.s32.totalorder %s20, 1
      %s204 = scalar_select %p203, %s20, 1
      %p205 = scmp.lt.s32.totalorder %s202, 7
      %s206 = scalar_select %p205, %s202, 7
      %s207 = smul.addr %s206, 4
      %s208 = smul.addr %s204, 32
      %s209 = sadd.s32 %s207, %s208
      %s210 = smul.addr %s209, 4
      %s211 = scalar_lea.vmem %s2, %s210
      %p212 = pneg %p126
      %p213 = pneg %p123
      %p214 = scmp.lt.s32.totalorder %s20, 1
      %s215 = scalar_select %p214, %s20, 1
      %p216 = scmp.lt.s32.totalorder %s21, 1
      %s217 = scalar_select %p216, %s21, 1
      %s218 = smul.addr %s215, 2
      %s219 = sadd.s32 %s217, %s218
      %s220 = scalar_lea.vmem %s3, %s219
      %p221 = pneg %p154
      %p222 = pneg %p151
      %p223 = scmp.lt.s32.totalorder %s20, 1
      %s224 = scalar_select %p223, %s20, 1
      %p225 = scmp.lt.s32.totalorder %s21, 1
      %s226 = scalar_select %p225, %s21, 1
      %s227 = smul.addr %s224, 2
      %s228 = sadd.s32 %s226, %s227
      %s229 = scalar_lea.vmem %s4, %s228
      %p230 = scmp.lt.s32.totalorder %s20, 1
      %s231 = scalar_select %p230, %s20, 1
      %s232 = smul.addr %s231, 20
      %s233 = smul.addr %s232, 4
      %s234 = scalar_lea.vmem %s0, %s233
      %s235 = smul.u32 4, %s21
      %p236 = scmp.lt.s32.totalorder %s20, 1
      %s237 = scalar_select %p236, %s20, 1
      %p238 = scmp.lt.s32.totalorder %s235, 7
      %s239 = scalar_select %p238, %s235, 7
      %s240 = smul.addr %s239, 4
      %s241 = smul.addr %s237, 32
      %s242 = sadd.s32 %s240, %s241
      %s243 = smul.addr %s242, 4
      %s244 = scalar_lea.vmem %s2, %s243
      %s245 = smul.u32 4, %s21
      %p246 = scmp.lt.s32.totalorder %s20, 1
      %s247 = scalar_select %p246, %s20, 1
      %p248 = scmp.lt.s32.totalorder %s21, 1
      %s249 = scalar_select %p248, %s21, 1
      %s250 = smul.addr %s247, 2
      %s251 = sadd.s32 %s249, %s250
      %s252 = scalar_lea.vmem %s3, %s251
      %p253 = scmp.lt.s32.totalorder %s20, 1
      %s254 = scalar_select %p253, %s20, 1
      %p255 = scmp.lt.s32.totalorder %s21, 1
      %s256 = scalar_select %p255, %s21, 1
      %s257 = smul.addr %s254, 2
      %s258 = sadd.s32 %s256, %s257
      %s259 = scalar_lea.vmem %s4, %s258
      %261 = vst [vmem:[%s252] sm:$0x1] 0.0
      %262 = vst [vmem:[%s259] sm:$0x1] 0.0
      %s263 = smul.u32 %s21, 4
      loop: start=0, step=1, limit=4
      $region29: #{wgan_generator_forward.6} parent=27 // loop_pre_header
        _
      $region30: #{wgan_generator_forward.6} parent=27 // loop_header
        %s265 = sphi 0, %s269
        %p266 = scmp.ge.s32.totalorder %s265, 4
      $region31: #{wgan_generator_forward.6} parent=27 // loop_header_branch
        %268 = sbr.rel (%p266) target = $region35
      $region32: #{wgan_generator_forward.6} parent=27 // loop_body
        %s270 = sadd.s32 %s263, %s265
        %s271 = smul.u32 %s270, 2
        %s272 = smul.addr %s271, 4
        %s273 = scalar_lea.vmem %s234, %s272
        %v274 = vld [vmem:[%s273] sm:$0xf]
        %v275 = vld [vmem:[%s273 + $0x4] sm:$0x1]
        %v276 = vld [vmem:[%s273] sm:$0xe]
        %s277 = sadd.s32 %s270, 1
        %s278 = smul.u32 %s277, 2
        %s279 = smul.addr %s278, 4
        %s280 = scalar_lea.vmem %s234, %s279
        %v281 = vld [vmem:[%s280] sm:$0xf]
        %v282 = vld [vmem:[%s280 + $0x4] sm:$0x1]
        %v283 = vld [vmem:[%s280] sm:$0xe]
        %s284 = sadd.s32 %s270, 2
        %s285 = smul.u32 %s284, 2
        %s286 = smul.addr %s285, 4
        %s287 = scalar_lea.vmem %s234, %s286
        %v288 = vld [vmem:[%s287] sm:$0xf]
        %v289 = vld [vmem:[%s287 + $0x4] sm:$0x1]
        %v290 = vld [vmem:[%s287] sm:$0xe]
        %v291 = vld [vmem:[%s1] sm:$0xf]
        %v292 = vld [vmem:[%s1 + $0x4] sm:$0xf]
        %v293 = vld [vmem:[%s1 + $0x8] sm:$0xf]
        %v294 = vld [vmem:[%s1 + $0xc] sm:$0xf]
        %v295 = vld [vmem:[%s1 + $0x10] sm:$0xf]
        %v296 = vld [vmem:[%s1 + $0x14] sm:$0xf]
        %v297 = vld [vmem:[%s1 + $0x18] sm:$0xf]
        %v298 = vld [vmem:[%s1 + $0x1c] sm:$0xf]
        %s299 = scalar_lea.vmem %s1, 32
        %v300 = vld [vmem:[%s299] sm:$0xf]
        %v301 = vld [vmem:[%s299 + $0x4] sm:$0xf]
        %v302 = vld [vmem:[%s299 + $0x8] sm:$0xf]
        %v303 = vld [vmem:[%s299 + $0xc] sm:$0xf]
        %v304 = vld [vmem:[%s299 + $0x10] sm:$0xf]
        %v305 = vld [vmem:[%s299 + $0x14] sm:$0xf]
        %v306 = vld [vmem:[%s299 + $0x18] sm:$0xf]
        %v307 = vld [vmem:[%s299 + $0x1c] sm:$0xf]
        %v310 = vunpack.c.l.b16 %v274
        %v311 = vunpack.c.l.b16 %v275
        %v312 = vpack.c.b16 %v311, %v310
        %v314 = vshrl.u32 %v312, 16
        %v316 = vshll.u32 %v312, 16
        %v318 = vrot.slane %v316, 1
        %v319 = vor.u32 %v314, %v318
        %v328 = vunpack.c.l.b16 %v300
        %v329 = vunpack.c.l.b16 %v301
        %v330 = vunpack.c.l.b16 %v302
        %v331 = vunpack.c.l.b16 %v303
        %v332 = vunpack.c.l.b16 %v304
        %v333 = vunpack.c.l.b16 %v305
        %v334 = vunpack.c.l.b16 %v306
        %v335 = vunpack.c.l.b16 %v307
        %v336 = vpack.c.b16 %v329, %v328
        %v337 = vpack.c.b16 %v331, %v330
        %v338 = vpack.c.b16 %v333, %v332
        %v339 = vpack.c.b16 %v335, %v334
        %vm344 = vcmask 523264
        %v346 = vsel %vm344, %v319, 0
        %348 = vmatprep.subr.bf16.mxu0 0
        %349 = vmatpush1.bf16.msra.mxu0 0
        %350 = vmatprep.subr.bf16.mxu0 0
        %351 = vmatpush1.bf16.msra.mxu0 0
        %352 = vmatprep.subr.bf16.mxu0 0
        %353 = vmatpush1.bf16.msra.mxu0 0
        %354 = vmatprep.subr.bf16.mxu0 0
        %355 = vmatpush1.bf16.msra.mxu0 0
        %356 = vmatprep.subr.bf16.mxu0 0
        %357 = vmatpush1.bf16.msra.mxu0 %v339
        %358 = vmatprep.subr.bf16.mxu0 0
        %359 = vmatpush1.bf16.msra.mxu0 %v338
        %360 = vmatprep.subr.bf16.mxu0 0
        %361 = vmatpush1.bf16.msra.mxu0 %v337
        %362 = vmatprep.subr.bf16.mxu0 0
        %363 = vmatpush1.bf16.msra.mxu0 %v336
        %364 = vmatprep.subr.bf16.mxu0 0
        %365 = vmatpush2.bf16.msra.mxu0 0
        %366 = vmatprep.subr.bf16.mxu0 0
        %367 = vmatpush2.bf16.msra.mxu0 0
        %368 = vmatprep.subr.bf16.mxu0 0
        %369 = vmatpush2.bf16.msra.mxu0 0
        %370 = vmatprep.subr.bf16.mxu0 0
        %371 = vmatpush2.bf16.msra.mxu0 0
        %372 = vmatprep.subr.bf16.mxu0 0
        %373 = vmatpush2.bf16.msra.mxu0 0
        %374 = vmatprep.subr.bf16.mxu0 0
        %375 = vmatpush2.bf16.msra.mxu0 0
        %376 = vmatprep.subr.bf16.mxu0 0
        %377 = vmatpush2.bf16.msra.mxu0 0
        %378 = vmatprep.subr.bf16.mxu0 0
        %379 = vmatpush2.bf16.msra.mxu0 0
        %380 = vmatprep.mubr.bf16.mxu0 0
        %381 = vmatmul.mubr.bf16.gmra.mxu0 %v346
        %v382 = vpop.f32.mrf.mxu0
        %v383 = vadd.f32 0.0, %v382
        %v384 = vpop.f32.mrf.mxu0
        %v385 = vpop.f32.mrf.mxu0
        %v386 = vpop.f32.mrf.mxu0
        %387 = vdwg.mxu0
        %v396 = vunpack.c.l.b16 %v291
        %v397 = vunpack.c.l.b16 %v292
        %v398 = vunpack.c.l.b16 %v293
        %v399 = vunpack.c.l.b16 %v294
        %v400 = vunpack.c.l.b16 %v295
        %v401 = vunpack.c.l.b16 %v296
        %v402 = vunpack.c.l.b16 %v297
        %v403 = vunpack.c.l.b16 %v298
        %v404 = vpack.c.b16 %v397, %v396
        %v405 = vpack.c.b16 %v399, %v398
        %v406 = vpack.c.b16 %v401, %v400
        %v407 = vpack.c.b16 %v403, %v402
        %v413 = vsel %vm344, %v274, 0
        %415 = vmatprep.subr.bf16.mxu0 0
        %416 = vmatpush1.bf16.msra.mxu0 0
        %417 = vmatprep.subr.bf16.mxu0 0
        %418 = vmatpush1.bf16.msra.mxu0 0
        %419 = vmatprep.subr.bf16.mxu0 0
        %420 = vmatpush1.bf16.msra.mxu0 0
        %421 = vmatprep.subr.bf16.mxu0 0
        %422 = vmatpush1.bf16.msra.mxu0 0
        %423 = vmatprep.subr.bf16.mxu0 0
        %424 = vmatpush1.bf16.msra.mxu0 %v407
        %425 = vmatprep.subr.bf16.mxu0 0
        %426 = vmatpush1.bf16.msra.mxu0 %v406
        %427 = vmatprep.subr.bf16.mxu0 0
        %428 = vmatpush1.bf16.msra.mxu0 %v405
        %429 = vmatprep.subr.bf16.mxu0 0
        %430 = vmatpush1.bf16.msra.mxu0 %v404
        %431 = vmatprep.subr.bf16.mxu0 0
        %432 = vmatpush2.bf16.msra.mxu0 0
        %433 = vmatprep.subr.bf16.mxu0 0
        %434 = vmatpush2.bf16.msra.mxu0 0
        %435 = vmatprep.subr.bf16.mxu0 0
        %436 = vmatpush2.bf16.msra.mxu0 0
        %437 = vmatprep.subr.bf16.mxu0 0
        %438 = vmatpush2.bf16.msra.mxu0 0
        %439 = vmatprep.subr.bf16.mxu0 0
        %440 = vmatpush2.bf16.msra.mxu0 0
        %441 = vmatprep.subr.bf16.mxu0 0
        %442 = vmatpush2.bf16.msra.mxu0 0
        %443 = vmatprep.subr.bf16.mxu0 0
        %444 = vmatpush2.bf16.msra.mxu0 0
        %445 = vmatprep.subr.bf16.mxu0 0
        %446 = vmatpush2.bf16.msra.mxu0 0
        %447 = vmatprep.mubr.bf16.mxu0 0
        %448 = vmatmul.mubr.bf16.gmra.mxu0 %v413
        %v449 = vpop.f32.mrf.mxu0
        %v450 = vadd.f32 %v383, %v449
        %v451 = vpop.f32.mrf.mxu0
        %v452 = vpop.f32.mrf.mxu0
        %v453 = vpop.f32.mrf.mxu0
        %454 = vdwg.mxu0
        %s455 = scalar_lea.vmem %s1, 64
        %v456 = vld [vmem:[%s455] sm:$0xf]
        %v457 = vld [vmem:[%s455 + $0x4] sm:$0xf]
        %v458 = vld [vmem:[%s455 + $0x8] sm:$0xf]
        %v459 = vld [vmem:[%s455 + $0xc] sm:$0xf]
        %v460 = vld [vmem:[%s455 + $0x10] sm:$0xf]
        %v461 = vld [vmem:[%s455 + $0x14] sm:$0xf]
        %v462 = vld [vmem:[%s455 + $0x18] sm:$0xf]
        %v463 = vld [vmem:[%s455 + $0x1c] sm:$0xf]
        %v472 = vunpack.c.l.b16 %v456
        %v473 = vunpack.c.l.b16 %v457
        %v474 = vunpack.c.l.b16 %v458
        %v475 = vunpack.c.l.b16 %v459
        %v476 = vunpack.c.l.b16 %v460
        %v477 = vunpack.c.l.b16 %v461
        %v478 = vunpack.c.l.b16 %v462
        %v479 = vunpack.c.l.b16 %v463
        %v480 = vpack.c.b16 %v473, %v472
        %v481 = vpack.c.b16 %v475, %v474
        %v482 = vpack.c.b16 %v477, %v476
        %v483 = vpack.c.b16 %v479, %v478
        %v489 = vsel %vm344, %v281, 0
        %491 = vmatprep.subr.bf16.mxu0 0
        %492 = vmatpush1.bf16.msra.mxu0 0
        %493 = vmatprep.subr.bf16.mxu0 0
        %494 = vmatpush1.bf16.msra.mxu0 0
        %495 = vmatprep.subr.bf16.mxu0 0
        %496 = vmatpush1.bf16.msra.mxu0 0
        %497 = vmatprep.subr.bf16.mxu0 0
        %498 = vmatpush1.bf16.msra.mxu0 0
        %499 = vmatprep.subr.bf16.mxu0 0
        %500 = vmatpush1.bf16.msra.mxu0 %v483
        %501 = vmatprep.subr.bf16.mxu0 0
        %502 = vmatpush1.bf16.msra.mxu0 %v482
        %503 = vmatprep.subr.bf16.mxu0 0
        %504 = vmatpush1.bf16.msra.mxu0 %v481
        %505 = vmatprep.subr.bf16.mxu0 0
        %506 = vmatpush1.bf16.msra.mxu0 %v480
        %507 = vmatprep.subr.bf16.mxu0 0
        %508 = vmatpush2.bf16.msra.mxu0 0
        %509 = vmatprep.subr.bf16.mxu0 0
        %510 = vmatpush2.bf16.msra.mxu0 0
        %511 = vmatprep.subr.bf16.mxu0 0
        %512 = vmatpush2.bf16.msra.mxu0 0
        %513 = vmatprep.subr.bf16.mxu0 0
        %514 = vmatpush2.bf16.msra.mxu0 0
        %515 = vmatprep.subr.bf16.mxu0 0
        %516 = vmatpush2.bf16.msra.mxu0 0
        %517 = vmatprep.subr.bf16.mxu0 0
        %518 = vmatpush2.bf16.msra.mxu0 0
        %519 = vmatprep.subr.bf16.mxu0 0
        %520 = vmatpush2.bf16.msra.mxu0 0
        %521 = vmatprep.subr.bf16.mxu0 0
        %522 = vmatpush2.bf16.msra.mxu0 0
        %523 = vmatprep.mubr.bf16.mxu0 0
        %524 = vmatmul.mubr.bf16.gmra.mxu0 %v489
        %v525 = vpop.f32.mrf.mxu0
        %v526 = vadd.f32 0.0, %v525
        %v527 = vpop.f32.mrf.mxu0
        %v528 = vpop.f32.mrf.mxu0
        %v529 = vpop.f32.mrf.mxu0
        %530 = vdwg.mxu0
        %v531 = vadd.f32 %v450, %v526
        %s532 = scalar_lea.vmem %s1, 96
        %v533 = vld [vmem:[%s532] sm:$0xf]
        %v534 = vld [vmem:[%s532 + $0x4] sm:$0xf]
        %v535 = vld [vmem:[%s532 + $0x8] sm:$0xf]
        %v536 = vld [vmem:[%s532 + $0xc] sm:$0xf]
        %v537 = vld [vmem:[%s532 + $0x10] sm:$0xf]
        %v538 = vld [vmem:[%s532 + $0x14] sm:$0xf]
        %v539 = vld [vmem:[%s532 + $0x18] sm:$0xf]
        %v540 = vld [vmem:[%s532 + $0x1c] sm:$0xf]
        %v543 = vunpack.c.l.b16 %v281
        %v544 = vunpack.c.l.b16 %v282
        %v545 = vpack.c.b16 %v544, %v543
        %v547 = vshrl.u32 %v545, 16
        %v549 = vshll.u32 %v545, 16
        %v551 = vrot.slane %v549, 1
        %v552 = vor.u32 %v547, %v551
        %v561 = vunpack.c.l.b16 %v533
        %v562 = vunpack.c.l.b16 %v534
        %v563 = vunpack.c.l.b16 %v535
        %v564 = vunpack.c.l.b16 %v536
        %v565 = vunpack.c.l.b16 %v537
        %v566 = vunpack.c.l.b16 %v538
        %v567 = vunpack.c.l.b16 %v539
        %v568 = vunpack.c.l.b16 %v540
        %v569 = vpack.c.b16 %v562, %v561
        %v570 = vpack.c.b16 %v564, %v563
        %v571 = vpack.c.b16 %v566, %v565
        %v572 = vpack.c.b16 %v568, %v567
        %v578 = vsel %vm344, %v552, 0
        %580 = vmatprep.subr.bf16.mxu0 0
        %581 = vmatpush1.bf16.msra.mxu0 0
        %582 = vmatprep.subr.bf16.mxu0 0
        %583 = vmatpush1.bf16.msra.mxu0 0
        %584 = vmatprep.subr.bf16.mxu0 0
        %585 = vmatpush1.bf16.msra.mxu0 0
        %586 = vmatprep.subr.bf16.mxu0 0
        %587 = vmatpush1.bf16.msra.mxu0 0
        %588 = vmatprep.subr.bf16.mxu0 0
        %589 = vmatpush1.bf16.msra.mxu0 %v572
        %590 = vmatprep.subr.bf16.mxu0 0
        %591 = vmatpush1.bf16.msra.mxu0 %v571
        %592 = vmatprep.subr.bf16.mxu0 0
        %593 = vmatpush1.bf16.msra.mxu0 %v570
        %594 = vmatprep.subr.bf16.mxu0 0
        %595 = vmatpush1.bf16.msra.mxu0 %v569
        %596 = vmatprep.subr.bf16.mxu0 0
        %597 = vmatpush2.bf16.msra.mxu0 0
        %598 = vmatprep.subr.bf16.mxu0 0
        %599 = vmatpush2.bf16.msra.mxu0 0
        %600 = vmatprep.subr.bf16.mxu0 0
        %601 = vmatpush2.bf16.msra.mxu0 0
        %602 = vmatprep.subr.bf16.mxu0 0
        %603 = vmatpush2.bf16.msra.mxu0 0
        %604 = vmatprep.subr.bf16.mxu0 0
        %605 = vmatpush2.bf16.msra.mxu0 0
        %606 = vmatprep.subr.bf16.mxu0 0
        %607 = vmatpush2.bf16.msra.mxu0 0
        %608 = vmatprep.subr.bf16.mxu0 0
        %609 = vmatpush2.bf16.msra.mxu0 0
        %610 = vmatprep.subr.bf16.mxu0 0
        %611 = vmatpush2.bf16.msra.mxu0 0
        %612 = vmatprep.mubr.bf16.mxu0 0
        %613 = vmatmul.mubr.bf16.gmra.mxu0 %v578
        %v614 = vpop.f32.mrf.mxu0
        %v615 = vadd.f32 0.0, %v614
        %v616 = vpop.f32.mrf.mxu0
        %v617 = vpop.f32.mrf.mxu0
        %v618 = vpop.f32.mrf.mxu0
        %619 = vdwg.mxu0
        %v620 = vadd.f32 %v531, %v615
        %v621 = vld [vmem:[%s252] sm:$0x1]
        %v622 = vrot.slane %v620, 4
        %v623 = vadd.f32 %v620, %v622
        %v624 = vrot.slane %v623, 2
        %v625 = vadd.f32 %v623, %v624
        %v626 = vrot.slane %v625, 1
        %v627 = vadd.f32 %v625, %v626
        %v628 = vadd.f32 %v621, %v627
        %629 = vst [vmem:[%s252] sm:$0x1] %v628
        %v630 = vld [vmem:[%s259] sm:$0x1]
        %v631 = vmul.f32 %v620, %v620
        %v632 = vrot.slane %v631, 4
        %v633 = vadd.f32 %v631, %v632
        %v634 = vrot.slane %v633, 2
        %v635 = vadd.f32 %v633, %v634
        %v636 = vrot.slane %v635, 1
        %v637 = vadd.f32 %v635, %v636
        %v638 = vadd.f32 %v630, %v637
        %639 = vst [vmem:[%s259] sm:$0x1] %v638
        %v640 = vpack.c.bf16 %v620, %v620
        %s641 = smul.u32 %s265, 4
        %s642 = smul.addr %s641, 4
        %s643 = scalar_lea.vmem %s244, %s642
        %644 = vst [vmem:[%s643] sm:$0xf] %v640
        %s645 = scalar_lea.vmem %s1, 128
        %v646 = vld [vmem:[%s645] sm:$0xf]
        %v647 = vld [vmem:[%s645 + $0x4] sm:$0xf]
        %v648 = vld [vmem:[%s645 + $0x8] sm:$0xf]
        %v649 = vld [vmem:[%s645 + $0xc] sm:$0xf]
        %v650 = vld [vmem:[%s645 + $0x10] sm:$0xf]
        %v651 = vld [vmem:[%s645 + $0x14] sm:$0xf]
        %v652 = vld [vmem:[%s645 + $0x18] sm:$0xf]
        %v653 = vld [vmem:[%s645 + $0x1c] sm:$0xf]
        %s654 = scalar_lea.vmem %s1, 160
        %v655 = vld [vmem:[%s654] sm:$0xf]
        %v656 = vld [vmem:[%s654 + $0x4] sm:$0xf]
        %v657 = vld [vmem:[%s654 + $0x8] sm:$0xf]
        %v658 = vld [vmem:[%s654 + $0xc] sm:$0xf]
        %v659 = vld [vmem:[%s654 + $0x10] sm:$0xf]
        %v660 = vld [vmem:[%s654 + $0x14] sm:$0xf]
        %v661 = vld [vmem:[%s654 + $0x18] sm:$0xf]
        %v662 = vld [vmem:[%s654 + $0x1c] sm:$0xf]
        %v664 = vunpack.c.l.b16 %v276
        %v665 = vpack.c.b16 %v311, %v664
        %v666 = vrot.slane %v665, 1
        %v675 = vunpack.c.l.b16 %v655
        %v676 = vunpack.c.l.b16 %v656
        %v677 = vunpack.c.l.b16 %v657
        %v678 = vunpack.c.l.b16 %v658
        %v679 = vunpack.c.l.b16 %v659
        %v680 = vunpack.c.l.b16 %v660
        %v681 = vunpack.c.l.b16 %v661
        %v682 = vunpack.c.l.b16 %v662
        %v683 = vpack.c.b16 %v676, %v675
        %v684 = vpack.c.b16 %v678, %v677
        %v685 = vpack.c.b16 %v680, %v679
        %v686 = vpack.c.b16 %v682, %v681
        %v692 = vsel %vm344, %v666, 0
        %694 = vmatprep.subr.bf16.mxu0 0
        %695 = vmatpush1.bf16.msra.mxu0 0
        %696 = vmatprep.subr.bf16.mxu0 0
        %697 = vmatpush1.bf16.msra.mxu0 0
        %698 = vmatprep.subr.bf16.mxu0 0
        %699 = vmatpush1.bf16.msra.mxu0 0
        %700 = vmatprep.subr.bf16.mxu0 0
        %701 = vmatpush1.bf16.msra.mxu0 0
        %702 = vmatprep.subr.bf16.mxu0 0
        %703 = vmatpush1.bf16.msra.mxu0 %v686
        %704 = vmatprep.subr.bf16.mxu0 0
        %705 = vmatpush1.bf16.msra.mxu0 %v685
        %706 = vmatprep.subr.bf16.mxu0 0
        %707 = vmatpush1.bf16.msra.mxu0 %v684
        %708 = vmatprep.subr.bf16.mxu0 0
        %709 = vmatpush1.bf16.msra.mxu0 %v683
        %710 = vmatprep.subr.bf16.mxu0 0
        %711 = vmatpush2.bf16.msra.mxu0 0
        %712 = vmatprep.subr.bf16.mxu0 0
        %713 = vmatpush2.bf16.msra.mxu0 0
        %714 = vmatprep.subr.bf16.mxu0 0
        %715 = vmatpush2.bf16.msra.mxu0 0
        %716 = vmatprep.subr.bf16.mxu0 0
        %717 = vmatpush2.bf16.msra.mxu0 0
        %718 = vmatprep.subr.bf16.mxu0 0
        %719 = vmatpush2.bf16.msra.mxu0 0
        %720 = vmatprep.subr.bf16.mxu0 0
        %721 = vmatpush2.bf16.msra.mxu0 0
        %722 = vmatprep.subr.bf16.mxu0 0
        %723 = vmatpush2.bf16.msra.mxu0 0
        %724 = vmatprep.subr.bf16.mxu0 0
        %725 = vmatpush2.bf16.msra.mxu0 0
        %726 = vmatprep.mubr.bf16.mxu0 0
        %727 = vmatmul.mubr.bf16.gmra.mxu0 %v692
        %v728 = vpop.f32.mrf.mxu0
        %v729 = vadd.f32 0.0, %v728
        %v730 = vpop.f32.mrf.mxu0
        %v731 = vpop.f32.mrf.mxu0
        %v732 = vpop.f32.mrf.mxu0
        %733 = vdwg.mxu0
        %v742 = vunpack.c.l.b16 %v646
        %v743 = vunpack.c.l.b16 %v647
        %v744 = vunpack.c.l.b16 %v648
        %v745 = vunpack.c.l.b16 %v649
        %v746 = vunpack.c.l.b16 %v650
        %v747 = vunpack.c.l.b16 %v651
        %v748 = vunpack.c.l.b16 %v652
        %v749 = vunpack.c.l.b16 %v653
        %v750 = vpack.c.b16 %v743, %v742
        %v751 = vpack.c.b16 %v745, %v744
        %v752 = vpack.c.b16 %v747, %v746
        %v753 = vpack.c.b16 %v749, %v748
        %758 = vmatprep.subr.bf16.mxu0 0
        %759 = vmatpush1.bf16.msra.mxu0 0
        %760 = vmatprep.subr.bf16.mxu0 0
        %761 = vmatpush1.bf16.msra.mxu0 0
        %762 = vmatprep.subr.bf16.mxu0 0
        %763 = vmatpush1.bf16.msra.mxu0 0
        %764 = vmatprep.subr.bf16.mxu0 0
        %765 = vmatpush1.bf16.msra.mxu0 0
        %766 = vmatprep.subr.bf16.mxu0 0
        %767 = vmatpush1.bf16.msra.mxu0 %v753
        %768 = vmatprep.subr.bf16.mxu0 0
        %769 = vmatpush1.bf16.msra.mxu0 %v752
        %770 = vmatprep.subr.bf16.mxu0 0
        %771 = vmatpush1.bf16.msra.mxu0 %v751
        %772 = vmatprep.subr.bf16.mxu0 0
        %773 = vmatpush1.bf16.msra.mxu0 %v750
        %774 = vmatprep.subr.bf16.mxu0 0
        %775 = vmatpush2.bf16.msra.mxu0 0
        %776 = vmatprep.subr.bf16.mxu0 0
        %777 = vmatpush2.bf16.msra.mxu0 0
        %778 = vmatprep.subr.bf16.mxu0 0
        %779 = vmatpush2.bf16.msra.mxu0 0
        %780 = vmatprep.subr.bf16.mxu0 0
        %781 = vmatpush2.bf16.msra.mxu0 0
        %782 = vmatprep.subr.bf16.mxu0 0
        %783 = vmatpush2.bf16.msra.mxu0 0
        %784 = vmatprep.subr.bf16.mxu0 0
        %785 = vmatpush2.bf16.msra.mxu0 0
        %786 = vmatprep.subr.bf16.mxu0 0
        %787 = vmatpush2.bf16.msra.mxu0 0
        %788 = vmatprep.subr.bf16.mxu0 0
        %789 = vmatpush2.bf16.msra.mxu0 0
        %790 = vmatprep.mubr.bf16.mxu0 0
        %791 = vmatmul.mubr.bf16.gmra.mxu0 %v346
        %v792 = vpop.f32.mrf.mxu0
        %v793 = vadd.f32 %v729, %v792
        %v794 = vpop.f32.mrf.mxu0
        %v795 = vpop.f32.mrf.mxu0
        %v796 = vpop.f32.mrf.mxu0
        %797 = vdwg.mxu0
        %s798 = scalar_lea.vmem %s1, 192
        %v799 = vld [vmem:[%s798] sm:$0xf]
        %v800 = vld [vmem:[%s798 + $0x4] sm:$0xf]
        %v801 = vld [vmem:[%s798 + $0x8] sm:$0xf]
        %v802 = vld [vmem:[%s798 + $0xc] sm:$0xf]
        %v803 = vld [vmem:[%s798 + $0x10] sm:$0xf]
        %v804 = vld [vmem:[%s798 + $0x14] sm:$0xf]
        %v805 = vld [vmem:[%s798 + $0x18] sm:$0xf]
        %v806 = vld [vmem:[%s798 + $0x1c] sm:$0xf]
        %v815 = vunpack.c.l.b16 %v799
        %v816 = vunpack.c.l.b16 %v800
        %v817 = vunpack.c.l.b16 %v801
        %v818 = vunpack.c.l.b16 %v802
        %v819 = vunpack.c.l.b16 %v803
        %v820 = vunpack.c.l.b16 %v804
        %v821 = vunpack.c.l.b16 %v805
        %v822 = vunpack.c.l.b16 %v806
        %v823 = vpack.c.b16 %v816, %v815
        %v824 = vpack.c.b16 %v818, %v817
        %v825 = vpack.c.b16 %v820, %v819
        %v826 = vpack.c.b16 %v822, %v821
        %831 = vmatprep.subr.bf16.mxu0 0
        %832 = vmatpush1.bf16.msra.mxu0 0
        %833 = vmatprep.subr.bf16.mxu0 0
        %834 = vmatpush1.bf16.msra.mxu0 0
        %835 = vmatprep.subr.bf16.mxu0 0
        %836 = vmatpush1.bf16.msra.mxu0 0
        %837 = vmatprep.subr.bf16.mxu0 0
        %838 = vmatpush1.bf16.msra.mxu0 0
        %839 = vmatprep.subr.bf16.mxu0 0
        %840 = vmatpush1.bf16.msra.mxu0 %v826
        %841 = vmatprep.subr.bf16.mxu0 0
        %842 = vmatpush1.bf16.msra.mxu0 %v825
        %843 = vmatprep.subr.bf16.mxu0 0
        %844 = vmatpush1.bf16.msra.mxu0 %v824
        %845 = vmatprep.subr.bf16.mxu0 0
        %846 = vmatpush1.bf16.msra.mxu0 %v823
        %847 = vmatprep.subr.bf16.mxu0 0
        %848 = vmatpush2.bf16.msra.mxu0 0
        %849 = vmatprep.subr.bf16.mxu0 0
        %850 = vmatpush2.bf16.msra.mxu0 0
        %851 = vmatprep.subr.bf16.mxu0 0
        %852 = vmatpush2.bf16.msra.mxu0 0
        %853 = vmatprep.subr.bf16.mxu0 0
        %854 = vmatpush2.bf16.msra.mxu0 0
        %855 = vmatprep.subr.bf16.mxu0 0
        %856 = vmatpush2.bf16.msra.mxu0 0
        %857 = vmatprep.subr.bf16.mxu0 0
        %858 = vmatpush2.bf16.msra.mxu0 0
        %859 = vmatprep.subr.bf16.mxu0 0
        %860 = vmatpush2.bf16.msra.mxu0 0
        %861 = vmatprep.subr.bf16.mxu0 0
        %862 = vmatpush2.bf16.msra.mxu0 0
        %863 = vmatprep.mubr.bf16.mxu0 0
        %864 = vmatmul.mubr.bf16.gmra.mxu0 %v578
        %v865 = vpop.f32.mrf.mxu0
        %v866 = vadd.f32 0.0, %v865
        %v867 = vpop.f32.mrf.mxu0
        %v868 = vpop.f32.mrf.mxu0
        %v869 = vpop.f32.mrf.mxu0
        %870 = vdwg.mxu0
        %v871 = vadd.f32 %v793, %v866
        %s872 = scalar_lea.vmem %s1, 224
        %v873 = vld [vmem:[%s872] sm:$0xf]
        %v874 = vld [vmem:[%s872 + $0x4] sm:$0xf]
        %v875 = vld [vmem:[%s872 + $0x8] sm:$0xf]
        %v876 = vld [vmem:[%s872 + $0xc] sm:$0xf]
        %v877 = vld [vmem:[%s872 + $0x10] sm:$0xf]
        %v878 = vld [vmem:[%s872 + $0x14] sm:$0xf]
        %v879 = vld [vmem:[%s872 + $0x18] sm:$0xf]
        %v880 = vld [vmem:[%s872 + $0x1c] sm:$0xf]
        %v882 = vunpack.c.l.b16 %v283
        %v883 = vpack.c.b16 %v544, %v882
        %v884 = vrot.slane %v883, 1
        %v893 = vunpack.c.l.b16 %v873
        %v894 = vunpack.c.l.b16 %v874
        %v895 = vunpack.c.l.b16 %v875
        %v896 = vunpack.c.l.b16 %v876
        %v897 = vunpack.c.l.b16 %v877
        %v898 = vunpack.c.l.b16 %v878
        %v899 = vunpack.c.l.b16 %v879
        %v900 = vunpack.c.l.b16 %v880
        %v901 = vpack.c.b16 %v894, %v893
        %v902 = vpack.c.b16 %v896, %v895
        %v903 = vpack.c.b16 %v898, %v897
        %v904 = vpack.c.b16 %v900, %v899
        %v910 = vsel %vm344, %v884, 0
        %912 = vmatprep.subr.bf16.mxu0 0
        %913 = vmatpush1.bf16.msra.mxu0 0
        %914 = vmatprep.subr.bf16.mxu0 0
        %915 = vmatpush1.bf16.msra.mxu0 0
        %916 = vmatprep.subr.bf16.mxu0 0
        %917 = vmatpush1.bf16.msra.mxu0 0
        %918 = vmatprep.subr.bf16.mxu0 0
        %919 = vmatpush1.bf16.msra.mxu0 0
        %920 = vmatprep.subr.bf16.mxu0 0
        %921 = vmatpush1.bf16.msra.mxu0 %v904
        %922 = vmatprep.subr.bf16.mxu0 0
        %923 = vmatpush1.bf16.msra.mxu0 %v903
        %924 = vmatprep.subr.bf16.mxu0 0
        %925 = vmatpush1.bf16.msra.mxu0 %v902
        %926 = vmatprep.subr.bf16.mxu0 0
        %927 = vmatpush1.bf16.msra.mxu0 %v901
        %928 = vmatprep.subr.bf16.mxu0 0
        %929 = vmatpush2.bf16.msra.mxu0 0
        %930 = vmatprep.subr.bf16.mxu0 0
        %931 = vmatpush2.bf16.msra.mxu0 0
        %932 = vmatprep.subr.bf16.mxu0 0
        %933 = vmatpush2.bf16.msra.mxu0 0
        %934 = vmatprep.subr.bf16.mxu0 0
        %935 = vmatpush2.bf16.msra.mxu0 0
        %936 = vmatprep.subr.bf16.mxu0 0
        %937 = vmatpush2.bf16.msra.mxu0 0
        %938 = vmatprep.subr.bf16.mxu0 0
        %939 = vmatpush2.bf16.msra.mxu0 0
        %940 = vmatprep.subr.bf16.mxu0 0
        %941 = vmatpush2.bf16.msra.mxu0 0
        %942 = vmatprep.subr.bf16.mxu0 0
        %943 = vmatpush2.bf16.msra.mxu0 0
        %944 = vmatprep.mubr.bf16.mxu0 0
        %945 = vmatmul.mubr.bf16.gmra.mxu0 %v910
        %v946 = vpop.f32.mrf.mxu0
        %v947 = vadd.f32 0.0, %v946
        %v948 = vpop.f32.mrf.mxu0
        %v949 = vpop.f32.mrf.mxu0
        %v950 = vpop.f32.mrf.mxu0
        %951 = vdwg.mxu0
        %v952 = vadd.f32 %v871, %v947
        %v953 = vld [vmem:[%s252] sm:$0x1]
        %v954 = vrot.slane %v952, 4
        %v955 = vadd.f32 %v952, %v954
        %v956 = vrot.slane %v955, 2
        %v957 = vadd.f32 %v955, %v956
        %v958 = vrot.slane %v957, 1
        %v959 = vadd.f32 %v957, %v958
        %v960 = vadd.f32 %v953, %v959
        %961 = vst [vmem:[%s252] sm:$0x1] %v960
        %v962 = vld [vmem:[%s259] sm:$0x1]
        %v963 = vmul.f32 %v952, %v952
        %v964 = vrot.slane %v963, 4
        %v965 = vadd.f32 %v963, %v964
        %v966 = vrot.slane %v965, 2
        %v967 = vadd.f32 %v965, %v966
        %v968 = vrot.slane %v967, 1
        %v969 = vadd.f32 %v967, %v968
        %v970 = vadd.f32 %v962, %v969
        %971 = vst [vmem:[%s259] sm:$0x1] %v970
        %v972 = vpack.c.bf16 %v952, %v952
        %973 = vst [vmem:[%s643 + $0x4] sm:$0xf] %v972
        %s974 = scalar_lea.vmem %s1, 256
        %v975 = vld [vmem:[%s974] sm:$0xf]
        %v976 = vld [vmem:[%s974 + $0x4] sm:$0xf]
        %v977 = vld [vmem:[%s974 + $0x8] sm:$0xf]
        %v978 = vld [vmem:[%s974 + $0xc] sm:$0xf]
        %v979 = vld [vmem:[%s974 + $0x10] sm:$0xf]
        %v980 = vld [vmem:[%s974 + $0x14] sm:$0xf]
        %v981 = vld [vmem:[%s974 + $0x18] sm:$0xf]
        %v982 = vld [vmem:[%s974 + $0x1c] sm:$0xf]
        %s983 = scalar_lea.vmem %s1, 288
        %v984 = vld [vmem:[%s983] sm:$0xf]
        %v985 = vld [vmem:[%s983 + $0x4] sm:$0xf]
        %v986 = vld [vmem:[%s983 + $0x8] sm:$0xf]
        %v987 = vld [vmem:[%s983 + $0xc] sm:$0xf]
        %v988 = vld [vmem:[%s983 + $0x10] sm:$0xf]
        %v989 = vld [vmem:[%s983 + $0x14] sm:$0xf]
        %v990 = vld [vmem:[%s983 + $0x18] sm:$0xf]
        %v991 = vld [vmem:[%s983 + $0x1c] sm:$0xf]
        %v1000 = vunpack.c.l.b16 %v984
        %v1001 = vunpack.c.l.b16 %v985
        %v1002 = vunpack.c.l.b16 %v986
        %v1003 = vunpack.c.l.b16 %v987
        %v1004 = vunpack.c.l.b16 %v988
        %v1005 = vunpack.c.l.b16 %v989
        %v1006 = vunpack.c.l.b16 %v990
        %v1007 = vunpack.c.l.b16 %v991
        %v1008 = vpack.c.b16 %v1001, %v1000
        %v1009 = vpack.c.b16 %v1003, %v1002
        %v1010 = vpack.c.b16 %v1005, %v1004
        %v1011 = vpack.c.b16 %v1007, %v1006
        %1016 = vmatprep.subr.bf16.mxu0 0
        %1017 = vmatpush1.bf16.msra.mxu0 0
        %1018 = vmatprep.subr.bf16.mxu0 0
        %1019 = vmatpush1.bf16.msra.mxu0 0
        %1020 = vmatprep.subr.bf16.mxu0 0
        %1021 = vmatpush1.bf16.msra.mxu0 0
        %1022 = vmatprep.subr.bf16.mxu0 0
        %1023 = vmatpush1.bf16.msra.mxu0 0
        %1024 = vmatprep.subr.bf16.mxu0 0
        %1025 = vmatpush1.bf16.msra.mxu0 %v1011
        %1026 = vmatprep.subr.bf16.mxu0 0
        %1027 = vmatpush1.bf16.msra.mxu0 %v1010
        %1028 = vmatprep.subr.bf16.mxu0 0
        %1029 = vmatpush1.bf16.msra.mxu0 %v1009
        %1030 = vmatprep.subr.bf16.mxu0 0
        %1031 = vmatpush1.bf16.msra.mxu0 %v1008
        %1032 = vmatprep.subr.bf16.mxu0 0
        %1033 = vmatpush2.bf16.msra.mxu0 0
        %1034 = vmatprep.subr.bf16.mxu0 0
        %1035 = vmatpush2.bf16.msra.mxu0 0
        %1036 = vmatprep.subr.bf16.mxu0 0
        %1037 = vmatpush2.bf16.msra.mxu0 0
        %1038 = vmatprep.subr.bf16.mxu0 0
        %1039 = vmatpush2.bf16.msra.mxu0 0
        %1040 = vmatprep.subr.bf16.mxu0 0
        %1041 = vmatpush2.bf16.msra.mxu0 0
        %1042 = vmatprep.subr.bf16.mxu0 0
        %1043 = vmatpush2.bf16.msra.mxu0 0
        %1044 = vmatprep.subr.bf16.mxu0 0
        %1045 = vmatpush2.bf16.msra.mxu0 0
        %1046 = vmatprep.subr.bf16.mxu0 0
        %1047 = vmatpush2.bf16.msra.mxu0 0
        %1048 = vmatprep.mubr.bf16.mxu0 0
        %1049 = vmatmul.mubr.bf16.gmra.mxu0 %v578
        %v1050 = vpop.f32.mrf.mxu0
        %v1051 = vadd.f32 0.0, %v1050
        %v1052 = vpop.f32.mrf.mxu0
        %v1053 = vpop.f32.mrf.mxu0
        %v1054 = vpop.f32.mrf.mxu0
        %1055 = vdwg.mxu0
        %v1064 = vunpack.c.l.b16 %v975
        %v1065 = vunpack.c.l.b16 %v976
        %v1066 = vunpack.c.l.b16 %v977
        %v1067 = vunpack.c.l.b16 %v978
        %v1068 = vunpack.c.l.b16 %v979
        %v1069 = vunpack.c.l.b16 %v980
        %v1070 = vunpack.c.l.b16 %v981
        %v1071 = vunpack.c.l.b16 %v982
        %v1072 = vpack.c.b16 %v1065, %v1064
        %v1073 = vpack.c.b16 %v1067, %v1066
        %v1074 = vpack.c.b16 %v1069, %v1068
        %v1075 = vpack.c.b16 %v1071, %v1070
        %1080 = vmatprep.subr.bf16.mxu0 0
        %1081 = vmatpush1.bf16.msra.mxu0 0
        %1082 = vmatprep.subr.bf16.mxu0 0
        %1083 = vmatpush1.bf16.msra.mxu0 0
        %1084 = vmatprep.subr.bf16.mxu0 0
        %1085 = vmatpush1.bf16.msra.mxu0 0
        %1086 = vmatprep.subr.bf16.mxu0 0
        %1087 = vmatpush1.bf16.msra.mxu0 0
        %1088 = vmatprep.subr.bf16.mxu0 0
        %1089 = vmatpush1.bf16.msra.mxu0 %v1075
        %1090 = vmatprep.subr.bf16.mxu0 0
        %1091 = vmatpush1.bf16.msra.mxu0 %v1074
        %1092 = vmatprep.subr.bf16.mxu0 0
        %1093 = vmatpush1.bf16.msra.mxu0 %v1073
        %1094 = vmatprep.subr.bf16.mxu0 0
        %1095 = vmatpush1.bf16.msra.mxu0 %v1072
        %1096 = vmatprep.subr.bf16.mxu0 0
        %1097 = vmatpush2.bf16.msra.mxu0 0
        %1098 = vmatprep.subr.bf16.mxu0 0
        %1099 = vmatpush2.bf16.msra.mxu0 0
        %1100 = vmatprep.subr.bf16.mxu0 0
        %1101 = vmatpush2.bf16.msra.mxu0 0
        %1102 = vmatprep.subr.bf16.mxu0 0
        %1103 = vmatpush2.bf16.msra.mxu0 0
        %1104 = vmatprep.subr.bf16.mxu0 0
        %1105 = vmatpush2.bf16.msra.mxu0 0
        %1106 = vmatprep.subr.bf16.mxu0 0
        %1107 = vmatpush2.bf16.msra.mxu0 0
        %1108 = vmatprep.subr.bf16.mxu0 0
        %1109 = vmatpush2.bf16.msra.mxu0 0
        %1110 = vmatprep.subr.bf16.mxu0 0
        %1111 = vmatpush2.bf16.msra.mxu0 0
        %1112 = vmatprep.mubr.bf16.mxu0 0
        %1113 = vmatmul.mubr.bf16.gmra.mxu0 %v489
        %v1114 = vpop.f32.mrf.mxu0
        %v1115 = vadd.f32 %v1051, %v1114
        %v1116 = vpop.f32.mrf.mxu0
        %v1117 = vpop.f32.mrf.mxu0
        %v1118 = vpop.f32.mrf.mxu0
        %1119 = vdwg.mxu0
        %s1120 = scalar_lea.vmem %s1, 320
        %v1121 = vld [vmem:[%s1120] sm:$0xf]
        %v1122 = vld [vmem:[%s1120 + $0x4] sm:$0xf]
        %v1123 = vld [vmem:[%s1120 + $0x8] sm:$0xf]
        %v1124 = vld [vmem:[%s1120 + $0xc] sm:$0xf]
        %v1125 = vld [vmem:[%s1120 + $0x10] sm:$0xf]
        %v1126 = vld [vmem:[%s1120 + $0x14] sm:$0xf]
        %v1127 = vld [vmem:[%s1120 + $0x18] sm:$0xf]
        %v1128 = vld [vmem:[%s1120 + $0x1c] sm:$0xf]
        %v1137 = vunpack.c.l.b16 %v1121
        %v1138 = vunpack.c.l.b16 %v1122
        %v1139 = vunpack.c.l.b16 %v1123
        %v1140 = vunpack.c.l.b16 %v1124
        %v1141 = vunpack.c.l.b16 %v1125
        %v1142 = vunpack.c.l.b16 %v1126
        %v1143 = vunpack.c.l.b16 %v1127
        %v1144 = vunpack.c.l.b16 %v1128
        %v1145 = vpack.c.b16 %v1138, %v1137
        %v1146 = vpack.c.b16 %v1140, %v1139
        %v1147 = vpack.c.b16 %v1142, %v1141
        %v1148 = vpack.c.b16 %v1144, %v1143
        %v1154 = vsel %vm344, %v288, 0
        %1156 = vmatprep.subr.bf16.mxu0 0
        %1157 = vmatpush1.bf16.msra.mxu0 0
        %1158 = vmatprep.subr.bf16.mxu0 0
        %1159 = vmatpush1.bf16.msra.mxu0 0
        %1160 = vmatprep.subr.bf16.mxu0 0
        %1161 = vmatpush1.bf16.msra.mxu0 0
        %1162 = vmatprep.subr.bf16.mxu0 0
        %1163 = vmatpush1.bf16.msra.mxu0 0
        %1164 = vmatprep.subr.bf16.mxu0 0
        %1165 = vmatpush1.bf16.msra.mxu0 %v1148
        %1166 = vmatprep.subr.bf16.mxu0 0
        %1167 = vmatpush1.bf16.msra.mxu0 %v1147
        %1168 = vmatprep.subr.bf16.mxu0 0
        %1169 = vmatpush1.bf16.msra.mxu0 %v1146
        %1170 = vmatprep.subr.bf16.mxu0 0
        %1171 = vmatpush1.bf16.msra.mxu0 %v1145
        %1172 = vmatprep.subr.bf16.mxu0 0
        %1173 = vmatpush2.bf16.msra.mxu0 0
        %1174 = vmatprep.subr.bf16.mxu0 0
        %1175 = vmatpush2.bf16.msra.mxu0 0
        %1176 = vmatprep.subr.bf16.mxu0 0
        %1177 = vmatpush2.bf16.msra.mxu0 0
        %1178 = vmatprep.subr.bf16.mxu0 0
        %1179 = vmatpush2.bf16.msra.mxu0 0
        %1180 = vmatprep.subr.bf16.mxu0 0
        %1181 = vmatpush2.bf16.msra.mxu0 0
        %1182 = vmatprep.subr.bf16.mxu0 0
        %1183 = vmatpush2.bf16.msra.mxu0 0
        %1184 = vmatprep.subr.bf16.mxu0 0
        %1185 = vmatpush2.bf16.msra.mxu0 0
        %1186 = vmatprep.subr.bf16.mxu0 0
        %1187 = vmatpush2.bf16.msra.mxu0 0
        %1188 = vmatprep.mubr.bf16.mxu0 0
        %1189 = vmatmul.mubr.bf16.gmra.mxu0 %v1154
        %v1190 = vpop.f32.mrf.mxu0
        %v1191 = vadd.f32 0.0, %v1190
        %v1192 = vpop.f32.mrf.mxu0
        %v1193 = vpop.f32.mrf.mxu0
        %v1194 = vpop.f32.mrf.mxu0
        %1195 = vdwg.mxu0
        %v1196 = vadd.f32 %v1115, %v1191
        %s1197 = scalar_lea.vmem %s1, 352
        %v1198 = vld [vmem:[%s1197] sm:$0xf]
        %v1199 = vld [vmem:[%s1197 + $0x4] sm:$0xf]
        %v1200 = vld [vmem:[%s1197 + $0x8] sm:$0xf]
        %v1201 = vld [vmem:[%s1197 + $0xc] sm:$0xf]
        %v1202 = vld [vmem:[%s1197 + $0x10] sm:$0xf]
        %v1203 = vld [vmem:[%s1197 + $0x14] sm:$0xf]
        %v1204 = vld [vmem:[%s1197 + $0x18] sm:$0xf]
        %v1205 = vld [vmem:[%s1197 + $0x1c] sm:$0xf]
        %v1208 = vunpack.c.l.b16 %v288
        %v1209 = vunpack.c.l.b16 %v289
        %v1210 = vpack.c.b16 %v1209, %v1208
        %v1212 = vshrl.u32 %v1210, 16
        %v1214 = vshll.u32 %v1210, 16
        %v1216 = vrot.slane %v1214, 1
        %v1217 = vor.u32 %v1212, %v1216
        %v1226 = vunpack.c.l.b16 %v1198
        %v1227 = vunpack.c.l.b16 %v1199
        %v1228 = vunpack.c.l.b16 %v1200
        %v1229 = vunpack.c.l.b16 %v1201
        %v1230 = vunpack.c.l.b16 %v1202
        %v1231 = vunpack.c.l.b16 %v1203
        %v1232 = vunpack.c.l.b16 %v1204
        %v1233 = vunpack.c.l.b16 %v1205
        %v1234 = vpack.c.b16 %v1227, %v1226
        %v1235 = vpack.c.b16 %v1229, %v1228
        %v1236 = vpack.c.b16 %v1231, %v1230
        %v1237 = vpack.c.b16 %v1233, %v1232
        %v1243 = vsel %vm344, %v1217, 0
        %1245 = vmatprep.subr.bf16.mxu0 0
        %1246 = vmatpush1.bf16.msra.mxu0 0
        %1247 = vmatprep.subr.bf16.mxu0 0
        %1248 = vmatpush1.bf16.msra.mxu0 0
        %1249 = vmatprep.subr.bf16.mxu0 0
        %1250 = vmatpush1.bf16.msra.mxu0 0
        %1251 = vmatprep.subr.bf16.mxu0 0
        %1252 = vmatpush1.bf16.msra.mxu0 0
        %1253 = vmatprep.subr.bf16.mxu0 0
        %1254 = vmatpush1.bf16.msra.mxu0 %v1237
        %1255 = vmatprep.subr.bf16.mxu0 0
        %1256 = vmatpush1.bf16.msra.mxu0 %v1236
        %1257 = vmatprep.subr.bf16.mxu0 0
        %1258 = vmatpush1.bf16.msra.mxu0 %v1235
        %1259 = vmatprep.subr.bf16.mxu0 0
        %1260 = vmatpush1.bf16.msra.mxu0 %v1234
        %1261 = vmatprep.subr.bf16.mxu0 0
        %1262 = vmatpush2.bf16.msra.mxu0 0
        %1263 = vmatprep.subr.bf16.mxu0 0
        %1264 = vmatpush2.bf16.msra.mxu0 0
        %1265 = vmatprep.subr.bf16.mxu0 0
        %1266 = vmatpush2.bf16.msra.mxu0 0
        %1267 = vmatprep.subr.bf16.mxu0 0
        %1268 = vmatpush2.bf16.msra.mxu0 0
        %1269 = vmatprep.subr.bf16.mxu0 0
        %1270 = vmatpush2.bf16.msra.mxu0 0
        %1271 = vmatprep.subr.bf16.mxu0 0
        %1272 = vmatpush2.bf16.msra.mxu0 0
        %1273 = vmatprep.subr.bf16.mxu0 0
        %1274 = vmatpush2.bf16.msra.mxu0 0
        %1275 = vmatprep.subr.bf16.mxu0 0
        %1276 = vmatpush2.bf16.msra.mxu0 0
        %1277 = vmatprep.mubr.bf16.mxu0 0
        %1278 = vmatmul.mubr.bf16.gmra.mxu0 %v1243
        %v1279 = vpop.f32.mrf.mxu0
        %v1280 = vadd.f32 0.0, %v1279
        %v1281 = vpop.f32.mrf.mxu0
        %v1282 = vpop.f32.mrf.mxu0
        %v1283 = vpop.f32.mrf.mxu0
        %1284 = vdwg.mxu0
        %v1285 = vadd.f32 %v1196, %v1280
        %v1286 = vld [vmem:[%s252] sm:$0x1]
        %v1287 = vrot.slane %v1285, 4
        %v1288 = vadd.f32 %v1285, %v1287
        %v1289 = vrot.slane %v1288, 2
        %v1290 = vadd.f32 %v1288, %v1289
        %v1291 = vrot.slane %v1290, 1
        %v1292 = vadd.f32 %v1290, %v1291
        %v1293 = vadd.f32 %v1286, %v1292
        %1294 = vst [vmem:[%s252] sm:$0x1] %v1293
        %v1295 = vld [vmem:[%s259] sm:$0x1]
        %v1296 = vmul.f32 %v1285, %v1285
        %v1297 = vrot.slane %v1296, 4
        %v1298 = vadd.f32 %v1296, %v1297
        %v1299 = vrot.slane %v1298, 2
        %v1300 = vadd.f32 %v1298, %v1299
        %v1301 = vrot.slane %v1300, 1
        %v1302 = vadd.f32 %v1300, %v1301
        %v1303 = vadd.f32 %v1295, %v1302
        %1304 = vst [vmem:[%s259] sm:$0x1] %v1303
        %v1305 = vpack.c.bf16 %v1285, %v1285
        %1306 = vst [vmem:[%s643 + $0x8] sm:$0xf] %v1305
        %s1307 = scalar_lea.vmem %s1, 384
        %v1308 = vld [vmem:[%s1307] sm:$0xf]
        %v1309 = vld [vmem:[%s1307 + $0x4] sm:$0xf]
        %v1310 = vld [vmem:[%s1307 + $0x8] sm:$0xf]
        %v1311 = vld [vmem:[%s1307 + $0xc] sm:$0xf]
        %v1312 = vld [vmem:[%s1307 + $0x10] sm:$0xf]
        %v1313 = vld [vmem:[%s1307 + $0x14] sm:$0xf]
        %v1314 = vld [vmem:[%s1307 + $0x18] sm:$0xf]
        %v1315 = vld [vmem:[%s1307 + $0x1c] sm:$0xf]
        %s1316 = scalar_lea.vmem %s1, 416
        %v1317 = vld [vmem:[%s1316] sm:$0xf]
        %v1318 = vld [vmem:[%s1316 + $0x4] sm:$0xf]
        %v1319 = vld [vmem:[%s1316 + $0x8] sm:$0xf]
        %v1320 = vld [vmem:[%s1316 + $0xc] sm:$0xf]
        %v1321 = vld [vmem:[%s1316 + $0x10] sm:$0xf]
        %v1322 = vld [vmem:[%s1316 + $0x14] sm:$0xf]
        %v1323 = vld [vmem:[%s1316 + $0x18] sm:$0xf]
        %v1324 = vld [vmem:[%s1316 + $0x1c] sm:$0xf]
        %v1333 = vunpack.c.l.b16 %v1317
        %v1334 = vunpack.c.l.b16 %v1318
        %v1335 = vunpack.c.l.b16 %v1319
        %v1336 = vunpack.c.l.b16 %v1320
        %v1337 = vunpack.c.l.b16 %v1321
        %v1338 = vunpack.c.l.b16 %v1322
        %v1339 = vunpack.c.l.b16 %v1323
        %v1340 = vunpack.c.l.b16 %v1324
        %v1341 = vpack.c.b16 %v1334, %v1333
        %v1342 = vpack.c.b16 %v1336, %v1335
        %v1343 = vpack.c.b16 %v1338, %v1337
        %v1344 = vpack.c.b16 %v1340, %v1339
        %1349 = vmatprep.subr.bf16.mxu0 0
        %1350 = vmatpush1.bf16.msra.mxu0 0
        %1351 = vmatprep.subr.bf16.mxu0 0
        %1352 = vmatpush1.bf16.msra.mxu0 0
        %1353 = vmatprep.subr.bf16.mxu0 0
        %1354 = vmatpush1.bf16.msra.mxu0 0
        %1355 = vmatprep.subr.bf16.mxu0 0
        %1356 = vmatpush1.bf16.msra.mxu0 0
        %1357 = vmatprep.subr.bf16.mxu0 0
        %1358 = vmatpush1.bf16.msra.mxu0 %v1344
        %1359 = vmatprep.subr.bf16.mxu0 0
        %1360 = vmatpush1.bf16.msra.mxu0 %v1343
        %1361 = vmatprep.subr.bf16.mxu0 0
        %1362 = vmatpush1.bf16.msra.mxu0 %v1342
        %1363 = vmatprep.subr.bf16.mxu0 0
        %1364 = vmatpush1.bf16.msra.mxu0 %v1341
        %1365 = vmatprep.subr.bf16.mxu0 0
        %1366 = vmatpush2.bf16.msra.mxu0 0
        %1367 = vmatprep.subr.bf16.mxu0 0
        %1368 = vmatpush2.bf16.msra.mxu0 0
        %1369 = vmatprep.subr.bf16.mxu0 0
        %1370 = vmatpush2.bf16.msra.mxu0 0
        %1371 = vmatprep.subr.bf16.mxu0 0
        %1372 = vmatpush2.bf16.msra.mxu0 0
        %1373 = vmatprep.subr.bf16.mxu0 0
        %1374 = vmatpush2.bf16.msra.mxu0 0
        %1375 = vmatprep.subr.bf16.mxu0 0
        %1376 = vmatpush2.bf16.msra.mxu0 0
        %1377 = vmatprep.subr.bf16.mxu0 0
        %1378 = vmatpush2.bf16.msra.mxu0 0
        %1379 = vmatprep.subr.bf16.mxu0 0
        %1380 = vmatpush2.bf16.msra.mxu0 0
        %1381 = vmatprep.mubr.bf16.mxu0 0
        %1382 = vmatmul.mubr.bf16.gmra.mxu0 %v910
        %v1383 = vpop.f32.mrf.mxu0
        %v1384 = vadd.f32 0.0, %v1383
        %v1385 = vpop.f32.mrf.mxu0
        %v1386 = vpop.f32.mrf.mxu0
        %v1387 = vpop.f32.mrf.mxu0
        %1388 = vdwg.mxu0
        %v1397 = vunpack.c.l.b16 %v1308
        %v1398 = vunpack.c.l.b16 %v1309
        %v1399 = vunpack.c.l.b16 %v1310
        %v1400 = vunpack.c.l.b16 %v1311
        %v1401 = vunpack.c.l.b16 %v1312
        %v1402 = vunpack.c.l.b16 %v1313
        %v1403 = vunpack.c.l.b16 %v1314
        %v1404 = vunpack.c.l.b16 %v1315
        %v1405 = vpack.c.b16 %v1398, %v1397
        %v1406 = vpack.c.b16 %v1400, %v1399
        %v1407 = vpack.c.b16 %v1402, %v1401
        %v1408 = vpack.c.b16 %v1404, %v1403
        %1413 = vmatprep.subr.bf16.mxu0 0
        %1414 = vmatpush1.bf16.msra.mxu0 0
        %1415 = vmatprep.subr.bf16.mxu0 0
        %1416 = vmatpush1.bf16.msra.mxu0 0
        %1417 = vmatprep.subr.bf16.mxu0 0
        %1418 = vmatpush1.bf16.msra.mxu0 0
        %1419 = vmatprep.subr.bf16.mxu0 0
        %1420 = vmatpush1.bf16.msra.mxu0 0
        %1421 = vmatprep.subr.bf16.mxu0 0
        %1422 = vmatpush1.bf16.msra.mxu0 %v1408
        %1423 = vmatprep.subr.bf16.mxu0 0
        %1424 = vmatpush1.bf16.msra.mxu0 %v1407
        %1425 = vmatprep.subr.bf16.mxu0 0
        %1426 = vmatpush1.bf16.msra.mxu0 %v1406
        %1427 = vmatprep.subr.bf16.mxu0 0
        %1428 = vmatpush1.bf16.msra.mxu0 %v1405
        %1429 = vmatprep.subr.bf16.mxu0 0
        %1430 = vmatpush2.bf16.msra.mxu0 0
        %1431 = vmatprep.subr.bf16.mxu0 0
        %1432 = vmatpush2.bf16.msra.mxu0 0
        %1433 = vmatprep.subr.bf16.mxu0 0
        %1434 = vmatpush2.bf16.msra.mxu0 0
        %1435 = vmatprep.subr.bf16.mxu0 0
        %1436 = vmatpush2.bf16.msra.mxu0 0
        %1437 = vmatprep.subr.bf16.mxu0 0
        %1438 = vmatpush2.bf16.msra.mxu0 0
        %1439 = vmatprep.subr.bf16.mxu0 0
        %1440 = vmatpush2.bf16.msra.mxu0 0
        %1441 = vmatprep.subr.bf16.mxu0 0
        %1442 = vmatpush2.bf16.msra.mxu0 0
        %1443 = vmatprep.subr.bf16.mxu0 0
        %1444 = vmatpush2.bf16.msra.mxu0 0
        %1445 = vmatprep.mubr.bf16.mxu0 0
        %1446 = vmatmul.mubr.bf16.gmra.mxu0 %v578
        %v1447 = vpop.f32.mrf.mxu0
        %v1448 = vadd.f32 %v1384, %v1447
        %v1449 = vpop.f32.mrf.mxu0
        %v1450 = vpop.f32.mrf.mxu0
        %v1451 = vpop.f32.mrf.mxu0
        %1452 = vdwg.mxu0
        %s1453 = scalar_lea.vmem %s1, 448
        %v1454 = vld [vmem:[%s1453] sm:$0xf]
        %v1455 = vld [vmem:[%s1453 + $0x4] sm:$0xf]
        %v1456 = vld [vmem:[%s1453 + $0x8] sm:$0xf]
        %v1457 = vld [vmem:[%s1453 + $0xc] sm:$0xf]
        %v1458 = vld [vmem:[%s1453 + $0x10] sm:$0xf]
        %v1459 = vld [vmem:[%s1453 + $0x14] sm:$0xf]
        %v1460 = vld [vmem:[%s1453 + $0x18] sm:$0xf]
        %v1461 = vld [vmem:[%s1453 + $0x1c] sm:$0xf]
        %v1470 = vunpack.c.l.b16 %v1454
        %v1471 = vunpack.c.l.b16 %v1455
        %v1472 = vunpack.c.l.b16 %v1456
        %v1473 = vunpack.c.l.b16 %v1457
        %v1474 = vunpack.c.l.b16 %v1458
        %v1475 = vunpack.c.l.b16 %v1459
        %v1476 = vunpack.c.l.b16 %v1460
        %v1477 = vunpack.c.l.b16 %v1461
        %v1478 = vpack.c.b16 %v1471, %v1470
        %v1479 = vpack.c.b16 %v1473, %v1472
        %v1480 = vpack.c.b16 %v1475, %v1474
        %v1481 = vpack.c.b16 %v1477, %v1476
        %1486 = vmatprep.subr.bf16.mxu0 0
        %1487 = vmatpush1.bf16.msra.mxu0 0
        %1488 = vmatprep.subr.bf16.mxu0 0
        %1489 = vmatpush1.bf16.msra.mxu0 0
        %1490 = vmatprep.subr.bf16.mxu0 0
        %1491 = vmatpush1.bf16.msra.mxu0 0
        %1492 = vmatprep.subr.bf16.mxu0 0
        %1493 = vmatpush1.bf16.msra.mxu0 0
        %1494 = vmatprep.subr.bf16.mxu0 0
        %1495 = vmatpush1.bf16.msra.mxu0 %v1481
        %1496 = vmatprep.subr.bf16.mxu0 0
        %1497 = vmatpush1.bf16.msra.mxu0 %v1480
        %1498 = vmatprep.subr.bf16.mxu0 0
        %1499 = vmatpush1.bf16.msra.mxu0 %v1479
        %1500 = vmatprep.subr.bf16.mxu0 0
        %1501 = vmatpush1.bf16.msra.mxu0 %v1478
        %1502 = vmatprep.subr.bf16.mxu0 0
        %1503 = vmatpush2.bf16.msra.mxu0 0
        %1504 = vmatprep.subr.bf16.mxu0 0
        %1505 = vmatpush2.bf16.msra.mxu0 0
        %1506 = vmatprep.subr.bf16.mxu0 0
        %1507 = vmatpush2.bf16.msra.mxu0 0
        %1508 = vmatprep.subr.bf16.mxu0 0
        %1509 = vmatpush2.bf16.msra.mxu0 0
        %1510 = vmatprep.subr.bf16.mxu0 0
        %1511 = vmatpush2.bf16.msra.mxu0 0
        %1512 = vmatprep.subr.bf16.mxu0 0
        %1513 = vmatpush2.bf16.msra.mxu0 0
        %1514 = vmatprep.subr.bf16.mxu0 0
        %1515 = vmatpush2.bf16.msra.mxu0 0
        %1516 = vmatprep.subr.bf16.mxu0 0
        %1517 = vmatpush2.bf16.msra.mxu0 0
        %1518 = vmatprep.mubr.bf16.mxu0 0
        %1519 = vmatmul.mubr.bf16.gmra.mxu0 %v1243
        %v1520 = vpop.f32.mrf.mxu0
        %v1521 = vadd.f32 0.0, %v1520
        %v1522 = vpop.f32.mrf.mxu0
        %v1523 = vpop.f32.mrf.mxu0
        %v1524 = vpop.f32.mrf.mxu0
        %1525 = vdwg.mxu0
        %v1526 = vadd.f32 %v1448, %v1521
        %s1527 = scalar_lea.vmem %s1, 480
        %v1528 = vld [vmem:[%s1527] sm:$0xf]
        %v1529 = vld [vmem:[%s1527 + $0x4] sm:$0xf]
        %v1530 = vld [vmem:[%s1527 + $0x8] sm:$0xf]
        %v1531 = vld [vmem:[%s1527 + $0xc] sm:$0xf]
        %v1532 = vld [vmem:[%s1527 + $0x10] sm:$0xf]
        %v1533 = vld [vmem:[%s1527 + $0x14] sm:$0xf]
        %v1534 = vld [vmem:[%s1527 + $0x18] sm:$0xf]
        %v1535 = vld [vmem:[%s1527 + $0x1c] sm:$0xf]
        %v1537 = vunpack.c.l.b16 %v290
        %v1538 = vpack.c.b16 %v1209, %v1537
        %v1539 = vrot.slane %v1538, 1
        %v1548 = vunpack.c.l.b16 %v1528
        %v1549 = vunpack.c.l.b16 %v1529
        %v1550 = vunpack.c.l.b16 %v1530
        %v1551 = vunpack.c.l.b16 %v1531
        %v1552 = vunpack.c.l.b16 %v1532
        %v1553 = vunpack.c.l.b16 %v1533
        %v1554 = vunpack.c.l.b16 %v1534
        %v1555 = vunpack.c.l.b16 %v1535
        %v1556 = vpack.c.b16 %v1549, %v1548
        %v1557 = vpack.c.b16 %v1551, %v1550
        %v1558 = vpack.c.b16 %v1553, %v1552
        %v1559 = vpack.c.b16 %v1555, %v1554
        %v1565 = vsel %vm344, %v1539, 0
        %1567 = vmatprep.subr.bf16.mxu0 0
        %1568 = vmatpush1.bf16.msra.mxu0 0
        %1569 = vmatprep.subr.bf16.mxu0 0
        %1570 = vmatpush1.bf16.msra.mxu0 0
        %1571 = vmatprep.subr.bf16.mxu0 0
        %1572 = vmatpush1.bf16.msra.mxu0 0
        %1573 = vmatprep.subr.bf16.mxu0 0
        %1574 = vmatpush1.bf16.msra.mxu0 0
        %1575 = vmatprep.subr.bf16.mxu0 0
        %1576 = vmatpush1.bf16.msra.mxu0 %v1559
        %1577 = vmatprep.subr.bf16.mxu0 0
        %1578 = vmatpush1.bf16.msra.mxu0 %v1558
        %1579 = vmatprep.subr.bf16.mxu0 0
        %1580 = vmatpush1.bf16.msra.mxu0 %v1557
        %1581 = vmatprep.subr.bf16.mxu0 0
        %1582 = vmatpush1.bf16.msra.mxu0 %v1556
        %1583 = vmatprep.subr.bf16.mxu0 0
        %1584 = vmatpush2.bf16.msra.mxu0 0
        %1585 = vmatprep.subr.bf16.mxu0 0
        %1586 = vmatpush2.bf16.msra.mxu0 0
        %1587 = vmatprep.subr.bf16.mxu0 0
        %1588 = vmatpush2.bf16.msra.mxu0 0
        %1589 = vmatprep.subr.bf16.mxu0 0
        %1590 = vmatpush2.bf16.msra.mxu0 0
        %1591 = vmatprep.subr.bf16.mxu0 0
        %1592 = vmatpush2.bf16.msra.mxu0 0
        %1593 = vmatprep.subr.bf16.mxu0 0
        %1594 = vmatpush2.bf16.msra.mxu0 0
        %1595 = vmatprep.subr.bf16.mxu0 0
        %1596 = vmatpush2.bf16.msra.mxu0 0
        %1597 = vmatprep.subr.bf16.mxu0 0
        %1598 = vmatpush2.bf16.msra.mxu0 0
        %1599 = vmatprep.mubr.bf16.mxu0 0
        %1600 = vmatmul.mubr.bf16.gmra.mxu0 %v1565
        %v1601 = vpop.f32.mrf.mxu0
        %v1602 = vadd.f32 0.0, %v1601
        %v1603 = vpop.f32.mrf.mxu0
        %v1604 = vpop.f32.mrf.mxu0
        %v1605 = vpop.f32.mrf.mxu0
        %1606 = vdwg.mxu0
        %v1607 = vadd.f32 %v1526, %v1602
        %v1608 = vld [vmem:[%s252] sm:$0x1]
        %v1609 = vrot.slane %v1607, 4
        %v1610 = vadd.f32 %v1607, %v1609
        %v1611 = vrot.slane %v1610, 2
        %v1612 = vadd.f32 %v1610, %v1611
        %v1613 = vrot.slane %v1612, 1
        %v1614 = vadd.f32 %v1612, %v1613
        %v1615 = vadd.f32 %v1608, %v1614
        %1616 = vst [vmem:[%s252] sm:$0x1] %v1615
        %v1617 = vld [vmem:[%s259] sm:$0x1]
        %v1618 = vmul.f32 %v1607, %v1607
        %v1619 = vrot.slane %v1618, 4
        %v1620 = vadd.f32 %v1618, %v1619
        %v1621 = vrot.slane %v1620, 2
        %v1622 = vadd.f32 %v1620, %v1621
        %v1623 = vrot.slane %v1622, 1
        %v1624 = vadd.f32 %v1622, %v1623
        %v1625 = vadd.f32 %v1617, %v1624
        %1626 = vst [vmem:[%s259] sm:$0x1] %v1625
        %v1627 = vpack.c.bf16 %v1607, %v1607
        %1628 = vst [vmem:[%s643 + $0xc] sm:$0xf] %v1627
      $region33: #{wgan_generator_forward.6} parent=27 // loop_footer
        %s269 = sadd.s32 1, %s265
      $region34: #{wgan_generator_forward.6} parent=27 // loop_footer_branch
        %264 = sbr.rel target = $region30
      $region35: #{wgan_generator_forward.6} parent=27 // loop_exit
        _
      %s1629 = smul.u32 4, %s21
      %p1630 = scmp.lt.s32.totalorder %s20, 1
      %s1631 = scalar_select %p1630, %s20, 1
      %p1632 = scmp.lt.s32.totalorder %s1629, 7
      %s1633 = scalar_select %p1632, %s1629, 7
      %s1634 = smul.addr %s1633, 4
      %s1635 = smul.addr %s1631, 32
      %s1636 = sadd.s32 %s1634, %s1635
      %s1637 = smul.addr %s1636, 4
      %s1638 = scalar_lea.vmem %s2, %s1637
      %p1639 = scmp.lt.s32.totalorder %s20, 1
      %s1640 = scalar_select %p1639, %s20, 1
      %p1641 = scmp.lt.s32.totalorder %s21, 1
      %s1642 = scalar_select %p1641, %s21, 1
      %s1643 = smul.addr %s1640, 2
      %s1644 = sadd.s32 %s1642, %s1643
      %s1645 = scalar_lea.vmem %s3, %s1644
      %p1646 = scmp.lt.s32.totalorder %s20, 1
      %s1647 = scalar_select %p1646, %s20, 1
      %p1648 = scmp.lt.s32.totalorder %s21, 1
      %s1649 = scalar_select %p1648, %s21, 1
      %s1650 = smul.addr %s1647, 2
      %s1651 = sadd.s32 %s1649, %s1650
      %s1652 = scalar_lea.vmem %s4, %s1651
      // Predicated region
      $region36: #{wgan_generator_forward.6} parent=27 // pred_check
        %p1653 = pneg %p95
      $region37: #{wgan_generator_forward.6} parent=27 // pred_check_branch
        %1655 = sbr.rel (%p1653) target = $region39
      $region38: #{wgan_generator_forward.6} parent=27 // pred_region
        %s1656 = smul.u32 4, %s21
      $region39: #{wgan_generator_forward.6} parent=27 // pred_fallthru
        _
      // Predicated region
      $region40: #{wgan_generator_forward.6} parent=27 // pred_check
        %p1657 = pneg %p123
      $region41: #{wgan_generator_forward.6} parent=27 // pred_check_branch
        %1659 = sbr.rel (%p1657) target = $region43
      $region42: #{wgan_generator_forward.6} parent=27 // pred_region
        _
      $region43: #{wgan_generator_forward.6} parent=27 // pred_fallthru
        _
      // Predicated region
      $region44: #{wgan_generator_forward.6} parent=27 // pred_check
        %p1660 = pneg %p151
      $region45: #{wgan_generator_forward.6} parent=27 // pred_check_branch
        %1662 = sbr.rel (%p1660) target = $region47
      $region46: #{wgan_generator_forward.6} parent=27 // pred_region
        _
      $region47: #{wgan_generator_forward.6} parent=27 // pred_fallthru
        _
    $region28: #{wgan_generator_forward.6} parent=5 // pred_fallthru
      _
    %p1663 = scmp.le.s32.totalorder 2, %s11
    // Predicated region
    $region48: #{wgan_generator_forward.6} parent=5 // pred_check
      %p1664 = pneg %p1663
    $region49: #{wgan_generator_forward.6} parent=5 // pred_check_branch
      %1666 = sbr.rel (%p1664) target = $region51
    $region50: #{wgan_generator_forward.6} parent=5 // pred_region
      %s1667 = ssub.s32 %s11, 2
      // Predicated region
      $region52: #{wgan_generator_forward.6} parent=50 // pred_check
        %p1668 = pneg %p101
      $region53: #{wgan_generator_forward.6} parent=50 // pred_check_branch
        %1670 = sbr.rel (%p1668) target = $region55
      $region54: #{wgan_generator_forward.6} parent=50 // pred_region
        %s1671 = smul.u32 4, %s23
        %p1672 = scmp.lt.s32.totalorder %s22, 1
        %s1673 = scalar_select %p1672, %s22, 1
        %p1674 = scmp.lt.s32.totalorder %s1671, 7
        %s1675 = scalar_select %p1674, %s1671, 7
        %s1676 = smul.addr %s1675, 4
        %s1677 = smul.addr %s1673, 32
        %s1678 = sadd.s32 %s1676, %s1677
        %s1679 = smul.addr %s1678, 4
        %s1680 = scalar_lea.vmem %s2, %s1679
      $region55: #{wgan_generator_forward.6} parent=50 // pred_fallthru
        _
      // Predicated region
      $region56: #{wgan_generator_forward.6} parent=50 // pred_check
        %p1681 = pneg %p129
      $region57: #{wgan_generator_forward.6} parent=50 // pred_check_branch
        %1683 = sbr.rel (%p1681) target = $region59
      $region58: #{wgan_generator_forward.6} parent=50 // pred_region
        %p1684 = scmp.lt.s32.totalorder %s22, 1
        %s1685 = scalar_select %p1684, %s22, 1
        %p1686 = scmp.lt.s32.totalorder %s23, 1
        %s1687 = scalar_select %p1686, %s23, 1
        %s1688 = smul.addr %s1685, 2
        %s1689 = sadd.s32 %s1687, %s1688
        %s1690 = scalar_lea.vmem %s3, %s1689
      $region59: #{wgan_generator_forward.6} parent=50 // pred_fallthru
        _
      // Predicated region
      $region60: #{wgan_generator_forward.6} parent=50 // pred_check
        %p1691 = pneg %p157
      $region61: #{wgan_generator_forward.6} parent=50 // pred_check_branch
        %1693 = sbr.rel (%p1691) target = $region63
      $region62: #{wgan_generator_forward.6} parent=50 // pred_region
        %p1694 = scmp.lt.s32.totalorder %s22, 1
        %s1695 = scalar_select %p1694, %s22, 1
        %p1696 = scmp.lt.s32.totalorder %s23, 1
        %s1697 = scalar_select %p1696, %s23, 1
        %s1698 = smul.addr %s1695, 2
        %s1699 = sadd.s32 %s1697, %s1698
        %s1700 = scalar_lea.vmem %s4, %s1699
      $region63: #{wgan_generator_forward.6} parent=50 // pred_fallthru
        _
    $region51: #{wgan_generator_forward.6} parent=5 // pred_fallthru
      _
  $region6: #{wgan_generator_forward.6} parent=0 // loop_footer
    %s15 = sadd.s32 1, %s11
  $region7: #{wgan_generator_forward.6} parent=0 // loop_footer_branch
    %10 = sbr.rel target = $region3
  $region8: #{wgan_generator_forward.6} parent=0 // loop_exit
    _

</llo_original>
